<compile_context>
chip_gen: v6e
topology: v6e:2x2x1
jax: 0.10.0
libtpu: 0.0.40
codegen_flags: <defaults>
</compile_context>

<pallas_src>
import functools

import jax
import jax.numpy as jnp
import numpy as np
from jax.experimental import pallas as pl
from jax.experimental.pallas import tpu as pltpu


# ----------------------------------------------------------------------------
# Phase-plane convention.
#
# A 4x4 / stride-2 / pad-1 layer with input (Hi, Wi) reads the zero-padded input
# xp (Hi+2, Wi+2).  We keep xp split into 4 "phase planes"
#       plane(pi, pj)[a, b, :] = xp[2a + pi, 2b + pj, :]
# stacked along the row axis (plane p = 2*pi + pj occupies rows [p*Hh, (p+1)*Hh),
# Hh = Hi/2 + 1), so that tap (ki, kj) of every output pixel is a *contiguous*
# window:   tap(ki,kj) @ output (h,w)  ==  plane(ki%2, kj%2)[h + ki//2, w + kj//2].
# ----------------------------------------------------------------------------
def _im2col_from_phases(src_ref, Bt, Ho, Wo, C):
    """Build the (Bt*Ho*Wo, 16*C) im2col operand from a phase-stacked source ref."""
    Hh = Ho + 1
    cols = []
    for ki in range(4):
        for kj in range(4):
            p = (ki % 2) * 2 + (kj % 2)
            win = src_ref[:, pl.ds(p * Hh + ki // 2, Ho), pl.ds(kj // 2, Wo), :]
            cols.append(win.reshape(Bt * Ho * Wo, C))
    return jnp.concatenate(cols, axis=1)                      # (Bt*Ho*Wo, 16*C)


def _scatter_to_phases(y, dst_ref, Bt, Ho_n, Wo_n, C):
    """Scatter y (Bt*(2*Ho_n)*(2*Wo_n), C), row-major over (b, h, w), into the next
    layer's zero-padded phase-stacked input scratch: 4 block stores (one per spatial
    parity) + halo-only zeroing of the padding border (8 tiny stores)."""
    Hh, Wh = Ho_n + 1, Wo_n + 1
    dt = dst_ref.dtype
    y6 = y.reshape(Bt, Ho_n, 2, Wo_n, 2, C).astype(dt)        # h = 2a+sh, w = 2b+sw
    for sh in range(2):
        for sw in range(2):
            p = (1 - sh) * 2 + (1 - sw)                       # destination phase
            blk = y6[:, :, sh, :, sw, :]                      # (Bt, Ho_n, Wo_n, C)
            dst_ref[:, pl.ds(p * Hh + sh, Ho_n), pl.ds(sw, Wo_n), :] = blk
    zrow = jnp.zeros((Bt, 1, Wh, C), dt)
    zcol = jnp.zeros((Bt, Hh, 1, C), dt)
    for pi in range(2):
        for pj in range(2):
            p = pi * 2 + pj
            hr = 0 if pi == 0 else Hh - 1                     # padding row of plane
            hc = 0 if pj == 0 else Wh - 1                     # padding col of plane
            dst_ref[:, pl.ds(p * Hh + hr, 1), :, :] = zrow
            dst_ref[:, pl.ds(p * Hh, Hh), pl.ds(hc, 1), :] = zcol


# ----------------------------------------------------------------------------
# Fused kernel: conv1 -> lrelu -> conv2 -> lrelu -> classifier, Bt batch elems/step.
# ----------------------------------------------------------------------------
def _fused_kernel(xph_ref, w1_ref, b1_ref, w2_ref, b2_ref, w3_ref, b3_ref,
                  out_ref, ph2_ref, ph3_ref, *,
                  Bt, Cin, C1, C2, Ho1, Wo1, Ho2, Wo2, Ho3, Wo3):
    f32 = jnp.float32

    def leaky(v):
        return jnp.where(v > 0, v, 0.2 * v)

    # -- layer 1: in-VMEM im2col + one bf16 MXU matmul (depthwise folded into pointwise)
    x1 = _im2col_from_phases(xph_ref, Bt, Ho1, Wo1, Cin)       # (Bt*M1, 16*Cin) bf16
    y1 = jnp.dot(x1, w1_ref[...], preferred_element_type=f32) + b1_ref[...]
    y1 = leaky(y1)                                             # (Bt*M1, C1) f32
    _scatter_to_phases(y1, ph2_ref, Bt, Ho2, Wo2, C1)

    # -- layer 2
    x2 = _im2col_from_phases(ph2_ref, Bt, Ho2, Wo2, C1)        # (Bt*M2, 16*C1)
    y2 = jnp.dot(x2, w2_ref[...], preferred_element_type=f32) + b2_ref[...]
    y2 = leaky(y2)                                             # (Bt*M2, C2) f32
    _scatter_to_phases(y2, ph3_ref, Bt, Ho3, Wo3, C2)

    # -- classifier: ONE (Bt*M3, 16*C2) x (16*C2, 1) matmul, no activation
    x3 = _im2col_from_phases(ph3_ref, Bt, Ho3, Wo3, C2)        # (Bt*M3, 16*C2)
    y3 = jnp.dot(x3, w3_ref[...], preferred_element_type=f32) + b3_ref[...]

    # Lane-major output slab: only Bt*Ho3*Wo3 floats leave VMEM per grid step.
    out_ref[...] = y3.reshape(1, Bt * Ho3 * Wo3).astype(out_ref.dtype)


# ----------------------------------------------------------------------------
# Effective (depthwise folded into pointwise) weights:
#   W_eff[(ki*4+kj)*Cin + c, co] = dw[ki,kj,c] * pw[c,co],   b_eff = db @ pw + pb
# ----------------------------------------------------------------------------
def _eff_weights(dw, db, pw, pb, dtype):
    cin, cout = pw.shape
    w = (dw.reshape(16, cin, 1) * pw.reshape(1, cin, cout)).reshape(16 * cin, cout)
    b = (db @ pw + pb).reshape(1, cout)
    return w.astype(dtype), b.astype(jnp.float32)


def _phase_split(xp):
    """(N, Hp, Wp, C) zero-padded NHWC -> (N, 4*Hp//2, Wp//2, C) phase-stacked."""
    N, Hp, Wp, C = xp.shape
    Hh, Wh = Hp // 2, Wp // 2
    x = xp.reshape(N, Hh, 2, Wh, 2, C).transpose(0, 2, 4, 1, 3, 5)
    return x.reshape(N, 4 * Hh, Wh, C)        # plane p=2*pi+pj at rows [p*Hh,(p+1)*Hh)


def _tile_pad(rows, lanes):
    return (-(-rows // 8) * 8) * (-(-lanes // 128) * 128)


def _pick_batch_tile(N, H, W, Cin, C1, C2, budget_bytes):
    """Largest divisor of N (<=32) whose per-step working set (tiling-padded, with the
    double-buffered input block and im2col temporaries) fits a conservative VMEM
    budget sized for v7x's 64 MiB; v5e/v6e have more headroom."""
    Ho1, Wo1, Ho2, Wo2, Ho3, Wo3 = H // 2, W // 2, H // 4, W // 4, H // 8, W // 8
    per = 0
    per += 2 * 2 * 4 * (Ho1 + 1) * _tile_pad(Wo1 + 1, Cin)     # dbl-buffered bf16 input
    per += 2 * 4 * (Ho2 + 1) * _tile_pad(Wo2 + 1, C1)          # ph2 scratch (bf16)
    per += 2 * 4 * (Ho3 + 1) * _tile_pad(Wo3 + 1, C2)          # ph3 scratch (bf16)
    per += 2 * 2 * _tile_pad(Ho1 * Wo1, 16 * Cin)              # x1 im2col (+slack)
    per += 2 * 2 * _tile_pad(Ho2 * Wo2, 16 * C1)               # x2 im2col
    per += 2 * 2 * _tile_pad(Ho3 * Wo3, 16 * C2)               # x3 im2col
    per += 4 * 2 * _tile_pad(Ho1 * Wo1, C1)                    # y1 f32 temporaries
    per += 4 * 2 * _tile_pad(Ho2 * Wo2, C2)                    # y2 f32 temporaries
    bt = 1
    for d in range(1, N + 1):
        if N % d == 0 and d <= 32 and d * per <= budget_bytes:
            bt = d
    return bt


# ----------------------------------------------------------------------------
# Full model wrapper.
# ----------------------------------------------------------------------------
def light_light_fc_discriminator(x_nchw, params, *, compute_dtype=jnp.bfloat16):
    N, Cin, H, W = x_nchw.shape
    assert H % 8 == 0 and W % 8 == 0, "3 stride-2 layers need H, W % 8 == 0"

    dw1, db1, pw1, pb1 = params["conv1"]
    dw2, db2, pw2, pb2 = params["conv2"]
    dw3, db3, pw3, pb3 = params["classifier"]
    C1, C2 = pw1.shape[1], pw2.shape[1]

    Ho1, Wo1 = H // 2, W // 2
    Ho2, Wo2 = Ho1 // 2, Wo1 // 2
    Ho3, Wo3 = Ho2 // 2, Wo2 // 2
    M3 = Ho3 * Wo3
    Hh1, Wh1 = Ho1 + 1, Wo1 + 1

    # One-time glue: pure relayout of ~1x the raw input (NCHW -> NHWC -> zero-pad ->
    # 2x2 phase split), cast to bf16.  No 4x im2col intermediate ever touches HBM.
    x_nhwc = jnp.transpose(x_nchw, (0, 2, 3, 1))
    xp = jnp.pad(x_nhwc, ((0, 0), (1, 1), (1, 1), (0, 0)))
    xph = _phase_split(xp).astype(compute_dtype)               # (N, 4*Hh1, Wh1, Cin)

    # Effective weights (depthwise folded into pointwise), bf16 operands for the MXU,
    # f32 biases added post-accumulation.
    w1, b1 = _eff_weights(dw1, db1, pw1, pb1, compute_dtype)   # (16*Cin, C1), (1, C1)
    w2, b2 = _eff_weights(dw2, db2, pw2, pb2, compute_dtype)   # (16*C1, C2), (1, C2)
    w3, b3 = _eff_weights(dw3, db3, pw3, pb3, compute_dtype)   # (16*C2, 1),  (1, 1)

    Bt = _pick_batch_tile(N, H, W, Cin, C1, C2, budget_bytes=32 * 1024 * 1024)
    G = N // Bt
    # TODO(synk): for large H*W, add a spatial row-tile grid axis (last, "arbitrary")
    # so the per-step im2col stays within v7x's 64 MiB / v5e's scoped VMEM.

    kernel = functools.partial(
        _fused_kernel, Bt=Bt, Cin=Cin, C1=C1, C2=C2,
        Ho1=Ho1, Wo1=Wo1, Ho2=Ho2, Wo2=Wo2, Ho3=Ho3, Wo3=Wo3)

    out_flat = pl.pallas_call(
        kernel,
        out_shape=jax.ShapeDtypeStruct((G, Bt * M3), jnp.float32),
        grid=(G,),
        in_specs=[
            pl.BlockSpec((Bt, 4 * Hh1, Wh1, Cin), lambda g: (g, 0, 0, 0)),
            pl.BlockSpec(w1.shape, lambda g: (0, 0)),          # grid-constant weights:
            pl.BlockSpec(b1.shape, lambda g: (0, 0)),          # DMA'd once, VMEM-resident
            pl.BlockSpec(w2.shape, lambda g: (0, 0)),
            pl.BlockSpec(b2.shape, lambda g: (0, 0)),
            pl.BlockSpec(w3.shape, lambda g: (0, 0)),
            pl.BlockSpec(b3.shape, lambda g: (0, 0)),
        ],
        out_specs=pl.BlockSpec((1, Bt * M3), lambda g: (g, 0)),
        scratch_shapes=[
            pltpu.VMEM((Bt, 4 * (Ho2 + 1), Wo2 + 1, C1), compute_dtype),  # L2 input planes
            pltpu.VMEM((Bt, 4 * (Ho3 + 1), Wo3 + 1, C2), compute_dtype),  # L3 input planes
        ],
        compiler_params=pltpu.CompilerParams(
            dimension_semantics=("parallel",),                 # v7x: batch across both TCs
            vmem_limit_bytes=48 * 1024 * 1024),
    )(xph, w1, b1, w2, b2, w3, b3)

    return out_flat.reshape(N, Ho3, Wo3)[:, None, :, :]        # (N, 1, H//8, W//8)


# ----------------------------------------------------------------------------
# Deterministic parameter construction (synthetic init, not a checkpoint).
# ----------------------------------------------------------------------------
def make_dsconv_params(key, ch_in, ch_out):
    k1, k2, k3, k4 = jax.random.split(key, 4)
    dw = jax.random.normal(k1, (4, 4, ch_in), jnp.float32) * 0.1   # depthwise (kh,kw,Cin)
    db = jax.random.normal(k2, (ch_in,), jnp.float32) * 0.1
    pw = jax.random.normal(k3, (ch_in, ch_out), jnp.float32) * 0.1  # pointwise (Cin,Cout)
    pb = jax.random.normal(k4, (ch_out,), jnp.float32) * 0.1
    return (dw, db, pw, pb)


# ----------------------------------------------------------------------------
# Pure-JAX f32 reference (numerical sanity check).
# ----------------------------------------------------------------------------
def _ref_dsconv(x_nchw, dw, db, pw, pb, apply_leaky):
    cin = x_nchw.shape[1]
    wd = jnp.transpose(dw, (2, 0, 1))[:, None, :, :]          # (Cin,1,4,4) OIHW
    y = jax.lax.conv_general_dilated(
        x_nchw, wd, (2, 2), ((1, 1), (1, 1)),
        feature_group_count=cin,
        dimension_numbers=("NCHW", "OIHW", "NCHW"))
    y = y + db.reshape(1, cin, 1, 1)
    wp = jnp.transpose(pw, (1, 0))[:, :, None, None]          # (Cout,Cin,1,1)
    y = jax.lax.conv_general_dilated(
        y, wp, (1, 1), ((0, 0), (0, 0)),
        dimension_numbers=("NCHW", "OIHW", "NCHW"))
    y = y + pb.reshape(1, -1, 1, 1)
    if apply_leaky:
        y = jnp.where(y > 0, y, 0.2 * y)
    return y


def _ref_model(x_nchw, params):
    y = _ref_dsconv(x_nchw, *params["conv1"], apply_leaky=True)
    y = _ref_dsconv(y, *params["conv2"], apply_leaky=True)
    y = _ref_dsconv(y, *params["classifier"], apply_leaky=False)
    return y


if __name__ == "__main__":
    # Small shapes: num_classes=4, ndf=8, batch=2, spatial=16x16.
    num_classes, ndf = 4, 8
    N, H, W = 2, 16, 16

    root = jax.random.PRNGKey(0)
    kx, k1, k2, k3 = jax.random.split(root, 4)

    x = jax.random.normal(kx, (N, num_classes, H, W), jnp.float32)   # NCHW input
    params = {
        "conv1": make_dsconv_params(k1, num_classes, ndf),
        "conv2": make_dsconv_params(k2, ndf, ndf * 2),
        "classifier": make_dsconv_params(k3, ndf * 2, 1),
    }

    fwd = jax.jit(light_light_fc_discriminator)
    out = jax.block_until_ready(fwd(x, params))

    ref = jax.block_until_ready(_ref_model(x, params))
    assert out.shape == (N, 1, H // 8, W // 8), out.shape
    # bf16 operands (f32 accumulation) => looser tolerance than a pure-f32 check.
    np.testing.assert_allclose(np.asarray(out), np.asarray(ref),
                               rtol=5e-2, atol=3e-2)

    print("KERNEL_OK")
</pallas_src>

<mosaic_0001>
module attributes {stable_mosaic.version = 11 : i64} {
  func.func @_fused_kernel(%arg0: i32, %arg1: memref<2x36x9x4xbf16, #tpu.memory_space<vmem>>, %arg2: memref<64x8xbf16, #tpu.memory_space<vmem>>, %arg3: memref<1x8xf32, #tpu.memory_space<vmem>>, %arg4: memref<128x16xbf16, #tpu.memory_space<vmem>>, %arg5: memref<1x16xf32, #tpu.memory_space<vmem>>, %arg6: memref<256x1xbf16, #tpu.memory_space<vmem>>, %arg7: memref<1x1xf32, #tpu.memory_space<vmem>>, %arg8: memref<1x8xf32, #tpu.memory_space<vmem>>, %arg9: memref<2x20x5x8xbf16, #tpu.memory_space<vmem>>, %arg10: memref<2x12x3x16xbf16, #tpu.memory_space<vmem>>) attributes {dimension_semantics = [#tpu.dimension_semantics<parallel>], iteration_bounds = array<i64: 1>, scalar_prefetch = 0 : i64, scratch_operands = 2 : i64, tpu.core_type = #tpu.core_type<tc>, window_params = [{transform_indices = @transform_0, window_bounds = array<i64: 2, 36, 9, 4>}, {pipeline_mode = #tpu.pipeline_mode<synchronous>, transform_indices = @transform_1, window_bounds = array<i64: 64, 8>}, {pipeline_mode = #tpu.pipeline_mode<synchronous>, transform_indices = @transform_2, window_bounds = array<i64: 1, 8>}, {pipeline_mode = #tpu.pipeline_mode<synchronous>, transform_indices = @transform_3, window_bounds = array<i64: 128, 16>}, {pipeline_mode = #tpu.pipeline_mode<synchronous>, transform_indices = @transform_4, window_bounds = array<i64: 1, 16>}, {pipeline_mode = #tpu.pipeline_mode<synchronous>, transform_indices = @transform_5, window_bounds = array<i64: 256, 1>}, {pipeline_mode = #tpu.pipeline_mode<synchronous>, transform_indices = @transform_6, window_bounds = array<i64: 1, 1>}, {transform_indices = @transform_7, window_bounds = array<i64: 1, 8>}]} {
    %c0 = arith.constant 0 : index
    %c0_0 = arith.constant 0 : index
    %c0_1 = arith.constant 0 : index
    %c0_2 = arith.constant 0 : index
    %0 = vector.load %arg1[%c0, %c0_0, %c0_1, %c0_2] : memref<2x36x9x4xbf16, #tpu.memory_space<vmem>>, vector<2x8x8x4xbf16>
    %1 = vector.shape_cast %0 : vector<2x8x8x4xbf16> to vector<128x4xbf16>
    %c0_3 = arith.constant 0 : index
    %c9 = arith.constant 9 : index
    %c0_4 = arith.constant 0 : index
    %c0_5 = arith.constant 0 : index
    %2 = vector.load %arg1[%c0_3, %c9, %c0_4, %c0_5] : memref<2x36x9x4xbf16, #tpu.memory_space<vmem>>, vector<2x8x8x4xbf16>
    %3 = vector.shape_cast %2 : vector<2x8x8x4xbf16> to vector<128x4xbf16>
    %c0_6 = arith.constant 0 : index
    %c0_7 = arith.constant 0 : index
    %c1 = arith.constant 1 : index
    %c0_8 = arith.constant 0 : index
    %4 = vector.load %arg1[%c0_6, %c0_7, %c1, %c0_8] : memref<2x36x9x4xbf16, #tpu.memory_space<vmem>>, vector<2x8x8x4xbf16>
    %5 = vector.shape_cast %4 : vector<2x8x8x4xbf16> to vector<128x4xbf16>
    %c0_9 = arith.constant 0 : index
    %c9_10 = arith.constant 9 : index
    %c1_11 = arith.constant 1 : index
    %c0_12 = arith.constant 0 : index
    %6 = vector.load %arg1[%c0_9, %c9_10, %c1_11, %c0_12] : memref<2x36x9x4xbf16, #tpu.memory_space<vmem>>, vector<2x8x8x4xbf16>
    %7 = vector.shape_cast %6 : vector<2x8x8x4xbf16> to vector<128x4xbf16>
    %c0_13 = arith.constant 0 : index
    %c18 = arith.constant 18 : index
    %c0_14 = arith.constant 0 : index
    %c0_15 = arith.constant 0 : index
    %8 = vector.load %arg1[%c0_13, %c18, %c0_14, %c0_15] : memref<2x36x9x4xbf16, #tpu.memory_space<vmem>>, vector<2x8x8x4xbf16>
    %9 = vector.shape_cast %8 : vector<2x8x8x4xbf16> to vector<128x4xbf16>
    %c0_16 = arith.constant 0 : index
    %c27 = arith.constant 27 : index
    %c0_17 = arith.constant 0 : index
    %c0_18 = arith.constant 0 : index
    %10 = vector.load %arg1[%c0_16, %c27, %c0_17, %c0_18] : memref<2x36x9x4xbf16, #tpu.memory_space<vmem>>, vector<2x8x8x4xbf16>
    %11 = vector.shape_cast %10 : vector<2x8x8x4xbf16> to vector<128x4xbf16>
    %c0_19 = arith.constant 0 : index
    %c18_20 = arith.constant 18 : index
    %c1_21 = arith.constant 1 : index
    %c0_22 = arith.constant 0 : index
    %12 = vector.load %arg1[%c0_19, %c18_20, %c1_21, %c0_22] : memref<2x36x9x4xbf16, #tpu.memory_space<vmem>>, vector<2x8x8x4xbf16>
    %13 = vector.shape_cast %12 : vector<2x8x8x4xbf16> to vector<128x4xbf16>
    %c0_23 = arith.constant 0 : index
    %c27_24 = arith.constant 27 : index
    %c1_25 = arith.constant 1 : index
    %c0_26 = arith.constant 0 : index
    %14 = vector.load %arg1[%c0_23, %c27_24, %c1_25, %c0_26] : memref<2x36x9x4xbf16, #tpu.memory_space<vmem>>, vector<2x8x8x4xbf16>
    %15 = vector.shape_cast %14 : vector<2x8x8x4xbf16> to vector<128x4xbf16>
    %c0_27 = arith.constant 0 : index
    %c1_28 = arith.constant 1 : index
    %c0_29 = arith.constant 0 : index
    %c0_30 = arith.constant 0 : index
    %16 = vector.load %arg1[%c0_27, %c1_28, %c0_29, %c0_30] : memref<2x36x9x4xbf16, #tpu.memory_space<vmem>>, vector<2x8x8x4xbf16>
    %17 = vector.shape_cast %16 : vector<2x8x8x4xbf16> to vector<128x4xbf16>
    %c0_31 = arith.constant 0 : index
    %c10 = arith.constant 10 : index
    %c0_32 = arith.constant 0 : index
    %c0_33 = arith.constant 0 : index
    %18 = vector.load %arg1[%c0_31, %c10, %c0_32, %c0_33] : memref<2x36x9x4xbf16, #tpu.memory_space<vmem>>, vector<2x8x8x4xbf16>
    %19 = vector.shape_cast %18 : vector<2x8x8x4xbf16> to vector<128x4xbf16>
    %c0_34 = arith.constant 0 : index
    %c1_35 = arith.constant 1 : index
    %c1_36 = arith.constant 1 : index
    %c0_37 = arith.constant 0 : index
    %20 = vector.load %arg1[%c0_34, %c1_35, %c1_36, %c0_37] : memref<2x36x9x4xbf16, #tpu.memory_space<vmem>>, vector<2x8x8x4xbf16>
    %21 = vector.shape_cast %20 : vector<2x8x8x4xbf16> to vector<128x4xbf16>
    %c0_38 = arith.constant 0 : index
    %c10_39 = arith.constant 10 : index
    %c1_40 = arith.constant 1 : index
    %c0_41 = arith.constant 0 : index
    %22 = vector.load %arg1[%c0_38, %c10_39, %c1_40, %c0_41] : memref<2x36x9x4xbf16, #tpu.memory_space<vmem>>, vector<2x8x8x4xbf16>
    %23 = vector.shape_cast %22 : vector<2x8x8x4xbf16> to vector<128x4xbf16>
    %c0_42 = arith.constant 0 : index
    %c19 = arith.constant 19 : index
    %c0_43 = arith.constant 0 : index
    %c0_44 = arith.constant 0 : index
    %24 = vector.load %arg1[%c0_42, %c19, %c0_43, %c0_44] : memref<2x36x9x4xbf16, #tpu.memory_space<vmem>>, vector<2x8x8x4xbf16>
    %25 = vector.shape_cast %24 : vector<2x8x8x4xbf16> to vector<128x4xbf16>
    %c0_45 = arith.constant 0 : index
    %c28 = arith.constant 28 : index
    %c0_46 = arith.constant 0 : index
    %c0_47 = arith.constant 0 : index
    %26 = vector.load %arg1[%c0_45, %c28, %c0_46, %c0_47] : memref<2x36x9x4xbf16, #tpu.memory_space<vmem>>, vector<2x8x8x4xbf16>
    %27 = vector.shape_cast %26 : vector<2x8x8x4xbf16> to vector<128x4xbf16>
    %c0_48 = arith.constant 0 : index
    %c19_49 = arith.constant 19 : index
    %c1_50 = arith.constant 1 : index
    %c0_51 = arith.constant 0 : index
    %28 = vector.load %arg1[%c0_48, %c19_49, %c1_50, %c0_51] : memref<2x36x9x4xbf16, #tpu.memory_space<vmem>>, vector<2x8x8x4xbf16>
    %29 = vector.shape_cast %28 : vector<2x8x8x4xbf16> to vector<128x4xbf16>
    %c0_52 = arith.constant 0 : index
    %c28_53 = arith.constant 28 : index
    %c1_54 = arith.constant 1 : index
    %c0_55 = arith.constant 0 : index
    %30 = vector.load %arg1[%c0_52, %c28_53, %c1_54, %c0_55] : memref<2x36x9x4xbf16, #tpu.memory_space<vmem>>, vector<2x8x8x4xbf16>
    %31 = vector.shape_cast %30 : vector<2x8x8x4xbf16> to vector<128x4xbf16>
    %32 = tpu.concatenate %1, %3, %5, %7, %9, %11, %13, %15, %17, %19, %21, %23, %25, %27, %29, %31 in 1 : vector<128x4xbf16>, vector<128x4xbf16>, vector<128x4xbf16>, vector<128x4xbf16>, vector<128x4xbf16>, vector<128x4xbf16>, vector<128x4xbf16>, vector<128x4xbf16>, vector<128x4xbf16>, vector<128x4xbf16>, vector<128x4xbf16>, vector<128x4xbf16>, vector<128x4xbf16>, vector<128x4xbf16>, vector<128x4xbf16>, vector<128x4xbf16> -> vector<128x64xbf16>
    %c0_56 = arith.constant 0 : index
    %c0_57 = arith.constant 0 : index
    %33 = vector.load %arg2[%c0_56, %c0_57] : memref<64x8xbf16, #tpu.memory_space<vmem>>, vector<64x8xbf16>
    %cst = arith.constant dense<0.000000e+00> : vector<128x8xf32>
    %34 = tpu.matmul %32, %33, %cst {dimension_numbers = #tpu.dot_dimension_numbers<[1], [0], [0], [1], [0, 0, 1, 1], [], []>} : vector<128x64xbf16>, vector<64x8xbf16>, vector<128x8xf32> -> vector<128x8xf32>
    %c0_58 = arith.constant 0 : index
    %c0_59 = arith.constant 0 : index
    %35 = vector.load %arg3[%c0_58, %c0_59] : memref<1x8xf32, #tpu.memory_space<vmem>>, vector<1x8xf32>
    %36 = vector.broadcast %35 : vector<1x8xf32> to vector<128x8xf32>
    %37 = arith.addf %34, %36 : vector<128x8xf32>
    %cst_60 = arith.constant 0.000000e+00 : f32
    %38 = vector.broadcast %cst_60 : f32 to vector<128x8xf32>
    %39 = arith.cmpf ogt, %37, %38 : vector<128x8xf32>
    %cst_61 = arith.constant 2.000000e-01 : f32
    %40 = vector.broadcast %cst_61 : f32 to vector<128x8xf32>
    %41 = arith.mulf %40, %37 : vector<128x8xf32>
    %42 = arith.select %39, %37, %41 : vector<128x8xi1>, vector<128x8xf32>
    %43 = vector.shape_cast %42 : vector<128x8xf32> to vector<2x4x2x4x2x8xf32>
    %44 = arith.truncf %43 : vector<2x4x2x4x2x8xf32> to vector<2x4x2x4x2x8xbf16>
    %45 = vector.extract_strided_slice %44 {offsets = [0, 0, 0, 0, 0, 0], sizes = [2, 4, 1, 4, 1, 8], strides = [1, 1, 1, 1, 1, 1]} : vector<2x4x2x4x2x8xbf16> to vector<2x4x1x4x1x8xbf16>
    %46 = vector.shape_cast %45 : vector<2x4x1x4x1x8xbf16> to vector<2x4x4x8xbf16>
    %c0_62 = arith.constant 0 : index
    %c15 = arith.constant 15 : index
    %c0_63 = arith.constant 0 : index
    %c0_64 = arith.constant 0 : index
    %47 = vector.load %arg9[%c0_62, %c15, %c0_63, %c0_64] : memref<2x20x5x8xbf16, #tpu.memory_space<vmem>>, vector<2x4x4x8xbf16>
    tpu.vector_store %arg9[%c0_62, %c15, %c0_63, %c0_64], %46 {strides = array<i32>} : memref<2x20x5x8xbf16, #tpu.memory_space<vmem>>, vector<2x4x4x8xbf16>,
    %48 = vector.extract_strided_slice %44 {offsets = [0, 0, 0, 0, 1, 0], sizes = [2, 4, 1, 4, 1, 8], strides = [1, 1, 1, 1, 1, 1]} : vector<2x4x2x4x2x8xbf16> to vector<2x4x1x4x1x8xbf16>
    %49 = vector.shape_cast %48 : vector<2x4x1x4x1x8xbf16> to vector<2x4x4x8xbf16>
    %c0_65 = arith.constant 0 : index
    %c10_66 = arith.constant 10 : index
    %c1_67 = arith.constant 1 : index
    %c0_68 = arith.constant 0 : index
    %50 = vector.load %arg9[%c0_65, %c10_66, %c1_67, %c0_68] : memref<2x20x5x8xbf16, #tpu.memory_space<vmem>>, vector<2x4x4x8xbf16>
    tpu.vector_store %arg9[%c0_65, %c10_66, %c1_67, %c0_68], %49 {strides = array<i32>} : memref<2x20x5x8xbf16, #tpu.memory_space<vmem>>, vector<2x4x4x8xbf16>,
    %51 = vector.extract_strided_slice %44 {offsets = [0, 0, 1, 0, 0, 0], sizes = [2, 4, 1, 4, 1, 8], strides = [1, 1, 1, 1, 1, 1]} : vector<2x4x2x4x2x8xbf16> to vector<2x4x1x4x1x8xbf16>
    %52 = vector.shape_cast %51 : vector<2x4x1x4x1x8xbf16> to vector<2x4x4x8xbf16>
    %c0_69 = arith.constant 0 : index
    %c6 = arith.constant 6 : index
    %c0_70 = arith.constant 0 : index
    %c0_71 = arith.constant 0 : index
    %53 = vector.load %arg9[%c0_69, %c6, %c0_70, %c0_71] : memref<2x20x5x8xbf16, #tpu.memory_space<vmem>>, vector<2x4x4x8xbf16>
    tpu.vector_store %arg9[%c0_69, %c6, %c0_70, %c0_71], %52 {strides = array<i32>} : memref<2x20x5x8xbf16, #tpu.memory_space<vmem>>, vector<2x4x4x8xbf16>,
    %54 = vector.extract_strided_slice %44 {offsets = [0, 0, 1, 0, 1, 0], sizes = [2, 4, 1, 4, 1, 8], strides = [1, 1, 1, 1, 1, 1]} : vector<2x4x2x4x2x8xbf16> to vector<2x4x1x4x1x8xbf16>
    %55 = vector.shape_cast %54 : vector<2x4x1x4x1x8xbf16> to vector<2x4x4x8xbf16>
    %c0_72 = arith.constant 0 : index
    %c1_73 = arith.constant 1 : index
    %c1_74 = arith.constant 1 : index
    %c0_75 = arith.constant 0 : index
    %56 = vector.load %arg9[%c0_72, %c1_73, %c1_74, %c0_75] : memref<2x20x5x8xbf16, #tpu.memory_space<vmem>>, vector<2x4x4x8xbf16>
    tpu.vector_store %arg9[%c0_72, %c1_73, %c1_74, %c0_75], %55 {strides = array<i32>} : memref<2x20x5x8xbf16, #tpu.memory_space<vmem>>, vector<2x4x4x8xbf16>,
    %cst_76 = arith.constant 0.000000e+00 : bf16
    %57 = vector.broadcast %cst_76 : bf16 to vector<2x1x5x8xbf16>
    %cst_77 = arith.constant 0.000000e+00 : bf16
    %58 = vector.broadcast %cst_77 : bf16 to vector<2x5x1x8xbf16>
    %c0_78 = arith.constant 0 : index
    %c0_79 = arith.constant 0 : index
    %c0_80 = arith.constant 0 : index
    %c0_81 = arith.constant 0 : index
    %59 = vector.load %arg9[%c0_78, %c0_79, %c0_80, %c0_81] : memref<2x20x5x8xbf16, #tpu.memory_space<vmem>>, vector<2x1x5x8xbf16>
    tpu.vector_store %arg9[%c0_78, %c0_79, %c0_80, %c0_81], %57 {strides = array<i32>} : memref<2x20x5x8xbf16, #tpu.memory_space<vmem>>, vector<2x1x5x8xbf16>,
    %c0_82 = arith.constant 0 : index
    %c0_83 = arith.constant 0 : index
    %c0_84 = arith.constant 0 : index
    %c0_85 = arith.constant 0 : index
    %60 = vector.load %arg9[%c0_82, %c0_83, %c0_84, %c0_85] : memref<2x20x5x8xbf16, #tpu.memory_space<vmem>>, vector<2x5x1x8xbf16>
    tpu.vector_store %arg9[%c0_82, %c0_83, %c0_84, %c0_85], %58 {strides = array<i32>} : memref<2x20x5x8xbf16, #tpu.memory_space<vmem>>, vector<2x5x1x8xbf16>,
    %c0_86 = arith.constant 0 : index
    %c5 = arith.constant 5 : index
    %c0_87 = arith.constant 0 : index
    %c0_88 = arith.constant 0 : index
    %61 = vector.load %arg9[%c0_86, %c5, %c0_87, %c0_88] : memref<2x20x5x8xbf16, #tpu.memory_space<vmem>>, vector<2x1x5x8xbf16>
    tpu.vector_store %arg9[%c0_86, %c5, %c0_87, %c0_88], %57 {strides = array<i32>} : memref<2x20x5x8xbf16, #tpu.memory_space<vmem>>, vector<2x1x5x8xbf16>,
    %c0_89 = arith.constant 0 : index
    %c5_90 = arith.constant 5 : index
    %c4 = arith.constant 4 : index
    %c0_91 = arith.constant 0 : index
    %62 = vector.load %arg9[%c0_89, %c5_90, %c4, %c0_91] : memref<2x20x5x8xbf16, #tpu.memory_space<vmem>>, vector<2x5x1x8xbf16>
    tpu.vector_store %arg9[%c0_89, %c5_90, %c4, %c0_91], %58 {strides = array<i32>} : memref<2x20x5x8xbf16, #tpu.memory_space<vmem>>, vector<2x5x1x8xbf16>,
    %c0_92 = arith.constant 0 : index
    %c14 = arith.constant 14 : index
    %c0_93 = arith.constant 0 : index
    %c0_94 = arith.constant 0 : index
    %63 = vector.load %arg9[%c0_92, %c14, %c0_93, %c0_94] : memref<2x20x5x8xbf16, #tpu.memory_space<vmem>>, vector<2x1x5x8xbf16>
    tpu.vector_store %arg9[%c0_92, %c14, %c0_93, %c0_94], %57 {strides = array<i32>} : memref<2x20x5x8xbf16, #tpu.memory_space<vmem>>, vector<2x1x5x8xbf16>,
    %c0_95 = arith.constant 0 : index
    %c10_96 = arith.constant 10 : index
    %c0_97 = arith.constant 0 : index
    %c0_98 = arith.constant 0 : index
    %64 = vector.load %arg9[%c0_95, %c10_96, %c0_97, %c0_98] : memref<2x20x5x8xbf16, #tpu.memory_space<vmem>>, vector<2x5x1x8xbf16>
    tpu.vector_store %arg9[%c0_95, %c10_96, %c0_97, %c0_98], %58 {strides = array<i32>} : memref<2x20x5x8xbf16, #tpu.memory_space<vmem>>, vector<2x5x1x8xbf16>,
    %c0_99 = arith.constant 0 : index
    %c19_100 = arith.constant 19 : index
    %c0_101 = arith.constant 0 : index
    %c0_102 = arith.constant 0 : index
    %65 = vector.load %arg9[%c0_99, %c19_100, %c0_101, %c0_102] : memref<2x20x5x8xbf16, #tpu.memory_space<vmem>>, vector<2x1x5x8xbf16>
    tpu.vector_store %arg9[%c0_99, %c19_100, %c0_101, %c0_102], %57 {strides = array<i32>} : memref<2x20x5x8xbf16, #tpu.memory_space<vmem>>, vector<2x1x5x8xbf16>,
    %c0_103 = arith.constant 0 : index
    %c15_104 = arith.constant 15 : index
    %c4_105 = arith.constant 4 : index
    %c0_106 = arith.constant 0 : index
    %66 = vector.load %arg9[%c0_103, %c15_104, %c4_105, %c0_106] : memref<2x20x5x8xbf16, #tpu.memory_space<vmem>>, vector<2x5x1x8xbf16>
    tpu.vector_store %arg9[%c0_103, %c15_104, %c4_105, %c0_106], %58 {strides = array<i32>} : memref<2x20x5x8xbf16, #tpu.memory_space<vmem>>, vector<2x5x1x8xbf16>,
    %c0_107 = arith.constant 0 : index
    %c0_108 = arith.constant 0 : index
    %c0_109 = arith.constant 0 : index
    %c0_110 = arith.constant 0 : index
    %67 = vector.load %arg9[%c0_107, %c0_108, %c0_109, %c0_110] : memref<2x20x5x8xbf16, #tpu.memory_space<vmem>>, vector<2x4x4x8xbf16>
    %68 = vector.shape_cast %67 : vector<2x4x4x8xbf16> to vector<32x8xbf16>
    %c0_111 = arith.constant 0 : index
    %c5_112 = arith.constant 5 : index
    %c0_113 = arith.constant 0 : index
    %c0_114 = arith.constant 0 : index
    %69 = vector.load %arg9[%c0_111, %c5_112, %c0_113, %c0_114] : memref<2x20x5x8xbf16, #tpu.memory_space<vmem>>, vector<2x4x4x8xbf16>
    %70 = vector.shape_cast %69 : vector<2x4x4x8xbf16> to vector<32x8xbf16>
    %c0_115 = arith.constant 0 : index
    %c0_116 = arith.constant 0 : index
    %c1_117 = arith.constant 1 : index
    %c0_118 = arith.constant 0 : index
    %71 = vector.load %arg9[%c0_115, %c0_116, %c1_117, %c0_118] : memref<2x20x5x8xbf16, #tpu.memory_space<vmem>>, vector<2x4x4x8xbf16>
    %72 = vector.shape_cast %71 : vector<2x4x4x8xbf16> to vector<32x8xbf16>
    %c0_119 = arith.constant 0 : index
    %c5_120 = arith.constant 5 : index
    %c1_121 = arith.constant 1 : index
    %c0_122 = arith.constant 0 : index
    %73 = vector.load %arg9[%c0_119, %c5_120, %c1_121, %c0_122] : memref<2x20x5x8xbf16, #tpu.memory_space<vmem>>, vector<2x4x4x8xbf16>
    %74 = vector.shape_cast %73 : vector<2x4x4x8xbf16> to vector<32x8xbf16>
    %c0_123 = arith.constant 0 : index
    %c10_124 = arith.constant 10 : index
    %c0_125 = arith.constant 0 : index
    %c0_126 = arith.constant 0 : index
    %75 = vector.load %arg9[%c0_123, %c10_124, %c0_125, %c0_126] : memref<2x20x5x8xbf16, #tpu.memory_space<vmem>>, vector<2x4x4x8xbf16>
    %76 = vector.shape_cast %75 : vector<2x4x4x8xbf16> to vector<32x8xbf16>
    %c0_127 = arith.constant 0 : index
    %c15_128 = arith.constant 15 : index
    %c0_129 = arith.constant 0 : index
    %c0_130 = arith.constant 0 : index
    %77 = vector.load %arg9[%c0_127, %c15_128, %c0_129, %c0_130] : memref<2x20x5x8xbf16, #tpu.memory_space<vmem>>, vector<2x4x4x8xbf16>
    %78 = vector.shape_cast %77 : vector<2x4x4x8xbf16> to vector<32x8xbf16>
    %c0_131 = arith.constant 0 : index
    %c10_132 = arith.constant 10 : index
    %c1_133 = arith.constant 1 : index
    %c0_134 = arith.constant 0 : index
    %79 = vector.load %arg9[%c0_131, %c10_132, %c1_133, %c0_134] : memref<2x20x5x8xbf16, #tpu.memory_space<vmem>>, vector<2x4x4x8xbf16>
    %80 = vector.shape_cast %79 : vector<2x4x4x8xbf16> to vector<32x8xbf16>
    %c0_135 = arith.constant 0 : index
    %c15_136 = arith.constant 15 : index
    %c1_137 = arith.constant 1 : index
    %c0_138 = arith.constant 0 : index
    %81 = vector.load %arg9[%c0_135, %c15_136, %c1_137, %c0_138] : memref<2x20x5x8xbf16, #tpu.memory_space<vmem>>, vector<2x4x4x8xbf16>
    %82 = vector.shape_cast %81 : vector<2x4x4x8xbf16> to vector<32x8xbf16>
    %c0_139 = arith.constant 0 : index
    %c1_140 = arith.constant 1 : index
    %c0_141 = arith.constant 0 : index
    %c0_142 = arith.constant 0 : index
    %83 = vector.load %arg9[%c0_139, %c1_140, %c0_141, %c0_142] : memref<2x20x5x8xbf16, #tpu.memory_space<vmem>>, vector<2x4x4x8xbf16>
    %84 = vector.shape_cast %83 : vector<2x4x4x8xbf16> to vector<32x8xbf16>
    %c0_143 = arith.constant 0 : index
    %c6_144 = arith.constant 6 : index
    %c0_145 = arith.constant 0 : index
    %c0_146 = arith.constant 0 : index
    %85 = vector.load %arg9[%c0_143, %c6_144, %c0_145, %c0_146] : memref<2x20x5x8xbf16, #tpu.memory_space<vmem>>, vector<2x4x4x8xbf16>
    %86 = vector.shape_cast %85 : vector<2x4x4x8xbf16> to vector<32x8xbf16>
    %c0_147 = arith.constant 0 : index
    %c1_148 = arith.constant 1 : index
    %c1_149 = arith.constant 1 : index
    %c0_150 = arith.constant 0 : index
    %87 = vector.load %arg9[%c0_147, %c1_148, %c1_149, %c0_150] : memref<2x20x5x8xbf16, #tpu.memory_space<vmem>>, vector<2x4x4x8xbf16>
    %88 = vector.shape_cast %87 : vector<2x4x4x8xbf16> to vector<32x8xbf16>
    %c0_151 = arith.constant 0 : index
    %c6_152 = arith.constant 6 : index
    %c1_153 = arith.constant 1 : index
    %c0_154 = arith.constant 0 : index
    %89 = vector.load %arg9[%c0_151, %c6_152, %c1_153, %c0_154] : memref<2x20x5x8xbf16, #tpu.memory_space<vmem>>, vector<2x4x4x8xbf16>
    %90 = vector.shape_cast %89 : vector<2x4x4x8xbf16> to vector<32x8xbf16>
    %c0_155 = arith.constant 0 : index
    %c11 = arith.constant 11 : index
    %c0_156 = arith.constant 0 : index
    %c0_157 = arith.constant 0 : index
    %91 = vector.load %arg9[%c0_155, %c11, %c0_156, %c0_157] : memref<2x20x5x8xbf16, #tpu.memory_space<vmem>>, vector<2x4x4x8xbf16>
    %92 = vector.shape_cast %91 : vector<2x4x4x8xbf16> to vector<32x8xbf16>
    %c0_158 = arith.constant 0 : index
    %c16 = arith.constant 16 : index
    %c0_159 = arith.constant 0 : index
    %c0_160 = arith.constant 0 : index
    %93 = vector.load %arg9[%c0_158, %c16, %c0_159, %c0_160] : memref<2x20x5x8xbf16, #tpu.memory_space<vmem>>, vector<2x4x4x8xbf16>
    %94 = vector.shape_cast %93 : vector<2x4x4x8xbf16> to vector<32x8xbf16>
    %c0_161 = arith.constant 0 : index
    %c11_162 = arith.constant 11 : index
    %c1_163 = arith.constant 1 : index
    %c0_164 = arith.constant 0 : index
    %95 = vector.load %arg9[%c0_161, %c11_162, %c1_163, %c0_164] : memref<2x20x5x8xbf16, #tpu.memory_space<vmem>>, vector<2x4x4x8xbf16>
    %96 = vector.shape_cast %95 : vector<2x4x4x8xbf16> to vector<32x8xbf16>
    %c0_165 = arith.constant 0 : index
    %c16_166 = arith.constant 16 : index
    %c1_167 = arith.constant 1 : index
    %c0_168 = arith.constant 0 : index
    %97 = vector.load %arg9[%c0_165, %c16_166, %c1_167, %c0_168] : memref<2x20x5x8xbf16, #tpu.memory_space<vmem>>, vector<2x4x4x8xbf16>
    %98 = vector.shape_cast %97 : vector<2x4x4x8xbf16> to vector<32x8xbf16>
    %99 = tpu.concatenate %68, %70, %72, %74, %76, %78, %80, %82, %84, %86, %88, %90, %92, %94, %96, %98 in 1 : vector<32x8xbf16>, vector<32x8xbf16>, vector<32x8xbf16>, vector<32x8xbf16>, vector<32x8xbf16>, vector<32x8xbf16>, vector<32x8xbf16>, vector<32x8xbf16>, vector<32x8xbf16>, vector<32x8xbf16>, vector<32x8xbf16>, vector<32x8xbf16>, vector<32x8xbf16>, vector<32x8xbf16>, vector<32x8xbf16>, vector<32x8xbf16> -> vector<32x128xbf16>
    %c0_169 = arith.constant 0 : index
    %c0_170 = arith.constant 0 : index
    %100 = vector.load %arg4[%c0_169, %c0_170] : memref<128x16xbf16, #tpu.memory_space<vmem>>, vector<128x16xbf16>
    %cst_171 = arith.constant dense<0.000000e+00> : vector<32x16xf32>
    %101 = tpu.matmul %99, %100, %cst_171 {dimension_numbers = #tpu.dot_dimension_numbers<[1], [0], [0], [1], [0, 0, 1, 1], [], []>} : vector<32x128xbf16>, vector<128x16xbf16>, vector<32x16xf32> -> vector<32x16xf32>
    %c0_172 = arith.constant 0 : index
    %c0_173 = arith.constant 0 : index
    %102 = vector.load %arg5[%c0_172, %c0_173] : memref<1x16xf32, #tpu.memory_space<vmem>>, vector<1x16xf32>
    %103 = vector.broadcast %102 : vector<1x16xf32> to vector<32x16xf32>
    %104 = arith.addf %101, %103 : vector<32x16xf32>
    %cst_174 = arith.constant 0.000000e+00 : f32
    %105 = vector.broadcast %cst_174 : f32 to vector<32x16xf32>
    %106 = arith.cmpf ogt, %104, %105 : vector<32x16xf32>
    %cst_175 = arith.constant 2.000000e-01 : f32
    %107 = vector.broadcast %cst_175 : f32 to vector<32x16xf32>
    %108 = arith.mulf %107, %104 : vector<32x16xf32>
    %109 = arith.select %106, %104, %108 : vector<32x16xi1>, vector<32x16xf32>
    %110 = vector.shape_cast %109 : vector<32x16xf32> to vector<2x2x2x2x2x16xf32>
    %111 = arith.truncf %110 : vector<2x2x2x2x2x16xf32> to vector<2x2x2x2x2x16xbf16>
    %112 = vector.extract_strided_slice %111 {offsets = [0, 0, 0, 0, 0, 0], sizes = [2, 2, 1, 2, 1, 16], strides = [1, 1, 1, 1, 1, 1]} : vector<2x2x2x2x2x16xbf16> to vector<2x2x1x2x1x16xbf16>
    %113 = vector.shape_cast %112 : vector<2x2x1x2x1x16xbf16> to vector<2x2x2x16xbf16>
    %c0_176 = arith.constant 0 : index
    %c9_177 = arith.constant 9 : index
    %c0_178 = arith.constant 0 : index
    %c0_179 = arith.constant 0 : index
    %114 = vector.load %arg10[%c0_176, %c9_177, %c0_178, %c0_179] : memref<2x12x3x16xbf16, #tpu.memory_space<vmem>>, vector<2x2x2x16xbf16>
    tpu.vector_store %arg10[%c0_176, %c9_177, %c0_178, %c0_179], %113 {strides = array<i32>} : memref<2x12x3x16xbf16, #tpu.memory_space<vmem>>, vector<2x2x2x16xbf16>,
    %115 = vector.extract_strided_slice %111 {offsets = [0, 0, 0, 0, 1, 0], sizes = [2, 2, 1, 2, 1, 16], strides = [1, 1, 1, 1, 1, 1]} : vector<2x2x2x2x2x16xbf16> to vector<2x2x1x2x1x16xbf16>
    %116 = vector.shape_cast %115 : vector<2x2x1x2x1x16xbf16> to vector<2x2x2x16xbf16>
    %c0_180 = arith.constant 0 : index
    %c6_181 = arith.constant 6 : index
    %c1_182 = arith.constant 1 : index
    %c0_183 = arith.constant 0 : index
    %117 = vector.load %arg10[%c0_180, %c6_181, %c1_182, %c0_183] : memref<2x12x3x16xbf16, #tpu.memory_space<vmem>>, vector<2x2x2x16xbf16>
    tpu.vector_store %arg10[%c0_180, %c6_181, %c1_182, %c0_183], %116 {strides = array<i32>} : memref<2x12x3x16xbf16, #tpu.memory_space<vmem>>, vector<2x2x2x16xbf16>,
    %118 = vector.extract_strided_slice %111 {offsets = [0, 0, 1, 0, 0, 0], sizes = [2, 2, 1, 2, 1, 16], strides = [1, 1, 1, 1, 1, 1]} : vector<2x2x2x2x2x16xbf16> to vector<2x2x1x2x1x16xbf16>
    %119 = vector.shape_cast %118 : vector<2x2x1x2x1x16xbf16> to vector<2x2x2x16xbf16>
    %c0_184 = arith.constant 0 : index
    %c4_185 = arith.constant 4 : index
    %c0_186 = arith.constant 0 : index
    %c0_187 = arith.constant 0 : index
    %120 = vector.load %arg10[%c0_184, %c4_185, %c0_186, %c0_187] : memref<2x12x3x16xbf16, #tpu.memory_space<vmem>>, vector<2x2x2x16xbf16>
    tpu.vector_store %arg10[%c0_184, %c4_185, %c0_186, %c0_187], %119 {strides = array<i32>} : memref<2x12x3x16xbf16, #tpu.memory_space<vmem>>, vector<2x2x2x16xbf16>,
    %121 = vector.extract_strided_slice %111 {offsets = [0, 0, 1, 0, 1, 0], sizes = [2, 2, 1, 2, 1, 16], strides = [1, 1, 1, 1, 1, 1]} : vector<2x2x2x2x2x16xbf16> to vector<2x2x1x2x1x16xbf16>
    %122 = vector.shape_cast %121 : vector<2x2x1x2x1x16xbf16> to vector<2x2x2x16xbf16>
    %c0_188 = arith.constant 0 : index
    %c1_189 = arith.constant 1 : index
    %c1_190 = arith.constant 1 : index
    %c0_191 = arith.constant 0 : index
    %123 = vector.load %arg10[%c0_188, %c1_189, %c1_190, %c0_191] : memref<2x12x3x16xbf16, #tpu.memory_space<vmem>>, vector<2x2x2x16xbf16>
    tpu.vector_store %arg10[%c0_188, %c1_189, %c1_190, %c0_191], %122 {strides = array<i32>} : memref<2x12x3x16xbf16, #tpu.memory_space<vmem>>, vector<2x2x2x16xbf16>,
    %cst_192 = arith.constant 0.000000e+00 : bf16
    %124 = vector.broadcast %cst_192 : bf16 to vector<2x1x3x16xbf16>
    %cst_193 = arith.constant 0.000000e+00 : bf16
    %125 = vector.broadcast %cst_193 : bf16 to vector<2x3x1x16xbf16>
    %c0_194 = arith.constant 0 : index
    %c0_195 = arith.constant 0 : index
    %c0_196 = arith.constant 0 : index
    %c0_197 = arith.constant 0 : index
    %126 = vector.load %arg10[%c0_194, %c0_195, %c0_196, %c0_197] : memref<2x12x3x16xbf16, #tpu.memory_space<vmem>>, vector<2x1x3x16xbf16>
    tpu.vector_store %arg10[%c0_194, %c0_195, %c0_196, %c0_197], %124 {strides = array<i32>} : memref<2x12x3x16xbf16, #tpu.memory_space<vmem>>, vector<2x1x3x16xbf16>,
    %c0_198 = arith.constant 0 : index
    %c0_199 = arith.constant 0 : index
    %c0_200 = arith.constant 0 : index
    %c0_201 = arith.constant 0 : index
    %127 = vector.load %arg10[%c0_198, %c0_199, %c0_200, %c0_201] : memref<2x12x3x16xbf16, #tpu.memory_space<vmem>>, vector<2x3x1x16xbf16>
    tpu.vector_store %arg10[%c0_198, %c0_199, %c0_200, %c0_201], %125 {strides = array<i32>} : memref<2x12x3x16xbf16, #tpu.memory_space<vmem>>, vector<2x3x1x16xbf16>,
    %c0_202 = arith.constant 0 : index
    %c3 = arith.constant 3 : index
    %c0_203 = arith.constant 0 : index
    %c0_204 = arith.constant 0 : index
    %128 = vector.load %arg10[%c0_202, %c3, %c0_203, %c0_204] : memref<2x12x3x16xbf16, #tpu.memory_space<vmem>>, vector<2x1x3x16xbf16>
    tpu.vector_store %arg10[%c0_202, %c3, %c0_203, %c0_204], %124 {strides = array<i32>} : memref<2x12x3x16xbf16, #tpu.memory_space<vmem>>, vector<2x1x3x16xbf16>,
    %c0_205 = arith.constant 0 : index
    %c3_206 = arith.constant 3 : index
    %c2 = arith.constant 2 : index
    %c0_207 = arith.constant 0 : index
    %129 = vector.load %arg10[%c0_205, %c3_206, %c2, %c0_207] : memref<2x12x3x16xbf16, #tpu.memory_space<vmem>>, vector<2x3x1x16xbf16>
    tpu.vector_store %arg10[%c0_205, %c3_206, %c2, %c0_207], %125 {strides = array<i32>} : memref<2x12x3x16xbf16, #tpu.memory_space<vmem>>, vector<2x3x1x16xbf16>,
    %c0_208 = arith.constant 0 : index
    %c8 = arith.constant 8 : index
    %c0_209 = arith.constant 0 : index
    %c0_210 = arith.constant 0 : index
    %130 = vector.load %arg10[%c0_208, %c8, %c0_209, %c0_210] : memref<2x12x3x16xbf16, #tpu.memory_space<vmem>>, vector<2x1x3x16xbf16>
    tpu.vector_store %arg10[%c0_208, %c8, %c0_209, %c0_210], %124 {strides = array<i32>} : memref<2x12x3x16xbf16, #tpu.memory_space<vmem>>, vector<2x1x3x16xbf16>,
    %c0_211 = arith.constant 0 : index
    %c6_212 = arith.constant 6 : index
    %c0_213 = arith.constant 0 : index
    %c0_214 = arith.constant 0 : index
    %131 = vector.load %arg10[%c0_211, %c6_212, %c0_213, %c0_214] : memref<2x12x3x16xbf16, #tpu.memory_space<vmem>>, vector<2x3x1x16xbf16>
    tpu.vector_store %arg10[%c0_211, %c6_212, %c0_213, %c0_214], %125 {strides = array<i32>} : memref<2x12x3x16xbf16, #tpu.memory_space<vmem>>, vector<2x3x1x16xbf16>,
    %c0_215 = arith.constant 0 : index
    %c11_216 = arith.constant 11 : index
    %c0_217 = arith.constant 0 : index
    %c0_218 = arith.constant 0 : index
    %132 = vector.load %arg10[%c0_215, %c11_216, %c0_217, %c0_218] : memref<2x12x3x16xbf16, #tpu.memory_space<vmem>>, vector<2x1x3x16xbf16>
    tpu.vector_store %arg10[%c0_215, %c11_216, %c0_217, %c0_218], %124 {strides = array<i32>} : memref<2x12x3x16xbf16, #tpu.memory_space<vmem>>, vector<2x1x3x16xbf16>,
    %c0_219 = arith.constant 0 : index
    %c9_220 = arith.constant 9 : index
    %c2_221 = arith.constant 2 : index
    %c0_222 = arith.constant 0 : index
    %133 = vector.load %arg10[%c0_219, %c9_220, %c2_221, %c0_222] : memref<2x12x3x16xbf16, #tpu.memory_space<vmem>>, vector<2x3x1x16xbf16>
    tpu.vector_store %arg10[%c0_219, %c9_220, %c2_221, %c0_222], %125 {strides = array<i32>} : memref<2x12x3x16xbf16, #tpu.memory_space<vmem>>, vector<2x3x1x16xbf16>,
    %c0_223 = arith.constant 0 : index
    %c0_224 = arith.constant 0 : index
    %c0_225 = arith.constant 0 : index
    %c0_226 = arith.constant 0 : index
    %134 = vector.load %arg10[%c0_223, %c0_224, %c0_225, %c0_226] : memref<2x12x3x16xbf16, #tpu.memory_space<vmem>>, vector<2x2x2x16xbf16>
    %135 = vector.shape_cast %134 : vector<2x2x2x16xbf16> to vector<8x16xbf16>
    %c0_227 = arith.constant 0 : index
    %c3_228 = arith.constant 3 : index
    %c0_229 = arith.constant 0 : index
    %c0_230 = arith.constant 0 : index
    %136 = vector.load %arg10[%c0_227, %c3_228, %c0_229, %c0_230] : memref<2x12x3x16xbf16, #tpu.memory_space<vmem>>, vector<2x2x2x16xbf16>
    %137 = vector.shape_cast %136 : vector<2x2x2x16xbf16> to vector<8x16xbf16>
    %c0_231 = arith.constant 0 : index
    %c0_232 = arith.constant 0 : index
    %c1_233 = arith.constant 1 : index
    %c0_234 = arith.constant 0 : index
    %138 = vector.load %arg10[%c0_231, %c0_232, %c1_233, %c0_234] : memref<2x12x3x16xbf16, #tpu.memory_space<vmem>>, vector<2x2x2x16xbf16>
    %139 = vector.shape_cast %138 : vector<2x2x2x16xbf16> to vector<8x16xbf16>
    %c0_235 = arith.constant 0 : index
    %c3_236 = arith.constant 3 : index
    %c1_237 = arith.constant 1 : index
    %c0_238 = arith.constant 0 : index
    %140 = vector.load %arg10[%c0_235, %c3_236, %c1_237, %c0_238] : memref<2x12x3x16xbf16, #tpu.memory_space<vmem>>, vector<2x2x2x16xbf16>
    %141 = vector.shape_cast %140 : vector<2x2x2x16xbf16> to vector<8x16xbf16>
    %c0_239 = arith.constant 0 : index
    %c6_240 = arith.constant 6 : index
    %c0_241 = arith.constant 0 : index
    %c0_242 = arith.constant 0 : index
    %142 = vector.load %arg10[%c0_239, %c6_240, %c0_241, %c0_242] : memref<2x12x3x16xbf16, #tpu.memory_space<vmem>>, vector<2x2x2x16xbf16>
    %143 = vector.shape_cast %142 : vector<2x2x2x16xbf16> to vector<8x16xbf16>
    %c0_243 = arith.constant 0 : index
    %c9_244 = arith.constant 9 : index
    %c0_245 = arith.constant 0 : index
    %c0_246 = arith.constant 0 : index
    %144 = vector.load %arg10[%c0_243, %c9_244, %c0_245, %c0_246] : memref<2x12x3x16xbf16, #tpu.memory_space<vmem>>, vector<2x2x2x16xbf16>
    %145 = vector.shape_cast %144 : vector<2x2x2x16xbf16> to vector<8x16xbf16>
    %c0_247 = arith.constant 0 : index
    %c6_248 = arith.constant 6 : index
    %c1_249 = arith.constant 1 : index
    %c0_250 = arith.constant 0 : index
    %146 = vector.load %arg10[%c0_247, %c6_248, %c1_249, %c0_250] : memref<2x12x3x16xbf16, #tpu.memory_space<vmem>>, vector<2x2x2x16xbf16>
    %147 = vector.shape_cast %146 : vector<2x2x2x16xbf16> to vector<8x16xbf16>
    %c0_251 = arith.constant 0 : index
    %c9_252 = arith.constant 9 : index
    %c1_253 = arith.constant 1 : index
    %c0_254 = arith.constant 0 : index
    %148 = vector.load %arg10[%c0_251, %c9_252, %c1_253, %c0_254] : memref<2x12x3x16xbf16, #tpu.memory_space<vmem>>, vector<2x2x2x16xbf16>
    %149 = vector.shape_cast %148 : vector<2x2x2x16xbf16> to vector<8x16xbf16>
    %c0_255 = arith.constant 0 : index
    %c1_256 = arith.constant 1 : index
    %c0_257 = arith.constant 0 : index
    %c0_258 = arith.constant 0 : index
    %150 = vector.load %arg10[%c0_255, %c1_256, %c0_257, %c0_258] : memref<2x12x3x16xbf16, #tpu.memory_space<vmem>>, vector<2x2x2x16xbf16>
    %151 = vector.shape_cast %150 : vector<2x2x2x16xbf16> to vector<8x16xbf16>
    %c0_259 = arith.constant 0 : index
    %c4_260 = arith.constant 4 : index
    %c0_261 = arith.constant 0 : index
    %c0_262 = arith.constant 0 : index
    %152 = vector.load %arg10[%c0_259, %c4_260, %c0_261, %c0_262] : memref<2x12x3x16xbf16, #tpu.memory_space<vmem>>, vector<2x2x2x16xbf16>
    %153 = vector.shape_cast %152 : vector<2x2x2x16xbf16> to vector<8x16xbf16>
    %c0_263 = arith.constant 0 : index
    %c1_264 = arith.constant 1 : index
    %c1_265 = arith.constant 1 : index
    %c0_266 = arith.constant 0 : index
    %154 = vector.load %arg10[%c0_263, %c1_264, %c1_265, %c0_266] : memref<2x12x3x16xbf16, #tpu.memory_space<vmem>>, vector<2x2x2x16xbf16>
    %155 = vector.shape_cast %154 : vector<2x2x2x16xbf16> to vector<8x16xbf16>
    %c0_267 = arith.constant 0 : index
    %c4_268 = arith.constant 4 : index
    %c1_269 = arith.constant 1 : index
    %c0_270 = arith.constant 0 : index
    %156 = vector.load %arg10[%c0_267, %c4_268, %c1_269, %c0_270] : memref<2x12x3x16xbf16, #tpu.memory_space<vmem>>, vector<2x2x2x16xbf16>
    %157 = vector.shape_cast %156 : vector<2x2x2x16xbf16> to vector<8x16xbf16>
    %c0_271 = arith.constant 0 : index
    %c7 = arith.constant 7 : index
    %c0_272 = arith.constant 0 : index
    %c0_273 = arith.constant 0 : index
    %158 = vector.load %arg10[%c0_271, %c7, %c0_272, %c0_273] : memref<2x12x3x16xbf16, #tpu.memory_space<vmem>>, vector<2x2x2x16xbf16>
    %159 = vector.shape_cast %158 : vector<2x2x2x16xbf16> to vector<8x16xbf16>
    %c0_274 = arith.constant 0 : index
    %c10_275 = arith.constant 10 : index
    %c0_276 = arith.constant 0 : index
    %c0_277 = arith.constant 0 : index
    %160 = vector.load %arg10[%c0_274, %c10_275, %c0_276, %c0_277] : memref<2x12x3x16xbf16, #tpu.memory_space<vmem>>, vector<2x2x2x16xbf16>
    %161 = vector.shape_cast %160 : vector<2x2x2x16xbf16> to vector<8x16xbf16>
    %c0_278 = arith.constant 0 : index
    %c7_279 = arith.constant 7 : index
    %c1_280 = arith.constant 1 : index
    %c0_281 = arith.constant 0 : index
    %162 = vector.load %arg10[%c0_278, %c7_279, %c1_280, %c0_281] : memref<2x12x3x16xbf16, #tpu.memory_space<vmem>>, vector<2x2x2x16xbf16>
    %163 = vector.shape_cast %162 : vector<2x2x2x16xbf16> to vector<8x16xbf16>
    %c0_282 = arith.constant 0 : index
    %c10_283 = arith.constant 10 : index
    %c1_284 = arith.constant 1 : index
    %c0_285 = arith.constant 0 : index
    %164 = vector.load %arg10[%c0_282, %c10_283, %c1_284, %c0_285] : memref<2x12x3x16xbf16, #tpu.memory_space<vmem>>, vector<2x2x2x16xbf16>
    %165 = vector.shape_cast %164 : vector<2x2x2x16xbf16> to vector<8x16xbf16>
    %166 = tpu.concatenate %135, %137, %139, %141, %143, %145, %147, %149, %151, %153, %155, %157, %159, %161, %163, %165 in 1 : vector<8x16xbf16>, vector<8x16xbf16>, vector<8x16xbf16>, vector<8x16xbf16>, vector<8x16xbf16>, vector<8x16xbf16>, vector<8x16xbf16>, vector<8x16xbf16>, vector<8x16xbf16>, vector<8x16xbf16>, vector<8x16xbf16>, vector<8x16xbf16>, vector<8x16xbf16>, vector<8x16xbf16>, vector<8x16xbf16>, vector<8x16xbf16> -> vector<8x256xbf16>
    %c0_286 = arith.constant 0 : index
    %c0_287 = arith.constant 0 : index
    %167 = vector.load %arg6[%c0_286, %c0_287] : memref<256x1xbf16, #tpu.memory_space<vmem>>, vector<256x1xbf16>
    %cst_288 = arith.constant dense<0.000000e+00> : vector<8x1xf32>
    %168 = tpu.matmul %166, %167, %cst_288 {dimension_numbers = #tpu.dot_dimension_numbers<[1], [0], [0], [1], [0, 0, 1, 1], [], []>} : vector<8x256xbf16>, vector<256x1xbf16>, vector<8x1xf32> -> vector<8x1xf32>
    %c0_289 = arith.constant 0 : index
    %c0_290 = arith.constant 0 : index
    %169 = vector.load %arg7[%c0_289, %c0_290] : memref<1x1xf32, #tpu.memory_space<vmem>>, vector<1x1xf32>
    %170 = vector.broadcast %169 : vector<1x1xf32> to vector<8x1xf32>
    %171 = arith.addf %168, %170 : vector<8x1xf32>
    %172 = vector.shape_cast %171 : vector<8x1xf32> to vector<1x8xf32>
    %c0_291 = arith.constant 0 : index
    %c0_292 = arith.constant 0 : index
    %173 = vector.load %arg8[%c0_291, %c0_292] : memref<1x8xf32, #tpu.memory_space<vmem>>, vector<1x8xf32>
    tpu.vector_store %arg8[%c0_291, %c0_292], %172 {strides = array<i32>} : memref<1x8xf32, #tpu.memory_space<vmem>>, vector<1x8xf32>,
    return
  }
  func.func @transform_0(%arg0: i32) -> (i32, i32, i32, i32) {
    %c0_i32 = arith.constant 0 : i32
    %c0_i32_0 = arith.constant 0 : i32
    %c0_i32_1 = arith.constant 0 : i32
    %c0_i32_2 = arith.constant 0 : i32
    return %arg0, %c0_i32, %c0_i32_0, %c0_i32_1 : i32, i32, i32, i32
  }
  func.func @transform_1(%arg0: i32) -> (i32, i32) {
    %c0_i32 = arith.constant 0 : i32
    %c0_i32_0 = arith.constant 0 : i32
    %c0_i32_1 = arith.constant 0 : i32
    return %c0_i32, %c0_i32_0 : i32, i32
  }
  func.func @transform_2(%arg0: i32) -> (i32, i32) {
    %c0_i32 = arith.constant 0 : i32
    %c0_i32_0 = arith.constant 0 : i32
    %c0_i32_1 = arith.constant 0 : i32
    return %c0_i32, %c0_i32_0 : i32, i32
  }
  func.func @transform_3(%arg0: i32) -> (i32, i32) {
    %c0_i32 = arith.constant 0 : i32
    %c0_i32_0 = arith.constant 0 : i32
    %c0_i32_1 = arith.constant 0 : i32
    return %c0_i32, %c0_i32_0 : i32, i32
  }
  func.func @transform_4(%arg0: i32) -> (i32, i32) {
    %c0_i32 = arith.constant 0 : i32
    %c0_i32_0 = arith.constant 0 : i32
    %c0_i32_1 = arith.constant 0 : i32
    return %c0_i32, %c0_i32_0 : i32, i32
  }
  func.func @transform_5(%arg0: i32) -> (i32, i32) {
    %c0_i32 = arith.constant 0 : i32
    %c0_i32_0 = arith.constant 0 : i32
    %c0_i32_1 = arith.constant 0 : i32
    return %c0_i32, %c0_i32_0 : i32, i32
  }
  func.func @transform_6(%arg0: i32) -> (i32, i32) {
    %c0_i32 = arith.constant 0 : i32
    %c0_i32_0 = arith.constant 0 : i32
    %c0_i32_1 = arith.constant 0 : i32
    return %c0_i32, %c0_i32_0 : i32, i32
  }
  func.func @transform_7(%arg0: i32) -> (i32, i32) {
    %c0_i32 = arith.constant 0 : i32
    %c0_i32_0 = arith.constant 0 : i32
    return %arg0, %c0_i32 : i32, i32
  }
}

</mosaic_0001>

<llo_original>
// kernel: mul.11
$region0: #{mul.11}
  #allocation0 [shape = 's32[1]{0}', space=sflag, size = 0x4, scoped, tag = 'scoped memory for mul.11']
  %s0 = inlined_call_operand.vmem [shape: f32[256,1], index: 0, kind: input, shape index: {}]
  %s1 = inlined_call_operand.vmem [shape: f32[256,1], index: 1, kind: input, shape index: {}]
  %s2 = inlined_call_operand.vmem [shape: bf16[256,1], index: 2, kind: output, shape index: {}]
  %v3 = vld [vmem:[%s0] sm:$0x1]
  %v4 = vld [vmem:[%s1] sm:$0x1]
  %5 = xla_tuple %v3, %v4
  %6 = xla_tuple %5
  %v7 = vmul.f32 %v3, %v4
  %8 = xla_tuple %v7
  %v9 = vpack.c.bf16 0.0, %v7
  %10 = vst [vmem:[%s2] sm:$0x1] %v9
  %s11 = scalar_lea.vmem %s0, 1
  %v12 = vld [vmem:[%s11] sm:$0x1]
  %s13 = scalar_lea.vmem %s1, 1
  %v14 = vld [vmem:[%s13] sm:$0x1]
  %15 = xla_tuple %v12, %v14
  %16 = xla_tuple %15
  %v17 = vmul.f32 %v12, %v14
  %18 = xla_tuple %v17
  %s19 = scalar_lea.vmem %s2, 1
  %v20 = vpack.c.bf16 0.0, %v17
  %21 = vst [vmem:[%s19] sm:$0x1] %v20

// kernel: light_light_fc_discriminator.1
$region0: #{light_light_fc_discriminator.1}
  #allocation0 [shape = 'u32[]', space=smem, size = 0x4, offset = 0x4, fixed_abs, tag = 'smem constant byte address 0x4 - core index']
  #allocation1 [shape = 'u32[144,128]{1,0:T(1,128)}', space=vmem, size = 0x12000, scoped, tag = 'internal scratch']
  #allocation2 [shape = 'bf16[2,20,5,8]{3,2,1,0:T(8,128)(2,1)}', space=vmem, size = 0x14000, scoped, tag = 'scratch operand']
  #allocation3 [shape = 'bf16[2,12,3,16]{3,2,1,0:T(4,128)(2,1)}', space=vmem, size = 0x6000, scoped, tag = 'scratch operand']
  #allocation4 [shape = 'f32[1,1]{1,0:T(1,128)S(1)}', space=vmem, size = 0x200, scoped, tag = 'scoped memory for light_light_fc_discriminator.1']
  %s0 = inlined_call_operand.vmem [shape: bf16[2,36,9,4], index: 0, kind: input, shape index: {}]
  %s1 = inlined_call_operand.vmem [shape: bf16[64,8], index: 1, kind: input, shape index: {}]
  %s2 = inlined_call_operand.vmem [shape: f32[1,8], index: 2, kind: input, shape index: {}]
  %s3 = inlined_call_operand.vmem [shape: bf16[128,16], index: 3, kind: input, shape index: {}]
  %s4 = inlined_call_operand.vmem [shape: f32[1,16], index: 4, kind: input, shape index: {}]
  %s5 = inlined_call_operand.vmem [shape: bf16[256,1], index: 5, kind: input, shape index: {}]
  %s6 = inlined_call_operand.<no memory space> [shape: f32[1,1], index: 6, kind: input, shape index: {}]
  %s7 = inlined_call_operand.vmem [shape: f32[1,8], index: 7, kind: output, shape index: {}]
  %s8 = sld [smem:[#allocation0]]
  $region38: #{light_light_fc_discriminator.1} parent=0
    _
  %s10 = ssub.s32 1, %s8
  %s11 = scalar_select 0, %s10, %s8
  %v12 = vstv %s6
  %13 = vst [vmem:[#allocation4] sm:$0x1] %v12
  // Predicated region
  $region2: #{light_light_fc_discriminator.1} parent=0 // pred_check
    _
  $region3: #{light_light_fc_discriminator.1} parent=0 // pred_check_branch
    %15 = sbr.rel (0) target = $region5
  $region4: #{light_light_fc_discriminator.1} parent=0 // pred_region
    _
  $region5: #{light_light_fc_discriminator.1} parent=0 // pred_fallthru
    _
  // Predicated region
  $region6: #{light_light_fc_discriminator.1} parent=0 // pred_check
    _
  $region7: #{light_light_fc_discriminator.1} parent=0 // pred_check_branch
    %17 = sbr.rel (0) target = $region9
  $region8: #{light_light_fc_discriminator.1} parent=0 // pred_region
    _
  $region9: #{light_light_fc_discriminator.1} parent=0 // pred_fallthru
    _
  // Predicated region
  $region10: #{light_light_fc_discriminator.1} parent=0 // pred_check
    _
  $region11: #{light_light_fc_discriminator.1} parent=0 // pred_check_branch
    %19 = sbr.rel (0) target = $region13
  $region12: #{light_light_fc_discriminator.1} parent=0 // pred_region
    _
  $region13: #{light_light_fc_discriminator.1} parent=0 // pred_fallthru
    _
  // Predicated region
  $region14: #{light_light_fc_discriminator.1} parent=0 // pred_check
    _
  $region15: #{light_light_fc_discriminator.1} parent=0 // pred_check_branch
    %21 = sbr.rel (0) target = $region17
  $region16: #{light_light_fc_discriminator.1} parent=0 // pred_region
    _
  $region17: #{light_light_fc_discriminator.1} parent=0 // pred_fallthru
    _
  // Predicated region
  $region18: #{light_light_fc_discriminator.1} parent=0 // pred_check
    _
  $region19: #{light_light_fc_discriminator.1} parent=0 // pred_check_branch
    %23 = sbr.rel (0) target = $region21
  $region20: #{light_light_fc_discriminator.1} parent=0 // pred_region
    _
  $region21: #{light_light_fc_discriminator.1} parent=0 // pred_fallthru
    _
  // Predicated region
  $region22: #{light_light_fc_discriminator.1} parent=0 // pred_check
    _
  $region23: #{light_light_fc_discriminator.1} parent=0 // pred_check_branch
    %25 = sbr.rel (0) target = $region25
  $region24: #{light_light_fc_discriminator.1} parent=0 // pred_region
    _
  $region25: #{light_light_fc_discriminator.1} parent=0 // pred_fallthru
    _
  // Predicated region
  $region26: #{light_light_fc_discriminator.1} parent=0 // pred_check
    _
  $region27: #{light_light_fc_discriminator.1} parent=0 // pred_check_branch
    %27 = sbr.rel (0) target = $region29
  $region28: #{light_light_fc_discriminator.1} parent=0 // pred_region
    _
  $region29: #{light_light_fc_discriminator.1} parent=0 // pred_fallthru
    _
  %v29 = vld [vmem:[%s0] sm:$0xf]
  %v30 = vld [vmem:[%s0 + $0x8] sm:$0xf]
  %v31 = vld [vmem:[%s0 + $0x10] sm:$0xf]
  %v32 = vld [vmem:[%s0 + $0x18] sm:$0xf]
  %v33 = vld [vmem:[%s0 + $0x20] sm:$0xf]
  %v34 = vld [vmem:[%s0 + $0x28] sm:$0xf]
  %v35 = vld [vmem:[%s0 + $0x30] sm:$0xf]
  %v36 = vld [vmem:[%s0 + $0x38] sm:$0xf]
  %v37 = vld [vmem:[%s0 + $0x120] sm:$0xf]
  %v38 = vld [vmem:[%s0 + $0x128] sm:$0xf]
  %v39 = vld [vmem:[%s0 + $0x130] sm:$0xf]
  %v40 = vld [vmem:[%s0 + $0x138] sm:$0xf]
  %v41 = vld [vmem:[%s0 + $0x140] sm:$0xf]
  %v42 = vld [vmem:[%s0 + $0x148] sm:$0xf]
  %v43 = vld [vmem:[%s0 + $0x150] sm:$0xf]
  %v44 = vld [vmem:[%s0 + $0x158] sm:$0xf]
  %s45 = scalar_lea.vmem %s0, 72
  %v46 = vld [vmem:[%s45] sm:$0xf]
  %v47 = vld [vmem:[%s45 + $0x8] sm:$0xf]
  %v48 = vld [vmem:[%s45 + $0x10] sm:$0xf]
  %v49 = vld [vmem:[%s45 + $0x18] sm:$0xf]
  %v50 = vld [vmem:[%s45 + $0x20] sm:$0xf]
  %v51 = vld [vmem:[%s45 + $0x28] sm:$0xf]
  %v52 = vld [vmem:[%s45 + $0x30] sm:$0xf]
  %v53 = vld [vmem:[%s45 + $0x38] sm:$0xf]
  %v54 = vld [vmem:[%s45 + $0x120] sm:$0xf]
  %v55 = vld [vmem:[%s45 + $0x128] sm:$0xf]
  %v56 = vld [vmem:[%s45 + $0x130] sm:$0xf]
  %v57 = vld [vmem:[%s45 + $0x138] sm:$0xf]
  %v58 = vld [vmem:[%s45 + $0x140] sm:$0xf]
  %v59 = vld [vmem:[%s45 + $0x148] sm:$0xf]
  %v60 = vld [vmem:[%s45 + $0x150] sm:$0xf]
  %v61 = vld [vmem:[%s45 + $0x158] sm:$0xf]
  %v62 = vld [vmem:[%s0 + $0x4] sm:$0x1]
  %v63 = vld [vmem:[%s0 + $0xc] sm:$0x1]
  %v64 = vld [vmem:[%s0 + $0x14] sm:$0x1]
  %v65 = vld [vmem:[%s0 + $0x1c] sm:$0x1]
  %v66 = vld [vmem:[%s0 + $0x24] sm:$0x1]
  %v67 = vld [vmem:[%s0 + $0x2c] sm:$0x1]
  %v68 = vld [vmem:[%s0 + $0x34] sm:$0x1]
  %v69 = vld [vmem:[%s0 + $0x3c] sm:$0x1]
  %v70 = vld [vmem:[%s0 + $0x124] sm:$0x1]
  %v71 = vld [vmem:[%s0 + $0x12c] sm:$0x1]
  %v72 = vld [vmem:[%s0 + $0x134] sm:$0x1]
  %v73 = vld [vmem:[%s0 + $0x13c] sm:$0x1]
  %v74 = vld [vmem:[%s0 + $0x144] sm:$0x1]
  %v75 = vld [vmem:[%s0 + $0x14c] sm:$0x1]
  %v76 = vld [vmem:[%s0 + $0x154] sm:$0x1]
  %v77 = vld [vmem:[%s0 + $0x15c] sm:$0x1]
  %vm78 = vsmask.f32 3328
  %vm79 = vsmask.f32 7440
  %vm80 = vmor %vm78, %vm79
  %v82 = vshrl.u32 %v29, 16
  %v84 = vrot.slane %v82, 4
  %v85 = vshll.u32 %v29, 16
  %v87 = vrot.slane %v85, 5
  %v88 = vor.u32 %v84, %v87
  %v89 = vrot.slane %v88, 4
  %v91 = vshll.u32 %v62, 16
  %v93 = vrot.slane %v91, 5
  %v94 = vsel %vm80, %v89, %v93
  %v96 = vshrl.u32 %v30, 16
  %v98 = vrot.slane %v96, 4
  %v99 = vshll.u32 %v30, 16
  %v101 = vrot.slane %v99, 5
  %v102 = vor.u32 %v98, %v101
  %v103 = vrot.slane %v102, 4
  %v105 = vshll.u32 %v63, 16
  %v107 = vrot.slane %v105, 5
  %v108 = vsel %vm80, %v103, %v107
  %v110 = vshrl.u32 %v31, 16
  %v112 = vrot.slane %v110, 4
  %v113 = vshll.u32 %v31, 16
  %v115 = vrot.slane %v113, 5
  %v116 = vor.u32 %v112, %v115
  %v117 = vrot.slane %v116, 4
  %v119 = vshll.u32 %v64, 16
  %v121 = vrot.slane %v119, 5
  %v122 = vsel %vm80, %v117, %v121
  %v124 = vshrl.u32 %v32, 16
  %v126 = vrot.slane %v124, 4
  %v127 = vshll.u32 %v32, 16
  %v129 = vrot.slane %v127, 5
  %v130 = vor.u32 %v126, %v129
  %v131 = vrot.slane %v130, 4
  %v133 = vshll.u32 %v65, 16
  %v135 = vrot.slane %v133, 5
  %v136 = vsel %vm80, %v131, %v135
  %v138 = vshrl.u32 %v33, 16
  %v140 = vrot.slane %v138, 4
  %v141 = vshll.u32 %v33, 16
  %v143 = vrot.slane %v141, 5
  %v144 = vor.u32 %v140, %v143
  %v145 = vrot.slane %v144, 4
  %v147 = vshll.u32 %v66, 16
  %v149 = vrot.slane %v147, 5
  %v150 = vsel %vm80, %v145, %v149
  %v152 = vshrl.u32 %v34, 16
  %v154 = vrot.slane %v152, 4
  %v155 = vshll.u32 %v34, 16
  %v157 = vrot.slane %v155, 5
  %v158 = vor.u32 %v154, %v157
  %v159 = vrot.slane %v158, 4
  %v161 = vshll.u32 %v67, 16
  %v163 = vrot.slane %v161, 5
  %v164 = vsel %vm80, %v159, %v163
  %v166 = vshrl.u32 %v35, 16
  %v168 = vrot.slane %v166, 4
  %v169 = vshll.u32 %v35, 16
  %v171 = vrot.slane %v169, 5
  %v172 = vor.u32 %v168, %v171
  %v173 = vrot.slane %v172, 4
  %v175 = vshll.u32 %v68, 16
  %v177 = vrot.slane %v175, 5
  %v178 = vsel %vm80, %v173, %v177
  %v180 = vshrl.u32 %v36, 16
  %v182 = vrot.slane %v180, 4
  %v183 = vshll.u32 %v36, 16
  %v185 = vrot.slane %v183, 5
  %v186 = vor.u32 %v182, %v185
  %v187 = vrot.slane %v186, 4
  %v189 = vshll.u32 %v69, 16
  %v191 = vrot.slane %v189, 5
  %v192 = vsel %vm80, %v187, %v191
  %v194 = vshrl.u32 %v37, 16
  %v196 = vrot.slane %v194, 4
  %v197 = vshll.u32 %v37, 16
  %v199 = vrot.slane %v197, 5
  %v200 = vor.u32 %v196, %v199
  %v201 = vrot.slane %v200, 4
  %v203 = vshll.u32 %v70, 16
  %v205 = vrot.slane %v203, 5
  %v206 = vsel %vm80, %v201, %v205
  %v208 = vshrl.u32 %v38, 16
  %v210 = vrot.slane %v208, 4
  %v211 = vshll.u32 %v38, 16
  %v213 = vrot.slane %v211, 5
  %v214 = vor.u32 %v210, %v213
  %v215 = vrot.slane %v214, 4
  %v217 = vshll.u32 %v71, 16
  %v219 = vrot.slane %v217, 5
  %v220 = vsel %vm80, %v215, %v219
  %v222 = vshrl.u32 %v39, 16
  %v224 = vrot.slane %v222, 4
  %v225 = vshll.u32 %v39, 16
  %v227 = vrot.slane %v225, 5
  %v228 = vor.u32 %v224, %v227
  %v229 = vrot.slane %v228, 4
  %v231 = vshll.u32 %v72, 16
  %v233 = vrot.slane %v231, 5
  %v234 = vsel %vm80, %v229, %v233
  %v236 = vshrl.u32 %v40, 16
  %v238 = vrot.slane %v236, 4
  %v239 = vshll.u32 %v40, 16
  %v241 = vrot.slane %v239, 5
  %v242 = vor.u32 %v238, %v241
  %v243 = vrot.slane %v242, 4
  %v245 = vshll.u32 %v73, 16
  %v247 = vrot.slane %v245, 5
  %v248 = vsel %vm80, %v243, %v247
  %v250 = vshrl.u32 %v41, 16
  %v252 = vrot.slane %v250, 4
  %v253 = vshll.u32 %v41, 16
  %v255 = vrot.slane %v253, 5
  %v256 = vor.u32 %v252, %v255
  %v257 = vrot.slane %v256, 4
  %v259 = vshll.u32 %v74, 16
  %v261 = vrot.slane %v259, 5
  %v262 = vsel %vm80, %v257, %v261
  %v264 = vshrl.u32 %v42, 16
  %v266 = vrot.slane %v264, 4
  %v267 = vshll.u32 %v42, 16
  %v269 = vrot.slane %v267, 5
  %v270 = vor.u32 %v266, %v269
  %v271 = vrot.slane %v270, 4
  %v273 = vshll.u32 %v75, 16
  %v275 = vrot.slane %v273, 5
  %v276 = vsel %vm80, %v271, %v275
  %v278 = vshrl.u32 %v43, 16
  %v280 = vrot.slane %v278, 4
  %v281 = vshll.u32 %v43, 16
  %v283 = vrot.slane %v281, 5
  %v284 = vor.u32 %v280, %v283
  %v285 = vrot.slane %v284, 4
  %v287 = vshll.u32 %v76, 16
  %v289 = vrot.slane %v287, 5
  %v290 = vsel %vm80, %v285, %v289
  %v292 = vshrl.u32 %v44, 16
  %v294 = vrot.slane %v292, 4
  %v295 = vshll.u32 %v44, 16
  %v297 = vrot.slane %v295, 5
  %v298 = vor.u32 %v294, %v297
  %v299 = vrot.slane %v298, 4
  %v301 = vshll.u32 %v77, 16
  %v303 = vrot.slane %v301, 5
  %v304 = vsel %vm80, %v299, %v303
  %v305 = vld [vmem:[%s45 + $0x4] sm:$0x1]
  %v306 = vld [vmem:[%s45 + $0xc] sm:$0x1]
  %v307 = vld [vmem:[%s45 + $0x14] sm:$0x1]
  %v308 = vld [vmem:[%s45 + $0x1c] sm:$0x1]
  %v309 = vld [vmem:[%s45 + $0x24] sm:$0x1]
  %v310 = vld [vmem:[%s45 + $0x2c] sm:$0x1]
  %v311 = vld [vmem:[%s45 + $0x34] sm:$0x1]
  %v312 = vld [vmem:[%s45 + $0x3c] sm:$0x1]
  %v313 = vld [vmem:[%s45 + $0x124] sm:$0x1]
  %v314 = vld [vmem:[%s45 + $0x12c] sm:$0x1]
  %v315 = vld [vmem:[%s45 + $0x134] sm:$0x1]
  %v316 = vld [vmem:[%s45 + $0x13c] sm:$0x1]
  %v317 = vld [vmem:[%s45 + $0x144] sm:$0x1]
  %v318 = vld [vmem:[%s45 + $0x14c] sm:$0x1]
  %v319 = vld [vmem:[%s45 + $0x154] sm:$0x1]
  %v320 = vld [vmem:[%s45 + $0x15c] sm:$0x1]
  %v322 = vshrl.u32 %v46, 16
  %v324 = vrot.slane %v322, 4
  %v325 = vshll.u32 %v46, 16
  %v327 = vrot.slane %v325, 5
  %v328 = vor.u32 %v324, %v327
  %v329 = vrot.slane %v328, 4
  %v331 = vshll.u32 %v305, 16
  %v333 = vrot.slane %v331, 5
  %v334 = vsel %vm80, %v329, %v333
  %v336 = vshrl.u32 %v47, 16
  %v338 = vrot.slane %v336, 4
  %v339 = vshll.u32 %v47, 16
  %v341 = vrot.slane %v339, 5
  %v342 = vor.u32 %v338, %v341
  %v343 = vrot.slane %v342, 4
  %v345 = vshll.u32 %v306, 16
  %v347 = vrot.slane %v345, 5
  %v348 = vsel %vm80, %v343, %v347
  %v350 = vshrl.u32 %v48, 16
  %v352 = vrot.slane %v350, 4
  %v353 = vshll.u32 %v48, 16
  %v355 = vrot.slane %v353, 5
  %v356 = vor.u32 %v352, %v355
  %v357 = vrot.slane %v356, 4
  %v359 = vshll.u32 %v307, 16
  %v361 = vrot.slane %v359, 5
  %v362 = vsel %vm80, %v357, %v361
  %v364 = vshrl.u32 %v49, 16
  %v366 = vrot.slane %v364, 4
  %v367 = vshll.u32 %v49, 16
  %v369 = vrot.slane %v367, 5
  %v370 = vor.u32 %v366, %v369
  %v371 = vrot.slane %v370, 4
  %v373 = vshll.u32 %v308, 16
  %v375 = vrot.slane %v373, 5
  %v376 = vsel %vm80, %v371, %v375
  %v378 = vshrl.u32 %v50, 16
  %v380 = vrot.slane %v378, 4
  %v381 = vshll.u32 %v50, 16
  %v383 = vrot.slane %v381, 5
  %v384 = vor.u32 %v380, %v383
  %v385 = vrot.slane %v384, 4
  %v387 = vshll.u32 %v309, 16
  %v389 = vrot.slane %v387, 5
  %v390 = vsel %vm80, %v385, %v389
  %v392 = vshrl.u32 %v51, 16
  %v394 = vrot.slane %v392, 4
  %v395 = vshll.u32 %v51, 16
  %v397 = vrot.slane %v395, 5
  %v398 = vor.u32 %v394, %v397
  %v399 = vrot.slane %v398, 4
  %v401 = vshll.u32 %v310, 16
  %v403 = vrot.slane %v401, 5
  %v404 = vsel %vm80, %v399, %v403
  %v406 = vshrl.u32 %v52, 16
  %v408 = vrot.slane %v406, 4
  %v409 = vshll.u32 %v52, 16
  %v411 = vrot.slane %v409, 5
  %v412 = vor.u32 %v408, %v411
  %v413 = vrot.slane %v412, 4
  %v415 = vshll.u32 %v311, 16
  %v417 = vrot.slane %v415, 5
  %v418 = vsel %vm80, %v413, %v417
  %v420 = vshrl.u32 %v53, 16
  %v422 = vrot.slane %v420, 4
  %v423 = vshll.u32 %v53, 16
  %v425 = vrot.slane %v423, 5
  %v426 = vor.u32 %v422, %v425
  %v427 = vrot.slane %v426, 4
  %v429 = vshll.u32 %v312, 16
  %v431 = vrot.slane %v429, 5
  %v432 = vsel %vm80, %v427, %v431
  %v434 = vshrl.u32 %v54, 16
  %v436 = vrot.slane %v434, 4
  %v437 = vshll.u32 %v54, 16
  %v439 = vrot.slane %v437, 5
  %v440 = vor.u32 %v436, %v439
  %v441 = vrot.slane %v440, 4
  %v443 = vshll.u32 %v313, 16
  %v445 = vrot.slane %v443, 5
  %v446 = vsel %vm80, %v441, %v445
  %v448 = vshrl.u32 %v55, 16
  %v450 = vrot.slane %v448, 4
  %v451 = vshll.u32 %v55, 16
  %v453 = vrot.slane %v451, 5
  %v454 = vor.u32 %v450, %v453
  %v455 = vrot.slane %v454, 4
  %v457 = vshll.u32 %v314, 16
  %v459 = vrot.slane %v457, 5
  %v460 = vsel %vm80, %v455, %v459
  %v462 = vshrl.u32 %v56, 16
  %v464 = vrot.slane %v462, 4
  %v465 = vshll.u32 %v56, 16
  %v467 = vrot.slane %v465, 5
  %v468 = vor.u32 %v464, %v467
  %v469 = vrot.slane %v468, 4
  %v471 = vshll.u32 %v315, 16
  %v473 = vrot.slane %v471, 5
  %v474 = vsel %vm80, %v469, %v473
  %v476 = vshrl.u32 %v57, 16
  %v478 = vrot.slane %v476, 4
  %v479 = vshll.u32 %v57, 16
  %v481 = vrot.slane %v479, 5
  %v482 = vor.u32 %v478, %v481
  %v483 = vrot.slane %v482, 4
  %v485 = vshll.u32 %v316, 16
  %v487 = vrot.slane %v485, 5
  %v488 = vsel %vm80, %v483, %v487
  %v490 = vshrl.u32 %v58, 16
  %v492 = vrot.slane %v490, 4
  %v493 = vshll.u32 %v58, 16
  %v495 = vrot.slane %v493, 5
  %v496 = vor.u32 %v492, %v495
  %v497 = vrot.slane %v496, 4
  %v499 = vshll.u32 %v317, 16
  %v501 = vrot.slane %v499, 5
  %v502 = vsel %vm80, %v497, %v501
  %v504 = vshrl.u32 %v59, 16
  %v506 = vrot.slane %v504, 4
  %v507 = vshll.u32 %v59, 16
  %v509 = vrot.slane %v507, 5
  %v510 = vor.u32 %v506, %v509
  %v511 = vrot.slane %v510, 4
  %v513 = vshll.u32 %v318, 16
  %v515 = vrot.slane %v513, 5
  %v516 = vsel %vm80, %v511, %v515
  %v518 = vshrl.u32 %v60, 16
  %v520 = vrot.slane %v518, 4
  %v521 = vshll.u32 %v60, 16
  %v523 = vrot.slane %v521, 5
  %v524 = vor.u32 %v520, %v523
  %v525 = vrot.slane %v524, 4
  %v527 = vshll.u32 %v319, 16
  %v529 = vrot.slane %v527, 5
  %v530 = vsel %vm80, %v525, %v529
  %v532 = vshrl.u32 %v61, 16
  %v534 = vrot.slane %v532, 4
  %v535 = vshll.u32 %v61, 16
  %v537 = vrot.slane %v535, 5
  %v538 = vor.u32 %v534, %v537
  %v539 = vrot.slane %v538, 4
  %v541 = vshll.u32 %v320, 16
  %v543 = vrot.slane %v541, 5
  %v544 = vsel %vm80, %v539, %v543
  %s545 = scalar_lea.vmem %s0, 144
  %v546 = vld [vmem:[%s545] sm:$0xf]
  %v547 = vld [vmem:[%s545 + $0x8] sm:$0xf]
  %v548 = vld [vmem:[%s545 + $0x10] sm:$0xf]
  %v549 = vld [vmem:[%s545 + $0x18] sm:$0xf]
  %v550 = vld [vmem:[%s545 + $0x20] sm:$0xf]
  %v551 = vld [vmem:[%s545 + $0x28] sm:$0xf]
  %v552 = vld [vmem:[%s545 + $0x30] sm:$0xf]
  %v553 = vld [vmem:[%s545 + $0x38] sm:$0xf]
  %v554 = vld [vmem:[%s545 + $0x120] sm:$0xf]
  %v555 = vld [vmem:[%s545 + $0x128] sm:$0xf]
  %v556 = vld [vmem:[%s545 + $0x130] sm:$0xf]
  %v557 = vld [vmem:[%s545 + $0x138] sm:$0xf]
  %v558 = vld [vmem:[%s545 + $0x140] sm:$0xf]
  %v559 = vld [vmem:[%s545 + $0x148] sm:$0xf]
  %v560 = vld [vmem:[%s545 + $0x150] sm:$0xf]
  %v561 = vld [vmem:[%s545 + $0x158] sm:$0xf]
  %s562 = scalar_lea.vmem %s0, 216
  %v563 = vld [vmem:[%s562] sm:$0xf]
  %v564 = vld [vmem:[%s562 + $0x8] sm:$0xf]
  %v565 = vld [vmem:[%s562 + $0x10] sm:$0xf]
  %v566 = vld [vmem:[%s562 + $0x18] sm:$0xf]
  %v567 = vld [vmem:[%s562 + $0x20] sm:$0xf]
  %v568 = vld [vmem:[%s562 + $0x28] sm:$0xf]
  %v569 = vld [vmem:[%s562 + $0x30] sm:$0xf]
  %v570 = vld [vmem:[%s562 + $0x38] sm:$0xf]
  %v571 = vld [vmem:[%s562 + $0x120] sm:$0xf]
  %v572 = vld [vmem:[%s562 + $0x128] sm:$0xf]
  %v573 = vld [vmem:[%s562 + $0x130] sm:$0xf]
  %v574 = vld [vmem:[%s562 + $0x138] sm:$0xf]
  %v575 = vld [vmem:[%s562 + $0x140] sm:$0xf]
  %v576 = vld [vmem:[%s562 + $0x148] sm:$0xf]
  %v577 = vld [vmem:[%s562 + $0x150] sm:$0xf]
  %v578 = vld [vmem:[%s562 + $0x158] sm:$0xf]
  %v579 = vld [vmem:[%s545 + $0x4] sm:$0x1]
  %v580 = vld [vmem:[%s545 + $0xc] sm:$0x1]
  %v581 = vld [vmem:[%s545 + $0x14] sm:$0x1]
  %v582 = vld [vmem:[%s545 + $0x1c] sm:$0x1]
  %v583 = vld [vmem:[%s545 + $0x24] sm:$0x1]
  %v584 = vld [vmem:[%s545 + $0x2c] sm:$0x1]
  %v585 = vld [vmem:[%s545 + $0x34] sm:$0x1]
  %v586 = vld [vmem:[%s545 + $0x3c] sm:$0x1]
  %v587 = vld [vmem:[%s545 + $0x124] sm:$0x1]
  %v588 = vld [vmem:[%s545 + $0x12c] sm:$0x1]
  %v589 = vld [vmem:[%s545 + $0x134] sm:$0x1]
  %v590 = vld [vmem:[%s545 + $0x13c] sm:$0x1]
  %v591 = vld [vmem:[%s545 + $0x144] sm:$0x1]
  %v592 = vld [vmem:[%s545 + $0x14c] sm:$0x1]
  %v593 = vld [vmem:[%s545 + $0x154] sm:$0x1]
  %v594 = vld [vmem:[%s545 + $0x15c] sm:$0x1]
  %v596 = vshrl.u32 %v546, 16
  %v598 = vrot.slane %v596, 4
  %v599 = vshll.u32 %v546, 16
  %v601 = vrot.slane %v599, 5
  %v602 = vor.u32 %v598, %v601
  %v603 = vrot.slane %v602, 4
  %v605 = vshll.u32 %v579, 16
  %v607 = vrot.slane %v605, 5
  %v608 = vsel %vm80, %v603, %v607
  %v610 = vshrl.u32 %v547, 16
  %v612 = vrot.slane %v610, 4
  %v613 = vshll.u32 %v547, 16
  %v615 = vrot.slane %v613, 5
  %v616 = vor.u32 %v612, %v615
  %v617 = vrot.slane %v616, 4
  %v619 = vshll.u32 %v580, 16
  %v621 = vrot.slane %v619, 5
  %v622 = vsel %vm80, %v617, %v621
  %v624 = vshrl.u32 %v548, 16
  %v626 = vrot.slane %v624, 4
  %v627 = vshll.u32 %v548, 16
  %v629 = vrot.slane %v627, 5
  %v630 = vor.u32 %v626, %v629
  %v631 = vrot.slane %v630, 4
  %v633 = vshll.u32 %v581, 16
  %v635 = vrot.slane %v633, 5
  %v636 = vsel %vm80, %v631, %v635
  %v638 = vshrl.u32 %v549, 16
  %v640 = vrot.slane %v638, 4
  %v641 = vshll.u32 %v549, 16
  %v643 = vrot.slane %v641, 5
  %v644 = vor.u32 %v640, %v643
  %v645 = vrot.slane %v644, 4
  %v647 = vshll.u32 %v582, 16
  %v649 = vrot.slane %v647, 5
  %v650 = vsel %vm80, %v645, %v649
  %v652 = vshrl.u32 %v550, 16
  %v654 = vrot.slane %v652, 4
  %v655 = vshll.u32 %v550, 16
  %v657 = vrot.slane %v655, 5
  %v658 = vor.u32 %v654, %v657
  %v659 = vrot.slane %v658, 4
  %v661 = vshll.u32 %v583, 16
  %v663 = vrot.slane %v661, 5
  %v664 = vsel %vm80, %v659, %v663
  %v666 = vshrl.u32 %v551, 16
  %v668 = vrot.slane %v666, 4
  %v669 = vshll.u32 %v551, 16
  %v671 = vrot.slane %v669, 5
  %v672 = vor.u32 %v668, %v671
  %v673 = vrot.slane %v672, 4
  %v675 = vshll.u32 %v584, 16
  %v677 = vrot.slane %v675, 5
  %v678 = vsel %vm80, %v673, %v677
  %v680 = vshrl.u32 %v552, 16
  %v682 = vrot.slane %v680, 4
  %v683 = vshll.u32 %v552, 16
  %v685 = vrot.slane %v683, 5
  %v686 = vor.u32 %v682, %v685
  %v687 = vrot.slane %v686, 4
  %v689 = vshll.u32 %v585, 16
  %v691 = vrot.slane %v689, 5
  %v692 = vsel %vm80, %v687, %v691
  %v694 = vshrl.u32 %v553, 16
  %v696 = vrot.slane %v694, 4
  %v697 = vshll.u32 %v553, 16
  %v699 = vrot.slane %v697, 5
  %v700 = vor.u32 %v696, %v699
  %v701 = vrot.slane %v700, 4
  %v703 = vshll.u32 %v586, 16
  %v705 = vrot.slane %v703, 5
  %v706 = vsel %vm80, %v701, %v705
  %v708 = vshrl.u32 %v554, 16
  %v710 = vrot.slane %v708, 4
  %v711 = vshll.u32 %v554, 16
  %v713 = vrot.slane %v711, 5
  %v714 = vor.u32 %v710, %v713
  %v715 = vrot.slane %v714, 4
  %v717 = vshll.u32 %v587, 16
  %v719 = vrot.slane %v717, 5
  %v720 = vsel %vm80, %v715, %v719
  %v722 = vshrl.u32 %v555, 16
  %v724 = vrot.slane %v722, 4
  %v725 = vshll.u32 %v555, 16
  %v727 = vrot.slane %v725, 5
  %v728 = vor.u32 %v724, %v727
  %v729 = vrot.slane %v728, 4
  %v731 = vshll.u32 %v588, 16
  %v733 = vrot.slane %v731, 5
  %v734 = vsel %vm80, %v729, %v733
  %v736 = vshrl.u32 %v556, 16
  %v738 = vrot.slane %v736, 4
  %v739 = vshll.u32 %v556, 16
  %v741 = vrot.slane %v739, 5
  %v742 = vor.u32 %v738, %v741
  %v743 = vrot.slane %v742, 4
  %v745 = vshll.u32 %v589, 16
  %v747 = vrot.slane %v745, 5
  %v748 = vsel %vm80, %v743, %v747
  %v750 = vshrl.u32 %v557, 16
  %v752 = vrot.slane %v750, 4
  %v753 = vshll.u32 %v557, 16
  %v755 = vrot.slane %v753, 5
  %v756 = vor.u32 %v752, %v755
  %v757 = vrot.slane %v756, 4
  %v759 = vshll.u32 %v590, 16
  %v761 = vrot.slane %v759, 5
  %v762 = vsel %vm80, %v757, %v761
  %v764 = vshrl.u32 %v558, 16
  %v766 = vrot.slane %v764, 4
  %v767 = vshll.u32 %v558, 16
  %v769 = vrot.slane %v767, 5
  %v770 = vor.u32 %v766, %v769
  %v771 = vrot.slane %v770, 4
  %v773 = vshll.u32 %v591, 16
  %v775 = vrot.slane %v773, 5
  %v776 = vsel %vm80, %v771, %v775
  %v778 = vshrl.u32 %v559, 16
  %v780 = vrot.slane %v778, 4
  %v781 = vshll.u32 %v559, 16
  %v783 = vrot.slane %v781, 5
  %v784 = vor.u32 %v780, %v783
  %v785 = vrot.slane %v784, 4
  %v787 = vshll.u32 %v592, 16
  %v789 = vrot.slane %v787, 5
  %v790 = vsel %vm80, %v785, %v789
  %v792 = vshrl.u32 %v560, 16
  %v794 = vrot.slane %v792, 4
  %v795 = vshll.u32 %v560, 16
  %v797 = vrot.slane %v795, 5
  %v798 = vor.u32 %v794, %v797
  %v799 = vrot.slane %v798, 4
  %v801 = vshll.u32 %v593, 16
  %v803 = vrot.slane %v801, 5
  %v804 = vsel %vm80, %v799, %v803
  %v806 = vshrl.u32 %v561, 16
  %v808 = vrot.slane %v806, 4
  %v809 = vshll.u32 %v561, 16
  %v811 = vrot.slane %v809, 5
  %v812 = vor.u32 %v808, %v811
  %v813 = vrot.slane %v812, 4
  %v815 = vshll.u32 %v594, 16
  %v817 = vrot.slane %v815, 5
  %v818 = vsel %vm80, %v813, %v817
  %v819 = vld [vmem:[%s562 + $0x4] sm:$0x1]
  %v820 = vld [vmem:[%s562 + $0xc] sm:$0x1]
  %v821 = vld [vmem:[%s562 + $0x14] sm:$0x1]
  %v822 = vld [vmem:[%s562 + $0x1c] sm:$0x1]
  %v823 = vld [vmem:[%s562 + $0x24] sm:$0x1]
  %v824 = vld [vmem:[%s562 + $0x2c] sm:$0x1]
  %v825 = vld [vmem:[%s562 + $0x34] sm:$0x1]
  %v826 = vld [vmem:[%s562 + $0x3c] sm:$0x1]
  %v827 = vld [vmem:[%s562 + $0x124] sm:$0x1]
  %v828 = vld [vmem:[%s562 + $0x12c] sm:$0x1]
  %v829 = vld [vmem:[%s562 + $0x134] sm:$0x1]
  %v830 = vld [vmem:[%s562 + $0x13c] sm:$0x1]
  %v831 = vld [vmem:[%s562 + $0x144] sm:$0x1]
  %v832 = vld [vmem:[%s562 + $0x14c] sm:$0x1]
  %v833 = vld [vmem:[%s562 + $0x154] sm:$0x1]
  %v834 = vld [vmem:[%s562 + $0x15c] sm:$0x1]
  %v836 = vshrl.u32 %v563, 16
  %v838 = vrot.slane %v836, 4
  %v839 = vshll.u32 %v563, 16
  %v841 = vrot.slane %v839, 5
  %v842 = vor.u32 %v838, %v841
  %v843 = vrot.slane %v842, 4
  %v845 = vshll.u32 %v819, 16
  %v847 = vrot.slane %v845, 5
  %v848 = vsel %vm80, %v843, %v847
  %v850 = vshrl.u32 %v564, 16
  %v852 = vrot.slane %v850, 4
  %v853 = vshll.u32 %v564, 16
  %v855 = vrot.slane %v853, 5
  %v856 = vor.u32 %v852, %v855
  %v857 = vrot.slane %v856, 4
  %v859 = vshll.u32 %v820, 16
  %v861 = vrot.slane %v859, 5
  %v862 = vsel %vm80, %v857, %v861
  %v864 = vshrl.u32 %v565, 16
  %v866 = vrot.slane %v864, 4
  %v867 = vshll.u32 %v565, 16
  %v869 = vrot.slane %v867, 5
  %v870 = vor.u32 %v866, %v869
  %v871 = vrot.slane %v870, 4
  %v873 = vshll.u32 %v821, 16
  %v875 = vrot.slane %v873, 5
  %v876 = vsel %vm80, %v871, %v875
  %v878 = vshrl.u32 %v566, 16
  %v880 = vrot.slane %v878, 4
  %v881 = vshll.u32 %v566, 16
  %v883 = vrot.slane %v881, 5
  %v884 = vor.u32 %v880, %v883
  %v885 = vrot.slane %v884, 4
  %v887 = vshll.u32 %v822, 16
  %v889 = vrot.slane %v887, 5
  %v890 = vsel %vm80, %v885, %v889
  %v892 = vshrl.u32 %v567, 16
  %v894 = vrot.slane %v892, 4
  %v895 = vshll.u32 %v567, 16
  %v897 = vrot.slane %v895, 5
  %v898 = vor.u32 %v894, %v897
  %v899 = vrot.slane %v898, 4
  %v901 = vshll.u32 %v823, 16
  %v903 = vrot.slane %v901, 5
  %v904 = vsel %vm80, %v899, %v903
  %v906 = vshrl.u32 %v568, 16
  %v908 = vrot.slane %v906, 4
  %v909 = vshll.u32 %v568, 16
  %v911 = vrot.slane %v909, 5
  %v912 = vor.u32 %v908, %v911
  %v913 = vrot.slane %v912, 4
  %v915 = vshll.u32 %v824, 16
  %v917 = vrot.slane %v915, 5
  %v918 = vsel %vm80, %v913, %v917
  %v920 = vshrl.u32 %v569, 16
  %v922 = vrot.slane %v920, 4
  %v923 = vshll.u32 %v569, 16
  %v925 = vrot.slane %v923, 5
  %v926 = vor.u32 %v922, %v925
  %v927 = vrot.slane %v926, 4
  %v929 = vshll.u32 %v825, 16
  %v931 = vrot.slane %v929, 5
  %v932 = vsel %vm80, %v927, %v931
  %v934 = vshrl.u32 %v570, 16
  %v936 = vrot.slane %v934, 4
  %v937 = vshll.u32 %v570, 16
  %v939 = vrot.slane %v937, 5
  %v940 = vor.u32 %v936, %v939
  %v941 = vrot.slane %v940, 4
  %v943 = vshll.u32 %v826, 16
  %v945 = vrot.slane %v943, 5
  %v946 = vsel %vm80, %v941, %v945
  %v948 = vshrl.u32 %v571, 16
  %v950 = vrot.slane %v948, 4
  %v951 = vshll.u32 %v571, 16
  %v953 = vrot.slane %v951, 5
  %v954 = vor.u32 %v950, %v953
  %v955 = vrot.slane %v954, 4
  %v957 = vshll.u32 %v827, 16
  %v959 = vrot.slane %v957, 5
  %v960 = vsel %vm80, %v955, %v959
  %v962 = vshrl.u32 %v572, 16
  %v964 = vrot.slane %v962, 4
  %v965 = vshll.u32 %v572, 16
  %v967 = vrot.slane %v965, 5
  %v968 = vor.u32 %v964, %v967
  %v969 = vrot.slane %v968, 4
  %v971 = vshll.u32 %v828, 16
  %v973 = vrot.slane %v971, 5
  %v974 = vsel %vm80, %v969, %v973
  %v976 = vshrl.u32 %v573, 16
  %v978 = vrot.slane %v976, 4
  %v979 = vshll.u32 %v573, 16
  %v981 = vrot.slane %v979, 5
  %v982 = vor.u32 %v978, %v981
  %v983 = vrot.slane %v982, 4
  %v985 = vshll.u32 %v829, 16
  %v987 = vrot.slane %v985, 5
  %v988 = vsel %vm80, %v983, %v987
  %v990 = vshrl.u32 %v574, 16
  %v992 = vrot.slane %v990, 4
  %v993 = vshll.u32 %v574, 16
  %v995 = vrot.slane %v993, 5
  %v996 = vor.u32 %v992, %v995
  %v997 = vrot.slane %v996, 4
  %v999 = vshll.u32 %v830, 16
  %v1001 = vrot.slane %v999, 5
  %v1002 = vsel %vm80, %v997, %v1001
  %v1004 = vshrl.u32 %v575, 16
  %v1006 = vrot.slane %v1004, 4
  %v1007 = vshll.u32 %v575, 16
  %v1009 = vrot.slane %v1007, 5
  %v1010 = vor.u32 %v1006, %v1009
  %v1011 = vrot.slane %v1010, 4
  %v1013 = vshll.u32 %v831, 16
  %v1015 = vrot.slane %v1013, 5
  %v1016 = vsel %vm80, %v1011, %v1015
  %v1018 = vshrl.u32 %v576, 16
  %v1020 = vrot.slane %v1018, 4
  %v1021 = vshll.u32 %v576, 16
  %v1023 = vrot.slane %v1021, 5
  %v1024 = vor.u32 %v1020, %v1023
  %v1025 = vrot.slane %v1024, 4
  %v1027 = vshll.u32 %v832, 16
  %v1029 = vrot.slane %v1027, 5
  %v1030 = vsel %vm80, %v1025, %v1029
  %v1032 = vshrl.u32 %v577, 16
  %v1034 = vrot.slane %v1032, 4
  %v1035 = vshll.u32 %v577, 16
  %v1037 = vrot.slane %v1035, 5
  %v1038 = vor.u32 %v1034, %v1037
  %v1039 = vrot.slane %v1038, 4
  %v1041 = vshll.u32 %v833, 16
  %v1043 = vrot.slane %v1041, 5
  %v1044 = vsel %vm80, %v1039, %v1043
  %v1046 = vshrl.u32 %v578, 16
  %v1048 = vrot.slane %v1046, 4
  %v1049 = vshll.u32 %v578, 16
  %v1051 = vrot.slane %v1049, 5
  %v1052 = vor.u32 %v1048, %v1051
  %v1053 = vrot.slane %v1052, 4
  %v1055 = vshll.u32 %v834, 16
  %v1057 = vrot.slane %v1055, 5
  %v1058 = vsel %vm80, %v1053, %v1057
  %s1059 = scalar_lea.vmem %s0, 8
  %v1060 = vld [vmem:[%s1059] sm:$0xf]
  %v1061 = vld [vmem:[%s1059 + $0x8] sm:$0xf]
  %v1062 = vld [vmem:[%s1059 + $0x10] sm:$0xf]
  %v1063 = vld [vmem:[%s1059 + $0x18] sm:$0xf]
  %v1064 = vld [vmem:[%s1059 + $0x20] sm:$0xf]
  %v1065 = vld [vmem:[%s1059 + $0x28] sm:$0xf]
  %v1066 = vld [vmem:[%s1059 + $0x30] sm:$0xf]
  %v1067 = vld [vmem:[%s1059 + $0x38] sm:$0xf]
  %v1068 = vld [vmem:[%s1059 + $0x120] sm:$0xf]
  %v1069 = vld [vmem:[%s1059 + $0x128] sm:$0xf]
  %v1070 = vld [vmem:[%s1059 + $0x130] sm:$0xf]
  %v1071 = vld [vmem:[%s1059 + $0x138] sm:$0xf]
  %v1072 = vld [vmem:[%s1059 + $0x140] sm:$0xf]
  %v1073 = vld [vmem:[%s1059 + $0x148] sm:$0xf]
  %v1074 = vld [vmem:[%s1059 + $0x150] sm:$0xf]
  %v1075 = vld [vmem:[%s1059 + $0x158] sm:$0xf]
  %s1076 = scalar_lea.vmem %s0, 80
  %v1077 = vld [vmem:[%s1076] sm:$0xf]
  %v1078 = vld [vmem:[%s1076 + $0x8] sm:$0xf]
  %v1079 = vld [vmem:[%s1076 + $0x10] sm:$0xf]
  %v1080 = vld [vmem:[%s1076 + $0x18] sm:$0xf]
  %v1081 = vld [vmem:[%s1076 + $0x20] sm:$0xf]
  %v1082 = vld [vmem:[%s1076 + $0x28] sm:$0xf]
  %v1083 = vld [vmem:[%s1076 + $0x30] sm:$0xf]
  %v1084 = vld [vmem:[%s1076 + $0x38] sm:$0xf]
  %v1085 = vld [vmem:[%s1076 + $0x120] sm:$0xf]
  %v1086 = vld [vmem:[%s1076 + $0x128] sm:$0xf]
  %v1087 = vld [vmem:[%s1076 + $0x130] sm:$0xf]
  %v1088 = vld [vmem:[%s1076 + $0x138] sm:$0xf]
  %v1089 = vld [vmem:[%s1076 + $0x140] sm:$0xf]
  %v1090 = vld [vmem:[%s1076 + $0x148] sm:$0xf]
  %v1091 = vld [vmem:[%s1076 + $0x150] sm:$0xf]
  %v1092 = vld [vmem:[%s1076 + $0x158] sm:$0xf]
  %v1093 = vld [vmem:[%s1059 + $0x4] sm:$0x1]
  %v1094 = vld [vmem:[%s1059 + $0xc] sm:$0x1]
  %v1095 = vld [vmem:[%s1059 + $0x14] sm:$0x1]
  %v1096 = vld [vmem:[%s1059 + $0x1c] sm:$0x1]
  %v1097 = vld [vmem:[%s1059 + $0x24] sm:$0x1]
  %v1098 = vld [vmem:[%s1059 + $0x2c] sm:$0x1]
  %v1099 = vld [vmem:[%s1059 + $0x34] sm:$0x1]
  %v1100 = vld [vmem:[%s1059 + $0x3c] sm:$0x1]
  %v1101 = vld [vmem:[%s1059 + $0x124] sm:$0x1]
  %v1102 = vld [vmem:[%s1059 + $0x12c] sm:$0x1]
  %v1103 = vld [vmem:[%s1059 + $0x134] sm:$0x1]
  %v1104 = vld [vmem:[%s1059 + $0x13c] sm:$0x1]
  %v1105 = vld [vmem:[%s1059 + $0x144] sm:$0x1]
  %v1106 = vld [vmem:[%s1059 + $0x14c] sm:$0x1]
  %v1107 = vld [vmem:[%s1059 + $0x154] sm:$0x1]
  %v1108 = vld [vmem:[%s1059 + $0x15c] sm:$0x1]
  %v1110 = vshrl.u32 %v1060, 16
  %v1112 = vrot.slane %v1110, 4
  %v1113 = vshll.u32 %v1060, 16
  %v1115 = vrot.slane %v1113, 5
  %v1116 = vor.u32 %v1112, %v1115
  %v1117 = vrot.slane %v1116, 4
  %v1119 = vshll.u32 %v1093, 16
  %v1121 = vrot.slane %v1119, 5
  %v1122 = vsel %vm80, %v1117, %v1121
  %v1124 = vshrl.u32 %v1061, 16
  %v1126 = vrot.slane %v1124, 4
  %v1127 = vshll.u32 %v1061, 16
  %v1129 = vrot.slane %v1127, 5
  %v1130 = vor.u32 %v1126, %v1129
  %v1131 = vrot.slane %v1130, 4
  %v1133 = vshll.u32 %v1094, 16
  %v1135 = vrot.slane %v1133, 5
  %v1136 = vsel %vm80, %v1131, %v1135
  %v1138 = vshrl.u32 %v1062, 16
  %v1140 = vrot.slane %v1138, 4
  %v1141 = vshll.u32 %v1062, 16
  %v1143 = vrot.slane %v1141, 5
  %v1144 = vor.u32 %v1140, %v1143
  %v1145 = vrot.slane %v1144, 4
  %v1147 = vshll.u32 %v1095, 16
  %v1149 = vrot.slane %v1147, 5
  %v1150 = vsel %vm80, %v1145, %v1149
  %v1152 = vshrl.u32 %v1063, 16
  %v1154 = vrot.slane %v1152, 4
  %v1155 = vshll.u32 %v1063, 16
  %v1157 = vrot.slane %v1155, 5
  %v1158 = vor.u32 %v1154, %v1157
  %v1159 = vrot.slane %v1158, 4
  %v1161 = vshll.u32 %v1096, 16
  %v1163 = vrot.slane %v1161, 5
  %v1164 = vsel %vm80, %v1159, %v1163
  %v1166 = vshrl.u32 %v1064, 16
  %v1168 = vrot.slane %v1166, 4
  %v1169 = vshll.u32 %v1064, 16
  %v1171 = vrot.slane %v1169, 5
  %v1172 = vor.u32 %v1168, %v1171
  %v1173 = vrot.slane %v1172, 4
  %v1175 = vshll.u32 %v1097, 16
  %v1177 = vrot.slane %v1175, 5
  %v1178 = vsel %vm80, %v1173, %v1177
  %v1180 = vshrl.u32 %v1065, 16
  %v1182 = vrot.slane %v1180, 4
  %v1183 = vshll.u32 %v1065, 16
  %v1185 = vrot.slane %v1183, 5
  %v1186 = vor.u32 %v1182, %v1185
  %v1187 = vrot.slane %v1186, 4
  %v1189 = vshll.u32 %v1098, 16
  %v1191 = vrot.slane %v1189, 5
  %v1192 = vsel %vm80, %v1187, %v1191
  %v1194 = vshrl.u32 %v1066, 16
  %v1196 = vrot.slane %v1194, 4
  %v1197 = vshll.u32 %v1066, 16
  %v1199 = vrot.slane %v1197, 5
  %v1200 = vor.u32 %v1196, %v1199
  %v1201 = vrot.slane %v1200, 4
  %v1203 = vshll.u32 %v1099, 16
  %v1205 = vrot.slane %v1203, 5
  %v1206 = vsel %vm80, %v1201, %v1205
  %v1208 = vshrl.u32 %v1067, 16
  %v1210 = vrot.slane %v1208, 4
  %v1211 = vshll.u32 %v1067, 16
  %v1213 = vrot.slane %v1211, 5
  %v1214 = vor.u32 %v1210, %v1213
  %v1215 = vrot.slane %v1214, 4
  %v1217 = vshll.u32 %v1100, 16
  %v1219 = vrot.slane %v1217, 5
  %v1220 = vsel %vm80, %v1215, %v1219
  %v1222 = vshrl.u32 %v1068, 16
  %v1224 = vrot.slane %v1222, 4
  %v1225 = vshll.u32 %v1068, 16
  %v1227 = vrot.slane %v1225, 5
  %v1228 = vor.u32 %v1224, %v1227
  %v1229 = vrot.slane %v1228, 4
  %v1231 = vshll.u32 %v1101, 16
  %v1233 = vrot.slane %v1231, 5
  %v1234 = vsel %vm80, %v1229, %v1233
  %v1236 = vshrl.u32 %v1069, 16
  %v1238 = vrot.slane %v1236, 4
  %v1239 = vshll.u32 %v1069, 16
  %v1241 = vrot.slane %v1239, 5
  %v1242 = vor.u32 %v1238, %v1241
  %v1243 = vrot.slane %v1242, 4
  %v1245 = vshll.u32 %v1102, 16
  %v1247 = vrot.slane %v1245, 5
  %v1248 = vsel %vm80, %v1243, %v1247
  %v1250 = vshrl.u32 %v1070, 16
  %v1252 = vrot.slane %v1250, 4
  %v1253 = vshll.u32 %v1070, 16
  %v1255 = vrot.slane %v1253, 5
  %v1256 = vor.u32 %v1252, %v1255
  %v1257 = vrot.slane %v1256, 4
  %v1259 = vshll.u32 %v1103, 16
  %v1261 = vrot.slane %v1259, 5
  %v1262 = vsel %vm80, %v1257, %v1261
  %v1264 = vshrl.u32 %v1071, 16
  %v1266 = vrot.slane %v1264, 4
  %v1267 = vshll.u32 %v1071, 16
  %v1269 = vrot.slane %v1267, 5
  %v1270 = vor.u32 %v1266, %v1269
  %v1271 = vrot.slane %v1270, 4
  %v1273 = vshll.u32 %v1104, 16
  %v1275 = vrot.slane %v1273, 5
  %v1276 = vsel %vm80, %v1271, %v1275
  %v1278 = vshrl.u32 %v1072, 16
  %v1280 = vrot.slane %v1278, 4
  %v1281 = vshll.u32 %v1072, 16
  %v1283 = vrot.slane %v1281, 5
  %v1284 = vor.u32 %v1280, %v1283
  %v1285 = vrot.slane %v1284, 4
  %v1287 = vshll.u32 %v1105, 16
  %v1289 = vrot.slane %v1287, 5
  %v1290 = vsel %vm80, %v1285, %v1289
  %v1292 = vshrl.u32 %v1073, 16
  %v1294 = vrot.slane %v1292, 4
  %v1295 = vshll.u32 %v1073, 16
  %v1297 = vrot.slane %v1295, 5
  %v1298 = vor.u32 %v1294, %v1297
  %v1299 = vrot.slane %v1298, 4
  %v1301 = vshll.u32 %v1106, 16
  %v1303 = vrot.slane %v1301, 5
  %v1304 = vsel %vm80, %v1299, %v1303
  %v1306 = vshrl.u32 %v1074, 16
  %v1308 = vrot.slane %v1306, 4
  %v1309 = vshll.u32 %v1074, 16
  %v1311 = vrot.slane %v1309, 5
  %v1312 = vor.u32 %v1308, %v1311
  %v1313 = vrot.slane %v1312, 4
  %v1315 = vshll.u32 %v1107, 16
  %v1317 = vrot.slane %v1315, 5
  %v1318 = vsel %vm80, %v1313, %v1317
  %v1320 = vshrl.u32 %v1075, 16
  %v1322 = vrot.slane %v1320, 4
  %v1323 = vshll.u32 %v1075, 16
  %v1325 = vrot.slane %v1323, 5
  %v1326 = vor.u32 %v1322, %v1325
  %v1327 = vrot.slane %v1326, 4
  %v1329 = vshll.u32 %v1108, 16
  %v1331 = vrot.slane %v1329, 5
  %v1332 = vsel %vm80, %v1327, %v1331
  %v1333 = vld [vmem:[%s1076 + $0x4] sm:$0x1]
  %v1334 = vld [vmem:[%s1076 + $0xc] sm:$0x1]
  %v1335 = vld [vmem:[%s1076 + $0x14] sm:$0x1]
  %v1336 = vld [vmem:[%s1076 + $0x1c] sm:$0x1]
  %v1337 = vld [vmem:[%s1076 + $0x24] sm:$0x1]
  %v1338 = vld [vmem:[%s1076 + $0x2c] sm:$0x1]
  %v1339 = vld [vmem:[%s1076 + $0x34] sm:$0x1]
  %v1340 = vld [vmem:[%s1076 + $0x3c] sm:$0x1]
  %v1341 = vld [vmem:[%s1076 + $0x124] sm:$0x1]
  %v1342 = vld [vmem:[%s1076 + $0x12c] sm:$0x1]
  %v1343 = vld [vmem:[%s1076 + $0x134] sm:$0x1]
  %v1344 = vld [vmem:[%s1076 + $0x13c] sm:$0x1]
  %v1345 = vld [vmem:[%s1076 + $0x144] sm:$0x1]
  %v1346 = vld [vmem:[%s1076 + $0x14c] sm:$0x1]
  %v1347 = vld [vmem:[%s1076 + $0x154] sm:$0x1]
  %v1348 = vld [vmem:[%s1076 + $0x15c] sm:$0x1]
  %v1350 = vshrl.u32 %v1077, 16
  %v1352 = vrot.slane %v1350, 4
  %v1353 = vshll.u32 %v1077, 16
  %v1355 = vrot.slane %v1353, 5
  %v1356 = vor.u32 %v1352, %v1355
  %v1357 = vrot.slane %v1356, 4
  %v1359 = vshll.u32 %v1333, 16
  %v1361 = vrot.slane %v1359, 5
  %v1362 = vsel %vm80, %v1357, %v1361
  %v1364 = vshrl.u32 %v1078, 16
  %v1366 = vrot.slane %v1364, 4
  %v1367 = vshll.u32 %v1078, 16
  %v1369 = vrot.slane %v1367, 5
  %v1370 = vor.u32 %v1366, %v1369
  %v1371 = vrot.slane %v1370, 4
  %v1373 = vshll.u32 %v1334, 16
  %v1375 = vrot.slane %v1373, 5
  %v1376 = vsel %vm80, %v1371, %v1375
  %v1378 = vshrl.u32 %v1079, 16
  %v1380 = vrot.slane %v1378, 4
  %v1381 = vshll.u32 %v1079, 16
  %v1383 = vrot.slane %v1381, 5
  %v1384 = vor.u32 %v1380, %v1383
  %v1385 = vrot.slane %v1384, 4
  %v1387 = vshll.u32 %v1335, 16
  %v1389 = vrot.slane %v1387, 5
  %v1390 = vsel %vm80, %v1385, %v1389
  %v1392 = vshrl.u32 %v1080, 16
  %v1394 = vrot.slane %v1392, 4
  %v1395 = vshll.u32 %v1080, 16
  %v1397 = vrot.slane %v1395, 5
  %v1398 = vor.u32 %v1394, %v1397
  %v1399 = vrot.slane %v1398, 4
  %v1401 = vshll.u32 %v1336, 16
  %v1403 = vrot.slane %v1401, 5
  %v1404 = vsel %vm80, %v1399, %v1403
  %v1406 = vshrl.u32 %v1081, 16
  %v1408 = vrot.slane %v1406, 4
  %v1409 = vshll.u32 %v1081, 16
  %v1411 = vrot.slane %v1409, 5
  %v1412 = vor.u32 %v1408, %v1411
  %v1413 = vrot.slane %v1412, 4
  %v1415 = vshll.u32 %v1337, 16
  %v1417 = vrot.slane %v1415, 5
  %v1418 = vsel %vm80, %v1413, %v1417
  %v1420 = vshrl.u32 %v1082, 16
  %v1422 = vrot.slane %v1420, 4
  %v1423 = vshll.u32 %v1082, 16
  %v1425 = vrot.slane %v1423, 5
  %v1426 = vor.u32 %v1422, %v1425
  %v1427 = vrot.slane %v1426, 4
  %v1429 = vshll.u32 %v1338, 16
  %v1431 = vrot.slane %v1429, 5
  %v1432 = vsel %vm80, %v1427, %v1431
  %v1434 = vshrl.u32 %v1083, 16
  %v1436 = vrot.slane %v1434, 4
  %v1437 = vshll.u32 %v1083, 16
  %v1439 = vrot.slane %v1437, 5
  %v1440 = vor.u32 %v1436, %v1439
  %v1441 = vrot.slane %v1440, 4
  %v1443 = vshll.u32 %v1339, 16
  %v1445 = vrot.slane %v1443, 5
  %v1446 = vsel %vm80, %v1441, %v1445
  %v1448 = vshrl.u32 %v1084, 16
  %v1450 = vrot.slane %v1448, 4
  %v1451 = vshll.u32 %v1084, 16
  %v1453 = vrot.slane %v1451, 5
  %v1454 = vor.u32 %v1450, %v1453
  %v1455 = vrot.slane %v1454, 4
  %v1457 = vshll.u32 %v1340, 16
  %v1459 = vrot.slane %v1457, 5
  %v1460 = vsel %vm80, %v1455, %v1459
  %v1462 = vshrl.u32 %v1085, 16
  %v1464 = vrot.slane %v1462, 4
  %v1465 = vshll.u32 %v1085, 16
  %v1467 = vrot.slane %v1465, 5
  %v1468 = vor.u32 %v1464, %v1467
  %v1469 = vrot.slane %v1468, 4
  %v1471 = vshll.u32 %v1341, 16
  %v1473 = vrot.slane %v1471, 5
  %v1474 = vsel %vm80, %v1469, %v1473
  %v1476 = vshrl.u32 %v1086, 16
  %v1478 = vrot.slane %v1476, 4
  %v1479 = vshll.u32 %v1086, 16
  %v1481 = vrot.slane %v1479, 5
  %v1482 = vor.u32 %v1478, %v1481
  %v1483 = vrot.slane %v1482, 4
  %v1485 = vshll.u32 %v1342, 16
  %v1487 = vrot.slane %v1485, 5
  %v1488 = vsel %vm80, %v1483, %v1487
  %v1490 = vshrl.u32 %v1087, 16
  %v1492 = vrot.slane %v1490, 4
  %v1493 = vshll.u32 %v1087, 16
  %v1495 = vrot.slane %v1493, 5
  %v1496 = vor.u32 %v1492, %v1495
  %v1497 = vrot.slane %v1496, 4
  %v1499 = vshll.u32 %v1343, 16
  %v1501 = vrot.slane %v1499, 5
  %v1502 = vsel %vm80, %v1497, %v1501
  %v1504 = vshrl.u32 %v1088, 16
  %v1506 = vrot.slane %v1504, 4
  %v1507 = vshll.u32 %v1088, 16
  %v1509 = vrot.slane %v1507, 5
  %v1510 = vor.u32 %v1506, %v1509
  %v1511 = vrot.slane %v1510, 4
  %v1513 = vshll.u32 %v1344, 16
  %v1515 = vrot.slane %v1513, 5
  %v1516 = vsel %vm80, %v1511, %v1515
  %v1518 = vshrl.u32 %v1089, 16
  %v1520 = vrot.slane %v1518, 4
  %v1521 = vshll.u32 %v1089, 16
  %v1523 = vrot.slane %v1521, 5
  %v1524 = vor.u32 %v1520, %v1523
  %v1525 = vrot.slane %v1524, 4
  %v1527 = vshll.u32 %v1345, 16
  %v1529 = vrot.slane %v1527, 5
  %v1530 = vsel %vm80, %v1525, %v1529
  %v1532 = vshrl.u32 %v1090, 16
  %v1534 = vrot.slane %v1532, 4
  %v1535 = vshll.u32 %v1090, 16
  %v1537 = vrot.slane %v1535, 5
  %v1538 = vor.u32 %v1534, %v1537
  %v1539 = vrot.slane %v1538, 4
  %v1541 = vshll.u32 %v1346, 16
  %v1543 = vrot.slane %v1541, 5
  %v1544 = vsel %vm80, %v1539, %v1543
  %v1546 = vshrl.u32 %v1091, 16
  %v1548 = vrot.slane %v1546, 4
  %v1549 = vshll.u32 %v1091, 16
  %v1551 = vrot.slane %v1549, 5
  %v1552 = vor.u32 %v1548, %v1551
  %v1553 = vrot.slane %v1552, 4
  %v1555 = vshll.u32 %v1347, 16
  %v1557 = vrot.slane %v1555, 5
  %v1558 = vsel %vm80, %v1553, %v1557
  %v1560 = vshrl.u32 %v1092, 16
  %v1562 = vrot.slane %v1560, 4
  %v1563 = vshll.u32 %v1092, 16
  %v1565 = vrot.slane %v1563, 5
  %v1566 = vor.u32 %v1562, %v1565
  %v1567 = vrot.slane %v1566, 4
  %v1569 = vshll.u32 %v1348, 16
  %v1571 = vrot.slane %v1569, 5
  %v1572 = vsel %vm80, %v1567, %v1571
  %s1573 = scalar_lea.vmem %s0, 152
  %v1574 = vld [vmem:[%s1573] sm:$0xf]
  %v1575 = vld [vmem:[%s1573 + $0x8] sm:$0xf]
  %v1576 = vld [vmem:[%s1573 + $0x10] sm:$0xf]
  %v1577 = vld [vmem:[%s1573 + $0x18] sm:$0xf]
  %v1578 = vld [vmem:[%s1573 + $0x20] sm:$0xf]
  %v1579 = vld [vmem:[%s1573 + $0x28] sm:$0xf]
  %v1580 = vld [vmem:[%s1573 + $0x30] sm:$0xf]
  %v1581 = vld [vmem:[%s1573 + $0x38] sm:$0xf]
  %v1582 = vld [vmem:[%s1573 + $0x120] sm:$0xf]
  %v1583 = vld [vmem:[%s1573 + $0x128] sm:$0xf]
  %v1584 = vld [vmem:[%s1573 + $0x130] sm:$0xf]
  %v1585 = vld [vmem:[%s1573 + $0x138] sm:$0xf]
  %v1586 = vld [vmem:[%s1573 + $0x140] sm:$0xf]
  %v1587 = vld [vmem:[%s1573 + $0x148] sm:$0xf]
  %v1588 = vld [vmem:[%s1573 + $0x150] sm:$0xf]
  %v1589 = vld [vmem:[%s1573 + $0x158] sm:$0xf]
  %s1590 = scalar_lea.vmem %s0, 224
  %v1591 = vld [vmem:[%s1590] sm:$0xf]
  %v1592 = vld [vmem:[%s1590 + $0x8] sm:$0xf]
  %v1593 = vld [vmem:[%s1590 + $0x10] sm:$0xf]
  %v1594 = vld [vmem:[%s1590 + $0x18] sm:$0xf]
  %v1595 = vld [vmem:[%s1590 + $0x20] sm:$0xf]
  %v1596 = vld [vmem:[%s1590 + $0x28] sm:$0xf]
  %v1597 = vld [vmem:[%s1590 + $0x30] sm:$0xf]
  %v1598 = vld [vmem:[%s1590 + $0x38] sm:$0xf]
  %v1599 = vld [vmem:[%s1590 + $0x120] sm:$0xf]
  %v1600 = vld [vmem:[%s1590 + $0x128] sm:$0xf]
  %v1601 = vld [vmem:[%s1590 + $0x130] sm:$0xf]
  %v1602 = vld [vmem:[%s1590 + $0x138] sm:$0xf]
  %v1603 = vld [vmem:[%s1590 + $0x140] sm:$0xf]
  %v1604 = vld [vmem:[%s1590 + $0x148] sm:$0xf]
  %v1605 = vld [vmem:[%s1590 + $0x150] sm:$0xf]
  %v1606 = vld [vmem:[%s1590 + $0x158] sm:$0xf]
  %v1607 = vld [vmem:[%s1573 + $0x4] sm:$0x1]
  %v1608 = vld [vmem:[%s1573 + $0xc] sm:$0x1]
  %v1609 = vld [vmem:[%s1573 + $0x14] sm:$0x1]
  %v1610 = vld [vmem:[%s1573 + $0x1c] sm:$0x1]
  %v1611 = vld [vmem:[%s1573 + $0x24] sm:$0x1]
  %v1612 = vld [vmem:[%s1573 + $0x2c] sm:$0x1]
  %v1613 = vld [vmem:[%s1573 + $0x34] sm:$0x1]
  %v1614 = vld [vmem:[%s1573 + $0x3c] sm:$0x1]
  %v1615 = vld [vmem:[%s1573 + $0x124] sm:$0x1]
  %v1616 = vld [vmem:[%s1573 + $0x12c] sm:$0x1]
  %v1617 = vld [vmem:[%s1573 + $0x134] sm:$0x1]
  %v1618 = vld [vmem:[%s1573 + $0x13c] sm:$0x1]
  %v1619 = vld [vmem:[%s1573 + $0x144] sm:$0x1]
  %v1620 = vld [vmem:[%s1573 + $0x14c] sm:$0x1]
  %v1621 = vld [vmem:[%s1573 + $0x154] sm:$0x1]
  %v1622 = vld [vmem:[%s1573 + $0x15c] sm:$0x1]
  %v1624 = vshrl.u32 %v1574, 16
  %v1626 = vrot.slane %v1624, 4
  %v1627 = vshll.u32 %v1574, 16
  %v1629 = vrot.slane %v1627, 5
  %v1630 = vor.u32 %v1626, %v1629
  %v1631 = vrot.slane %v1630, 4
  %v1633 = vshll.u32 %v1607, 16
  %v1635 = vrot.slane %v1633, 5
  %v1636 = vsel %vm80, %v1631, %v1635
  %v1638 = vshrl.u32 %v1575, 16
  %v1640 = vrot.slane %v1638, 4
  %v1641 = vshll.u32 %v1575, 16
  %v1643 = vrot.slane %v1641, 5
  %v1644 = vor.u32 %v1640, %v1643
  %v1645 = vrot.slane %v1644, 4
  %v1647 = vshll.u32 %v1608, 16
  %v1649 = vrot.slane %v1647, 5
  %v1650 = vsel %vm80, %v1645, %v1649
  %v1652 = vshrl.u32 %v1576, 16
  %v1654 = vrot.slane %v1652, 4
  %v1655 = vshll.u32 %v1576, 16
  %v1657 = vrot.slane %v1655, 5
  %v1658 = vor.u32 %v1654, %v1657
  %v1659 = vrot.slane %v1658, 4
  %v1661 = vshll.u32 %v1609, 16
  %v1663 = vrot.slane %v1661, 5
  %v1664 = vsel %vm80, %v1659, %v1663
  %v1666 = vshrl.u32 %v1577, 16
  %v1668 = vrot.slane %v1666, 4
  %v1669 = vshll.u32 %v1577, 16
  %v1671 = vrot.slane %v1669, 5
  %v1672 = vor.u32 %v1668, %v1671
  %v1673 = vrot.slane %v1672, 4
  %v1675 = vshll.u32 %v1610, 16
  %v1677 = vrot.slane %v1675, 5
  %v1678 = vsel %vm80, %v1673, %v1677
  %v1680 = vshrl.u32 %v1578, 16
  %v1682 = vrot.slane %v1680, 4
  %v1683 = vshll.u32 %v1578, 16
  %v1685 = vrot.slane %v1683, 5
  %v1686 = vor.u32 %v1682, %v1685
  %v1687 = vrot.slane %v1686, 4
  %v1689 = vshll.u32 %v1611, 16
  %v1691 = vrot.slane %v1689, 5
  %v1692 = vsel %vm80, %v1687, %v1691
  %v1694 = vshrl.u32 %v1579, 16
  %v1696 = vrot.slane %v1694, 4
  %v1697 = vshll.u32 %v1579, 16
  %v1699 = vrot.slane %v1697, 5
  %v1700 = vor.u32 %v1696, %v1699
  %v1701 = vrot.slane %v1700, 4
  %v1703 = vshll.u32 %v1612, 16
  %v1705 = vrot.slane %v1703, 5
  %v1706 = vsel %vm80, %v1701, %v1705
  %v1708 = vshrl.u32 %v1580, 16
  %v1710 = vrot.slane %v1708, 4
  %v1711 = vshll.u32 %v1580, 16
  %v1713 = vrot.slane %v1711, 5
  %v1714 = vor.u32 %v1710, %v1713
  %v1715 = vrot.slane %v1714, 4
  %v1717 = vshll.u32 %v1613, 16
  %v1719 = vrot.slane %v1717, 5
  %v1720 = vsel %vm80, %v1715, %v1719
  %v1722 = vshrl.u32 %v1581, 16
  %v1724 = vrot.slane %v1722, 4
  %v1725 = vshll.u32 %v1581, 16
  %v1727 = vrot.slane %v1725, 5
  %v1728 = vor.u32 %v1724, %v1727
  %v1729 = vrot.slane %v1728, 4
  %v1731 = vshll.u32 %v1614, 16
  %v1733 = vrot.slane %v1731, 5
  %v1734 = vsel %vm80, %v1729, %v1733
  %v1736 = vshrl.u32 %v1582, 16
  %v1738 = vrot.slane %v1736, 4
  %v1739 = vshll.u32 %v1582, 16
  %v1741 = vrot.slane %v1739, 5
  %v1742 = vor.u32 %v1738, %v1741
  %v1743 = vrot.slane %v1742, 4
  %v1745 = vshll.u32 %v1615, 16
  %v1747 = vrot.slane %v1745, 5
  %v1748 = vsel %vm80, %v1743, %v1747
  %v1750 = vshrl.u32 %v1583, 16
  %v1752 = vrot.slane %v1750, 4
  %v1753 = vshll.u32 %v1583, 16
  %v1755 = vrot.slane %v1753, 5
  %v1756 = vor.u32 %v1752, %v1755
  %v1757 = vrot.slane %v1756, 4
  %v1759 = vshll.u32 %v1616, 16
  %v1761 = vrot.slane %v1759, 5
  %v1762 = vsel %vm80, %v1757, %v1761
  %v1764 = vshrl.u32 %v1584, 16
  %v1766 = vrot.slane %v1764, 4
  %v1767 = vshll.u32 %v1584, 16
  %v1769 = vrot.slane %v1767, 5
  %v1770 = vor.u32 %v1766, %v1769
  %v1771 = vrot.slane %v1770, 4
  %v1773 = vshll.u32 %v1617, 16
  %v1775 = vrot.slane %v1773, 5
  %v1776 = vsel %vm80, %v1771, %v1775
  %v1778 = vshrl.u32 %v1585, 16
  %v1780 = vrot.slane %v1778, 4
  %v1781 = vshll.u32 %v1585, 16
  %v1783 = vrot.slane %v1781, 5
  %v1784 = vor.u32 %v1780, %v1783
  %v1785 = vrot.slane %v1784, 4
  %v1787 = vshll.u32 %v1618, 16
  %v1789 = vrot.slane %v1787, 5
  %v1790 = vsel %vm80, %v1785, %v1789
  %v1792 = vshrl.u32 %v1586, 16
  %v1794 = vrot.slane %v1792, 4
  %v1795 = vshll.u32 %v1586, 16
  %v1797 = vrot.slane %v1795, 5
  %v1798 = vor.u32 %v1794, %v1797
  %v1799 = vrot.slane %v1798, 4
  %v1801 = vshll.u32 %v1619, 16
  %v1803 = vrot.slane %v1801, 5
  %v1804 = vsel %vm80, %v1799, %v1803
  %v1806 = vshrl.u32 %v1587, 16
  %v1808 = vrot.slane %v1806, 4
  %v1809 = vshll.u32 %v1587, 16
  %v1811 = vrot.slane %v1809, 5
  %v1812 = vor.u32 %v1808, %v1811
  %v1813 = vrot.slane %v1812, 4
  %v1815 = vshll.u32 %v1620, 16
  %v1817 = vrot.slane %v1815, 5
  %v1818 = vsel %vm80, %v1813, %v1817
  %v1820 = vshrl.u32 %v1588, 16
  %v1822 = vrot.slane %v1820, 4
  %v1823 = vshll.u32 %v1588, 16
  %v1825 = vrot.slane %v1823, 5
  %v1826 = vor.u32 %v1822, %v1825
  %v1827 = vrot.slane %v1826, 4
  %v1829 = vshll.u32 %v1621, 16
  %v1831 = vrot.slane %v1829, 5
  %v1832 = vsel %vm80, %v1827, %v1831
  %v1834 = vshrl.u32 %v1589, 16
  %v1836 = vrot.slane %v1834, 4
  %v1837 = vshll.u32 %v1589, 16
  %v1839 = vrot.slane %v1837, 5
  %v1840 = vor.u32 %v1836, %v1839
  %v1841 = vrot.slane %v1840, 4
  %v1843 = vshll.u32 %v1622, 16
  %v1845 = vrot.slane %v1843, 5
  %v1846 = vsel %vm80, %v1841, %v1845
  %v1847 = vld [vmem:[%s1590 + $0x4] sm:$0x1]
  %v1848 = vld [vmem:[%s1590 + $0xc] sm:$0x1]
  %v1849 = vld [vmem:[%s1590 + $0x14] sm:$0x1]
  %v1850 = vld [vmem:[%s1590 + $0x1c] sm:$0x1]
  %v1851 = vld [vmem:[%s1590 + $0x24] sm:$0x1]
  %v1852 = vld [vmem:[%s1590 + $0x2c] sm:$0x1]
  %v1853 = vld [vmem:[%s1590 + $0x34] sm:$0x1]
  %v1854 = vld [vmem:[%s1590 + $0x3c] sm:$0x1]
  %v1855 = vld [vmem:[%s1590 + $0x124] sm:$0x1]
  %v1856 = vld [vmem:[%s1590 + $0x12c] sm:$0x1]
  %v1857 = vld [vmem:[%s1590 + $0x134] sm:$0x1]
  %v1858 = vld [vmem:[%s1590 + $0x13c] sm:$0x1]
  %v1859 = vld [vmem:[%s1590 + $0x144] sm:$0x1]
  %v1860 = vld [vmem:[%s1590 + $0x14c] sm:$0x1]
  %v1861 = vld [vmem:[%s1590 + $0x154] sm:$0x1]
  %v1862 = vld [vmem:[%s1590 + $0x15c] sm:$0x1]
  %v1864 = vshrl.u32 %v1591, 16
  %v1866 = vrot.slane %v1864, 4
  %v1867 = vshll.u32 %v1591, 16
  %v1869 = vrot.slane %v1867, 5
  %v1870 = vor.u32 %v1866, %v1869
  %v1871 = vrot.slane %v1870, 4
  %v1873 = vshll.u32 %v1847, 16
  %v1875 = vrot.slane %v1873, 5
  %v1876 = vsel %vm80, %v1871, %v1875
  %v1878 = vshrl.u32 %v1592, 16
  %v1880 = vrot.slane %v1878, 4
  %v1881 = vshll.u32 %v1592, 16
  %v1883 = vrot.slane %v1881, 5
  %v1884 = vor.u32 %v1880, %v1883
  %v1885 = vrot.slane %v1884, 4
  %v1887 = vshll.u32 %v1848, 16
  %v1889 = vrot.slane %v1887, 5
  %v1890 = vsel %vm80, %v1885, %v1889
  %v1892 = vshrl.u32 %v1593, 16
  %v1894 = vrot.slane %v1892, 4
  %v1895 = vshll.u32 %v1593, 16
  %v1897 = vrot.slane %v1895, 5
  %v1898 = vor.u32 %v1894, %v1897
  %v1899 = vrot.slane %v1898, 4
  %v1901 = vshll.u32 %v1849, 16
  %v1903 = vrot.slane %v1901, 5
  %v1904 = vsel %vm80, %v1899, %v1903
  %v1906 = vshrl.u32 %v1594, 16
  %v1908 = vrot.slane %v1906, 4
  %v1909 = vshll.u32 %v1594, 16
  %v1911 = vrot.slane %v1909, 5
  %v1912 = vor.u32 %v1908, %v1911
  %v1913 = vrot.slane %v1912, 4
  %v1915 = vshll.u32 %v1850, 16
  %v1917 = vrot.slane %v1915, 5
  %v1918 = vsel %vm80, %v1913, %v1917
  %v1920 = vshrl.u32 %v1595, 16
  %v1922 = vrot.slane %v1920, 4
  %v1923 = vshll.u32 %v1595, 16
  %v1925 = vrot.slane %v1923, 5
  %v1926 = vor.u32 %v1922, %v1925
  %v1927 = vrot.slane %v1926, 4
  %v1929 = vshll.u32 %v1851, 16
  %v1931 = vrot.slane %v1929, 5
  %v1932 = vsel %vm80, %v1927, %v1931
  %v1934 = vshrl.u32 %v1596, 16
  %v1936 = vrot.slane %v1934, 4
  %v1937 = vshll.u32 %v1596, 16
  %v1939 = vrot.slane %v1937, 5
  %v1940 = vor.u32 %v1936, %v1939
  %v1941 = vrot.slane %v1940, 4
  %v1943 = vshll.u32 %v1852, 16
  %v1945 = vrot.slane %v1943, 5
  %v1946 = vsel %vm80, %v1941, %v1945
  %v1948 = vshrl.u32 %v1597, 16
  %v1950 = vrot.slane %v1948, 4
  %v1951 = vshll.u32 %v1597, 16
  %v1953 = vrot.slane %v1951, 5
  %v1954 = vor.u32 %v1950, %v1953
  %v1955 = vrot.slane %v1954, 4
  %v1957 = vshll.u32 %v1853, 16
  %v1959 = vrot.slane %v1957, 5
  %v1960 = vsel %vm80, %v1955, %v1959
  %v1962 = vshrl.u32 %v1598, 16
  %v1964 = vrot.slane %v1962, 4
  %v1965 = vshll.u32 %v1598, 16
  %v1967 = vrot.slane %v1965, 5
  %v1968 = vor.u32 %v1964, %v1967
  %v1969 = vrot.slane %v1968, 4
  %v1971 = vshll.u32 %v1854, 16
  %v1973 = vrot.slane %v1971, 5
  %v1974 = vsel %vm80, %v1969, %v1973
  %v1976 = vshrl.u32 %v1599, 16
  %v1978 = vrot.slane %v1976, 4
  %v1979 = vshll.u32 %v1599, 16
  %v1981 = vrot.slane %v1979, 5
  %v1982 = vor.u32 %v1978, %v1981
  %v1983 = vrot.slane %v1982, 4
  %v1985 = vshll.u32 %v1855, 16
  %v1987 = vrot.slane %v1985, 5
  %v1988 = vsel %vm80, %v1983, %v1987
  %v1990 = vshrl.u32 %v1600, 16
  %v1992 = vrot.slane %v1990, 4
  %v1993 = vshll.u32 %v1600, 16
  %v1995 = vrot.slane %v1993, 5
  %v1996 = vor.u32 %v1992, %v1995
  %v1997 = vrot.slane %v1996, 4
  %v1999 = vshll.u32 %v1856, 16
  %v2001 = vrot.slane %v1999, 5
  %v2002 = vsel %vm80, %v1997, %v2001
  %v2004 = vshrl.u32 %v1601, 16
  %v2006 = vrot.slane %v2004, 4
  %v2007 = vshll.u32 %v1601, 16
  %v2009 = vrot.slane %v2007, 5
  %v2010 = vor.u32 %v2006, %v2009
  %v2011 = vrot.slane %v2010, 4
  %v2013 = vshll.u32 %v1857, 16
  %v2015 = vrot.slane %v2013, 5
  %v2016 = vsel %vm80, %v2011, %v2015
  %v2018 = vshrl.u32 %v1602, 16
  %v2020 = vrot.slane %v2018, 4
  %v2021 = vshll.u32 %v1602, 16
  %v2023 = vrot.slane %v2021, 5
  %v2024 = vor.u32 %v2020, %v2023
  %v2025 = vrot.slane %v2024, 4
  %v2027 = vshll.u32 %v1858, 16
  %v2029 = vrot.slane %v2027, 5
  %v2030 = vsel %vm80, %v2025, %v2029
  %v2032 = vshrl.u32 %v1603, 16
  %v2034 = vrot.slane %v2032, 4
  %v2035 = vshll.u32 %v1603, 16
  %v2037 = vrot.slane %v2035, 5
  %v2038 = vor.u32 %v2034, %v2037
  %v2039 = vrot.slane %v2038, 4
  %v2041 = vshll.u32 %v1859, 16
  %v2043 = vrot.slane %v2041, 5
  %v2044 = vsel %vm80, %v2039, %v2043
  %v2046 = vshrl.u32 %v1604, 16
  %v2048 = vrot.slane %v2046, 4
  %v2049 = vshll.u32 %v1604, 16
  %v2051 = vrot.slane %v2049, 5
  %v2052 = vor.u32 %v2048, %v2051
  %v2053 = vrot.slane %v2052, 4
  %v2055 = vshll.u32 %v1860, 16
  %v2057 = vrot.slane %v2055, 5
  %v2058 = vsel %vm80, %v2053, %v2057
  %v2060 = vshrl.u32 %v1605, 16
  %v2062 = vrot.slane %v2060, 4
  %v2063 = vshll.u32 %v1605, 16
  %v2065 = vrot.slane %v2063, 5
  %v2066 = vor.u32 %v2062, %v2065
  %v2067 = vrot.slane %v2066, 4
  %v2069 = vshll.u32 %v1861, 16
  %v2071 = vrot.slane %v2069, 5
  %v2072 = vsel %vm80, %v2067, %v2071
  %v2074 = vshrl.u32 %v1606, 16
  %v2076 = vrot.slane %v2074, 4
  %v2077 = vshll.u32 %v1606, 16
  %v2079 = vrot.slane %v2077, 5
  %v2080 = vor.u32 %v2076, %v2079
  %v2081 = vrot.slane %v2080, 4
  %v2083 = vshll.u32 %v1862, 16
  %v2085 = vrot.slane %v2083, 5
  %v2086 = vsel %vm80, %v2081, %v2085
  %v2103 = vunpack.c.l.b16 %v29
  %v2104 = vunpack.c.l.b16 %v30
  %v2105 = vunpack.c.l.b16 %v31
  %v2106 = vunpack.c.l.b16 %v32
  %v2107 = vunpack.c.l.b16 %v33
  %v2108 = vunpack.c.l.b16 %v34
  %v2109 = vunpack.c.l.b16 %v35
  %v2110 = vunpack.c.l.b16 %v36
  %v2111 = vunpack.c.l.b16 %v37
  %v2112 = vunpack.c.l.b16 %v38
  %v2113 = vunpack.c.l.b16 %v39
  %v2114 = vunpack.c.l.b16 %v40
  %v2115 = vunpack.c.l.b16 %v41
  %v2116 = vunpack.c.l.b16 %v42
  %v2117 = vunpack.c.l.b16 %v43
  %v2118 = vunpack.c.l.b16 %v44
  %v2119 = vpack.c.b16 %v2104, %v2103
  %v2120 = vpack.c.b16 %v2106, %v2105
  %v2121 = vpack.c.b16 %v2108, %v2107
  %v2122 = vpack.c.b16 %v2110, %v2109
  %v2123 = vpack.c.b16 %v2112, %v2111
  %v2124 = vpack.c.b16 %v2114, %v2113
  %v2125 = vpack.c.b16 %v2116, %v2115
  %v2126 = vpack.c.b16 %v2118, %v2117
  %v2143 = vunpack.c.l.b16 %v46
  %v2144 = vunpack.c.l.b16 %v47
  %v2145 = vunpack.c.l.b16 %v48
  %v2146 = vunpack.c.l.b16 %v49
  %v2147 = vunpack.c.l.b16 %v50
  %v2148 = vunpack.c.l.b16 %v51
  %v2149 = vunpack.c.l.b16 %v52
  %v2150 = vunpack.c.l.b16 %v53
  %v2151 = vunpack.c.l.b16 %v54
  %v2152 = vunpack.c.l.b16 %v55
  %v2153 = vunpack.c.l.b16 %v56
  %v2154 = vunpack.c.l.b16 %v57
  %v2155 = vunpack.c.l.b16 %v58
  %v2156 = vunpack.c.l.b16 %v59
  %v2157 = vunpack.c.l.b16 %v60
  %v2158 = vunpack.c.l.b16 %v61
  %v2159 = vpack.c.b16 %v2144, %v2143
  %v2160 = vpack.c.b16 %v2146, %v2145
  %v2161 = vpack.c.b16 %v2148, %v2147
  %v2162 = vpack.c.b16 %v2150, %v2149
  %v2163 = vpack.c.b16 %v2152, %v2151
  %v2164 = vpack.c.b16 %v2154, %v2153
  %v2165 = vpack.c.b16 %v2156, %v2155
  %v2166 = vpack.c.b16 %v2158, %v2157
  %2167 = vrot.lane.b32.xlu0 %v2159, 4
  %v2168 = vpop.permute.xlu0 %2167
  %2169 = vrot.lane.b32.xlu0 %v2160, 4
  %v2170 = vpop.permute.xlu0 %2169
  %2171 = vrot.lane.b32.xlu0 %v2161, 4
  %v2172 = vpop.permute.xlu0 %2171
  %2173 = vrot.lane.b32.xlu0 %v2162, 4
  %v2174 = vpop.permute.xlu0 %2173
  %2175 = vrot.lane.b32.xlu0 %v2163, 4
  %v2176 = vpop.permute.xlu0 %2175
  %2177 = vrot.lane.b32.xlu0 %v2164, 4
  %v2178 = vpop.permute.xlu0 %2177
  %2179 = vrot.lane.b32.xlu0 %v2165, 4
  %v2180 = vpop.permute.xlu0 %2179
  %2181 = vrot.lane.b32.xlu0 %v2166, 4
  %v2182 = vpop.permute.xlu0 %2181
  %v2183 = vunpack.c.l.b16 %v94
  %v2184 = vunpack.c.l.b16 %v108
  %v2185 = vunpack.c.l.b16 %v122
  %v2186 = vunpack.c.l.b16 %v136
  %v2187 = vunpack.c.l.b16 %v150
  %v2188 = vunpack.c.l.b16 %v164
  %v2189 = vunpack.c.l.b16 %v178
  %v2190 = vunpack.c.l.b16 %v192
  %v2191 = vunpack.c.l.b16 %v206
  %v2192 = vunpack.c.l.b16 %v220
  %v2193 = vunpack.c.l.b16 %v234
  %v2194 = vunpack.c.l.b16 %v248
  %v2195 = vunpack.c.l.b16 %v262
  %v2196 = vunpack.c.l.b16 %v276
  %v2197 = vunpack.c.l.b16 %v290
  %v2198 = vunpack.c.l.b16 %v304
  %v2199 = vpack.c.b16 %v2184, %v2183
  %v2200 = vpack.c.b16 %v2186, %v2185
  %v2201 = vpack.c.b16 %v2188, %v2187
  %v2202 = vpack.c.b16 %v2190, %v2189
  %v2203 = vpack.c.b16 %v2192, %v2191
  %v2204 = vpack.c.b16 %v2194, %v2193
  %v2205 = vpack.c.b16 %v2196, %v2195
  %v2206 = vpack.c.b16 %v2198, %v2197
  %2207 = vrot.lane.b32.xlu0 %v2199, 8
  %v2208 = vpop.permute.xlu0 %2207
  %2209 = vrot.lane.b32.xlu0 %v2200, 8
  %v2210 = vpop.permute.xlu0 %2209
  %2211 = vrot.lane.b32.xlu0 %v2201, 8
  %v2212 = vpop.permute.xlu0 %2211
  %2213 = vrot.lane.b32.xlu0 %v2202, 8
  %v2214 = vpop.permute.xlu0 %2213
  %2215 = vrot.lane.b32.xlu0 %v2203, 8
  %v2216 = vpop.permute.xlu0 %2215
  %2217 = vrot.lane.b32.xlu0 %v2204, 8
  %v2218 = vpop.permute.xlu0 %2217
  %2219 = vrot.lane.b32.xlu0 %v2205, 8
  %v2220 = vpop.permute.xlu0 %2219
  %2221 = vrot.lane.b32.xlu0 %v2206, 8
  %v2222 = vpop.permute.xlu0 %2221
  %v2223 = vunpack.c.l.b16 %v334
  %v2224 = vunpack.c.l.b16 %v348
  %v2225 = vunpack.c.l.b16 %v362
  %v2226 = vunpack.c.l.b16 %v376
  %v2227 = vunpack.c.l.b16 %v390
  %v2228 = vunpack.c.l.b16 %v404
  %v2229 = vunpack.c.l.b16 %v418
  %v2230 = vunpack.c.l.b16 %v432
  %v2231 = vunpack.c.l.b16 %v446
  %v2232 = vunpack.c.l.b16 %v460
  %v2233 = vunpack.c.l.b16 %v474
  %v2234 = vunpack.c.l.b16 %v488
  %v2235 = vunpack.c.l.b16 %v502
  %v2236 = vunpack.c.l.b16 %v516
  %v2237 = vunpack.c.l.b16 %v530
  %v2238 = vunpack.c.l.b16 %v544
  %v2239 = vpack.c.b16 %v2224, %v2223
  %v2240 = vpack.c.b16 %v2226, %v2225
  %v2241 = vpack.c.b16 %v2228, %v2227
  %v2242 = vpack.c.b16 %v2230, %v2229
  %v2243 = vpack.c.b16 %v2232, %v2231
  %v2244 = vpack.c.b16 %v2234, %v2233
  %v2245 = vpack.c.b16 %v2236, %v2235
  %v2246 = vpack.c.b16 %v2238, %v2237
  %2247 = vrot.lane.b32.xlu0 %v2239, 12
  %v2248 = vpop.permute.xlu0 %2247
  %2249 = vrot.lane.b32.xlu0 %v2240, 12
  %v2250 = vpop.permute.xlu0 %2249
  %2251 = vrot.lane.b32.xlu0 %v2241, 12
  %v2252 = vpop.permute.xlu0 %2251
  %2253 = vrot.lane.b32.xlu0 %v2242, 12
  %v2254 = vpop.permute.xlu0 %2253
  %2255 = vrot.lane.b32.xlu0 %v2243, 12
  %v2256 = vpop.permute.xlu0 %2255
  %2257 = vrot.lane.b32.xlu0 %v2244, 12
  %v2258 = vpop.permute.xlu0 %2257
  %2259 = vrot.lane.b32.xlu0 %v2245, 12
  %v2260 = vpop.permute.xlu0 %2259
  %2261 = vrot.lane.b32.xlu0 %v2246, 12
  %v2262 = vpop.permute.xlu0 %2261
  %v2279 = vunpack.c.l.b16 %v546
  %v2280 = vunpack.c.l.b16 %v547
  %v2281 = vunpack.c.l.b16 %v548
  %v2282 = vunpack.c.l.b16 %v549
  %v2283 = vunpack.c.l.b16 %v550
  %v2284 = vunpack.c.l.b16 %v551
  %v2285 = vunpack.c.l.b16 %v552
  %v2286 = vunpack.c.l.b16 %v553
  %v2287 = vunpack.c.l.b16 %v554
  %v2288 = vunpack.c.l.b16 %v555
  %v2289 = vunpack.c.l.b16 %v556
  %v2290 = vunpack.c.l.b16 %v557
  %v2291 = vunpack.c.l.b16 %v558
  %v2292 = vunpack.c.l.b16 %v559
  %v2293 = vunpack.c.l.b16 %v560
  %v2294 = vunpack.c.l.b16 %v561
  %v2295 = vpack.c.b16 %v2280, %v2279
  %v2296 = vpack.c.b16 %v2282, %v2281
  %v2297 = vpack.c.b16 %v2284, %v2283
  %v2298 = vpack.c.b16 %v2286, %v2285
  %v2299 = vpack.c.b16 %v2288, %v2287
  %v2300 = vpack.c.b16 %v2290, %v2289
  %v2301 = vpack.c.b16 %v2292, %v2291
  %v2302 = vpack.c.b16 %v2294, %v2293
  %2303 = vrot.lane.b32.xlu0 %v2295, 16
  %v2304 = vpop.permute.xlu0 %2303
  %2305 = vrot.lane.b32.xlu0 %v2296, 16
  %v2306 = vpop.permute.xlu0 %2305
  %2307 = vrot.lane.b32.xlu0 %v2297, 16
  %v2308 = vpop.permute.xlu0 %2307
  %2309 = vrot.lane.b32.xlu0 %v2298, 16
  %v2310 = vpop.permute.xlu0 %2309
  %2311 = vrot.lane.b32.xlu0 %v2299, 16
  %v2312 = vpop.permute.xlu0 %2311
  %2313 = vrot.lane.b32.xlu0 %v2300, 16
  %v2314 = vpop.permute.xlu0 %2313
  %2315 = vrot.lane.b32.xlu0 %v2301, 16
  %v2316 = vpop.permute.xlu0 %2315
  %2317 = vrot.lane.b32.xlu0 %v2302, 16
  %v2318 = vpop.permute.xlu0 %2317
  %v2335 = vunpack.c.l.b16 %v563
  %v2336 = vunpack.c.l.b16 %v564
  %v2337 = vunpack.c.l.b16 %v565
  %v2338 = vunpack.c.l.b16 %v566
  %v2339 = vunpack.c.l.b16 %v567
  %v2340 = vunpack.c.l.b16 %v568
  %v2341 = vunpack.c.l.b16 %v569
  %v2342 = vunpack.c.l.b16 %v570
  %v2343 = vunpack.c.l.b16 %v571
  %v2344 = vunpack.c.l.b16 %v572
  %v2345 = vunpack.c.l.b16 %v573
  %v2346 = vunpack.c.l.b16 %v574
  %v2347 = vunpack.c.l.b16 %v575
  %v2348 = vunpack.c.l.b16 %v576
  %v2349 = vunpack.c.l.b16 %v577
  %v2350 = vunpack.c.l.b16 %v578
  %v2351 = vpack.c.b16 %v2336, %v2335
  %v2352 = vpack.c.b16 %v2338, %v2337
  %v2353 = vpack.c.b16 %v2340, %v2339
  %v2354 = vpack.c.b16 %v2342, %v2341
  %v2355 = vpack.c.b16 %v2344, %v2343
  %v2356 = vpack.c.b16 %v2346, %v2345
  %v2357 = vpack.c.b16 %v2348, %v2347
  %v2358 = vpack.c.b16 %v2350, %v2349
  %2359 = vrot.lane.b32.xlu0 %v2351, 20
  %v2360 = vpop.permute.xlu0 %2359
  %2361 = vrot.lane.b32.xlu0 %v2352, 20
  %v2362 = vpop.permute.xlu0 %2361
  %2363 = vrot.lane.b32.xlu0 %v2353, 20
  %v2364 = vpop.permute.xlu0 %2363
  %2365 = vrot.lane.b32.xlu0 %v2354, 20
  %v2366 = vpop.permute.xlu0 %2365
  %2367 = vrot.lane.b32.xlu0 %v2355, 20
  %v2368 = vpop.permute.xlu0 %2367
  %2369 = vrot.lane.b32.xlu0 %v2356, 20
  %v2370 = vpop.permute.xlu0 %2369
  %2371 = vrot.lane.b32.xlu0 %v2357, 20
  %v2372 = vpop.permute.xlu0 %2371
  %2373 = vrot.lane.b32.xlu0 %v2358, 20
  %v2374 = vpop.permute.xlu0 %2373
  %v2375 = vunpack.c.l.b16 %v608
  %v2376 = vunpack.c.l.b16 %v622
  %v2377 = vunpack.c.l.b16 %v636
  %v2378 = vunpack.c.l.b16 %v650
  %v2379 = vunpack.c.l.b16 %v664
  %v2380 = vunpack.c.l.b16 %v678
  %v2381 = vunpack.c.l.b16 %v692
  %v2382 = vunpack.c.l.b16 %v706
  %v2383 = vunpack.c.l.b16 %v720
  %v2384 = vunpack.c.l.b16 %v734
  %v2385 = vunpack.c.l.b16 %v748
  %v2386 = vunpack.c.l.b16 %v762
  %v2387 = vunpack.c.l.b16 %v776
  %v2388 = vunpack.c.l.b16 %v790
  %v2389 = vunpack.c.l.b16 %v804
  %v2390 = vunpack.c.l.b16 %v818
  %v2391 = vpack.c.b16 %v2376, %v2375
  %v2392 = vpack.c.b16 %v2378, %v2377
  %v2393 = vpack.c.b16 %v2380, %v2379
  %v2394 = vpack.c.b16 %v2382, %v2381
  %v2395 = vpack.c.b16 %v2384, %v2383
  %v2396 = vpack.c.b16 %v2386, %v2385
  %v2397 = vpack.c.b16 %v2388, %v2387
  %v2398 = vpack.c.b16 %v2390, %v2389
  %2399 = vrot.lane.b32.xlu0 %v2391, 24
  %v2400 = vpop.permute.xlu0 %2399
  %2401 = vrot.lane.b32.xlu0 %v2392, 24
  %v2402 = vpop.permute.xlu0 %2401
  %2403 = vrot.lane.b32.xlu0 %v2393, 24
  %v2404 = vpop.permute.xlu0 %2403
  %2405 = vrot.lane.b32.xlu0 %v2394, 24
  %v2406 = vpop.permute.xlu0 %2405
  %2407 = vrot.lane.b32.xlu0 %v2395, 24
  %v2408 = vpop.permute.xlu0 %2407
  %2409 = vrot.lane.b32.xlu0 %v2396, 24
  %v2410 = vpop.permute.xlu0 %2409
  %2411 = vrot.lane.b32.xlu0 %v2397, 24
  %v2412 = vpop.permute.xlu0 %2411
  %2413 = vrot.lane.b32.xlu0 %v2398, 24
  %v2414 = vpop.permute.xlu0 %2413
  %v2415 = vunpack.c.l.b16 %v848
  %v2416 = vunpack.c.l.b16 %v862
  %v2417 = vunpack.c.l.b16 %v876
  %v2418 = vunpack.c.l.b16 %v890
  %v2419 = vunpack.c.l.b16 %v904
  %v2420 = vunpack.c.l.b16 %v918
  %v2421 = vunpack.c.l.b16 %v932
  %v2422 = vunpack.c.l.b16 %v946
  %v2423 = vunpack.c.l.b16 %v960
  %v2424 = vunpack.c.l.b16 %v974
  %v2425 = vunpack.c.l.b16 %v988
  %v2426 = vunpack.c.l.b16 %v1002
  %v2427 = vunpack.c.l.b16 %v1016
  %v2428 = vunpack.c.l.b16 %v1030
  %v2429 = vunpack.c.l.b16 %v1044
  %v2430 = vunpack.c.l.b16 %v1058
  %v2431 = vpack.c.b16 %v2416, %v2415
  %v2432 = vpack.c.b16 %v2418, %v2417
  %v2433 = vpack.c.b16 %v2420, %v2419
  %v2434 = vpack.c.b16 %v2422, %v2421
  %v2435 = vpack.c.b16 %v2424, %v2423
  %v2436 = vpack.c.b16 %v2426, %v2425
  %v2437 = vpack.c.b16 %v2428, %v2427
  %v2438 = vpack.c.b16 %v2430, %v2429
  %2439 = vrot.lane.b32.xlu0 %v2431, 28
  %v2440 = vpop.permute.xlu0 %2439
  %2441 = vrot.lane.b32.xlu0 %v2432, 28
  %v2442 = vpop.permute.xlu0 %2441
  %2443 = vrot.lane.b32.xlu0 %v2433, 28
  %v2444 = vpop.permute.xlu0 %2443
  %2445 = vrot.lane.b32.xlu0 %v2434, 28
  %v2446 = vpop.permute.xlu0 %2445
  %2447 = vrot.lane.b32.xlu0 %v2435, 28
  %v2448 = vpop.permute.xlu0 %2447
  %2449 = vrot.lane.b32.xlu0 %v2436, 28
  %v2450 = vpop.permute.xlu0 %2449
  %2451 = vrot.lane.b32.xlu0 %v2437, 28
  %v2452 = vpop.permute.xlu0 %2451
  %2453 = vrot.lane.b32.xlu0 %v2438, 28
  %v2454 = vpop.permute.xlu0 %2453
  %v2471 = vunpack.c.l.b16 %v1060
  %v2472 = vunpack.c.l.b16 %v1061
  %v2473 = vunpack.c.l.b16 %v1062
  %v2474 = vunpack.c.l.b16 %v1063
  %v2475 = vunpack.c.l.b16 %v1064
  %v2476 = vunpack.c.l.b16 %v1065
  %v2477 = vunpack.c.l.b16 %v1066
  %v2478 = vunpack.c.l.b16 %v1067
  %v2479 = vunpack.c.l.b16 %v1068
  %v2480 = vunpack.c.l.b16 %v1069
  %v2481 = vunpack.c.l.b16 %v1070
  %v2482 = vunpack.c.l.b16 %v1071
  %v2483 = vunpack.c.l.b16 %v1072
  %v2484 = vunpack.c.l.b16 %v1073
  %v2485 = vunpack.c.l.b16 %v1074
  %v2486 = vunpack.c.l.b16 %v1075
  %v2487 = vpack.c.b16 %v2472, %v2471
  %v2488 = vpack.c.b16 %v2474, %v2473
  %v2489 = vpack.c.b16 %v2476, %v2475
  %v2490 = vpack.c.b16 %v2478, %v2477
  %v2491 = vpack.c.b16 %v2480, %v2479
  %v2492 = vpack.c.b16 %v2482, %v2481
  %v2493 = vpack.c.b16 %v2484, %v2483
  %v2494 = vpack.c.b16 %v2486, %v2485
  %2495 = vrot.lane.b32.xlu0 %v2487, 32
  %v2496 = vpop.permute.xlu0 %2495
  %2497 = vrot.lane.b32.xlu0 %v2488, 32
  %v2498 = vpop.permute.xlu0 %2497
  %2499 = vrot.lane.b32.xlu0 %v2489, 32
  %v2500 = vpop.permute.xlu0 %2499
  %2501 = vrot.lane.b32.xlu0 %v2490, 32
  %v2502 = vpop.permute.xlu0 %2501
  %2503 = vrot.lane.b32.xlu0 %v2491, 32
  %v2504 = vpop.permute.xlu0 %2503
  %2505 = vrot.lane.b32.xlu0 %v2492, 32
  %v2506 = vpop.permute.xlu0 %2505
  %2507 = vrot.lane.b32.xlu0 %v2493, 32
  %v2508 = vpop.permute.xlu0 %2507
  %2509 = vrot.lane.b32.xlu0 %v2494, 32
  %v2510 = vpop.permute.xlu0 %2509
  %v2527 = vunpack.c.l.b16 %v1077
  %v2528 = vunpack.c.l.b16 %v1078
  %v2529 = vunpack.c.l.b16 %v1079
  %v2530 = vunpack.c.l.b16 %v1080
  %v2531 = vunpack.c.l.b16 %v1081
  %v2532 = vunpack.c.l.b16 %v1082
  %v2533 = vunpack.c.l.b16 %v1083
  %v2534 = vunpack.c.l.b16 %v1084
  %v2535 = vunpack.c.l.b16 %v1085
  %v2536 = vunpack.c.l.b16 %v1086
  %v2537 = vunpack.c.l.b16 %v1087
  %v2538 = vunpack.c.l.b16 %v1088
  %v2539 = vunpack.c.l.b16 %v1089
  %v2540 = vunpack.c.l.b16 %v1090
  %v2541 = vunpack.c.l.b16 %v1091
  %v2542 = vunpack.c.l.b16 %v1092
  %v2543 = vpack.c.b16 %v2528, %v2527
  %v2544 = vpack.c.b16 %v2530, %v2529
  %v2545 = vpack.c.b16 %v2532, %v2531
  %v2546 = vpack.c.b16 %v2534, %v2533
  %v2547 = vpack.c.b16 %v2536, %v2535
  %v2548 = vpack.c.b16 %v2538, %v2537
  %v2549 = vpack.c.b16 %v2540, %v2539
  %v2550 = vpack.c.b16 %v2542, %v2541
  %2551 = vrot.lane.b32.xlu0 %v2543, 36
  %v2552 = vpop.permute.xlu0 %2551
  %2553 = vrot.lane.b32.xlu0 %v2544, 36
  %v2554 = vpop.permute.xlu0 %2553
  %2555 = vrot.lane.b32.xlu0 %v2545, 36
  %v2556 = vpop.permute.xlu0 %2555
  %2557 = vrot.lane.b32.xlu0 %v2546, 36
  %v2558 = vpop.permute.xlu0 %2557
  %2559 = vrot.lane.b32.xlu0 %v2547, 36
  %v2560 = vpop.permute.xlu0 %2559
  %2561 = vrot.lane.b32.xlu0 %v2548, 36
  %v2562 = vpop.permute.xlu0 %2561
  %2563 = vrot.lane.b32.xlu0 %v2549, 36
  %v2564 = vpop.permute.xlu0 %2563
  %2565 = vrot.lane.b32.xlu0 %v2550, 36
  %v2566 = vpop.permute.xlu0 %2565
  %v2567 = vunpack.c.l.b16 %v1122
  %v2568 = vunpack.c.l.b16 %v1136
  %v2569 = vunpack.c.l.b16 %v1150
  %v2570 = vunpack.c.l.b16 %v1164
  %v2571 = vunpack.c.l.b16 %v1178
  %v2572 = vunpack.c.l.b16 %v1192
  %v2573 = vunpack.c.l.b16 %v1206
  %v2574 = vunpack.c.l.b16 %v1220
  %v2575 = vunpack.c.l.b16 %v1234
  %v2576 = vunpack.c.l.b16 %v1248
  %v2577 = vunpack.c.l.b16 %v1262
  %v2578 = vunpack.c.l.b16 %v1276
  %v2579 = vunpack.c.l.b16 %v1290
  %v2580 = vunpack.c.l.b16 %v1304
  %v2581 = vunpack.c.l.b16 %v1318
  %v2582 = vunpack.c.l.b16 %v1332
  %v2583 = vpack.c.b16 %v2568, %v2567
  %v2584 = vpack.c.b16 %v2570, %v2569
  %v2585 = vpack.c.b16 %v2572, %v2571
  %v2586 = vpack.c.b16 %v2574, %v2573
  %v2587 = vpack.c.b16 %v2576, %v2575
  %v2588 = vpack.c.b16 %v2578, %v2577
  %v2589 = vpack.c.b16 %v2580, %v2579
  %v2590 = vpack.c.b16 %v2582, %v2581
  %2591 = vrot.lane.b32.xlu0 %v2583, 40
  %v2592 = vpop.permute.xlu0 %2591
  %2593 = vrot.lane.b32.xlu0 %v2584, 40
  %v2594 = vpop.permute.xlu0 %2593
  %2595 = vrot.lane.b32.xlu0 %v2585, 40
  %v2596 = vpop.permute.xlu0 %2595
  %2597 = vrot.lane.b32.xlu0 %v2586, 40
  %v2598 = vpop.permute.xlu0 %2597
  %2599 = vrot.lane.b32.xlu0 %v2587, 40
  %v2600 = vpop.permute.xlu0 %2599
  %2601 = vrot.lane.b32.xlu0 %v2588, 40
  %v2602 = vpop.permute.xlu0 %2601
  %2603 = vrot.lane.b32.xlu0 %v2589, 40
  %v2604 = vpop.permute.xlu0 %2603
  %2605 = vrot.lane.b32.xlu0 %v2590, 40
  %v2606 = vpop.permute.xlu0 %2605
  %v2607 = vunpack.c.l.b16 %v1362
  %v2608 = vunpack.c.l.b16 %v1376
  %v2609 = vunpack.c.l.b16 %v1390
  %v2610 = vunpack.c.l.b16 %v1404
  %v2611 = vunpack.c.l.b16 %v1418
  %v2612 = vunpack.c.l.b16 %v1432
  %v2613 = vunpack.c.l.b16 %v1446
  %v2614 = vunpack.c.l.b16 %v1460
  %v2615 = vunpack.c.l.b16 %v1474
  %v2616 = vunpack.c.l.b16 %v1488
  %v2617 = vunpack.c.l.b16 %v1502
  %v2618 = vunpack.c.l.b16 %v1516
  %v2619 = vunpack.c.l.b16 %v1530
  %v2620 = vunpack.c.l.b16 %v1544
  %v2621 = vunpack.c.l.b16 %v1558
  %v2622 = vunpack.c.l.b16 %v1572
  %v2623 = vpack.c.b16 %v2608, %v2607
  %v2624 = vpack.c.b16 %v2610, %v2609
  %v2625 = vpack.c.b16 %v2612, %v2611
  %v2626 = vpack.c.b16 %v2614, %v2613
  %v2627 = vpack.c.b16 %v2616, %v2615
  %v2628 = vpack.c.b16 %v2618, %v2617
  %v2629 = vpack.c.b16 %v2620, %v2619
  %v2630 = vpack.c.b16 %v2622, %v2621
  %2631 = vrot.lane.b32.xlu0 %v2623, 44
  %v2632 = vpop.permute.xlu0 %2631
  %2633 = vrot.lane.b32.xlu0 %v2624, 44
  %v2634 = vpop.permute.xlu0 %2633
  %2635 = vrot.lane.b32.xlu0 %v2625, 44
  %v2636 = vpop.permute.xlu0 %2635
  %2637 = vrot.lane.b32.xlu0 %v2626, 44
  %v2638 = vpop.permute.xlu0 %2637
  %2639 = vrot.lane.b32.xlu0 %v2627, 44
  %v2640 = vpop.permute.xlu0 %2639
  %2641 = vrot.lane.b32.xlu0 %v2628, 44
  %v2642 = vpop.permute.xlu0 %2641
  %2643 = vrot.lane.b32.xlu0 %v2629, 44
  %v2644 = vpop.permute.xlu0 %2643
  %2645 = vrot.lane.b32.xlu0 %v2630, 44
  %v2646 = vpop.permute.xlu0 %2645
  %v2663 = vunpack.c.l.b16 %v1574
  %v2664 = vunpack.c.l.b16 %v1575
  %v2665 = vunpack.c.l.b16 %v1576
  %v2666 = vunpack.c.l.b16 %v1577
  %v2667 = vunpack.c.l.b16 %v1578
  %v2668 = vunpack.c.l.b16 %v1579
  %v2669 = vunpack.c.l.b16 %v1580
  %v2670 = vunpack.c.l.b16 %v1581
  %v2671 = vunpack.c.l.b16 %v1582
  %v2672 = vunpack.c.l.b16 %v1583
  %v2673 = vunpack.c.l.b16 %v1584
  %v2674 = vunpack.c.l.b16 %v1585
  %v2675 = vunpack.c.l.b16 %v1586
  %v2676 = vunpack.c.l.b16 %v1587
  %v2677 = vunpack.c.l.b16 %v1588
  %v2678 = vunpack.c.l.b16 %v1589
  %v2679 = vpack.c.b16 %v2664, %v2663
  %v2680 = vpack.c.b16 %v2666, %v2665
  %v2681 = vpack.c.b16 %v2668, %v2667
  %v2682 = vpack.c.b16 %v2670, %v2669
  %v2683 = vpack.c.b16 %v2672, %v2671
  %v2684 = vpack.c.b16 %v2674, %v2673
  %v2685 = vpack.c.b16 %v2676, %v2675
  %v2686 = vpack.c.b16 %v2678, %v2677
  %2687 = vrot.lane.b32.xlu0 %v2679, 48
  %v2688 = vpop.permute.xlu0 %2687
  %2689 = vrot.lane.b32.xlu0 %v2680, 48
  %v2690 = vpop.permute.xlu0 %2689
  %2691 = vrot.lane.b32.xlu0 %v2681, 48
  %v2692 = vpop.permute.xlu0 %2691
  %2693 = vrot.lane.b32.xlu0 %v2682, 48
  %v2694 = vpop.permute.xlu0 %2693
  %2695 = vrot.lane.b32.xlu0 %v2683, 48
  %v2696 = vpop.permute.xlu0 %2695
  %2697 = vrot.lane.b32.xlu0 %v2684, 48
  %v2698 = vpop.permute.xlu0 %2697
  %2699 = vrot.lane.b32.xlu0 %v2685, 48
  %v2700 = vpop.permute.xlu0 %2699
  %2701 = vrot.lane.b32.xlu0 %v2686, 48
  %v2702 = vpop.permute.xlu0 %2701
  %v2719 = vunpack.c.l.b16 %v1591
  %v2720 = vunpack.c.l.b16 %v1592
  %v2721 = vunpack.c.l.b16 %v1593
  %v2722 = vunpack.c.l.b16 %v1594
  %v2723 = vunpack.c.l.b16 %v1595
  %v2724 = vunpack.c.l.b16 %v1596
  %v2725 = vunpack.c.l.b16 %v1597
  %v2726 = vunpack.c.l.b16 %v1598
  %v2727 = vunpack.c.l.b16 %v1599
  %v2728 = vunpack.c.l.b16 %v1600
  %v2729 = vunpack.c.l.b16 %v1601
  %v2730 = vunpack.c.l.b16 %v1602
  %v2731 = vunpack.c.l.b16 %v1603
  %v2732 = vunpack.c.l.b16 %v1604
  %v2733 = vunpack.c.l.b16 %v1605
  %v2734 = vunpack.c.l.b16 %v1606
  %v2735 = vpack.c.b16 %v2720, %v2719
  %v2736 = vpack.c.b16 %v2722, %v2721
  %v2737 = vpack.c.b16 %v2724, %v2723
  %v2738 = vpack.c.b16 %v2726, %v2725
  %v2739 = vpack.c.b16 %v2728, %v2727
  %v2740 = vpack.c.b16 %v2730, %v2729
  %v2741 = vpack.c.b16 %v2732, %v2731
  %v2742 = vpack.c.b16 %v2734, %v2733
  %2743 = vrot.lane.b32.xlu0 %v2735, 52
  %v2744 = vpop.permute.xlu0 %2743
  %2745 = vrot.lane.b32.xlu0 %v2736, 52
  %v2746 = vpop.permute.xlu0 %2745
  %2747 = vrot.lane.b32.xlu0 %v2737, 52
  %v2748 = vpop.permute.xlu0 %2747
  %2749 = vrot.lane.b32.xlu0 %v2738, 52
  %v2750 = vpop.permute.xlu0 %2749
  %2751 = vrot.lane.b32.xlu0 %v2739, 52
  %v2752 = vpop.permute.xlu0 %2751
  %2753 = vrot.lane.b32.xlu0 %v2740, 52
  %v2754 = vpop.permute.xlu0 %2753
  %2755 = vrot.lane.b32.xlu0 %v2741, 52
  %v2756 = vpop.permute.xlu0 %2755
  %2757 = vrot.lane.b32.xlu0 %v2742, 52
  %v2758 = vpop.permute.xlu0 %2757
  %v2759 = vunpack.c.l.b16 %v1636
  %v2760 = vunpack.c.l.b16 %v1650
  %v2761 = vunpack.c.l.b16 %v1664
  %v2762 = vunpack.c.l.b16 %v1678
  %v2763 = vunpack.c.l.b16 %v1692
  %v2764 = vunpack.c.l.b16 %v1706
  %v2765 = vunpack.c.l.b16 %v1720
  %v2766 = vunpack.c.l.b16 %v1734
  %v2767 = vunpack.c.l.b16 %v1748
  %v2768 = vunpack.c.l.b16 %v1762
  %v2769 = vunpack.c.l.b16 %v1776
  %v2770 = vunpack.c.l.b16 %v1790
  %v2771 = vunpack.c.l.b16 %v1804
  %v2772 = vunpack.c.l.b16 %v1818
  %v2773 = vunpack.c.l.b16 %v1832
  %v2774 = vunpack.c.l.b16 %v1846
  %v2775 = vpack.c.b16 %v2760, %v2759
  %v2776 = vpack.c.b16 %v2762, %v2761
  %v2777 = vpack.c.b16 %v2764, %v2763
  %v2778 = vpack.c.b16 %v2766, %v2765
  %v2779 = vpack.c.b16 %v2768, %v2767
  %v2780 = vpack.c.b16 %v2770, %v2769
  %v2781 = vpack.c.b16 %v2772, %v2771
  %v2782 = vpack.c.b16 %v2774, %v2773
  %2783 = vrot.lane.b32.xlu0 %v2775, 56
  %v2784 = vpop.permute.xlu0 %2783
  %2785 = vrot.lane.b32.xlu0 %v2776, 56
  %v2786 = vpop.permute.xlu0 %2785
  %2787 = vrot.lane.b32.xlu0 %v2777, 56
  %v2788 = vpop.permute.xlu0 %2787
  %2789 = vrot.lane.b32.xlu0 %v2778, 56
  %v2790 = vpop.permute.xlu0 %2789
  %2791 = vrot.lane.b32.xlu0 %v2779, 56
  %v2792 = vpop.permute.xlu0 %2791
  %2793 = vrot.lane.b32.xlu0 %v2780, 56
  %v2794 = vpop.permute.xlu0 %2793
  %2795 = vrot.lane.b32.xlu0 %v2781, 56
  %v2796 = vpop.permute.xlu0 %2795
  %2797 = vrot.lane.b32.xlu0 %v2782, 56
  %v2798 = vpop.permute.xlu0 %2797
  %v2799 = vunpack.c.l.b16 %v1876
  %v2800 = vunpack.c.l.b16 %v1890
  %v2801 = vunpack.c.l.b16 %v1904
  %v2802 = vunpack.c.l.b16 %v1918
  %v2803 = vunpack.c.l.b16 %v1932
  %v2804 = vunpack.c.l.b16 %v1946
  %v2805 = vunpack.c.l.b16 %v1960
  %v2806 = vunpack.c.l.b16 %v1974
  %v2807 = vunpack.c.l.b16 %v1988
  %v2808 = vunpack.c.l.b16 %v2002
  %v2809 = vunpack.c.l.b16 %v2016
  %v2810 = vunpack.c.l.b16 %v2030
  %v2811 = vunpack.c.l.b16 %v2044
  %v2812 = vunpack.c.l.b16 %v2058
  %v2813 = vunpack.c.l.b16 %v2072
  %v2814 = vunpack.c.l.b16 %v2086
  %v2815 = vpack.c.b16 %v2800, %v2799
  %v2816 = vpack.c.b16 %v2802, %v2801
  %v2817 = vpack.c.b16 %v2804, %v2803
  %v2818 = vpack.c.b16 %v2806, %v2805
  %v2819 = vpack.c.b16 %v2808, %v2807
  %v2820 = vpack.c.b16 %v2810, %v2809
  %v2821 = vpack.c.b16 %v2812, %v2811
  %v2822 = vpack.c.b16 %v2814, %v2813
  %2823 = vrot.lane.b32.xlu0 %v2815, 60
  %v2824 = vpop.permute.xlu0 %2823
  %2825 = vrot.lane.b32.xlu0 %v2816, 60
  %v2826 = vpop.permute.xlu0 %2825
  %2827 = vrot.lane.b32.xlu0 %v2817, 60
  %v2828 = vpop.permute.xlu0 %2827
  %2829 = vrot.lane.b32.xlu0 %v2818, 60
  %v2830 = vpop.permute.xlu0 %2829
  %2831 = vrot.lane.b32.xlu0 %v2819, 60
  %v2832 = vpop.permute.xlu0 %2831
  %2833 = vrot.lane.b32.xlu0 %v2820, 60
  %v2834 = vpop.permute.xlu0 %2833
  %2835 = vrot.lane.b32.xlu0 %v2821, 60
  %v2836 = vpop.permute.xlu0 %2835
  %2837 = vrot.lane.b32.xlu0 %v2822, 60
  %v2838 = vpop.permute.xlu0 %2837
  %vm2839 = vcmask 31744
  %v2842 = vsel %vm2839, %v2119, %v2168
  %v2845 = vsel %vm2839, %v2120, %v2170
  %v2848 = vsel %vm2839, %v2121, %v2172
  %v2851 = vsel %vm2839, %v2122, %v2174
  %v2854 = vsel %vm2839, %v2123, %v2176
  %v2857 = vsel %vm2839, %v2124, %v2178
  %v2860 = vsel %vm2839, %v2125, %v2180
  %v2863 = vsel %vm2839, %v2126, %v2182
  %vm2864 = vcmask 64512
  %v2866 = vsel %vm2864, %v2842, %v2208
  %v2868 = vsel %vm2864, %v2845, %v2210
  %v2870 = vsel %vm2864, %v2848, %v2212
  %v2872 = vsel %vm2864, %v2851, %v2214
  %v2874 = vsel %vm2864, %v2854, %v2216
  %v2876 = vsel %vm2864, %v2857, %v2218
  %v2878 = vsel %vm2864, %v2860, %v2220
  %v2880 = vsel %vm2864, %v2863, %v2222
  %vm2881 = vcmask 97280
  %v2883 = vsel %vm2881, %v2866, %v2248
  %v2885 = vsel %vm2881, %v2868, %v2250
  %v2887 = vsel %vm2881, %v2870, %v2252
  %v2889 = vsel %vm2881, %v2872, %v2254
  %v2891 = vsel %vm2881, %v2874, %v2256
  %v2893 = vsel %vm2881, %v2876, %v2258
  %v2895 = vsel %vm2881, %v2878, %v2260
  %v2897 = vsel %vm2881, %v2880, %v2262
  %vm2898 = vcmask 130048
  %v2900 = vsel %vm2898, %v2883, %v2304
  %v2902 = vsel %vm2898, %v2885, %v2306
  %v2904 = vsel %vm2898, %v2887, %v2308
  %v2906 = vsel %vm2898, %v2889, %v2310
  %v2908 = vsel %vm2898, %v2891, %v2312
  %v2910 = vsel %vm2898, %v2893, %v2314
  %v2912 = vsel %vm2898, %v2895, %v2316
  %v2914 = vsel %vm2898, %v2897, %v2318
  %vm2915 = vcmask 162816
  %v2917 = vsel %vm2915, %v2900, %v2360
  %v2919 = vsel %vm2915, %v2902, %v2362
  %v2921 = vsel %vm2915, %v2904, %v2364
  %v2923 = vsel %vm2915, %v2906, %v2366
  %v2925 = vsel %vm2915, %v2908, %v2368
  %v2927 = vsel %vm2915, %v2910, %v2370
  %v2929 = vsel %vm2915, %v2912, %v2372
  %v2931 = vsel %vm2915, %v2914, %v2374
  %vm2932 = vcmask 195584
  %v2934 = vsel %vm2932, %v2917, %v2400
  %v2936 = vsel %vm2932, %v2919, %v2402
  %v2938 = vsel %vm2932, %v2921, %v2404
  %v2940 = vsel %vm2932, %v2923, %v2406
  %v2942 = vsel %vm2932, %v2925, %v2408
  %v2944 = vsel %vm2932, %v2927, %v2410
  %v2946 = vsel %vm2932, %v2929, %v2412
  %v2948 = vsel %vm2932, %v2931, %v2414
  %vm2949 = vcmask 228352
  %v2951 = vsel %vm2949, %v2934, %v2440
  %v2953 = vsel %vm2949, %v2936, %v2442
  %v2955 = vsel %vm2949, %v2938, %v2444
  %v2957 = vsel %vm2949, %v2940, %v2446
  %v2959 = vsel %vm2949, %v2942, %v2448
  %v2961 = vsel %vm2949, %v2944, %v2450
  %v2963 = vsel %vm2949, %v2946, %v2452
  %v2965 = vsel %vm2949, %v2948, %v2454
  %vm2966 = vcmask 261120
  %v2968 = vsel %vm2966, %v2951, %v2496
  %v2970 = vsel %vm2966, %v2953, %v2498
  %v2972 = vsel %vm2966, %v2955, %v2500
  %v2974 = vsel %vm2966, %v2957, %v2502
  %v2976 = vsel %vm2966, %v2959, %v2504
  %v2978 = vsel %vm2966, %v2961, %v2506
  %v2980 = vsel %vm2966, %v2963, %v2508
  %v2982 = vsel %vm2966, %v2965, %v2510
  %vm2983 = vcmask 293888
  %v2985 = vsel %vm2983, %v2968, %v2552
  %v2987 = vsel %vm2983, %v2970, %v2554
  %v2989 = vsel %vm2983, %v2972, %v2556
  %v2991 = vsel %vm2983, %v2974, %v2558
  %v2993 = vsel %vm2983, %v2976, %v2560
  %v2995 = vsel %vm2983, %v2978, %v2562
  %v2997 = vsel %vm2983, %v2980, %v2564
  %v2999 = vsel %vm2983, %v2982, %v2566
  %vm3000 = vcmask 326656
  %v3002 = vsel %vm3000, %v2985, %v2592
  %v3004 = vsel %vm3000, %v2987, %v2594
  %v3006 = vsel %vm3000, %v2989, %v2596
  %v3008 = vsel %vm3000, %v2991, %v2598
  %v3010 = vsel %vm3000, %v2993, %v2600
  %v3012 = vsel %vm3000, %v2995, %v2602
  %v3014 = vsel %vm3000, %v2997, %v2604
  %v3016 = vsel %vm3000, %v2999, %v2606
  %vm3017 = vcmask 359424
  %v3019 = vsel %vm3017, %v3002, %v2632
  %v3021 = vsel %vm3017, %v3004, %v2634
  %v3023 = vsel %vm3017, %v3006, %v2636
  %v3025 = vsel %vm3017, %v3008, %v2638
  %v3027 = vsel %vm3017, %v3010, %v2640
  %v3029 = vsel %vm3017, %v3012, %v2642
  %v3031 = vsel %vm3017, %v3014, %v2644
  %v3033 = vsel %vm3017, %v3016, %v2646
  %vm3034 = vcmask 392192
  %v3036 = vsel %vm3034, %v3019, %v2688
  %v3038 = vsel %vm3034, %v3021, %v2690
  %v3040 = vsel %vm3034, %v3023, %v2692
  %v3042 = vsel %vm3034, %v3025, %v2694
  %v3044 = vsel %vm3034, %v3027, %v2696
  %v3046 = vsel %vm3034, %v3029, %v2698
  %v3048 = vsel %vm3034, %v3031, %v2700
  %v3050 = vsel %vm3034, %v3033, %v2702
  %vm3051 = vcmask 424960
  %v3053 = vsel %vm3051, %v3036, %v2744
  %v3055 = vsel %vm3051, %v3038, %v2746
  %v3057 = vsel %vm3051, %v3040, %v2748
  %v3059 = vsel %vm3051, %v3042, %v2750
  %v3061 = vsel %vm3051, %v3044, %v2752
  %v3063 = vsel %vm3051, %v3046, %v2754
  %v3065 = vsel %vm3051, %v3048, %v2756
  %v3067 = vsel %vm3051, %v3050, %v2758
  %vm3068 = vcmask 457728
  %v3070 = vsel %vm3068, %v3053, %v2784
  %v3072 = vsel %vm3068, %v3055, %v2786
  %v3074 = vsel %vm3068, %v3057, %v2788
  %v3076 = vsel %vm3068, %v3059, %v2790
  %v3078 = vsel %vm3068, %v3061, %v2792
  %v3080 = vsel %vm3068, %v3063, %v2794
  %v3082 = vsel %vm3068, %v3065, %v2796
  %v3084 = vsel %vm3068, %v3067, %v2798
  %vm3085 = vcmask 490496
  %v3087 = vsel %vm3085, %v3070, %v2824
  %v3089 = vsel %vm3085, %v3072, %v2826
  %v3091 = vsel %vm3085, %v3074, %v2828
  %v3093 = vsel %vm3085, %v3076, %v2830
  %v3095 = vsel %vm3085, %v3078, %v2832
  %v3097 = vsel %vm3085, %v3080, %v2834
  %v3099 = vsel %vm3085, %v3082, %v2836
  %v3101 = vsel %vm3085, %v3084, %v2838
  %v3102 = vld [vmem:[%s1] sm:$0xf]
  %v3103 = vld [vmem:[%s1 + $0x4] sm:$0xf]
  %v3104 = vld [vmem:[%s1 + $0x8] sm:$0xf]
  %v3105 = vld [vmem:[%s1 + $0xc] sm:$0xf]
  %v3106 = vld [vmem:[%s1 + $0x10] sm:$0xf]
  %v3107 = vld [vmem:[%s1 + $0x14] sm:$0xf]
  %v3108 = vld [vmem:[%s1 + $0x18] sm:$0xf]
  %v3109 = vld [vmem:[%s1 + $0x1c] sm:$0xf]
  %v3110 = vld [vmem:[%s2] sm:$0x1]
  %v3112 = vlaneseq
  %v3113 = vshrl.u32 %v3112, 7
  %v3114 = vsub.s32 0, %v3113
  %v3115 = vrot.slane %v3110, %v3114
  %v3125 = vunpack.c.l.b16 %v3102
  %v3126 = vunpack.c.l.b16 %v3103
  %v3127 = vunpack.c.l.b16 %v3104
  %v3128 = vunpack.c.l.b16 %v3105
  %v3129 = vunpack.c.l.b16 %v3106
  %v3130 = vunpack.c.l.b16 %v3107
  %v3131 = vunpack.c.l.b16 %v3108
  %v3132 = vunpack.c.l.b16 %v3109
  %v3133 = vpack.c.b16 %v3126, %v3125
  %v3134 = vpack.c.b16 %v3128, %v3127
  %v3135 = vpack.c.b16 %v3130, %v3129
  %v3136 = vpack.c.b16 %v3132, %v3131
  %vm3141 = vcmask 523264
  %v3142 = vsel %vm3141, %v3087, 0
  %v3144 = vsel %vm3141, %v3089, 0
  %v3146 = vsel %vm3141, %v3091, 0
  %v3148 = vsel %vm3141, %v3093, 0
  %v3150 = vsel %vm3141, %v3095, 0
  %v3152 = vsel %vm3141, %v3097, 0
  %v3154 = vsel %vm3141, %v3099, 0
  %v3156 = vsel %vm3141, %v3101, 0
  %3158 = vmatprep.subr.bf16.mxu0 0
  %3159 = vmatpush1.bf16.msra.mxu0 0
  %3160 = vmatprep.subr.bf16.mxu0 0
  %3161 = vmatpush1.bf16.msra.mxu0 0
  %3162 = vmatprep.subr.bf16.mxu0 0
  %3163 = vmatpush1.bf16.msra.mxu0 0
  %3164 = vmatprep.subr.bf16.mxu0 0
  %3165 = vmatpush1.bf16.msra.mxu0 0
  %3166 = vmatprep.subr.bf16.mxu0 0
  %3167 = vmatpush1.bf16.msra.mxu0 %v3136
  %3168 = vmatprep.subr.bf16.mxu0 0
  %3169 = vmatpush1.bf16.msra.mxu0 %v3135
  %3170 = vmatprep.subr.bf16.mxu0 0
  %3171 = vmatpush1.bf16.msra.mxu0 %v3134
  %3172 = vmatprep.subr.bf16.mxu0 0
  %3173 = vmatpush1.bf16.msra.mxu0 %v3133
  %3174 = vmatprep.subr.bf16.mxu0 0
  %3175 = vmatpush2.bf16.msra.mxu0 0
  %3176 = vmatprep.subr.bf16.mxu0 0
  %3177 = vmatpush2.bf16.msra.mxu0 0
  %3178 = vmatprep.subr.bf16.mxu0 0
  %3179 = vmatpush2.bf16.msra.mxu0 0
  %3180 = vmatprep.subr.bf16.mxu0 0
  %3181 = vmatpush2.bf16.msra.mxu0 0
  %3182 = vmatprep.subr.bf16.mxu0 0
  %3183 = vmatpush2.bf16.msra.mxu0 0
  %3184 = vmatprep.subr.bf16.mxu0 0
  %3185 = vmatpush2.bf16.msra.mxu0 0
  %3186 = vmatprep.subr.bf16.mxu0 0
  %3187 = vmatpush2.bf16.msra.mxu0 0
  %3188 = vmatprep.subr.bf16.mxu0 0
  %3189 = vmatpush2.bf16.msra.mxu0 0
  %3190 = vmatprep.mubr.bf16.mxu0 0
  %3191 = vmatmul.mubr.bf16.gmra.mxu0 %v3142
  %v3192 = vpop.f32.mrf.mxu0
  %v3193 = vadd.f32 %v3115, %v3192
  %v3194 = vpop.f32.mrf.mxu0
  %v3195 = vpop.f32.mrf.mxu0
  %v3196 = vadd.f32 %v3115, %v3195
  %v3197 = vpop.f32.mrf.mxu0
  %3198 = vmatprep.mubr.bf16.mxu0 0
  %3199 = vmatmul.mubr.bf16.gmra.mxu0 %v3144
  %v3200 = vpop.f32.mrf.mxu0
  %v3201 = vadd.f32 %v3115, %v3200
  %v3202 = vpop.f32.mrf.mxu0
  %v3203 = vpop.f32.mrf.mxu0
  %v3204 = vadd.f32 %v3115, %v3203
  %v3205 = vpop.f32.mrf.mxu0
  %3206 = vmatprep.mubr.bf16.mxu0 0
  %3207 = vmatmul.mubr.bf16.gmra.mxu0 %v3146
  %v3208 = vpop.f32.mrf.mxu0
  %v3209 = vadd.f32 %v3115, %v3208
  %v3210 = vpop.f32.mrf.mxu0
  %v3211 = vpop.f32.mrf.mxu0
  %v3212 = vadd.f32 %v3115, %v3211
  %v3213 = vpop.f32.mrf.mxu0
  %3214 = vmatprep.mubr.bf16.mxu0 0
  %3215 = vmatmul.mubr.bf16.gmra.mxu0 %v3148
  %v3216 = vpop.f32.mrf.mxu0
  %v3217 = vadd.f32 %v3115, %v3216
  %v3218 = vpop.f32.mrf.mxu0
  %v3219 = vpop.f32.mrf.mxu0
  %v3220 = vadd.f32 %v3115, %v3219
  %v3221 = vpop.f32.mrf.mxu0
  %3222 = vmatprep.mubr.bf16.mxu0 0
  %3223 = vmatmul.mubr.bf16.gmra.mxu0 %v3150
  %v3224 = vpop.f32.mrf.mxu0
  %v3225 = vadd.f32 %v3115, %v3224
  %v3226 = vpop.f32.mrf.mxu0
  %v3227 = vpop.f32.mrf.mxu0
  %v3228 = vadd.f32 %v3115, %v3227
  %v3229 = vpop.f32.mrf.mxu0
  %3230 = vmatprep.mubr.bf16.mxu0 0
  %3231 = vmatmul.mubr.bf16.gmra.mxu0 %v3152
  %v3232 = vpop.f32.mrf.mxu0
  %v3233 = vadd.f32 %v3115, %v3232
  %v3234 = vpop.f32.mrf.mxu0
  %v3235 = vpop.f32.mrf.mxu0
  %v3236 = vadd.f32 %v3115, %v3235
  %v3237 = vpop.f32.mrf.mxu0
  %3238 = vmatprep.mubr.bf16.mxu0 0
  %3239 = vmatmul.mubr.bf16.gmra.mxu0 %v3154
  %v3240 = vpop.f32.mrf.mxu0
  %v3241 = vadd.f32 %v3115, %v3240
  %v3242 = vpop.f32.mrf.mxu0
  %v3243 = vpop.f32.mrf.mxu0
  %v3244 = vadd.f32 %v3115, %v3243
  %v3245 = vpop.f32.mrf.mxu0
  %3246 = vmatprep.mubr.bf16.mxu0 0
  %3247 = vmatmul.mubr.bf16.gmra.mxu0 %v3156
  %v3248 = vpop.f32.mrf.mxu0
  %v3249 = vadd.f32 %v3115, %v3248
  %v3250 = vpop.f32.mrf.mxu0
  %v3251 = vpop.f32.mrf.mxu0
  %v3252 = vadd.f32 %v3115, %v3251
  %v3253 = vpop.f32.mrf.mxu0
  %3254 = vdwg.mxu0
  %vm3255 = vcmp.gt.f32.partialorder %v3193, 0.0
  %vm3256 = vcmp.gt.f32.partialorder %v3196, 0.0
  %vm3257 = vcmp.gt.f32.partialorder %v3201, 0.0
  %vm3258 = vcmp.gt.f32.partialorder %v3204, 0.0
  %vm3259 = vcmp.gt.f32.partialorder %v3209, 0.0
  %vm3260 = vcmp.gt.f32.partialorder %v3212, 0.0
  %vm3261 = vcmp.gt.f32.partialorder %v3217, 0.0
  %vm3262 = vcmp.gt.f32.partialorder %v3220, 0.0
  %vm3263 = vcmp.gt.f32.partialorder %v3225, 0.0
  %vm3264 = vcmp.gt.f32.partialorder %v3228, 0.0
  %vm3265 = vcmp.gt.f32.partialorder %v3233, 0.0
  %vm3266 = vcmp.gt.f32.partialorder %v3236, 0.0
  %vm3267 = vcmp.gt.f32.partialorder %v3241, 0.0
  %vm3268 = vcmp.gt.f32.partialorder %v3244, 0.0
  %vm3269 = vcmp.gt.f32.partialorder %v3249, 0.0
  %vm3270 = vcmp.gt.f32.partialorder %v3252, 0.0
  %v3271 = vmul.f32 %v3193, 0.2
  %v3272 = vmul.f32 %v3196, 0.2
  %v3273 = vmul.f32 %v3201, 0.2
  %v3274 = vmul.f32 %v3204, 0.2
  %v3275 = vmul.f32 %v3209, 0.2
  %v3276 = vmul.f32 %v3212, 0.2
  %v3277 = vmul.f32 %v3217, 0.2
  %v3278 = vmul.f32 %v3220, 0.2
  %v3279 = vmul.f32 %v3225, 0.2
  %v3280 = vmul.f32 %v3228, 0.2
  %v3281 = vmul.f32 %v3233, 0.2
  %v3282 = vmul.f32 %v3236, 0.2
  %v3283 = vmul.f32 %v3241, 0.2
  %v3284 = vmul.f32 %v3244, 0.2
  %v3285 = vmul.f32 %v3249, 0.2
  %v3286 = vmul.f32 %v3252, 0.2
  %v3287 = vsel %vm3255, %v3193, %v3271
  %v3288 = vsel %vm3256, %v3196, %v3272
  %v3289 = vsel %vm3257, %v3201, %v3273
  %v3290 = vsel %vm3258, %v3204, %v3274
  %v3291 = vsel %vm3259, %v3209, %v3275
  %v3292 = vsel %vm3260, %v3212, %v3276
  %v3293 = vsel %vm3261, %v3217, %v3277
  %v3294 = vsel %vm3262, %v3220, %v3278
  %v3295 = vsel %vm3263, %v3225, %v3279
  %v3296 = vsel %vm3264, %v3228, %v3280
  %v3297 = vsel %vm3265, %v3233, %v3281
  %v3298 = vsel %vm3266, %v3236, %v3282
  %v3299 = vsel %vm3267, %v3241, %v3283
  %v3300 = vsel %vm3268, %v3244, %v3284
  %v3301 = vsel %vm3269, %v3249, %v3285
  %v3302 = vsel %vm3270, %v3252, %v3286
  %v3319 = vcombine.high %v3287, %v3287
  %v3321 = vunpack.c.l.s4 1983009808
  %v3322 = vunpack.c.0.s8 %v3321
  %v3323 = vlaneseq
  %v3324 = vshrl.u32 %v3323, 7
  %v3325 = vsub.s32 %v3322, %v3324
  %v3326 = vrot.slane %v3287, %v3325
  %v3328 = vunpack.c.l.s4 1983009808
  %v3329 = vunpack.c.0.s8 %v3328
  %v3330 = vlaneseq
  %v3331 = vshrl.u32 %v3330, 7
  %v3332 = vsub.s32 %v3329, %v3331
  %v3333 = vrot.slane %v3319, %v3332
  %v3334 = vcombine.high %v3326, %v3326
  %v3335 = vcombine.high %v3333, %v3333
  %v3336 = vcombine.high %v3288, %v3288
  %v3338 = vunpack.c.l.s4 1983009808
  %v3339 = vunpack.c.0.s8 %v3338
  %v3340 = vlaneseq
  %v3341 = vshrl.u32 %v3340, 7
  %v3342 = vsub.s32 %v3339, %v3341
  %v3343 = vrot.slane %v3288, %v3342
  %v3345 = vunpack.c.l.s4 1983009808
  %v3346 = vunpack.c.0.s8 %v3345
  %v3347 = vlaneseq
  %v3348 = vshrl.u32 %v3347, 7
  %v3349 = vsub.s32 %v3346, %v3348
  %v3350 = vrot.slane %v3336, %v3349
  %v3351 = vcombine.high %v3343, %v3343
  %v3352 = vcombine.high %v3350, %v3350
  %v3353 = vcombine.high %v3289, %v3289
  %v3355 = vunpack.c.l.s4 1983009808
  %v3356 = vunpack.c.0.s8 %v3355
  %v3357 = vlaneseq
  %v3358 = vshrl.u32 %v3357, 7
  %v3359 = vsub.s32 %v3356, %v3358
  %v3360 = vrot.slane %v3289, %v3359
  %v3362 = vunpack.c.l.s4 1983009808
  %v3363 = vunpack.c.0.s8 %v3362
  %v3364 = vlaneseq
  %v3365 = vshrl.u32 %v3364, 7
  %v3366 = vsub.s32 %v3363, %v3365
  %v3367 = vrot.slane %v3353, %v3366
  %v3368 = vcombine.high %v3360, %v3360
  %v3369 = vcombine.high %v3367, %v3367
  %v3370 = vcombine.high %v3290, %v3290
  %v3372 = vunpack.c.l.s4 1983009808
  %v3373 = vunpack.c.0.s8 %v3372
  %v3374 = vlaneseq
  %v3375 = vshrl.u32 %v3374, 7
  %v3376 = vsub.s32 %v3373, %v3375
  %v3377 = vrot.slane %v3290, %v3376
  %v3379 = vunpack.c.l.s4 1983009808
  %v3380 = vunpack.c.0.s8 %v3379
  %v3381 = vlaneseq
  %v3382 = vshrl.u32 %v3381, 7
  %v3383 = vsub.s32 %v3380, %v3382
  %v3384 = vrot.slane %v3370, %v3383
  %v3385 = vcombine.high %v3377, %v3377
  %v3386 = vcombine.high %v3384, %v3384
  %v3387 = vcombine.high %v3291, %v3291
  %v3389 = vunpack.c.l.s4 1983009808
  %v3390 = vunpack.c.0.s8 %v3389
  %v3391 = vlaneseq
  %v3392 = vshrl.u32 %v3391, 7
  %v3393 = vsub.s32 %v3390, %v3392
  %v3394 = vrot.slane %v3291, %v3393
  %v3396 = vunpack.c.l.s4 1983009808
  %v3397 = vunpack.c.0.s8 %v3396
  %v3398 = vlaneseq
  %v3399 = vshrl.u32 %v3398, 7
  %v3400 = vsub.s32 %v3397, %v3399
  %v3401 = vrot.slane %v3387, %v3400
  %v3402 = vcombine.high %v3394, %v3394
  %v3403 = vcombine.high %v3401, %v3401
  %v3404 = vcombine.high %v3292, %v3292
  %v3406 = vunpack.c.l.s4 1983009808
  %v3407 = vunpack.c.0.s8 %v3406
  %v3408 = vlaneseq
  %v3409 = vshrl.u32 %v3408, 7
  %v3410 = vsub.s32 %v3407, %v3409
  %v3411 = vrot.slane %v3292, %v3410
  %v3413 = vunpack.c.l.s4 1983009808
  %v3414 = vunpack.c.0.s8 %v3413
  %v3415 = vlaneseq
  %v3416 = vshrl.u32 %v3415, 7
  %v3417 = vsub.s32 %v3414, %v3416
  %v3418 = vrot.slane %v3404, %v3417
  %v3419 = vcombine.high %v3411, %v3411
  %v3420 = vcombine.high %v3418, %v3418
  %v3421 = vcombine.high %v3293, %v3293
  %v3423 = vunpack.c.l.s4 1983009808
  %v3424 = vunpack.c.0.s8 %v3423
  %v3425 = vlaneseq
  %v3426 = vshrl.u32 %v3425, 7
  %v3427 = vsub.s32 %v3424, %v3426
  %v3428 = vrot.slane %v3293, %v3427
  %v3430 = vunpack.c.l.s4 1983009808
  %v3431 = vunpack.c.0.s8 %v3430
  %v3432 = vlaneseq
  %v3433 = vshrl.u32 %v3432, 7
  %v3434 = vsub.s32 %v3431, %v3433
  %v3435 = vrot.slane %v3421, %v3434
  %v3436 = vcombine.high %v3428, %v3428
  %v3437 = vcombine.high %v3435, %v3435
  %v3438 = vcombine.high %v3294, %v3294
  %v3440 = vunpack.c.l.s4 1983009808
  %v3441 = vunpack.c.0.s8 %v3440
  %v3442 = vlaneseq
  %v3443 = vshrl.u32 %v3442, 7
  %v3444 = vsub.s32 %v3441, %v3443
  %v3445 = vrot.slane %v3294, %v3444
  %v3447 = vunpack.c.l.s4 1983009808
  %v3448 = vunpack.c.0.s8 %v3447
  %v3449 = vlaneseq
  %v3450 = vshrl.u32 %v3449, 7
  %v3451 = vsub.s32 %v3448, %v3450
  %v3452 = vrot.slane %v3438, %v3451
  %v3453 = vcombine.high %v3445, %v3445
  %v3454 = vcombine.high %v3452, %v3452
  %v3455 = vcombine.high %v3295, %v3295
  %v3457 = vunpack.c.l.s4 1983009808
  %v3458 = vunpack.c.0.s8 %v3457
  %v3459 = vlaneseq
  %v3460 = vshrl.u32 %v3459, 7
  %v3461 = vsub.s32 %v3458, %v3460
  %v3462 = vrot.slane %v3295, %v3461
  %v3464 = vunpack.c.l.s4 1983009808
  %v3465 = vunpack.c.0.s8 %v3464
  %v3466 = vlaneseq
  %v3467 = vshrl.u32 %v3466, 7
  %v3468 = vsub.s32 %v3465, %v3467
  %v3469 = vrot.slane %v3455, %v3468
  %v3470 = vcombine.high %v3462, %v3462
  %v3471 = vcombine.high %v3469, %v3469
  %v3472 = vcombine.high %v3296, %v3296
  %v3474 = vunpack.c.l.s4 1983009808
  %v3475 = vunpack.c.0.s8 %v3474
  %v3476 = vlaneseq
  %v3477 = vshrl.u32 %v3476, 7
  %v3478 = vsub.s32 %v3475, %v3477
  %v3479 = vrot.slane %v3296, %v3478
  %v3481 = vunpack.c.l.s4 1983009808
  %v3482 = vunpack.c.0.s8 %v3481
  %v3483 = vlaneseq
  %v3484 = vshrl.u32 %v3483, 7
  %v3485 = vsub.s32 %v3482, %v3484
  %v3486 = vrot.slane %v3472, %v3485
  %v3487 = vcombine.high %v3479, %v3479
  %v3488 = vcombine.high %v3486, %v3486
  %v3489 = vcombine.high %v3297, %v3297
  %v3491 = vunpack.c.l.s4 1983009808
  %v3492 = vunpack.c.0.s8 %v3491
  %v3493 = vlaneseq
  %v3494 = vshrl.u32 %v3493, 7
  %v3495 = vsub.s32 %v3492, %v3494
  %v3496 = vrot.slane %v3297, %v3495
  %v3498 = vunpack.c.l.s4 1983009808
  %v3499 = vunpack.c.0.s8 %v3498
  %v3500 = vlaneseq
  %v3501 = vshrl.u32 %v3500, 7
  %v3502 = vsub.s32 %v3499, %v3501
  %v3503 = vrot.slane %v3489, %v3502
  %v3504 = vcombine.high %v3496, %v3496
  %v3505 = vcombine.high %v3503, %v3503
  %v3506 = vcombine.high %v3298, %v3298
  %v3508 = vunpack.c.l.s4 1983009808
  %v3509 = vunpack.c.0.s8 %v3508
  %v3510 = vlaneseq
  %v3511 = vshrl.u32 %v3510, 7
  %v3512 = vsub.s32 %v3509, %v3511
  %v3513 = vrot.slane %v3298, %v3512
  %v3515 = vunpack.c.l.s4 1983009808
  %v3516 = vunpack.c.0.s8 %v3515
  %v3517 = vlaneseq
  %v3518 = vshrl.u32 %v3517, 7
  %v3519 = vsub.s32 %v3516, %v3518
  %v3520 = vrot.slane %v3506, %v3519
  %v3521 = vcombine.high %v3513, %v3513
  %v3522 = vcombine.high %v3520, %v3520
  %v3523 = vcombine.high %v3299, %v3299
  %v3525 = vunpack.c.l.s4 1983009808
  %v3526 = vunpack.c.0.s8 %v3525
  %v3527 = vlaneseq
  %v3528 = vshrl.u32 %v3527, 7
  %v3529 = vsub.s32 %v3526, %v3528
  %v3530 = vrot.slane %v3299, %v3529
  %v3532 = vunpack.c.l.s4 1983009808
  %v3533 = vunpack.c.0.s8 %v3532
  %v3534 = vlaneseq
  %v3535 = vshrl.u32 %v3534, 7
  %v3536 = vsub.s32 %v3533, %v3535
  %v3537 = vrot.slane %v3523, %v3536
  %v3538 = vcombine.high %v3530, %v3530
  %v3539 = vcombine.high %v3537, %v3537
  %v3540 = vcombine.high %v3300, %v3300
  %v3542 = vunpack.c.l.s4 1983009808
  %v3543 = vunpack.c.0.s8 %v3542
  %v3544 = vlaneseq
  %v3545 = vshrl.u32 %v3544, 7
  %v3546 = vsub.s32 %v3543, %v3545
  %v3547 = vrot.slane %v3300, %v3546
  %v3549 = vunpack.c.l.s4 1983009808
  %v3550 = vunpack.c.0.s8 %v3549
  %v3551 = vlaneseq
  %v3552 = vshrl.u32 %v3551, 7
  %v3553 = vsub.s32 %v3550, %v3552
  %v3554 = vrot.slane %v3540, %v3553
  %v3555 = vcombine.high %v3547, %v3547
  %v3556 = vcombine.high %v3554, %v3554
  %v3557 = vcombine.high %v3301, %v3301
  %v3559 = vunpack.c.l.s4 1983009808
  %v3560 = vunpack.c.0.s8 %v3559
  %v3561 = vlaneseq
  %v3562 = vshrl.u32 %v3561, 7
  %v3563 = vsub.s32 %v3560, %v3562
  %v3564 = vrot.slane %v3301, %v3563
  %v3566 = vunpack.c.l.s4 1983009808
  %v3567 = vunpack.c.0.s8 %v3566
  %v3568 = vlaneseq
  %v3569 = vshrl.u32 %v3568, 7
  %v3570 = vsub.s32 %v3567, %v3569
  %v3571 = vrot.slane %v3557, %v3570
  %v3572 = vcombine.high %v3564, %v3564
  %v3573 = vcombine.high %v3571, %v3571
  %v3574 = vcombine.high %v3302, %v3302
  %v3576 = vunpack.c.l.s4 1983009808
  %v3577 = vunpack.c.0.s8 %v3576
  %v3578 = vlaneseq
  %v3579 = vshrl.u32 %v3578, 7
  %v3580 = vsub.s32 %v3577, %v3579
  %v3581 = vrot.slane %v3302, %v3580
  %v3583 = vunpack.c.l.s4 1983009808
  %v3584 = vunpack.c.0.s8 %v3583
  %v3585 = vlaneseq
  %v3586 = vshrl.u32 %v3585, 7
  %v3587 = vsub.s32 %v3584, %v3586
  %v3588 = vrot.slane %v3574, %v3587
  %v3589 = vcombine.high %v3581, %v3581
  %v3590 = vcombine.high %v3588, %v3588
  %v3655 = vpack.c.bf16 %v3326, %v3326
  %v3656 = vpack.c.bf16 %v3334, %v3334
  %v3657 = vpack.c.bf16 %v3333, %v3333
  %v3658 = vpack.c.bf16 %v3335, %v3335
  %v3659 = vpack.c.bf16 %v3343, %v3343
  %v3660 = vpack.c.bf16 %v3351, %v3351
  %v3661 = vpack.c.bf16 %v3350, %v3350
  %v3662 = vpack.c.bf16 %v3352, %v3352
  %v3663 = vpack.c.bf16 %v3360, %v3360
  %v3664 = vpack.c.bf16 %v3368, %v3368
  %v3665 = vpack.c.bf16 %v3367, %v3367
  %v3666 = vpack.c.bf16 %v3369, %v3369
  %v3667 = vpack.c.bf16 %v3377, %v3377
  %v3668 = vpack.c.bf16 %v3385, %v3385
  %v3669 = vpack.c.bf16 %v3384, %v3384
  %v3670 = vpack.c.bf16 %v3386, %v3386
  %v3671 = vpack.c.bf16 %v3394, %v3394
  %v3672 = vpack.c.bf16 %v3402, %v3402
  %v3673 = vpack.c.bf16 %v3401, %v3401
  %v3674 = vpack.c.bf16 %v3403, %v3403
  %v3675 = vpack.c.bf16 %v3411, %v3411
  %v3676 = vpack.c.bf16 %v3419, %v3419
  %v3677 = vpack.c.bf16 %v3418, %v3418
  %v3678 = vpack.c.bf16 %v3420, %v3420
  %v3679 = vpack.c.bf16 %v3428, %v3428
  %v3680 = vpack.c.bf16 %v3436, %v3436
  %v3681 = vpack.c.bf16 %v3435, %v3435
  %v3682 = vpack.c.bf16 %v3437, %v3437
  %v3683 = vpack.c.bf16 %v3445, %v3445
  %v3684 = vpack.c.bf16 %v3453, %v3453
  %v3685 = vpack.c.bf16 %v3452, %v3452
  %v3686 = vpack.c.bf16 %v3454, %v3454
  %v3687 = vpack.c.bf16 %v3462, %v3462
  %v3688 = vpack.c.bf16 %v3470, %v3470
  %v3689 = vpack.c.bf16 %v3469, %v3469
  %v3690 = vpack.c.bf16 %v3471, %v3471
  %v3691 = vpack.c.bf16 %v3479, %v3479
  %v3692 = vpack.c.bf16 %v3487, %v3487
  %v3693 = vpack.c.bf16 %v3486, %v3486
  %v3694 = vpack.c.bf16 %v3488, %v3488
  %v3695 = vpack.c.bf16 %v3496, %v3496
  %v3696 = vpack.c.bf16 %v3504, %v3504
  %v3697 = vpack.c.bf16 %v3503, %v3503
  %v3698 = vpack.c.bf16 %v3505, %v3505
  %v3699 = vpack.c.bf16 %v3513, %v3513
  %v3700 = vpack.c.bf16 %v3521, %v3521
  %v3701 = vpack.c.bf16 %v3520, %v3520
  %v3702 = vpack.c.bf16 %v3522, %v3522
  %v3703 = vpack.c.bf16 %v3530, %v3530
  %v3704 = vpack.c.bf16 %v3538, %v3538
  %v3705 = vpack.c.bf16 %v3537, %v3537
  %v3706 = vpack.c.bf16 %v3539, %v3539
  %v3707 = vpack.c.bf16 %v3547, %v3547
  %v3708 = vpack.c.bf16 %v3555, %v3555
  %v3709 = vpack.c.bf16 %v3554, %v3554
  %v3710 = vpack.c.bf16 %v3556, %v3556
  %v3711 = vpack.c.bf16 %v3564, %v3564
  %v3712 = vpack.c.bf16 %v3572, %v3572
  %v3713 = vpack.c.bf16 %v3571, %v3571
  %v3714 = vpack.c.bf16 %v3573, %v3573
  %v3715 = vpack.c.bf16 %v3581, %v3581
  %v3716 = vpack.c.bf16 %v3589, %v3589
  %v3717 = vpack.c.bf16 %v3588, %v3588
  %v3718 = vpack.c.bf16 %v3590, %v3590
  %v3751 = vunpack.c.l.b16 %v3655
  %v3752 = vunpack.c.l.b16 %v3656
  %v3753 = vunpack.c.l.b16 %v3657
  %v3754 = vunpack.c.l.b16 %v3658
  %v3755 = vunpack.c.l.b16 %v3663
  %v3756 = vunpack.c.l.b16 %v3664
  %v3757 = vunpack.c.l.b16 %v3665
  %v3758 = vunpack.c.l.b16 %v3666
  %v3759 = vunpack.c.l.b16 %v3671
  %v3760 = vunpack.c.l.b16 %v3672
  %v3761 = vunpack.c.l.b16 %v3673
  %v3762 = vunpack.c.l.b16 %v3674
  %v3763 = vunpack.c.l.b16 %v3679
  %v3764 = vunpack.c.l.b16 %v3680
  %v3765 = vunpack.c.l.b16 %v3681
  %v3766 = vunpack.c.l.b16 %v3682
  %v3767 = vunpack.c.l.b16 %v3687
  %v3768 = vunpack.c.l.b16 %v3688
  %v3769 = vunpack.c.l.b16 %v3689
  %v3770 = vunpack.c.l.b16 %v3690
  %v3771 = vunpack.c.l.b16 %v3695
  %v3772 = vunpack.c.l.b16 %v3696
  %v3773 = vunpack.c.l.b16 %v3697
  %v3774 = vunpack.c.l.b16 %v3698
  %v3775 = vunpack.c.l.b16 %v3703
  %v3776 = vunpack.c.l.b16 %v3704
  %v3777 = vunpack.c.l.b16 %v3705
  %v3778 = vunpack.c.l.b16 %v3706
  %v3779 = vunpack.c.l.b16 %v3711
  %v3780 = vunpack.c.l.b16 %v3712
  %v3781 = vunpack.c.l.b16 %v3713
  %v3782 = vunpack.c.l.b16 %v3714
  %v3783 = vpack.c.b16 %v3751, %v3751
  %v3784 = vpack.c.b16 %v3752, %v3752
  %v3785 = vpack.c.b16 %v3753, %v3753
  %v3786 = vpack.c.b16 %v3754, %v3754
  %v3787 = vpack.c.b16 %v3755, %v3755
  %v3788 = vpack.c.b16 %v3756, %v3756
  %v3789 = vpack.c.b16 %v3757, %v3757
  %v3790 = vpack.c.b16 %v3758, %v3758
  %v3791 = vpack.c.b16 %v3759, %v3759
  %v3792 = vpack.c.b16 %v3760, %v3760
  %v3793 = vpack.c.b16 %v3761, %v3761
  %v3794 = vpack.c.b16 %v3762, %v3762
  %v3795 = vpack.c.b16 %v3763, %v3763
  %v3796 = vpack.c.b16 %v3764, %v3764
  %v3797 = vpack.c.b16 %v3765, %v3765
  %v3798 = vpack.c.b16 %v3766, %v3766
  %v3799 = vpack.c.b16 %v3767, %v3767
  %v3800 = vpack.c.b16 %v3768, %v3768
  %v3801 = vpack.c.b16 %v3769, %v3769
  %v3802 = vpack.c.b16 %v3770, %v3770
  %v3803 = vpack.c.b16 %v3771, %v3771
  %v3804 = vpack.c.b16 %v3772, %v3772
  %v3805 = vpack.c.b16 %v3773, %v3773
  %v3806 = vpack.c.b16 %v3774, %v3774
  %v3807 = vpack.c.b16 %v3775, %v3775
  %v3808 = vpack.c.b16 %v3776, %v3776
  %v3809 = vpack.c.b16 %v3777, %v3777
  %v3810 = vpack.c.b16 %v3778, %v3778
  %v3811 = vpack.c.b16 %v3779, %v3779
  %v3812 = vpack.c.b16 %v3780, %v3780
  %v3813 = vpack.c.b16 %v3781, %v3781
  %v3814 = vpack.c.b16 %v3782, %v3782
  %v3815 = vunpack.c.l.b16 %v3783
  %v3816 = vunpack.c.l.b16 %v3784
  %v3817 = vunpack.c.l.b16 %v3785
  %v3818 = vunpack.c.l.b16 %v3786
  %v3819 = vunpack.c.l.b16 %v3787
  %v3820 = vunpack.c.l.b16 %v3788
  %v3821 = vunpack.c.l.b16 %v3789
  %v3822 = vunpack.c.l.b16 %v3790
  %v3823 = vunpack.c.l.b16 %v3791
  %v3824 = vunpack.c.l.b16 %v3792
  %v3825 = vunpack.c.l.b16 %v3793
  %v3826 = vunpack.c.l.b16 %v3794
  %v3827 = vunpack.c.l.b16 %v3795
  %v3828 = vunpack.c.l.b16 %v3796
  %v3829 = vunpack.c.l.b16 %v3797
  %v3830 = vunpack.c.l.b16 %v3798
  %v3831 = vunpack.c.l.b16 %v3799
  %v3832 = vunpack.c.l.b16 %v3800
  %v3833 = vunpack.c.l.b16 %v3801
  %v3834 = vunpack.c.l.b16 %v3802
  %v3835 = vunpack.c.l.b16 %v3803
  %v3836 = vunpack.c.l.b16 %v3804
  %v3837 = vunpack.c.l.b16 %v3805
  %v3838 = vunpack.c.l.b16 %v3806
  %v3839 = vunpack.c.l.b16 %v3807
  %v3840 = vunpack.c.l.b16 %v3808
  %v3841 = vunpack.c.l.b16 %v3809
  %v3842 = vunpack.c.l.b16 %v3810
  %v3843 = vunpack.c.l.b16 %v3811
  %v3844 = vunpack.c.l.b16 %v3812
  %v3845 = vunpack.c.l.b16 %v3813
  %v3846 = vunpack.c.l.b16 %v3814
  %v3847 = vrot.slane %v3816, 7
  %vm3848 = vcmask 1041409
  %v3849 = vsel %vm3848, %v3847, %v3815
  %v3850 = vrot.slane %v3817, 6
  %vm3851 = vcmask 1042434
  %v3852 = vsel %vm3851, %v3850, %v3849
  %v3853 = vrot.slane %v3818, 5
  %vm3854 = vcmask 1043459
  %v3855 = vsel %vm3854, %v3853, %v3852
  %v3856 = vrot.slane %v3820, 7
  %v3857 = vsel %vm3848, %v3856, %v3819
  %v3858 = vrot.slane %v3821, 6
  %v3859 = vsel %vm3851, %v3858, %v3857
  %v3860 = vrot.slane %v3822, 5
  %v3861 = vsel %vm3854, %v3860, %v3859
  %v3862 = vrot.slane %v3824, 7
  %v3863 = vsel %vm3848, %v3862, %v3823
  %v3864 = vrot.slane %v3825, 6
  %v3865 = vsel %vm3851, %v3864, %v3863
  %v3866 = vrot.slane %v3826, 5
  %v3867 = vsel %vm3854, %v3866, %v3865
  %v3868 = vrot.slane %v3828, 7
  %v3869 = vsel %vm3848, %v3868, %v3827
  %v3870 = vrot.slane %v3829, 6
  %v3871 = vsel %vm3851, %v3870, %v3869
  %v3872 = vrot.slane %v3830, 5
  %v3873 = vsel %vm3854, %v3872, %v3871
  %v3874 = vrot.slane %v3832, 7
  %v3875 = vsel %vm3848, %v3874, %v3831
  %v3876 = vrot.slane %v3833, 6
  %v3877 = vsel %vm3851, %v3876, %v3875
  %v3878 = vrot.slane %v3834, 5
  %v3879 = vsel %vm3854, %v3878, %v3877
  %v3880 = vrot.slane %v3836, 7
  %v3881 = vsel %vm3848, %v3880, %v3835
  %v3882 = vrot.slane %v3837, 6
  %v3883 = vsel %vm3851, %v3882, %v3881
  %v3884 = vrot.slane %v3838, 5
  %v3885 = vsel %vm3854, %v3884, %v3883
  %v3886 = vrot.slane %v3840, 7
  %v3887 = vsel %vm3848, %v3886, %v3839
  %v3888 = vrot.slane %v3841, 6
  %v3889 = vsel %vm3851, %v3888, %v3887
  %v3890 = vrot.slane %v3842, 5
  %v3891 = vsel %vm3854, %v3890, %v3889
  %v3892 = vrot.slane %v3844, 7
  %v3893 = vsel %vm3848, %v3892, %v3843
  %v3894 = vrot.slane %v3845, 6
  %v3895 = vsel %vm3851, %v3894, %v3893
  %v3896 = vrot.slane %v3846, 5
  %v3897 = vsel %vm3854, %v3896, %v3895
  %v3898 = vpack.c.b16 %v3855, %v3855
  %v3899 = vpack.c.b16 %v3861, %v3861
  %v3900 = vpack.c.b16 %v3867, %v3867
  %v3901 = vpack.c.b16 %v3873, %v3873
  %v3902 = vpack.c.b16 %v3879, %v3879
  %v3903 = vpack.c.b16 %v3885, %v3885
  %v3904 = vpack.c.b16 %v3891, %v3891
  %v3905 = vpack.c.b16 %v3897, %v3897
  %s3914 = scalar_lea.vmem [#allocation2], 60
  %vm3915 = vcmask 58368
  %3916 = vst.msk [vmem:[%s3914] sm:$0x3] %vm3915, %v3898
  %3917 = vst.msk [vmem:[%s3914 + $0x4] sm:$0x3] %vm3915, %v3899
  %3918 = vst.msk [vmem:[%s3914 + $0x8] sm:$0x3] %vm3915, %v3900
  %3919 = vst.msk [vmem:[%s3914 + $0xc] sm:$0x3] %vm3915, %v3901
  %3920 = vst.msk [vmem:[%s3914 + $0x50] sm:$0x3] %vm3915, %v3902
  %3921 = vst.msk [vmem:[%s3914 + $0x54] sm:$0x3] %vm3915, %v3903
  %3922 = vst.msk [vmem:[%s3914 + $0x58] sm:$0x3] %vm3915, %v3904
  %3923 = vst.msk [vmem:[%s3914 + $0x5c] sm:$0x3] %vm3915, %v3905
  %v3924 = vsel %vm3851, %v3847, %v3815
  %v3925 = vsel %vm3854, %v3850, %v3924
  %vm3926 = vcmask 1044484
  %v3927 = vsel %vm3926, %v3853, %v3925
  %v3928 = vsel %vm3851, %v3856, %v3819
  %v3929 = vsel %vm3854, %v3858, %v3928
  %v3930 = vsel %vm3926, %v3860, %v3929
  %v3931 = vsel %vm3851, %v3862, %v3823
  %v3932 = vsel %vm3854, %v3864, %v3931
  %v3933 = vsel %vm3926, %v3866, %v3932
  %v3934 = vsel %vm3851, %v3868, %v3827
  %v3935 = vsel %vm3854, %v3870, %v3934
  %v3936 = vsel %vm3926, %v3872, %v3935
  %v3937 = vsel %vm3851, %v3874, %v3831
  %v3938 = vsel %vm3854, %v3876, %v3937
  %v3939 = vsel %vm3926, %v3878, %v3938
  %v3940 = vsel %vm3851, %v3880, %v3835
  %v3941 = vsel %vm3854, %v3882, %v3940
  %v3942 = vsel %vm3926, %v3884, %v3941
  %v3943 = vsel %vm3851, %v3886, %v3839
  %v3944 = vsel %vm3854, %v3888, %v3943
  %v3945 = vsel %vm3926, %v3890, %v3944
  %v3946 = vsel %vm3851, %v3892, %v3843
  %v3947 = vsel %vm3854, %v3894, %v3946
  %v3948 = vsel %vm3926, %v3896, %v3947
  %v3949 = vpack.c.b16 %v3927, %v3927
  %v3950 = vpack.c.b16 %v3930, %v3930
  %v3951 = vpack.c.b16 %v3933, %v3933
  %v3952 = vpack.c.b16 %v3936, %v3936
  %v3953 = vpack.c.b16 %v3939, %v3939
  %v3954 = vpack.c.b16 %v3942, %v3942
  %v3955 = vpack.c.b16 %v3945, %v3945
  %v3956 = vpack.c.b16 %v3948, %v3948
  %s3965 = scalar_lea.vmem [#allocation2], 40
  %vm3966 = vcmask 59392
  %vm3967 = vsmask.f32 2306
  %vm3968 = vmand %vm3966, %vm3967
  %v3969 = vld [vmem:[%s3965] sm:$0x7]
  %v3970 = vsel %vm3968, %v3949, %v3969
  %3971 = vst [vmem:[%s3965] sm:$0x7] %v3970
  %v3972 = vld [vmem:[%s3965 + $0x4] sm:$0x7]
  %v3973 = vsel %vm3968, %v3950, %v3972
  %3974 = vst [vmem:[%s3965 + $0x4] sm:$0x7] %v3973
  %v3975 = vld [vmem:[%s3965 + $0x8] sm:$0x7]
  %v3976 = vsel %vm3968, %v3951, %v3975
  %3977 = vst [vmem:[%s3965 + $0x8] sm:$0x7] %v3976
  %v3978 = vld [vmem:[%s3965 + $0xc] sm:$0x7]
  %v3979 = vsel %vm3968, %v3952, %v3978
  %3980 = vst [vmem:[%s3965 + $0xc] sm:$0x7] %v3979
  %v3981 = vld [vmem:[%s3965 + $0x50] sm:$0x7]
  %v3982 = vsel %vm3968, %v3953, %v3981
  %3983 = vst [vmem:[%s3965 + $0x50] sm:$0x7] %v3982
  %v3984 = vld [vmem:[%s3965 + $0x54] sm:$0x7]
  %v3985 = vsel %vm3968, %v3954, %v3984
  %3986 = vst [vmem:[%s3965 + $0x54] sm:$0x7] %v3985
  %v3987 = vld [vmem:[%s3965 + $0x58] sm:$0x7]
  %v3988 = vsel %vm3968, %v3955, %v3987
  %3989 = vst [vmem:[%s3965 + $0x58] sm:$0x7] %v3988
  %v3990 = vld [vmem:[%s3965 + $0x5c] sm:$0x7]
  %v3991 = vsel %vm3968, %v3956, %v3990
  %3992 = vst [vmem:[%s3965 + $0x5c] sm:$0x7] %v3991
  %v4025 = vunpack.c.l.b16 %v3659
  %v4026 = vunpack.c.l.b16 %v3660
  %v4027 = vunpack.c.l.b16 %v3661
  %v4028 = vunpack.c.l.b16 %v3662
  %v4029 = vunpack.c.l.b16 %v3667
  %v4030 = vunpack.c.l.b16 %v3668
  %v4031 = vunpack.c.l.b16 %v3669
  %v4032 = vunpack.c.l.b16 %v3670
  %v4033 = vunpack.c.l.b16 %v3675
  %v4034 = vunpack.c.l.b16 %v3676
  %v4035 = vunpack.c.l.b16 %v3677
  %v4036 = vunpack.c.l.b16 %v3678
  %v4037 = vunpack.c.l.b16 %v3683
  %v4038 = vunpack.c.l.b16 %v3684
  %v4039 = vunpack.c.l.b16 %v3685
  %v4040 = vunpack.c.l.b16 %v3686
  %v4041 = vunpack.c.l.b16 %v3691
  %v4042 = vunpack.c.l.b16 %v3692
  %v4043 = vunpack.c.l.b16 %v3693
  %v4044 = vunpack.c.l.b16 %v3694
  %v4045 = vunpack.c.l.b16 %v3699
  %v4046 = vunpack.c.l.b16 %v3700
  %v4047 = vunpack.c.l.b16 %v3701
  %v4048 = vunpack.c.l.b16 %v3702
  %v4049 = vunpack.c.l.b16 %v3707
  %v4050 = vunpack.c.l.b16 %v3708
  %v4051 = vunpack.c.l.b16 %v3709
  %v4052 = vunpack.c.l.b16 %v3710
  %v4053 = vunpack.c.l.b16 %v3715
  %v4054 = vunpack.c.l.b16 %v3716
  %v4055 = vunpack.c.l.b16 %v3717
  %v4056 = vunpack.c.l.b16 %v3718
  %v4057 = vpack.c.b16 %v4025, %v4025
  %v4058 = vpack.c.b16 %v4026, %v4026
  %v4059 = vpack.c.b16 %v4027, %v4027
  %v4060 = vpack.c.b16 %v4028, %v4028
  %v4061 = vpack.c.b16 %v4029, %v4029
  %v4062 = vpack.c.b16 %v4030, %v4030
  %v4063 = vpack.c.b16 %v4031, %v4031
  %v4064 = vpack.c.b16 %v4032, %v4032
  %v4065 = vpack.c.b16 %v4033, %v4033
  %v4066 = vpack.c.b16 %v4034, %v4034
  %v4067 = vpack.c.b16 %v4035, %v4035
  %v4068 = vpack.c.b16 %v4036, %v4036
  %v4069 = vpack.c.b16 %v4037, %v4037
  %v4070 = vpack.c.b16 %v4038, %v4038
  %v4071 = vpack.c.b16 %v4039, %v4039
  %v4072 = vpack.c.b16 %v4040, %v4040
  %v4073 = vpack.c.b16 %v4041, %v4041
  %v4074 = vpack.c.b16 %v4042, %v4042
  %v4075 = vpack.c.b16 %v4043, %v4043
  %v4076 = vpack.c.b16 %v4044, %v4044
  %v4077 = vpack.c.b16 %v4045, %v4045
  %v4078 = vpack.c.b16 %v4046, %v4046
  %v4079 = vpack.c.b16 %v4047, %v4047
  %v4080 = vpack.c.b16 %v4048, %v4048
  %v4081 = vpack.c.b16 %v4049, %v4049
  %v4082 = vpack.c.b16 %v4050, %v4050
  %v4083 = vpack.c.b16 %v4051, %v4051
  %v4084 = vpack.c.b16 %v4052, %v4052
  %v4085 = vpack.c.b16 %v4053, %v4053
  %v4086 = vpack.c.b16 %v4054, %v4054
  %v4087 = vpack.c.b16 %v4055, %v4055
  %v4088 = vpack.c.b16 %v4056, %v4056
  %v4089 = vunpack.c.l.b16 %v4057
  %v4090 = vunpack.c.l.b16 %v4058
  %v4091 = vunpack.c.l.b16 %v4059
  %v4092 = vunpack.c.l.b16 %v4060
  %v4093 = vunpack.c.l.b16 %v4061
  %v4094 = vunpack.c.l.b16 %v4062
  %v4095 = vunpack.c.l.b16 %v4063
  %v4096 = vunpack.c.l.b16 %v4064
  %v4097 = vunpack.c.l.b16 %v4065
  %v4098 = vunpack.c.l.b16 %v4066
  %v4099 = vunpack.c.l.b16 %v4067
  %v4100 = vunpack.c.l.b16 %v4068
  %v4101 = vunpack.c.l.b16 %v4069
  %v4102 = vunpack.c.l.b16 %v4070
  %v4103 = vunpack.c.l.b16 %v4071
  %v4104 = vunpack.c.l.b16 %v4072
  %v4105 = vunpack.c.l.b16 %v4073
  %v4106 = vunpack.c.l.b16 %v4074
  %v4107 = vunpack.c.l.b16 %v4075
  %v4108 = vunpack.c.l.b16 %v4076
  %v4109 = vunpack.c.l.b16 %v4077
  %v4110 = vunpack.c.l.b16 %v4078
  %v4111 = vunpack.c.l.b16 %v4079
  %v4112 = vunpack.c.l.b16 %v4080
  %v4113 = vunpack.c.l.b16 %v4081
  %v4114 = vunpack.c.l.b16 %v4082
  %v4115 = vunpack.c.l.b16 %v4083
  %v4116 = vunpack.c.l.b16 %v4084
  %v4117 = vunpack.c.l.b16 %v4085
  %v4118 = vunpack.c.l.b16 %v4086
  %v4119 = vunpack.c.l.b16 %v4087
  %v4120 = vunpack.c.l.b16 %v4088
  %v4121 = vrot.slane %v4090, 7
  %v4122 = vsel %vm3848, %v4121, %v4089
  %v4123 = vrot.slane %v4091, 6
  %v4124 = vsel %vm3851, %v4123, %v4122
  %v4125 = vrot.slane %v4092, 5
  %v4126 = vsel %vm3854, %v4125, %v4124
  %v4127 = vrot.slane %v4094, 7
  %v4128 = vsel %vm3848, %v4127, %v4093
  %v4129 = vrot.slane %v4095, 6
  %v4130 = vsel %vm3851, %v4129, %v4128
  %v4131 = vrot.slane %v4096, 5
  %v4132 = vsel %vm3854, %v4131, %v4130
  %v4133 = vrot.slane %v4098, 7
  %v4134 = vsel %vm3848, %v4133, %v4097
  %v4135 = vrot.slane %v4099, 6
  %v4136 = vsel %vm3851, %v4135, %v4134
  %v4137 = vrot.slane %v4100, 5
  %v4138 = vsel %vm3854, %v4137, %v4136
  %v4139 = vrot.slane %v4102, 7
  %v4140 = vsel %vm3848, %v4139, %v4101
  %v4141 = vrot.slane %v4103, 6
  %v4142 = vsel %vm3851, %v4141, %v4140
  %v4143 = vrot.slane %v4104, 5
  %v4144 = vsel %vm3854, %v4143, %v4142
  %v4145 = vrot.slane %v4106, 7
  %v4146 = vsel %vm3848, %v4145, %v4105
  %v4147 = vrot.slane %v4107, 6
  %v4148 = vsel %vm3851, %v4147, %v4146
  %v4149 = vrot.slane %v4108, 5
  %v4150 = vsel %vm3854, %v4149, %v4148
  %v4151 = vrot.slane %v4110, 7
  %v4152 = vsel %vm3848, %v4151, %v4109
  %v4153 = vrot.slane %v4111, 6
  %v4154 = vsel %vm3851, %v4153, %v4152
  %v4155 = vrot.slane %v4112, 5
  %v4156 = vsel %vm3854, %v4155, %v4154
  %v4157 = vrot.slane %v4114, 7
  %v4158 = vsel %vm3848, %v4157, %v4113
  %v4159 = vrot.slane %v4115, 6
  %v4160 = vsel %vm3851, %v4159, %v4158
  %v4161 = vrot.slane %v4116, 5
  %v4162 = vsel %vm3854, %v4161, %v4160
  %v4163 = vrot.slane %v4118, 7
  %v4164 = vsel %vm3848, %v4163, %v4117
  %v4165 = vrot.slane %v4119, 6
  %v4166 = vsel %vm3851, %v4165, %v4164
  %v4167 = vrot.slane %v4120, 5
  %v4168 = vsel %vm3854, %v4167, %v4166
  %v4169 = vpack.c.b16 %v4126, %v4126
  %v4170 = vpack.c.b16 %v4132, %v4132
  %v4171 = vpack.c.b16 %v4138, %v4138
  %v4172 = vpack.c.b16 %v4144, %v4144
  %v4173 = vpack.c.b16 %v4150, %v4150
  %v4174 = vpack.c.b16 %v4156, %v4156
  %v4175 = vpack.c.b16 %v4162, %v4162
  %v4176 = vpack.c.b16 %v4168, %v4168
  %s4185 = scalar_lea.vmem [#allocation2], 24
  %4186 = vst.msk [vmem:[%s4185] sm:$0x3] %vm3915, %v4169
  %4187 = vst.msk [vmem:[%s4185 + $0x4] sm:$0x3] %vm3915, %v4170
  %4188 = vst.msk [vmem:[%s4185 + $0x8] sm:$0x3] %vm3915, %v4171
  %4189 = vst.msk [vmem:[%s4185 + $0xc] sm:$0x3] %vm3915, %v4172
  %4190 = vst.msk [vmem:[%s4185 + $0x50] sm:$0x3] %vm3915, %v4173
  %4191 = vst.msk [vmem:[%s4185 + $0x54] sm:$0x3] %vm3915, %v4174
  %4192 = vst.msk [vmem:[%s4185 + $0x58] sm:$0x3] %vm3915, %v4175
  %4193 = vst.msk [vmem:[%s4185 + $0x5c] sm:$0x3] %vm3915, %v4176
  %v4194 = vsel %vm3851, %v4121, %v4089
  %v4195 = vsel %vm3854, %v4123, %v4194
  %v4196 = vsel %vm3926, %v4125, %v4195
  %v4197 = vsel %vm3851, %v4127, %v4093
  %v4198 = vsel %vm3854, %v4129, %v4197
  %v4199 = vsel %vm3926, %v4131, %v4198
  %v4200 = vsel %vm3851, %v4133, %v4097
  %v4201 = vsel %vm3854, %v4135, %v4200
  %v4202 = vsel %vm3926, %v4137, %v4201
  %v4203 = vsel %vm3851, %v4139, %v4101
  %v4204 = vsel %vm3854, %v4141, %v4203
  %v4205 = vsel %vm3926, %v4143, %v4204
  %v4206 = vsel %vm3851, %v4145, %v4105
  %v4207 = vsel %vm3854, %v4147, %v4206
  %v4208 = vsel %vm3926, %v4149, %v4207
  %v4209 = vsel %vm3851, %v4151, %v4109
  %v4210 = vsel %vm3854, %v4153, %v4209
  %v4211 = vsel %vm3926, %v4155, %v4210
  %v4212 = vsel %vm3851, %v4157, %v4113
  %v4213 = vsel %vm3854, %v4159, %v4212
  %v4214 = vsel %vm3926, %v4161, %v4213
  %v4215 = vsel %vm3851, %v4163, %v4117
  %v4216 = vsel %vm3854, %v4165, %v4215
  %v4217 = vsel %vm3926, %v4167, %v4216
  %v4218 = vpack.c.b16 %v4196, %v4196
  %v4219 = vpack.c.b16 %v4199, %v4199
  %v4220 = vpack.c.b16 %v4202, %v4202
  %v4221 = vpack.c.b16 %v4205, %v4205
  %v4222 = vpack.c.b16 %v4208, %v4208
  %v4223 = vpack.c.b16 %v4211, %v4211
  %v4224 = vpack.c.b16 %v4214, %v4214
  %v4225 = vpack.c.b16 %v4217, %v4217
  %s4234 = scalar_lea.vmem [#allocation2], 4
  %v4235 = vld [vmem:[%s4234] sm:$0x7]
  %v4236 = vsel %vm3968, %v4218, %v4235
  %4237 = vst [vmem:[%s4234] sm:$0x7] %v4236
  %v4238 = vld [vmem:[%s4234 + $0x4] sm:$0x7]
  %v4239 = vsel %vm3968, %v4219, %v4238
  %4240 = vst [vmem:[%s4234 + $0x4] sm:$0x7] %v4239
  %v4241 = vld [vmem:[%s4234 + $0x8] sm:$0x7]
  %v4242 = vsel %vm3968, %v4220, %v4241
  %4243 = vst [vmem:[%s4234 + $0x8] sm:$0x7] %v4242
  %v4244 = vld [vmem:[%s4234 + $0xc] sm:$0x7]
  %v4245 = vsel %vm3968, %v4221, %v4244
  %4246 = vst [vmem:[%s4234 + $0xc] sm:$0x7] %v4245
  %v4247 = vld [vmem:[%s4234 + $0x50] sm:$0x7]
  %v4248 = vsel %vm3968, %v4222, %v4247
  %4249 = vst [vmem:[%s4234 + $0x50] sm:$0x7] %v4248
  %v4250 = vld [vmem:[%s4234 + $0x54] sm:$0x7]
  %v4251 = vsel %vm3968, %v4223, %v4250
  %4252 = vst [vmem:[%s4234 + $0x54] sm:$0x7] %v4251
  %v4253 = vld [vmem:[%s4234 + $0x58] sm:$0x7]
  %v4254 = vsel %vm3968, %v4224, %v4253
  %4255 = vst [vmem:[%s4234 + $0x58] sm:$0x7] %v4254
  %v4256 = vld [vmem:[%s4234 + $0x5c] sm:$0x7]
  %v4257 = vsel %vm3968, %v4225, %v4256
  %4258 = vst [vmem:[%s4234 + $0x5c] sm:$0x7] %v4257
  %vm4259 = vsmask.f32 2304
  %vm4260 = vmand %vm3966, %vm4259
  %v4261 = vld [vmem:[#allocation2] sm:$0x7]
  %v4262 = vsel %vm4260, 0, %v4261
  %4263 = vst [vmem:[#allocation2] sm:$0x7] %v4262
  %v4264 = vld [vmem:[#allocation2 + $0x50] sm:$0x7]
  %v4265 = vsel %vm4260, 0, %v4264
  %4266 = vst [vmem:[#allocation2 + $0x50] sm:$0x7] %v4265
  %vm4267 = vcmask 57344
  %vm4268 = vsmask.f32 256
  %vm4269 = vmand %vm4267, %vm4268
  %v4270 = vld [vmem:[#allocation2] sm:$0x1]
  %v4271 = vsel %vm4269, 0, %v4270
  %4272 = vst [vmem:[#allocation2] sm:$0x1] %v4271
  %v4273 = vld [vmem:[#allocation2 + $0x4] sm:$0x1]
  %v4274 = vsel %vm4269, 0, %v4273
  %4275 = vst [vmem:[#allocation2 + $0x4] sm:$0x1] %v4274
  %v4276 = vld [vmem:[#allocation2 + $0x8] sm:$0x1]
  %v4277 = vsel %vm4269, 0, %v4276
  %4278 = vst [vmem:[#allocation2 + $0x8] sm:$0x1] %v4277
  %v4279 = vld [vmem:[#allocation2 + $0xc] sm:$0x1]
  %v4280 = vsel %vm4269, 0, %v4279
  %4281 = vst [vmem:[#allocation2 + $0xc] sm:$0x1] %v4280
  %v4282 = vld [vmem:[#allocation2 + $0x10] sm:$0x1]
  %v4283 = vsel %vm4269, 0, %v4282
  %4284 = vst [vmem:[#allocation2 + $0x10] sm:$0x1] %v4283
  %v4285 = vld [vmem:[#allocation2 + $0x50] sm:$0x1]
  %v4286 = vsel %vm4269, 0, %v4285
  %4287 = vst [vmem:[#allocation2 + $0x50] sm:$0x1] %v4286
  %v4288 = vld [vmem:[#allocation2 + $0x54] sm:$0x1]
  %v4289 = vsel %vm4269, 0, %v4288
  %4290 = vst [vmem:[#allocation2 + $0x54] sm:$0x1] %v4289
  %v4291 = vld [vmem:[#allocation2 + $0x58] sm:$0x1]
  %v4292 = vsel %vm4269, 0, %v4291
  %4293 = vst [vmem:[#allocation2 + $0x58] sm:$0x1] %v4292
  %v4294 = vld [vmem:[#allocation2 + $0x5c] sm:$0x1]
  %v4295 = vsel %vm4269, 0, %v4294
  %4296 = vst [vmem:[#allocation2 + $0x5c] sm:$0x1] %v4295
  %v4297 = vld [vmem:[#allocation2 + $0x60] sm:$0x1]
  %v4298 = vsel %vm4269, 0, %v4297
  %4299 = vst [vmem:[#allocation2 + $0x60] sm:$0x1] %v4298
  %s4300 = scalar_lea.vmem [#allocation2], 20
  %v4301 = vld [vmem:[%s4300] sm:$0x7]
  %v4302 = vsel %vm4260, 0, %v4301
  %4303 = vst [vmem:[%s4300] sm:$0x7] %v4302
  %v4304 = vld [vmem:[%s4300 + $0x50] sm:$0x7]
  %v4305 = vsel %vm4260, 0, %v4304
  %4306 = vst [vmem:[%s4300 + $0x50] sm:$0x7] %v4305
  %vm4307 = vcmask 59394
  %vm4308 = vmand %vm4307, %vm4259
  %v4309 = vld [vmem:[%s4300] sm:$0x4]
  %v4310 = vsel %vm4308, 0, %v4309
  %4311 = vst [vmem:[%s4300] sm:$0x4] %v4310
  %v4312 = vld [vmem:[%s4300 + $0x4] sm:$0x4]
  %v4313 = vsel %vm4308, 0, %v4312
  %4314 = vst [vmem:[%s4300 + $0x4] sm:$0x4] %v4313
  %v4315 = vld [vmem:[%s4300 + $0x8] sm:$0x4]
  %v4316 = vsel %vm4308, 0, %v4315
  %4317 = vst [vmem:[%s4300 + $0x8] sm:$0x4] %v4316
  %v4318 = vld [vmem:[%s4300 + $0xc] sm:$0x4]
  %v4319 = vsel %vm4308, 0, %v4318
  %4320 = vst [vmem:[%s4300 + $0xc] sm:$0x4] %v4319
  %v4321 = vld [vmem:[%s4300 + $0x10] sm:$0x4]
  %v4322 = vsel %vm4308, 0, %v4321
  %4323 = vst [vmem:[%s4300 + $0x10] sm:$0x4] %v4322
  %v4324 = vld [vmem:[%s4300 + $0x50] sm:$0x4]
  %v4325 = vsel %vm4308, 0, %v4324
  %4326 = vst [vmem:[%s4300 + $0x50] sm:$0x4] %v4325
  %v4327 = vld [vmem:[%s4300 + $0x54] sm:$0x4]
  %v4328 = vsel %vm4308, 0, %v4327
  %4329 = vst [vmem:[%s4300 + $0x54] sm:$0x4] %v4328
  %v4330 = vld [vmem:[%s4300 + $0x58] sm:$0x4]
  %v4331 = vsel %vm4308, 0, %v4330
  %4332 = vst [vmem:[%s4300 + $0x58] sm:$0x4] %v4331
  %v4333 = vld [vmem:[%s4300 + $0x5c] sm:$0x4]
  %v4334 = vsel %vm4308, 0, %v4333
  %4335 = vst [vmem:[%s4300 + $0x5c] sm:$0x4] %v4334
  %v4336 = vld [vmem:[%s4300 + $0x60] sm:$0x4]
  %v4337 = vsel %vm4308, 0, %v4336
  %4338 = vst [vmem:[%s4300 + $0x60] sm:$0x4] %v4337
  %s4339 = scalar_lea.vmem [#allocation2], 56
  %v4340 = vld [vmem:[%s4339] sm:$0x7]
  %v4341 = vsel %vm4260, 0, %v4340
  %4342 = vst [vmem:[%s4339] sm:$0x7] %v4341
  %v4343 = vld [vmem:[%s4339 + $0x50] sm:$0x7]
  %v4344 = vsel %vm4260, 0, %v4343
  %4345 = vst [vmem:[%s4339 + $0x50] sm:$0x7] %v4344
  %v4346 = vld [vmem:[%s3965] sm:$0x1]
  %v4347 = vsel %vm4269, 0, %v4346
  %4348 = vst [vmem:[%s3965] sm:$0x1] %v4347
  %v4349 = vld [vmem:[%s3965 + $0x4] sm:$0x1]
  %v4350 = vsel %vm4269, 0, %v4349
  %4351 = vst [vmem:[%s3965 + $0x4] sm:$0x1] %v4350
  %v4352 = vld [vmem:[%s3965 + $0x8] sm:$0x1]
  %v4353 = vsel %vm4269, 0, %v4352
  %4354 = vst [vmem:[%s3965 + $0x8] sm:$0x1] %v4353
  %v4355 = vld [vmem:[%s3965 + $0xc] sm:$0x1]
  %v4356 = vsel %vm4269, 0, %v4355
  %4357 = vst [vmem:[%s3965 + $0xc] sm:$0x1] %v4356
  %v4358 = vld [vmem:[%s3965 + $0x10] sm:$0x1]
  %v4359 = vsel %vm4269, 0, %v4358
  %4360 = vst [vmem:[%s3965 + $0x10] sm:$0x1] %v4359
  %v4361 = vld [vmem:[%s3965 + $0x50] sm:$0x1]
  %v4362 = vsel %vm4269, 0, %v4361
  %4363 = vst [vmem:[%s3965 + $0x50] sm:$0x1] %v4362
  %v4364 = vld [vmem:[%s3965 + $0x54] sm:$0x1]
  %v4365 = vsel %vm4269, 0, %v4364
  %4366 = vst [vmem:[%s3965 + $0x54] sm:$0x1] %v4365
  %v4367 = vld [vmem:[%s3965 + $0x58] sm:$0x1]
  %v4368 = vsel %vm4269, 0, %v4367
  %4369 = vst [vmem:[%s3965 + $0x58] sm:$0x1] %v4368
  %v4370 = vld [vmem:[%s3965 + $0x5c] sm:$0x1]
  %v4371 = vsel %vm4269, 0, %v4370
  %4372 = vst [vmem:[%s3965 + $0x5c] sm:$0x1] %v4371
  %v4373 = vld [vmem:[%s3965 + $0x60] sm:$0x1]
  %v4374 = vsel %vm4269, 0, %v4373
  %4375 = vst [vmem:[%s3965 + $0x60] sm:$0x1] %v4374
  %s4376 = scalar_lea.vmem [#allocation2], 76
  %v4377 = vld [vmem:[%s4376] sm:$0x7]
  %v4378 = vsel %vm4260, 0, %v4377
  %4379 = vst [vmem:[%s4376] sm:$0x7] %v4378
  %v4380 = vld [vmem:[%s4376 + $0x50] sm:$0x7]
  %v4381 = vsel %vm4260, 0, %v4380
  %4382 = vst [vmem:[%s4376 + $0x50] sm:$0x7] %v4381
  %v4383 = vld [vmem:[%s3914] sm:$0x4]
  %v4384 = vsel %vm4308, 0, %v4383
  %4385 = vst [vmem:[%s3914] sm:$0x4] %v4384
  %v4386 = vld [vmem:[%s3914 + $0x4] sm:$0x4]
  %v4387 = vsel %vm4308, 0, %v4386
  %4388 = vst [vmem:[%s3914 + $0x4] sm:$0x4] %v4387
  %v4389 = vld [vmem:[%s3914 + $0x8] sm:$0x4]
  %v4390 = vsel %vm4308, 0, %v4389
  %4391 = vst [vmem:[%s3914 + $0x8] sm:$0x4] %v4390
  %v4392 = vld [vmem:[%s3914 + $0xc] sm:$0x4]
  %v4393 = vsel %vm4308, 0, %v4392
  %4394 = vst [vmem:[%s3914 + $0xc] sm:$0x4] %v4393
  %v4395 = vld [vmem:[%s3914 + $0x10] sm:$0x4]
  %v4396 = vsel %vm4308, 0, %v4395
  %4397 = vst [vmem:[%s3914 + $0x10] sm:$0x4] %v4396
  %v4398 = vld [vmem:[%s3914 + $0x50] sm:$0x4]
  %v4399 = vsel %vm4308, 0, %v4398
  %4400 = vst [vmem:[%s3914 + $0x50] sm:$0x4] %v4399
  %v4401 = vld [vmem:[%s3914 + $0x54] sm:$0x4]
  %v4402 = vsel %vm4308, 0, %v4401
  %4403 = vst [vmem:[%s3914 + $0x54] sm:$0x4] %v4402
  %v4404 = vld [vmem:[%s3914 + $0x58] sm:$0x4]
  %v4405 = vsel %vm4308, 0, %v4404
  %4406 = vst [vmem:[%s3914 + $0x58] sm:$0x4] %v4405
  %v4407 = vld [vmem:[%s3914 + $0x5c] sm:$0x4]
  %v4408 = vsel %vm4308, 0, %v4407
  %4409 = vst [vmem:[%s3914 + $0x5c] sm:$0x4] %v4408
  %v4410 = vld [vmem:[%s3914 + $0x60] sm:$0x4]
  %v4411 = vsel %vm4308, 0, %v4410
  %4412 = vst [vmem:[%s3914 + $0x60] sm:$0x4] %v4411
  %v4413 = vld [vmem:[#allocation2] sm:$0x3]
  %v4414 = vld [vmem:[#allocation2 + $0x4] sm:$0x3]
  %v4415 = vld [vmem:[#allocation2 + $0x8] sm:$0x3]
  %v4416 = vld [vmem:[#allocation2 + $0xc] sm:$0x3]
  %v4417 = vld [vmem:[#allocation2 + $0x50] sm:$0x3]
  %v4418 = vld [vmem:[#allocation2 + $0x54] sm:$0x3]
  %v4419 = vld [vmem:[#allocation2 + $0x58] sm:$0x3]
  %v4420 = vld [vmem:[#allocation2 + $0x5c] sm:$0x3]
  %v4421 = vld [vmem:[%s4300] sm:$0x3]
  %v4422 = vld [vmem:[%s4300 + $0x4] sm:$0x3]
  %v4423 = vld [vmem:[%s4300 + $0x8] sm:$0x3]
  %v4424 = vld [vmem:[%s4300 + $0xc] sm:$0x3]
  %v4425 = vld [vmem:[%s4300 + $0x50] sm:$0x3]
  %v4426 = vld [vmem:[%s4300 + $0x54] sm:$0x3]
  %v4427 = vld [vmem:[%s4300 + $0x58] sm:$0x3]
  %v4428 = vld [vmem:[%s4300 + $0x5c] sm:$0x3]
  %v4429 = vld [vmem:[#allocation2] sm:$0x7]
  %v4430 = vld [vmem:[#allocation2 + $0x4] sm:$0x7]
  %v4431 = vld [vmem:[#allocation2 + $0x8] sm:$0x7]
  %v4432 = vld [vmem:[#allocation2 + $0xc] sm:$0x7]
  %v4433 = vld [vmem:[#allocation2 + $0x50] sm:$0x7]
  %v4434 = vld [vmem:[#allocation2 + $0x54] sm:$0x7]
  %v4435 = vld [vmem:[#allocation2 + $0x58] sm:$0x7]
  %v4436 = vld [vmem:[#allocation2 + $0x5c] sm:$0x7]
  %v4446 = vunpack.c.l.s4 1983009808
  %v4447 = vunpack.c.0.s8 %v4446
  %v4448 = vlaneseq
  %v4449 = vshrl.u32 %v4448, 7
  %v4450 = vsub.s32 %v4447, %v4449
  %v4451 = vrot.slane %v4429, %v4450
  %v4452 = vcombine.high %v4451, %v4451
  %v4454 = vunpack.c.l.s4 1983009808
  %v4455 = vunpack.c.0.s8 %v4454
  %v4456 = vlaneseq
  %v4457 = vshrl.u32 %v4456, 7
  %v4458 = vsub.s32 %v4455, %v4457
  %v4459 = vrot.slane %v4430, %v4458
  %v4460 = vcombine.high %v4459, %v4459
  %v4462 = vunpack.c.l.s4 1983009808
  %v4463 = vunpack.c.0.s8 %v4462
  %v4464 = vlaneseq
  %v4465 = vshrl.u32 %v4464, 7
  %v4466 = vsub.s32 %v4463, %v4465
  %v4467 = vrot.slane %v4431, %v4466
  %v4468 = vcombine.high %v4467, %v4467
  %v4470 = vunpack.c.l.s4 1983009808
  %v4471 = vunpack.c.0.s8 %v4470
  %v4472 = vlaneseq
  %v4473 = vshrl.u32 %v4472, 7
  %v4474 = vsub.s32 %v4471, %v4473
  %v4475 = vrot.slane %v4432, %v4474
  %v4476 = vcombine.high %v4475, %v4475
  %v4478 = vunpack.c.l.s4 1983009808
  %v4479 = vunpack.c.0.s8 %v4478
  %v4480 = vlaneseq
  %v4481 = vshrl.u32 %v4480, 7
  %v4482 = vsub.s32 %v4479, %v4481
  %v4483 = vrot.slane %v4433, %v4482
  %v4484 = vcombine.high %v4483, %v4483
  %v4486 = vunpack.c.l.s4 1983009808
  %v4487 = vunpack.c.0.s8 %v4486
  %v4488 = vlaneseq
  %v4489 = vshrl.u32 %v4488, 7
  %v4490 = vsub.s32 %v4487, %v4489
  %v4491 = vrot.slane %v4434, %v4490
  %v4492 = vcombine.high %v4491, %v4491
  %v4494 = vunpack.c.l.s4 1983009808
  %v4495 = vunpack.c.0.s8 %v4494
  %v4496 = vlaneseq
  %v4497 = vshrl.u32 %v4496, 7
  %v4498 = vsub.s32 %v4495, %v4497
  %v4499 = vrot.slane %v4435, %v4498
  %v4500 = vcombine.high %v4499, %v4499
  %v4502 = vunpack.c.l.s4 1983009808
  %v4503 = vunpack.c.0.s8 %v4502
  %v4504 = vlaneseq
  %v4505 = vshrl.u32 %v4504, 7
  %v4506 = vsub.s32 %v4503, %v4505
  %v4507 = vrot.slane %v4436, %v4506
  %v4508 = vcombine.high %v4507, %v4507
  %vm4509 = vsmask.f32 1280
  %vm4510 = vsmask.f32 3336
  %vm4511 = vmor %vm4509, %vm4510
  %vm4512 = vsmask.f32 5392
  %vm4513 = vmor %vm4511, %vm4512
  %vm4514 = vsmask.f32 7448
  %vm4515 = vmor %vm4513, %vm4514
  %v4517 = vshrl.u32 %v4451, 16
  %v4519 = vrot.slane %v4517, 6
  %v4520 = vshll.u32 %v4451, 16
  %v4522 = vrot.slane %v4520, 7
  %v4523 = vor.u32 %v4519, %v4522
  %v4524 = vrot.slane %v4523, 2
  %v4526 = vshll.u32 %v4452, 16
  %v4528 = vrot.slane %v4526, 7
  %v4529 = vsel %vm4515, %v4524, %v4528
  %v4531 = vshrl.u32 %v4459, 16
  %v4533 = vrot.slane %v4531, 6
  %v4534 = vshll.u32 %v4459, 16
  %v4536 = vrot.slane %v4534, 7
  %v4537 = vor.u32 %v4533, %v4536
  %v4538 = vrot.slane %v4537, 2
  %v4540 = vshll.u32 %v4460, 16
  %v4542 = vrot.slane %v4540, 7
  %v4543 = vsel %vm4515, %v4538, %v4542
  %v4545 = vshrl.u32 %v4467, 16
  %v4547 = vrot.slane %v4545, 6
  %v4548 = vshll.u32 %v4467, 16
  %v4550 = vrot.slane %v4548, 7
  %v4551 = vor.u32 %v4547, %v4550
  %v4552 = vrot.slane %v4551, 2
  %v4554 = vshll.u32 %v4468, 16
  %v4556 = vrot.slane %v4554, 7
  %v4557 = vsel %vm4515, %v4552, %v4556
  %v4559 = vshrl.u32 %v4475, 16
  %v4561 = vrot.slane %v4559, 6
  %v4562 = vshll.u32 %v4475, 16
  %v4564 = vrot.slane %v4562, 7
  %v4565 = vor.u32 %v4561, %v4564
  %v4566 = vrot.slane %v4565, 2
  %v4568 = vshll.u32 %v4476, 16
  %v4570 = vrot.slane %v4568, 7
  %v4571 = vsel %vm4515, %v4566, %v4570
  %v4573 = vshrl.u32 %v4483, 16
  %v4575 = vrot.slane %v4573, 6
  %v4576 = vshll.u32 %v4483, 16
  %v4578 = vrot.slane %v4576, 7
  %v4579 = vor.u32 %v4575, %v4578
  %v4580 = vrot.slane %v4579, 2
  %v4582 = vshll.u32 %v4484, 16
  %v4584 = vrot.slane %v4582, 7
  %v4585 = vsel %vm4515, %v4580, %v4584
  %v4587 = vshrl.u32 %v4491, 16
  %v4589 = vrot.slane %v4587, 6
  %v4590 = vshll.u32 %v4491, 16
  %v4592 = vrot.slane %v4590, 7
  %v4593 = vor.u32 %v4589, %v4592
  %v4594 = vrot.slane %v4593, 2
  %v4596 = vshll.u32 %v4492, 16
  %v4598 = vrot.slane %v4596, 7
  %v4599 = vsel %vm4515, %v4594, %v4598
  %v4601 = vshrl.u32 %v4499, 16
  %v4603 = vrot.slane %v4601, 6
  %v4604 = vshll.u32 %v4499, 16
  %v4606 = vrot.slane %v4604, 7
  %v4607 = vor.u32 %v4603, %v4606
  %v4608 = vrot.slane %v4607, 2
  %v4610 = vshll.u32 %v4500, 16
  %v4612 = vrot.slane %v4610, 7
  %v4613 = vsel %vm4515, %v4608, %v4612
  %v4615 = vshrl.u32 %v4507, 16
  %v4617 = vrot.slane %v4615, 6
  %v4618 = vshll.u32 %v4507, 16
  %v4620 = vrot.slane %v4618, 7
  %v4621 = vor.u32 %v4617, %v4620
  %v4622 = vrot.slane %v4621, 2
  %v4624 = vshll.u32 %v4508, 16
  %v4626 = vrot.slane %v4624, 7
  %v4627 = vsel %vm4515, %v4622, %v4626
  %v4628 = vld [vmem:[%s4300] sm:$0x7]
  %v4629 = vld [vmem:[%s4300 + $0x4] sm:$0x7]
  %v4630 = vld [vmem:[%s4300 + $0x8] sm:$0x7]
  %v4631 = vld [vmem:[%s4300 + $0xc] sm:$0x7]
  %v4632 = vld [vmem:[%s4300 + $0x50] sm:$0x7]
  %v4633 = vld [vmem:[%s4300 + $0x54] sm:$0x7]
  %v4634 = vld [vmem:[%s4300 + $0x58] sm:$0x7]
  %v4635 = vld [vmem:[%s4300 + $0x5c] sm:$0x7]
  %v4645 = vunpack.c.l.s4 1983009808
  %v4646 = vunpack.c.0.s8 %v4645
  %v4647 = vlaneseq
  %v4648 = vshrl.u32 %v4647, 7
  %v4649 = vsub.s32 %v4646, %v4648
  %v4650 = vrot.slane %v4628, %v4649
  %v4651 = vcombine.high %v4650, %v4650
  %v4653 = vunpack.c.l.s4 1983009808
  %v4654 = vunpack.c.0.s8 %v4653
  %v4655 = vlaneseq
  %v4656 = vshrl.u32 %v4655, 7
  %v4657 = vsub.s32 %v4654, %v4656
  %v4658 = vrot.slane %v4629, %v4657
  %v4659 = vcombine.high %v4658, %v4658
  %v4661 = vunpack.c.l.s4 1983009808
  %v4662 = vunpack.c.0.s8 %v4661
  %v4663 = vlaneseq
  %v4664 = vshrl.u32 %v4663, 7
  %v4665 = vsub.s32 %v4662, %v4664
  %v4666 = vrot.slane %v4630, %v4665
  %v4667 = vcombine.high %v4666, %v4666
  %v4669 = vunpack.c.l.s4 1983009808
  %v4670 = vunpack.c.0.s8 %v4669
  %v4671 = vlaneseq
  %v4672 = vshrl.u32 %v4671, 7
  %v4673 = vsub.s32 %v4670, %v4672
  %v4674 = vrot.slane %v4631, %v4673
  %v4675 = vcombine.high %v4674, %v4674
  %v4677 = vunpack.c.l.s4 1983009808
  %v4678 = vunpack.c.0.s8 %v4677
  %v4679 = vlaneseq
  %v4680 = vshrl.u32 %v4679, 7
  %v4681 = vsub.s32 %v4678, %v4680
  %v4682 = vrot.slane %v4632, %v4681
  %v4683 = vcombine.high %v4682, %v4682
  %v4685 = vunpack.c.l.s4 1983009808
  %v4686 = vunpack.c.0.s8 %v4685
  %v4687 = vlaneseq
  %v4688 = vshrl.u32 %v4687, 7
  %v4689 = vsub.s32 %v4686, %v4688
  %v4690 = vrot.slane %v4633, %v4689
  %v4691 = vcombine.high %v4690, %v4690
  %v4693 = vunpack.c.l.s4 1983009808
  %v4694 = vunpack.c.0.s8 %v4693
  %v4695 = vlaneseq
  %v4696 = vshrl.u32 %v4695, 7
  %v4697 = vsub.s32 %v4694, %v4696
  %v4698 = vrot.slane %v4634, %v4697
  %v4699 = vcombine.high %v4698, %v4698
  %v4701 = vunpack.c.l.s4 1983009808
  %v4702 = vunpack.c.0.s8 %v4701
  %v4703 = vlaneseq
  %v4704 = vshrl.u32 %v4703, 7
  %v4705 = vsub.s32 %v4702, %v4704
  %v4706 = vrot.slane %v4635, %v4705
  %v4707 = vcombine.high %v4706, %v4706
  %v4709 = vshrl.u32 %v4650, 16
  %v4711 = vrot.slane %v4709, 6
  %v4712 = vshll.u32 %v4650, 16
  %v4714 = vrot.slane %v4712, 7
  %v4715 = vor.u32 %v4711, %v4714
  %v4716 = vrot.slane %v4715, 2
  %v4718 = vshll.u32 %v4651, 16
  %v4720 = vrot.slane %v4718, 7
  %v4721 = vsel %vm4515, %v4716, %v4720
  %v4723 = vshrl.u32 %v4658, 16
  %v4725 = vrot.slane %v4723, 6
  %v4726 = vshll.u32 %v4658, 16
  %v4728 = vrot.slane %v4726, 7
  %v4729 = vor.u32 %v4725, %v4728
  %v4730 = vrot.slane %v4729, 2
  %v4732 = vshll.u32 %v4659, 16
  %v4734 = vrot.slane %v4732, 7
  %v4735 = vsel %vm4515, %v4730, %v4734
  %v4737 = vshrl.u32 %v4666, 16
  %v4739 = vrot.slane %v4737, 6
  %v4740 = vshll.u32 %v4666, 16
  %v4742 = vrot.slane %v4740, 7
  %v4743 = vor.u32 %v4739, %v4742
  %v4744 = vrot.slane %v4743, 2
  %v4746 = vshll.u32 %v4667, 16
  %v4748 = vrot.slane %v4746, 7
  %v4749 = vsel %vm4515, %v4744, %v4748
  %v4751 = vshrl.u32 %v4674, 16
  %v4753 = vrot.slane %v4751, 6
  %v4754 = vshll.u32 %v4674, 16
  %v4756 = vrot.slane %v4754, 7
  %v4757 = vor.u32 %v4753, %v4756
  %v4758 = vrot.slane %v4757, 2
  %v4760 = vshll.u32 %v4675, 16
  %v4762 = vrot.slane %v4760, 7
  %v4763 = vsel %vm4515, %v4758, %v4762
  %v4765 = vshrl.u32 %v4682, 16
  %v4767 = vrot.slane %v4765, 6
  %v4768 = vshll.u32 %v4682, 16
  %v4770 = vrot.slane %v4768, 7
  %v4771 = vor.u32 %v4767, %v4770
  %v4772 = vrot.slane %v4771, 2
  %v4774 = vshll.u32 %v4683, 16
  %v4776 = vrot.slane %v4774, 7
  %v4777 = vsel %vm4515, %v4772, %v4776
  %v4779 = vshrl.u32 %v4690, 16
  %v4781 = vrot.slane %v4779, 6
  %v4782 = vshll.u32 %v4690, 16
  %v4784 = vrot.slane %v4782, 7
  %v4785 = vor.u32 %v4781, %v4784
  %v4786 = vrot.slane %v4785, 2
  %v4788 = vshll.u32 %v4691, 16
  %v4790 = vrot.slane %v4788, 7
  %v4791 = vsel %vm4515, %v4786, %v4790
  %v4793 = vshrl.u32 %v4698, 16
  %v4795 = vrot.slane %v4793, 6
  %v4796 = vshll.u32 %v4698, 16
  %v4798 = vrot.slane %v4796, 7
  %v4799 = vor.u32 %v4795, %v4798
  %v4800 = vrot.slane %v4799, 2
  %v4802 = vshll.u32 %v4699, 16
  %v4804 = vrot.slane %v4802, 7
  %v4805 = vsel %vm4515, %v4800, %v4804
  %v4807 = vshrl.u32 %v4706, 16
  %v4809 = vrot.slane %v4807, 6
  %v4810 = vshll.u32 %v4706, 16
  %v4812 = vrot.slane %v4810, 7
  %v4813 = vor.u32 %v4809, %v4812
  %v4814 = vrot.slane %v4813, 2
  %v4816 = vshll.u32 %v4707, 16
  %v4818 = vrot.slane %v4816, 7
  %v4819 = vsel %vm4515, %v4814, %v4818
  %v4820 = vld [vmem:[%s3965] sm:$0x3]
  %v4821 = vld [vmem:[%s3965 + $0x4] sm:$0x3]
  %v4822 = vld [vmem:[%s3965 + $0x8] sm:$0x3]
  %v4823 = vld [vmem:[%s3965 + $0xc] sm:$0x3]
  %v4824 = vld [vmem:[%s3965 + $0x50] sm:$0x3]
  %v4825 = vld [vmem:[%s3965 + $0x54] sm:$0x3]
  %v4826 = vld [vmem:[%s3965 + $0x58] sm:$0x3]
  %v4827 = vld [vmem:[%s3965 + $0x5c] sm:$0x3]
  %v4828 = vld [vmem:[%s3914] sm:$0x3]
  %v4829 = vld [vmem:[%s3914 + $0x4] sm:$0x3]
  %v4830 = vld [vmem:[%s3914 + $0x8] sm:$0x3]
  %v4831 = vld [vmem:[%s3914 + $0xc] sm:$0x3]
  %v4832 = vld [vmem:[%s3914 + $0x50] sm:$0x3]
  %v4833 = vld [vmem:[%s3914 + $0x54] sm:$0x3]
  %v4834 = vld [vmem:[%s3914 + $0x58] sm:$0x3]
  %v4835 = vld [vmem:[%s3914 + $0x5c] sm:$0x3]
  %v4836 = vld [vmem:[%s3965] sm:$0x7]
  %v4837 = vld [vmem:[%s3965 + $0x4] sm:$0x7]
  %v4838 = vld [vmem:[%s3965 + $0x8] sm:$0x7]
  %v4839 = vld [vmem:[%s3965 + $0xc] sm:$0x7]
  %v4840 = vld [vmem:[%s3965 + $0x50] sm:$0x7]
  %v4841 = vld [vmem:[%s3965 + $0x54] sm:$0x7]
  %v4842 = vld [vmem:[%s3965 + $0x58] sm:$0x7]
  %v4843 = vld [vmem:[%s3965 + $0x5c] sm:$0x7]
  %v4853 = vunpack.c.l.s4 1983009808
  %v4854 = vunpack.c.0.s8 %v4853
  %v4855 = vlaneseq
  %v4856 = vshrl.u32 %v4855, 7
  %v4857 = vsub.s32 %v4854, %v4856
  %v4858 = vrot.slane %v4836, %v4857
  %v4859 = vcombine.high %v4858, %v4858
  %v4861 = vunpack.c.l.s4 1983009808
  %v4862 = vunpack.c.0.s8 %v4861
  %v4863 = vlaneseq
  %v4864 = vshrl.u32 %v4863, 7
  %v4865 = vsub.s32 %v4862, %v4864
  %v4866 = vrot.slane %v4837, %v4865
  %v4867 = vcombine.high %v4866, %v4866
  %v4869 = vunpack.c.l.s4 1983009808
  %v4870 = vunpack.c.0.s8 %v4869
  %v4871 = vlaneseq
  %v4872 = vshrl.u32 %v4871, 7
  %v4873 = vsub.s32 %v4870, %v4872
  %v4874 = vrot.slane %v4838, %v4873
  %v4875 = vcombine.high %v4874, %v4874
  %v4877 = vunpack.c.l.s4 1983009808
  %v4878 = vunpack.c.0.s8 %v4877
  %v4879 = vlaneseq
  %v4880 = vshrl.u32 %v4879, 7
  %v4881 = vsub.s32 %v4878, %v4880
  %v4882 = vrot.slane %v4839, %v4881
  %v4883 = vcombine.high %v4882, %v4882
  %v4885 = vunpack.c.l.s4 1983009808
  %v4886 = vunpack.c.0.s8 %v4885
  %v4887 = vlaneseq
  %v4888 = vshrl.u32 %v4887, 7
  %v4889 = vsub.s32 %v4886, %v4888
  %v4890 = vrot.slane %v4840, %v4889
  %v4891 = vcombine.high %v4890, %v4890
  %v4893 = vunpack.c.l.s4 1983009808
  %v4894 = vunpack.c.0.s8 %v4893
  %v4895 = vlaneseq
  %v4896 = vshrl.u32 %v4895, 7
  %v4897 = vsub.s32 %v4894, %v4896
  %v4898 = vrot.slane %v4841, %v4897
  %v4899 = vcombine.high %v4898, %v4898
  %v4901 = vunpack.c.l.s4 1983009808
  %v4902 = vunpack.c.0.s8 %v4901
  %v4903 = vlaneseq
  %v4904 = vshrl.u32 %v4903, 7
  %v4905 = vsub.s32 %v4902, %v4904
  %v4906 = vrot.slane %v4842, %v4905
  %v4907 = vcombine.high %v4906, %v4906
  %v4909 = vunpack.c.l.s4 1983009808
  %v4910 = vunpack.c.0.s8 %v4909
  %v4911 = vlaneseq
  %v4912 = vshrl.u32 %v4911, 7
  %v4913 = vsub.s32 %v4910, %v4912
  %v4914 = vrot.slane %v4843, %v4913
  %v4915 = vcombine.high %v4914, %v4914
  %v4917 = vshrl.u32 %v4858, 16
  %v4919 = vrot.slane %v4917, 6
  %v4920 = vshll.u32 %v4858, 16
  %v4922 = vrot.slane %v4920, 7
  %v4923 = vor.u32 %v4919, %v4922
  %v4924 = vrot.slane %v4923, 2
  %v4926 = vshll.u32 %v4859, 16
  %v4928 = vrot.slane %v4926, 7
  %v4929 = vsel %vm4515, %v4924, %v4928
  %v4931 = vshrl.u32 %v4866, 16
  %v4933 = vrot.slane %v4931, 6
  %v4934 = vshll.u32 %v4866, 16
  %v4936 = vrot.slane %v4934, 7
  %v4937 = vor.u32 %v4933, %v4936
  %v4938 = vrot.slane %v4937, 2
  %v4940 = vshll.u32 %v4867, 16
  %v4942 = vrot.slane %v4940, 7
  %v4943 = vsel %vm4515, %v4938, %v4942
  %v4945 = vshrl.u32 %v4874, 16
  %v4947 = vrot.slane %v4945, 6
  %v4948 = vshll.u32 %v4874, 16
  %v4950 = vrot.slane %v4948, 7
  %v4951 = vor.u32 %v4947, %v4950
  %v4952 = vrot.slane %v4951, 2
  %v4954 = vshll.u32 %v4875, 16
  %v4956 = vrot.slane %v4954, 7
  %v4957 = vsel %vm4515, %v4952, %v4956
  %v4959 = vshrl.u32 %v4882, 16
  %v4961 = vrot.slane %v4959, 6
  %v4962 = vshll.u32 %v4882, 16
  %v4964 = vrot.slane %v4962, 7
  %v4965 = vor.u32 %v4961, %v4964
  %v4966 = vrot.slane %v4965, 2
  %v4968 = vshll.u32 %v4883, 16
  %v4970 = vrot.slane %v4968, 7
  %v4971 = vsel %vm4515, %v4966, %v4970
  %v4973 = vshrl.u32 %v4890, 16
  %v4975 = vrot.slane %v4973, 6
  %v4976 = vshll.u32 %v4890, 16
  %v4978 = vrot.slane %v4976, 7
  %v4979 = vor.u32 %v4975, %v4978
  %v4980 = vrot.slane %v4979, 2
  %v4982 = vshll.u32 %v4891, 16
  %v4984 = vrot.slane %v4982, 7
  %v4985 = vsel %vm4515, %v4980, %v4984
  %v4987 = vshrl.u32 %v4898, 16
  %v4989 = vrot.slane %v4987, 6
  %v4990 = vshll.u32 %v4898, 16
  %v4992 = vrot.slane %v4990, 7
  %v4993 = vor.u32 %v4989, %v4992
  %v4994 = vrot.slane %v4993, 2
  %v4996 = vshll.u32 %v4899, 16
  %v4998 = vrot.slane %v4996, 7
  %v4999 = vsel %vm4515, %v4994, %v4998
  %v5001 = vshrl.u32 %v4906, 16
  %v5003 = vrot.slane %v5001, 6
  %v5004 = vshll.u32 %v4906, 16
  %v5006 = vrot.slane %v5004, 7
  %v5007 = vor.u32 %v5003, %v5006
  %v5008 = vrot.slane %v5007, 2
  %v5010 = vshll.u32 %v4907, 16
  %v5012 = vrot.slane %v5010, 7
  %v5013 = vsel %vm4515, %v5008, %v5012
  %v5015 = vshrl.u32 %v4914, 16
  %v5017 = vrot.slane %v5015, 6
  %v5018 = vshll.u32 %v4914, 16
  %v5020 = vrot.slane %v5018, 7
  %v5021 = vor.u32 %v5017, %v5020
  %v5022 = vrot.slane %v5021, 2
  %v5024 = vshll.u32 %v4915, 16
  %v5026 = vrot.slane %v5024, 7
  %v5027 = vsel %vm4515, %v5022, %v5026
  %v5028 = vld [vmem:[%s3914] sm:$0x7]
  %v5029 = vld [vmem:[%s3914 + $0x4] sm:$0x7]
  %v5030 = vld [vmem:[%s3914 + $0x8] sm:$0x7]
  %v5031 = vld [vmem:[%s3914 + $0xc] sm:$0x7]
  %v5032 = vld [vmem:[%s3914 + $0x50] sm:$0x7]
  %v5033 = vld [vmem:[%s3914 + $0x54] sm:$0x7]
  %v5034 = vld [vmem:[%s3914 + $0x58] sm:$0x7]
  %v5035 = vld [vmem:[%s3914 + $0x5c] sm:$0x7]
  %v5045 = vunpack.c.l.s4 1983009808
  %v5046 = vunpack.c.0.s8 %v5045
  %v5047 = vlaneseq
  %v5048 = vshrl.u32 %v5047, 7
  %v5049 = vsub.s32 %v5046, %v5048
  %v5050 = vrot.slane %v5028, %v5049
  %v5051 = vcombine.high %v5050, %v5050
  %v5053 = vunpack.c.l.s4 1983009808
  %v5054 = vunpack.c.0.s8 %v5053
  %v5055 = vlaneseq
  %v5056 = vshrl.u32 %v5055, 7
  %v5057 = vsub.s32 %v5054, %v5056
  %v5058 = vrot.slane %v5029, %v5057
  %v5059 = vcombine.high %v5058, %v5058
  %v5061 = vunpack.c.l.s4 1983009808
  %v5062 = vunpack.c.0.s8 %v5061
  %v5063 = vlaneseq
  %v5064 = vshrl.u32 %v5063, 7
  %v5065 = vsub.s32 %v5062, %v5064
  %v5066 = vrot.slane %v5030, %v5065
  %v5067 = vcombine.high %v5066, %v5066
  %v5069 = vunpack.c.l.s4 1983009808
  %v5070 = vunpack.c.0.s8 %v5069
  %v5071 = vlaneseq
  %v5072 = vshrl.u32 %v5071, 7
  %v5073 = vsub.s32 %v5070, %v5072
  %v5074 = vrot.slane %v5031, %v5073
  %v5075 = vcombine.high %v5074, %v5074
  %v5077 = vunpack.c.l.s4 1983009808
  %v5078 = vunpack.c.0.s8 %v5077
  %v5079 = vlaneseq
  %v5080 = vshrl.u32 %v5079, 7
  %v5081 = vsub.s32 %v5078, %v5080
  %v5082 = vrot.slane %v5032, %v5081
  %v5083 = vcombine.high %v5082, %v5082
  %v5085 = vunpack.c.l.s4 1983009808
  %v5086 = vunpack.c.0.s8 %v5085
  %v5087 = vlaneseq
  %v5088 = vshrl.u32 %v5087, 7
  %v5089 = vsub.s32 %v5086, %v5088
  %v5090 = vrot.slane %v5033, %v5089
  %v5091 = vcombine.high %v5090, %v5090
  %v5093 = vunpack.c.l.s4 1983009808
  %v5094 = vunpack.c.0.s8 %v5093
  %v5095 = vlaneseq
  %v5096 = vshrl.u32 %v5095, 7
  %v5097 = vsub.s32 %v5094, %v5096
  %v5098 = vrot.slane %v5034, %v5097
  %v5099 = vcombine.high %v5098, %v5098
  %v5101 = vunpack.c.l.s4 1983009808
  %v5102 = vunpack.c.0.s8 %v5101
  %v5103 = vlaneseq
  %v5104 = vshrl.u32 %v5103, 7
  %v5105 = vsub.s32 %v5102, %v5104
  %v5106 = vrot.slane %v5035, %v5105
  %v5107 = vcombine.high %v5106, %v5106
  %v5109 = vshrl.u32 %v5050, 16
  %v5111 = vrot.slane %v5109, 6
  %v5112 = vshll.u32 %v5050, 16
  %v5114 = vrot.slane %v5112, 7
  %v5115 = vor.u32 %v5111, %v5114
  %v5116 = vrot.slane %v5115, 2
  %v5118 = vshll.u32 %v5051, 16
  %v5120 = vrot.slane %v5118, 7
  %v5121 = vsel %vm4515, %v5116, %v5120
  %v5123 = vshrl.u32 %v5058, 16
  %v5125 = vrot.slane %v5123, 6
  %v5126 = vshll.u32 %v5058, 16
  %v5128 = vrot.slane %v5126, 7
  %v5129 = vor.u32 %v5125, %v5128
  %v5130 = vrot.slane %v5129, 2
  %v5132 = vshll.u32 %v5059, 16
  %v5134 = vrot.slane %v5132, 7
  %v5135 = vsel %vm4515, %v5130, %v5134
  %v5137 = vshrl.u32 %v5066, 16
  %v5139 = vrot.slane %v5137, 6
  %v5140 = vshll.u32 %v5066, 16
  %v5142 = vrot.slane %v5140, 7
  %v5143 = vor.u32 %v5139, %v5142
  %v5144 = vrot.slane %v5143, 2
  %v5146 = vshll.u32 %v5067, 16
  %v5148 = vrot.slane %v5146, 7
  %v5149 = vsel %vm4515, %v5144, %v5148
  %v5151 = vshrl.u32 %v5074, 16
  %v5153 = vrot.slane %v5151, 6
  %v5154 = vshll.u32 %v5074, 16
  %v5156 = vrot.slane %v5154, 7
  %v5157 = vor.u32 %v5153, %v5156
  %v5158 = vrot.slane %v5157, 2
  %v5160 = vshll.u32 %v5075, 16
  %v5162 = vrot.slane %v5160, 7
  %v5163 = vsel %vm4515, %v5158, %v5162
  %v5165 = vshrl.u32 %v5082, 16
  %v5167 = vrot.slane %v5165, 6
  %v5168 = vshll.u32 %v5082, 16
  %v5170 = vrot.slane %v5168, 7
  %v5171 = vor.u32 %v5167, %v5170
  %v5172 = vrot.slane %v5171, 2
  %v5174 = vshll.u32 %v5083, 16
  %v5176 = vrot.slane %v5174, 7
  %v5177 = vsel %vm4515, %v5172, %v5176
  %v5179 = vshrl.u32 %v5090, 16
  %v5181 = vrot.slane %v5179, 6
  %v5182 = vshll.u32 %v5090, 16
  %v5184 = vrot.slane %v5182, 7
  %v5185 = vor.u32 %v5181, %v5184
  %v5186 = vrot.slane %v5185, 2
  %v5188 = vshll.u32 %v5091, 16
  %v5190 = vrot.slane %v5188, 7
  %v5191 = vsel %vm4515, %v5186, %v5190
  %v5193 = vshrl.u32 %v5098, 16
  %v5195 = vrot.slane %v5193, 6
  %v5196 = vshll.u32 %v5098, 16
  %v5198 = vrot.slane %v5196, 7
  %v5199 = vor.u32 %v5195, %v5198
  %v5200 = vrot.slane %v5199, 2
  %v5202 = vshll.u32 %v5099, 16
  %v5204 = vrot.slane %v5202, 7
  %v5205 = vsel %vm4515, %v5200, %v5204
  %v5207 = vshrl.u32 %v5106, 16
  %v5209 = vrot.slane %v5207, 6
  %v5210 = vshll.u32 %v5106, 16
  %v5212 = vrot.slane %v5210, 7
  %v5213 = vor.u32 %v5209, %v5212
  %v5214 = vrot.slane %v5213, 2
  %v5216 = vshll.u32 %v5107, 16
  %v5218 = vrot.slane %v5216, 7
  %v5219 = vsel %vm4515, %v5214, %v5218
  %v5220 = vld [vmem:[%s4234] sm:$0x3]
  %v5221 = vld [vmem:[%s4234 + $0x4] sm:$0x3]
  %v5222 = vld [vmem:[%s4234 + $0x8] sm:$0x3]
  %v5223 = vld [vmem:[%s4234 + $0xc] sm:$0x3]
  %v5224 = vld [vmem:[%s4234 + $0x50] sm:$0x3]
  %v5225 = vld [vmem:[%s4234 + $0x54] sm:$0x3]
  %v5226 = vld [vmem:[%s4234 + $0x58] sm:$0x3]
  %v5227 = vld [vmem:[%s4234 + $0x5c] sm:$0x3]
  %v5228 = vld [vmem:[%s4185] sm:$0x3]
  %v5229 = vld [vmem:[%s4185 + $0x4] sm:$0x3]
  %v5230 = vld [vmem:[%s4185 + $0x8] sm:$0x3]
  %v5231 = vld [vmem:[%s4185 + $0xc] sm:$0x3]
  %v5232 = vld [vmem:[%s4185 + $0x50] sm:$0x3]
  %v5233 = vld [vmem:[%s4185 + $0x54] sm:$0x3]
  %v5234 = vld [vmem:[%s4185 + $0x58] sm:$0x3]
  %v5235 = vld [vmem:[%s4185 + $0x5c] sm:$0x3]
  %v5236 = vld [vmem:[%s4234] sm:$0x7]
  %v5237 = vld [vmem:[%s4234 + $0x4] sm:$0x7]
  %v5238 = vld [vmem:[%s4234 + $0x8] sm:$0x7]
  %v5239 = vld [vmem:[%s4234 + $0xc] sm:$0x7]
  %v5240 = vld [vmem:[%s4234 + $0x50] sm:$0x7]
  %v5241 = vld [vmem:[%s4234 + $0x54] sm:$0x7]
  %v5242 = vld [vmem:[%s4234 + $0x58] sm:$0x7]
  %v5243 = vld [vmem:[%s4234 + $0x5c] sm:$0x7]
  %v5253 = vunpack.c.l.s4 1983009808
  %v5254 = vunpack.c.0.s8 %v5253
  %v5255 = vlaneseq
  %v5256 = vshrl.u32 %v5255, 7
  %v5257 = vsub.s32 %v5254, %v5256
  %v5258 = vrot.slane %v5236, %v5257
  %v5259 = vcombine.high %v5258, %v5258
  %v5261 = vunpack.c.l.s4 1983009808
  %v5262 = vunpack.c.0.s8 %v5261
  %v5263 = vlaneseq
  %v5264 = vshrl.u32 %v5263, 7
  %v5265 = vsub.s32 %v5262, %v5264
  %v5266 = vrot.slane %v5237, %v5265
  %v5267 = vcombine.high %v5266, %v5266
  %v5269 = vunpack.c.l.s4 1983009808
  %v5270 = vunpack.c.0.s8 %v5269
  %v5271 = vlaneseq
  %v5272 = vshrl.u32 %v5271, 7
  %v5273 = vsub.s32 %v5270, %v5272
  %v5274 = vrot.slane %v5238, %v5273
  %v5275 = vcombine.high %v5274, %v5274
  %v5277 = vunpack.c.l.s4 1983009808
  %v5278 = vunpack.c.0.s8 %v5277
  %v5279 = vlaneseq
  %v5280 = vshrl.u32 %v5279, 7
  %v5281 = vsub.s32 %v5278, %v5280
  %v5282 = vrot.slane %v5239, %v5281
  %v5283 = vcombine.high %v5282, %v5282
  %v5285 = vunpack.c.l.s4 1983009808
  %v5286 = vunpack.c.0.s8 %v5285
  %v5287 = vlaneseq
  %v5288 = vshrl.u32 %v5287, 7
  %v5289 = vsub.s32 %v5286, %v5288
  %v5290 = vrot.slane %v5240, %v5289
  %v5291 = vcombine.high %v5290, %v5290
  %v5293 = vunpack.c.l.s4 1983009808
  %v5294 = vunpack.c.0.s8 %v5293
  %v5295 = vlaneseq
  %v5296 = vshrl.u32 %v5295, 7
  %v5297 = vsub.s32 %v5294, %v5296
  %v5298 = vrot.slane %v5241, %v5297
  %v5299 = vcombine.high %v5298, %v5298
  %v5301 = vunpack.c.l.s4 1983009808
  %v5302 = vunpack.c.0.s8 %v5301
  %v5303 = vlaneseq
  %v5304 = vshrl.u32 %v5303, 7
  %v5305 = vsub.s32 %v5302, %v5304
  %v5306 = vrot.slane %v5242, %v5305
  %v5307 = vcombine.high %v5306, %v5306
  %v5309 = vunpack.c.l.s4 1983009808
  %v5310 = vunpack.c.0.s8 %v5309
  %v5311 = vlaneseq
  %v5312 = vshrl.u32 %v5311, 7
  %v5313 = vsub.s32 %v5310, %v5312
  %v5314 = vrot.slane %v5243, %v5313
  %v5315 = vcombine.high %v5314, %v5314
  %v5317 = vshrl.u32 %v5258, 16
  %v5319 = vrot.slane %v5317, 6
  %v5320 = vshll.u32 %v5258, 16
  %v5322 = vrot.slane %v5320, 7
  %v5323 = vor.u32 %v5319, %v5322
  %v5324 = vrot.slane %v5323, 2
  %v5326 = vshll.u32 %v5259, 16
  %v5328 = vrot.slane %v5326, 7
  %v5329 = vsel %vm4515, %v5324, %v5328
  %v5331 = vshrl.u32 %v5266, 16
  %v5333 = vrot.slane %v5331, 6
  %v5334 = vshll.u32 %v5266, 16
  %v5336 = vrot.slane %v5334, 7
  %v5337 = vor.u32 %v5333, %v5336
  %v5338 = vrot.slane %v5337, 2
  %v5340 = vshll.u32 %v5267, 16
  %v5342 = vrot.slane %v5340, 7
  %v5343 = vsel %vm4515, %v5338, %v5342
  %v5345 = vshrl.u32 %v5274, 16
  %v5347 = vrot.slane %v5345, 6
  %v5348 = vshll.u32 %v5274, 16
  %v5350 = vrot.slane %v5348, 7
  %v5351 = vor.u32 %v5347, %v5350
  %v5352 = vrot.slane %v5351, 2
  %v5354 = vshll.u32 %v5275, 16
  %v5356 = vrot.slane %v5354, 7
  %v5357 = vsel %vm4515, %v5352, %v5356
  %v5359 = vshrl.u32 %v5282, 16
  %v5361 = vrot.slane %v5359, 6
  %v5362 = vshll.u32 %v5282, 16
  %v5364 = vrot.slane %v5362, 7
  %v5365 = vor.u32 %v5361, %v5364
  %v5366 = vrot.slane %v5365, 2
  %v5368 = vshll.u32 %v5283, 16
  %v5370 = vrot.slane %v5368, 7
  %v5371 = vsel %vm4515, %v5366, %v5370
  %v5373 = vshrl.u32 %v5290, 16
  %v5375 = vrot.slane %v5373, 6
  %v5376 = vshll.u32 %v5290, 16
  %v5378 = vrot.slane %v5376, 7
  %v5379 = vor.u32 %v5375, %v5378
  %v5380 = vrot.slane %v5379, 2
  %v5382 = vshll.u32 %v5291, 16
  %v5384 = vrot.slane %v5382, 7
  %v5385 = vsel %vm4515, %v5380, %v5384
  %v5387 = vshrl.u32 %v5298, 16
  %v5389 = vrot.slane %v5387, 6
  %v5390 = vshll.u32 %v5298, 16
  %v5392 = vrot.slane %v5390, 7
  %v5393 = vor.u32 %v5389, %v5392
  %v5394 = vrot.slane %v5393, 2
  %v5396 = vshll.u32 %v5299, 16
  %v5398 = vrot.slane %v5396, 7
  %v5399 = vsel %vm4515, %v5394, %v5398
  %v5401 = vshrl.u32 %v5306, 16
  %v5403 = vrot.slane %v5401, 6
  %v5404 = vshll.u32 %v5306, 16
  %v5406 = vrot.slane %v5404, 7
  %v5407 = vor.u32 %v5403, %v5406
  %v5408 = vrot.slane %v5407, 2
  %v5410 = vshll.u32 %v5307, 16
  %v5412 = vrot.slane %v5410, 7
  %v5413 = vsel %vm4515, %v5408, %v5412
  %v5415 = vshrl.u32 %v5314, 16
  %v5417 = vrot.slane %v5415, 6
  %v5418 = vshll.u32 %v5314, 16
  %v5420 = vrot.slane %v5418, 7
  %v5421 = vor.u32 %v5417, %v5420
  %v5422 = vrot.slane %v5421, 2
  %v5424 = vshll.u32 %v5315, 16
  %v5426 = vrot.slane %v5424, 7
  %v5427 = vsel %vm4515, %v5422, %v5426
  %v5428 = vld [vmem:[%s4185] sm:$0x7]
  %v5429 = vld [vmem:[%s4185 + $0x4] sm:$0x7]
  %v5430 = vld [vmem:[%s4185 + $0x8] sm:$0x7]
  %v5431 = vld [vmem:[%s4185 + $0xc] sm:$0x7]
  %v5432 = vld [vmem:[%s4185 + $0x50] sm:$0x7]
  %v5433 = vld [vmem:[%s4185 + $0x54] sm:$0x7]
  %v5434 = vld [vmem:[%s4185 + $0x58] sm:$0x7]
  %v5435 = vld [vmem:[%s4185 + $0x5c] sm:$0x7]
  %v5445 = vunpack.c.l.s4 1983009808
  %v5446 = vunpack.c.0.s8 %v5445
  %v5447 = vlaneseq
  %v5448 = vshrl.u32 %v5447, 7
  %v5449 = vsub.s32 %v5446, %v5448
  %v5450 = vrot.slane %v5428, %v5449
  %v5451 = vcombine.high %v5450, %v5450
  %v5453 = vunpack.c.l.s4 1983009808
  %v5454 = vunpack.c.0.s8 %v5453
  %v5455 = vlaneseq
  %v5456 = vshrl.u32 %v5455, 7
  %v5457 = vsub.s32 %v5454, %v5456
  %v5458 = vrot.slane %v5429, %v5457
  %v5459 = vcombine.high %v5458, %v5458
  %v5461 = vunpack.c.l.s4 1983009808
  %v5462 = vunpack.c.0.s8 %v5461
  %v5463 = vlaneseq
  %v5464 = vshrl.u32 %v5463, 7
  %v5465 = vsub.s32 %v5462, %v5464
  %v5466 = vrot.slane %v5430, %v5465
  %v5467 = vcombine.high %v5466, %v5466
  %v5469 = vunpack.c.l.s4 1983009808
  %v5470 = vunpack.c.0.s8 %v5469
  %v5471 = vlaneseq
  %v5472 = vshrl.u32 %v5471, 7
  %v5473 = vsub.s32 %v5470, %v5472
  %v5474 = vrot.slane %v5431, %v5473
  %v5475 = vcombine.high %v5474, %v5474
  %v5477 = vunpack.c.l.s4 1983009808
  %v5478 = vunpack.c.0.s8 %v5477
  %v5479 = vlaneseq
  %v5480 = vshrl.u32 %v5479, 7
  %v5481 = vsub.s32 %v5478, %v5480
  %v5482 = vrot.slane %v5432, %v5481
  %v5483 = vcombine.high %v5482, %v5482
  %v5485 = vunpack.c.l.s4 1983009808
  %v5486 = vunpack.c.0.s8 %v5485
  %v5487 = vlaneseq
  %v5488 = vshrl.u32 %v5487, 7
  %v5489 = vsub.s32 %v5486, %v5488
  %v5490 = vrot.slane %v5433, %v5489
  %v5491 = vcombine.high %v5490, %v5490
  %v5493 = vunpack.c.l.s4 1983009808
  %v5494 = vunpack.c.0.s8 %v5493
  %v5495 = vlaneseq
  %v5496 = vshrl.u32 %v5495, 7
  %v5497 = vsub.s32 %v5494, %v5496
  %v5498 = vrot.slane %v5434, %v5497
  %v5499 = vcombine.high %v5498, %v5498
  %v5501 = vunpack.c.l.s4 1983009808
  %v5502 = vunpack.c.0.s8 %v5501
  %v5503 = vlaneseq
  %v5504 = vshrl.u32 %v5503, 7
  %v5505 = vsub.s32 %v5502, %v5504
  %v5506 = vrot.slane %v5435, %v5505
  %v5507 = vcombine.high %v5506, %v5506
  %v5509 = vshrl.u32 %v5450, 16
  %v5511 = vrot.slane %v5509, 6
  %v5512 = vshll.u32 %v5450, 16
  %v5514 = vrot.slane %v5512, 7
  %v5515 = vor.u32 %v5511, %v5514
  %v5516 = vrot.slane %v5515, 2
  %v5518 = vshll.u32 %v5451, 16
  %v5520 = vrot.slane %v5518, 7
  %v5521 = vsel %vm4515, %v5516, %v5520
  %v5523 = vshrl.u32 %v5458, 16
  %v5525 = vrot.slane %v5523, 6
  %v5526 = vshll.u32 %v5458, 16
  %v5528 = vrot.slane %v5526, 7
  %v5529 = vor.u32 %v5525, %v5528
  %v5530 = vrot.slane %v5529, 2
  %v5532 = vshll.u32 %v5459, 16
  %v5534 = vrot.slane %v5532, 7
  %v5535 = vsel %vm4515, %v5530, %v5534
  %v5537 = vshrl.u32 %v5466, 16
  %v5539 = vrot.slane %v5537, 6
  %v5540 = vshll.u32 %v5466, 16
  %v5542 = vrot.slane %v5540, 7
  %v5543 = vor.u32 %v5539, %v5542
  %v5544 = vrot.slane %v5543, 2
  %v5546 = vshll.u32 %v5467, 16
  %v5548 = vrot.slane %v5546, 7
  %v5549 = vsel %vm4515, %v5544, %v5548
  %v5551 = vshrl.u32 %v5474, 16
  %v5553 = vrot.slane %v5551, 6
  %v5554 = vshll.u32 %v5474, 16
  %v5556 = vrot.slane %v5554, 7
  %v5557 = vor.u32 %v5553, %v5556
  %v5558 = vrot.slane %v5557, 2
  %v5560 = vshll.u32 %v5475, 16
  %v5562 = vrot.slane %v5560, 7
  %v5563 = vsel %vm4515, %v5558, %v5562
  %v5565 = vshrl.u32 %v5482, 16
  %v5567 = vrot.slane %v5565, 6
  %v5568 = vshll.u32 %v5482, 16
  %v5570 = vrot.slane %v5568, 7
  %v5571 = vor.u32 %v5567, %v5570
  %v5572 = vrot.slane %v5571, 2
  %v5574 = vshll.u32 %v5483, 16
  %v5576 = vrot.slane %v5574, 7
  %v5577 = vsel %vm4515, %v5572, %v5576
  %v5579 = vshrl.u32 %v5490, 16
  %v5581 = vrot.slane %v5579, 6
  %v5582 = vshll.u32 %v5490, 16
  %v5584 = vrot.slane %v5582, 7
  %v5585 = vor.u32 %v5581, %v5584
  %v5586 = vrot.slane %v5585, 2
  %v5588 = vshll.u32 %v5491, 16
  %v5590 = vrot.slane %v5588, 7
  %v5591 = vsel %vm4515, %v5586, %v5590
  %v5593 = vshrl.u32 %v5498, 16
  %v5595 = vrot.slane %v5593, 6
  %v5596 = vshll.u32 %v5498, 16
  %v5598 = vrot.slane %v5596, 7
  %v5599 = vor.u32 %v5595, %v5598
  %v5600 = vrot.slane %v5599, 2
  %v5602 = vshll.u32 %v5499, 16
  %v5604 = vrot.slane %v5602, 7
  %v5605 = vsel %vm4515, %v5600, %v5604
  %v5607 = vshrl.u32 %v5506, 16
  %v5609 = vrot.slane %v5607, 6
  %v5610 = vshll.u32 %v5506, 16
  %v5612 = vrot.slane %v5610, 7
  %v5613 = vor.u32 %v5609, %v5612
  %v5614 = vrot.slane %v5613, 2
  %v5616 = vshll.u32 %v5507, 16
  %v5618 = vrot.slane %v5616, 7
  %v5619 = vsel %vm4515, %v5614, %v5618
  %s5620 = scalar_lea.vmem [#allocation2], 44
  %v5621 = vld [vmem:[%s5620] sm:$0x3]
  %v5622 = vld [vmem:[%s5620 + $0x4] sm:$0x3]
  %v5623 = vld [vmem:[%s5620 + $0x8] sm:$0x3]
  %v5624 = vld [vmem:[%s5620 + $0xc] sm:$0x3]
  %v5625 = vld [vmem:[%s5620 + $0x50] sm:$0x3]
  %v5626 = vld [vmem:[%s5620 + $0x54] sm:$0x3]
  %v5627 = vld [vmem:[%s5620 + $0x58] sm:$0x3]
  %v5628 = vld [vmem:[%s5620 + $0x5c] sm:$0x3]
  %s5629 = scalar_lea.vmem [#allocation2], 64
  %v5630 = vld [vmem:[%s5629] sm:$0x3]
  %v5631 = vld [vmem:[%s5629 + $0x4] sm:$0x3]
  %v5632 = vld [vmem:[%s5629 + $0x8] sm:$0x3]
  %v5633 = vld [vmem:[%s5629 + $0xc] sm:$0x3]
  %v5634 = vld [vmem:[%s5629 + $0x50] sm:$0x3]
  %v5635 = vld [vmem:[%s5629 + $0x54] sm:$0x3]
  %v5636 = vld [vmem:[%s5629 + $0x58] sm:$0x3]
  %v5637 = vld [vmem:[%s5629 + $0x5c] sm:$0x3]
  %v5638 = vld [vmem:[%s5620] sm:$0x7]
  %v5639 = vld [vmem:[%s5620 + $0x4] sm:$0x7]
  %v5640 = vld [vmem:[%s5620 + $0x8] sm:$0x7]
  %v5641 = vld [vmem:[%s5620 + $0xc] sm:$0x7]
  %v5642 = vld [vmem:[%s5620 + $0x50] sm:$0x7]
  %v5643 = vld [vmem:[%s5620 + $0x54] sm:$0x7]
  %v5644 = vld [vmem:[%s5620 + $0x58] sm:$0x7]
  %v5645 = vld [vmem:[%s5620 + $0x5c] sm:$0x7]
  %v5655 = vunpack.c.l.s4 1983009808
  %v5656 = vunpack.c.0.s8 %v5655
  %v5657 = vlaneseq
  %v5658 = vshrl.u32 %v5657, 7
  %v5659 = vsub.s32 %v5656, %v5658
  %v5660 = vrot.slane %v5638, %v5659
  %v5661 = vcombine.high %v5660, %v5660
  %v5663 = vunpack.c.l.s4 1983009808
  %v5664 = vunpack.c.0.s8 %v5663
  %v5665 = vlaneseq
  %v5666 = vshrl.u32 %v5665, 7
  %v5667 = vsub.s32 %v5664, %v5666
  %v5668 = vrot.slane %v5639, %v5667
  %v5669 = vcombine.high %v5668, %v5668
  %v5671 = vunpack.c.l.s4 1983009808
  %v5672 = vunpack.c.0.s8 %v5671
  %v5673 = vlaneseq
  %v5674 = vshrl.u32 %v5673, 7
  %v5675 = vsub.s32 %v5672, %v5674
  %v5676 = vrot.slane %v5640, %v5675
  %v5677 = vcombine.high %v5676, %v5676
  %v5679 = vunpack.c.l.s4 1983009808
  %v5680 = vunpack.c.0.s8 %v5679
  %v5681 = vlaneseq
  %v5682 = vshrl.u32 %v5681, 7
  %v5683 = vsub.s32 %v5680, %v5682
  %v5684 = vrot.slane %v5641, %v5683
  %v5685 = vcombine.high %v5684, %v5684
  %v5687 = vunpack.c.l.s4 1983009808
  %v5688 = vunpack.c.0.s8 %v5687
  %v5689 = vlaneseq
  %v5690 = vshrl.u32 %v5689, 7
  %v5691 = vsub.s32 %v5688, %v5690
  %v5692 = vrot.slane %v5642, %v5691
  %v5693 = vcombine.high %v5692, %v5692
  %v5695 = vunpack.c.l.s4 1983009808
  %v5696 = vunpack.c.0.s8 %v5695
  %v5697 = vlaneseq
  %v5698 = vshrl.u32 %v5697, 7
  %v5699 = vsub.s32 %v5696, %v5698
  %v5700 = vrot.slane %v5643, %v5699
  %v5701 = vcombine.high %v5700, %v5700
  %v5703 = vunpack.c.l.s4 1983009808
  %v5704 = vunpack.c.0.s8 %v5703
  %v5705 = vlaneseq
  %v5706 = vshrl.u32 %v5705, 7
  %v5707 = vsub.s32 %v5704, %v5706
  %v5708 = vrot.slane %v5644, %v5707
  %v5709 = vcombine.high %v5708, %v5708
  %v5711 = vunpack.c.l.s4 1983009808
  %v5712 = vunpack.c.0.s8 %v5711
  %v5713 = vlaneseq
  %v5714 = vshrl.u32 %v5713, 7
  %v5715 = vsub.s32 %v5712, %v5714
  %v5716 = vrot.slane %v5645, %v5715
  %v5717 = vcombine.high %v5716, %v5716
  %v5719 = vshrl.u32 %v5660, 16
  %v5721 = vrot.slane %v5719, 6
  %v5722 = vshll.u32 %v5660, 16
  %v5724 = vrot.slane %v5722, 7
  %v5725 = vor.u32 %v5721, %v5724
  %v5726 = vrot.slane %v5725, 2
  %v5728 = vshll.u32 %v5661, 16
  %v5730 = vrot.slane %v5728, 7
  %v5731 = vsel %vm4515, %v5726, %v5730
  %v5733 = vshrl.u32 %v5668, 16
  %v5735 = vrot.slane %v5733, 6
  %v5736 = vshll.u32 %v5668, 16
  %v5738 = vrot.slane %v5736, 7
  %v5739 = vor.u32 %v5735, %v5738
  %v5740 = vrot.slane %v5739, 2
  %v5742 = vshll.u32 %v5669, 16
  %v5744 = vrot.slane %v5742, 7
  %v5745 = vsel %vm4515, %v5740, %v5744
  %v5747 = vshrl.u32 %v5676, 16
  %v5749 = vrot.slane %v5747, 6
  %v5750 = vshll.u32 %v5676, 16
  %v5752 = vrot.slane %v5750, 7
  %v5753 = vor.u32 %v5749, %v5752
  %v5754 = vrot.slane %v5753, 2
  %v5756 = vshll.u32 %v5677, 16
  %v5758 = vrot.slane %v5756, 7
  %v5759 = vsel %vm4515, %v5754, %v5758
  %v5761 = vshrl.u32 %v5684, 16
  %v5763 = vrot.slane %v5761, 6
  %v5764 = vshll.u32 %v5684, 16
  %v5766 = vrot.slane %v5764, 7
  %v5767 = vor.u32 %v5763, %v5766
  %v5768 = vrot.slane %v5767, 2
  %v5770 = vshll.u32 %v5685, 16
  %v5772 = vrot.slane %v5770, 7
  %v5773 = vsel %vm4515, %v5768, %v5772
  %v5775 = vshrl.u32 %v5692, 16
  %v5777 = vrot.slane %v5775, 6
  %v5778 = vshll.u32 %v5692, 16
  %v5780 = vrot.slane %v5778, 7
  %v5781 = vor.u32 %v5777, %v5780
  %v5782 = vrot.slane %v5781, 2
  %v5784 = vshll.u32 %v5693, 16
  %v5786 = vrot.slane %v5784, 7
  %v5787 = vsel %vm4515, %v5782, %v5786
  %v5789 = vshrl.u32 %v5700, 16
  %v5791 = vrot.slane %v5789, 6
  %v5792 = vshll.u32 %v5700, 16
  %v5794 = vrot.slane %v5792, 7
  %v5795 = vor.u32 %v5791, %v5794
  %v5796 = vrot.slane %v5795, 2
  %v5798 = vshll.u32 %v5701, 16
  %v5800 = vrot.slane %v5798, 7
  %v5801 = vsel %vm4515, %v5796, %v5800
  %v5803 = vshrl.u32 %v5708, 16
  %v5805 = vrot.slane %v5803, 6
  %v5806 = vshll.u32 %v5708, 16
  %v5808 = vrot.slane %v5806, 7
  %v5809 = vor.u32 %v5805, %v5808
  %v5810 = vrot.slane %v5809, 2
  %v5812 = vshll.u32 %v5709, 16
  %v5814 = vrot.slane %v5812, 7
  %v5815 = vsel %vm4515, %v5810, %v5814
  %v5817 = vshrl.u32 %v5716, 16
  %v5819 = vrot.slane %v5817, 6
  %v5820 = vshll.u32 %v5716, 16
  %v5822 = vrot.slane %v5820, 7
  %v5823 = vor.u32 %v5819, %v5822
  %v5824 = vrot.slane %v5823, 2
  %v5826 = vshll.u32 %v5717, 16
  %v5828 = vrot.slane %v5826, 7
  %v5829 = vsel %vm4515, %v5824, %v5828
  %v5830 = vld [vmem:[%s5629] sm:$0x7]
  %v5831 = vld [vmem:[%s5629 + $0x4] sm:$0x7]
  %v5832 = vld [vmem:[%s5629 + $0x8] sm:$0x7]
  %v5833 = vld [vmem:[%s5629 + $0xc] sm:$0x7]
  %v5834 = vld [vmem:[%s5629 + $0x50] sm:$0x7]
  %v5835 = vld [vmem:[%s5629 + $0x54] sm:$0x7]
  %v5836 = vld [vmem:[%s5629 + $0x58] sm:$0x7]
  %v5837 = vld [vmem:[%s5629 + $0x5c] sm:$0x7]
  %v5847 = vunpack.c.l.s4 1983009808
  %v5848 = vunpack.c.0.s8 %v5847
  %v5849 = vlaneseq
  %v5850 = vshrl.u32 %v5849, 7
  %v5851 = vsub.s32 %v5848, %v5850
  %v5852 = vrot.slane %v5830, %v5851
  %v5853 = vcombine.high %v5852, %v5852
  %v5855 = vunpack.c.l.s4 1983009808
  %v5856 = vunpack.c.0.s8 %v5855
  %v5857 = vlaneseq
  %v5858 = vshrl.u32 %v5857, 7
  %v5859 = vsub.s32 %v5856, %v5858
  %v5860 = vrot.slane %v5831, %v5859
  %v5861 = vcombine.high %v5860, %v5860
  %v5863 = vunpack.c.l.s4 1983009808
  %v5864 = vunpack.c.0.s8 %v5863
  %v5865 = vlaneseq
  %v5866 = vshrl.u32 %v5865, 7
  %v5867 = vsub.s32 %v5864, %v5866
  %v5868 = vrot.slane %v5832, %v5867
  %v5869 = vcombine.high %v5868, %v5868
  %v5871 = vunpack.c.l.s4 1983009808
  %v5872 = vunpack.c.0.s8 %v5871
  %v5873 = vlaneseq
  %v5874 = vshrl.u32 %v5873, 7
  %v5875 = vsub.s32 %v5872, %v5874
  %v5876 = vrot.slane %v5833, %v5875
  %v5877 = vcombine.high %v5876, %v5876
  %v5879 = vunpack.c.l.s4 1983009808
  %v5880 = vunpack.c.0.s8 %v5879
  %v5881 = vlaneseq
  %v5882 = vshrl.u32 %v5881, 7
  %v5883 = vsub.s32 %v5880, %v5882
  %v5884 = vrot.slane %v5834, %v5883
  %v5885 = vcombine.high %v5884, %v5884
  %v5887 = vunpack.c.l.s4 1983009808
  %v5888 = vunpack.c.0.s8 %v5887
  %v5889 = vlaneseq
  %v5890 = vshrl.u32 %v5889, 7
  %v5891 = vsub.s32 %v5888, %v5890
  %v5892 = vrot.slane %v5835, %v5891
  %v5893 = vcombine.high %v5892, %v5892
  %v5895 = vunpack.c.l.s4 1983009808
  %v5896 = vunpack.c.0.s8 %v5895
  %v5897 = vlaneseq
  %v5898 = vshrl.u32 %v5897, 7
  %v5899 = vsub.s32 %v5896, %v5898
  %v5900 = vrot.slane %v5836, %v5899
  %v5901 = vcombine.high %v5900, %v5900
  %v5903 = vunpack.c.l.s4 1983009808
  %v5904 = vunpack.c.0.s8 %v5903
  %v5905 = vlaneseq
  %v5906 = vshrl.u32 %v5905, 7
  %v5907 = vsub.s32 %v5904, %v5906
  %v5908 = vrot.slane %v5837, %v5907
  %v5909 = vcombine.high %v5908, %v5908
  %v5911 = vshrl.u32 %v5852, 16
  %v5913 = vrot.slane %v5911, 6
  %v5914 = vshll.u32 %v5852, 16
  %v5916 = vrot.slane %v5914, 7
  %v5917 = vor.u32 %v5913, %v5916
  %v5918 = vrot.slane %v5917, 2
  %v5920 = vshll.u32 %v5853, 16
  %v5922 = vrot.slane %v5920, 7
  %v5923 = vsel %vm4515, %v5918, %v5922
  %v5925 = vshrl.u32 %v5860, 16
  %v5927 = vrot.slane %v5925, 6
  %v5928 = vshll.u32 %v5860, 16
  %v5930 = vrot.slane %v5928, 7
  %v5931 = vor.u32 %v5927, %v5930
  %v5932 = vrot.slane %v5931, 2
  %v5934 = vshll.u32 %v5861, 16
  %v5936 = vrot.slane %v5934, 7
  %v5937 = vsel %vm4515, %v5932, %v5936
  %v5939 = vshrl.u32 %v5868, 16
  %v5941 = vrot.slane %v5939, 6
  %v5942 = vshll.u32 %v5868, 16
  %v5944 = vrot.slane %v5942, 7
  %v5945 = vor.u32 %v5941, %v5944
  %v5946 = vrot.slane %v5945, 2
  %v5948 = vshll.u32 %v5869, 16
  %v5950 = vrot.slane %v5948, 7
  %v5951 = vsel %vm4515, %v5946, %v5950
  %v5953 = vshrl.u32 %v5876, 16
  %v5955 = vrot.slane %v5953, 6
  %v5956 = vshll.u32 %v5876, 16
  %v5958 = vrot.slane %v5956, 7
  %v5959 = vor.u32 %v5955, %v5958
  %v5960 = vrot.slane %v5959, 2
  %v5962 = vshll.u32 %v5877, 16
  %v5964 = vrot.slane %v5962, 7
  %v5965 = vsel %vm4515, %v5960, %v5964
  %v5967 = vshrl.u32 %v5884, 16
  %v5969 = vrot.slane %v5967, 6
  %v5970 = vshll.u32 %v5884, 16
  %v5972 = vrot.slane %v5970, 7
  %v5973 = vor.u32 %v5969, %v5972
  %v5974 = vrot.slane %v5973, 2
  %v5976 = vshll.u32 %v5885, 16
  %v5978 = vrot.slane %v5976, 7
  %v5979 = vsel %vm4515, %v5974, %v5978
  %v5981 = vshrl.u32 %v5892, 16
  %v5983 = vrot.slane %v5981, 6
  %v5984 = vshll.u32 %v5892, 16
  %v5986 = vrot.slane %v5984, 7
  %v5987 = vor.u32 %v5983, %v5986
  %v5988 = vrot.slane %v5987, 2
  %v5990 = vshll.u32 %v5893, 16
  %v5992 = vrot.slane %v5990, 7
  %v5993 = vsel %vm4515, %v5988, %v5992
  %v5995 = vshrl.u32 %v5900, 16
  %v5997 = vrot.slane %v5995, 6
  %v5998 = vshll.u32 %v5900, 16
  %v6000 = vrot.slane %v5998, 7
  %v6001 = vor.u32 %v5997, %v6000
  %v6002 = vrot.slane %v6001, 2
  %v6004 = vshll.u32 %v5901, 16
  %v6006 = vrot.slane %v6004, 7
  %v6007 = vsel %vm4515, %v6002, %v6006
  %v6009 = vshrl.u32 %v5908, 16
  %v6011 = vrot.slane %v6009, 6
  %v6012 = vshll.u32 %v5908, 16
  %v6014 = vrot.slane %v6012, 7
  %v6015 = vor.u32 %v6011, %v6014
  %v6016 = vrot.slane %v6015, 2
  %v6018 = vshll.u32 %v5909, 16
  %v6020 = vrot.slane %v6018, 7
  %v6021 = vsel %vm4515, %v6016, %v6020
  %v6030 = vcombine.low %v4413, %v4414
  %v6031 = vcombine.low %v4415, %v4416
  %v6033 = vunpack.c.l.s4 1983009808
  %v6034 = vunpack.c.0.s8 %v6033
  %v6035 = vlaneseq
  %v6036 = vshrl.u32 %v6035, 7
  %v6037 = vsub.s32 %v6034, %v6036
  %v6038 = vrot.slane %v6030, %v6037
  %v6040 = vunpack.c.l.s4 1983009808
  %v6041 = vunpack.c.0.s8 %v6040
  %v6042 = vlaneseq
  %v6043 = vshrl.u32 %v6042, 7
  %v6044 = vsub.s32 %v6041, %v6043
  %v6045 = vrot.slane %v6031, %v6044
  %v6046 = vcombine.low %v6038, %v6045
  %v6047 = vcombine.low %v4417, %v4418
  %v6048 = vcombine.low %v4419, %v4420
  %v6050 = vunpack.c.l.s4 1983009808
  %v6051 = vunpack.c.0.s8 %v6050
  %v6052 = vlaneseq
  %v6053 = vshrl.u32 %v6052, 7
  %v6054 = vsub.s32 %v6051, %v6053
  %v6055 = vrot.slane %v6047, %v6054
  %v6057 = vunpack.c.l.s4 1983009808
  %v6058 = vunpack.c.0.s8 %v6057
  %v6059 = vlaneseq
  %v6060 = vshrl.u32 %v6059, 7
  %v6061 = vsub.s32 %v6058, %v6060
  %v6062 = vrot.slane %v6048, %v6061
  %v6063 = vcombine.low %v6055, %v6062
  %v6072 = vcombine.low %v4421, %v4422
  %v6073 = vcombine.low %v4423, %v4424
  %v6075 = vunpack.c.l.s4 1983009808
  %v6076 = vunpack.c.0.s8 %v6075
  %v6077 = vlaneseq
  %v6078 = vshrl.u32 %v6077, 7
  %v6079 = vsub.s32 %v6076, %v6078
  %v6080 = vrot.slane %v6072, %v6079
  %v6082 = vunpack.c.l.s4 1983009808
  %v6083 = vunpack.c.0.s8 %v6082
  %v6084 = vlaneseq
  %v6085 = vshrl.u32 %v6084, 7
  %v6086 = vsub.s32 %v6083, %v6085
  %v6087 = vrot.slane %v6073, %v6086
  %v6088 = vcombine.low %v6080, %v6087
  %v6089 = vcombine.low %v4425, %v4426
  %v6090 = vcombine.low %v4427, %v4428
  %v6092 = vunpack.c.l.s4 1983009808
  %v6093 = vunpack.c.0.s8 %v6092
  %v6094 = vlaneseq
  %v6095 = vshrl.u32 %v6094, 7
  %v6096 = vsub.s32 %v6093, %v6095
  %v6097 = vrot.slane %v6089, %v6096
  %v6099 = vunpack.c.l.s4 1983009808
  %v6100 = vunpack.c.0.s8 %v6099
  %v6101 = vlaneseq
  %v6102 = vshrl.u32 %v6101, 7
  %v6103 = vsub.s32 %v6100, %v6102
  %v6104 = vrot.slane %v6090, %v6103
  %v6105 = vcombine.low %v6097, %v6104
  %6106 = vrot.lane.b32.xlu0 %v6088, 8
  %v6107 = vpop.permute.xlu0 %6106
  %6108 = vrot.lane.b32.xlu0 %v6105, 8
  %v6109 = vpop.permute.xlu0 %6108
  %v6110 = vcombine.low %v4529, %v4543
  %v6111 = vcombine.low %v4557, %v4571
  %v6113 = vunpack.c.l.s4 1983009808
  %v6114 = vunpack.c.0.s8 %v6113
  %v6115 = vlaneseq
  %v6116 = vshrl.u32 %v6115, 7
  %v6117 = vsub.s32 %v6114, %v6116
  %v6118 = vrot.slane %v6110, %v6117
  %v6120 = vunpack.c.l.s4 1983009808
  %v6121 = vunpack.c.0.s8 %v6120
  %v6122 = vlaneseq
  %v6123 = vshrl.u32 %v6122, 7
  %v6124 = vsub.s32 %v6121, %v6123
  %v6125 = vrot.slane %v6111, %v6124
  %v6126 = vcombine.low %v6118, %v6125
  %v6127 = vcombine.low %v4585, %v4599
  %v6128 = vcombine.low %v4613, %v4627
  %v6130 = vunpack.c.l.s4 1983009808
  %v6131 = vunpack.c.0.s8 %v6130
  %v6132 = vlaneseq
  %v6133 = vshrl.u32 %v6132, 7
  %v6134 = vsub.s32 %v6131, %v6133
  %v6135 = vrot.slane %v6127, %v6134
  %v6137 = vunpack.c.l.s4 1983009808
  %v6138 = vunpack.c.0.s8 %v6137
  %v6139 = vlaneseq
  %v6140 = vshrl.u32 %v6139, 7
  %v6141 = vsub.s32 %v6138, %v6140
  %v6142 = vrot.slane %v6128, %v6141
  %v6143 = vcombine.low %v6135, %v6142
  %6144 = vrot.lane.b32.xlu0 %v6126, 16
  %v6145 = vpop.permute.xlu0 %6144
  %6146 = vrot.lane.b32.xlu0 %v6143, 16
  %v6147 = vpop.permute.xlu0 %6146
  %v6148 = vcombine.low %v4721, %v4735
  %v6149 = vcombine.low %v4749, %v4763
  %v6151 = vunpack.c.l.s4 1983009808
  %v6152 = vunpack.c.0.s8 %v6151
  %v6153 = vlaneseq
  %v6154 = vshrl.u32 %v6153, 7
  %v6155 = vsub.s32 %v6152, %v6154
  %v6156 = vrot.slane %v6148, %v6155
  %v6158 = vunpack.c.l.s4 1983009808
  %v6159 = vunpack.c.0.s8 %v6158
  %v6160 = vlaneseq
  %v6161 = vshrl.u32 %v6160, 7
  %v6162 = vsub.s32 %v6159, %v6161
  %v6163 = vrot.slane %v6149, %v6162
  %v6164 = vcombine.low %v6156, %v6163
  %v6165 = vcombine.low %v4777, %v4791
  %v6166 = vcombine.low %v4805, %v4819
  %v6168 = vunpack.c.l.s4 1983009808
  %v6169 = vunpack.c.0.s8 %v6168
  %v6170 = vlaneseq
  %v6171 = vshrl.u32 %v6170, 7
  %v6172 = vsub.s32 %v6169, %v6171
  %v6173 = vrot.slane %v6165, %v6172
  %v6175 = vunpack.c.l.s4 1983009808
  %v6176 = vunpack.c.0.s8 %v6175
  %v6177 = vlaneseq
  %v6178 = vshrl.u32 %v6177, 7
  %v6179 = vsub.s32 %v6176, %v6178
  %v6180 = vrot.slane %v6166, %v6179
  %v6181 = vcombine.low %v6173, %v6180
  %6182 = vrot.lane.b32.xlu0 %v6164, 24
  %v6183 = vpop.permute.xlu0 %6182
  %6184 = vrot.lane.b32.xlu0 %v6181, 24
  %v6185 = vpop.permute.xlu0 %6184
  %v6194 = vcombine.low %v4820, %v4821
  %v6195 = vcombine.low %v4822, %v4823
  %v6197 = vunpack.c.l.s4 1983009808
  %v6198 = vunpack.c.0.s8 %v6197
  %v6199 = vlaneseq
  %v6200 = vshrl.u32 %v6199, 7
  %v6201 = vsub.s32 %v6198, %v6200
  %v6202 = vrot.slane %v6194, %v6201
  %v6204 = vunpack.c.l.s4 1983009808
  %v6205 = vunpack.c.0.s8 %v6204
  %v6206 = vlaneseq
  %v6207 = vshrl.u32 %v6206, 7
  %v6208 = vsub.s32 %v6205, %v6207
  %v6209 = vrot.slane %v6195, %v6208
  %v6210 = vcombine.low %v6202, %v6209
  %v6211 = vcombine.low %v4824, %v4825
  %v6212 = vcombine.low %v4826, %v4827
  %v6214 = vunpack.c.l.s4 1983009808
  %v6215 = vunpack.c.0.s8 %v6214
  %v6216 = vlaneseq
  %v6217 = vshrl.u32 %v6216, 7
  %v6218 = vsub.s32 %v6215, %v6217
  %v6219 = vrot.slane %v6211, %v6218
  %v6221 = vunpack.c.l.s4 1983009808
  %v6222 = vunpack.c.0.s8 %v6221
  %v6223 = vlaneseq
  %v6224 = vshrl.u32 %v6223, 7
  %v6225 = vsub.s32 %v6222, %v6224
  %v6226 = vrot.slane %v6212, %v6225
  %v6227 = vcombine.low %v6219, %v6226
  %6228 = vrot.lane.b32.xlu0 %v6210, 32
  %v6229 = vpop.permute.xlu0 %6228
  %6230 = vrot.lane.b32.xlu0 %v6227, 32
  %v6231 = vpop.permute.xlu0 %6230
  %v6240 = vcombine.low %v4828, %v4829
  %v6241 = vcombine.low %v4830, %v4831
  %v6243 = vunpack.c.l.s4 1983009808
  %v6244 = vunpack.c.0.s8 %v6243
  %v6245 = vlaneseq
  %v6246 = vshrl.u32 %v6245, 7
  %v6247 = vsub.s32 %v6244, %v6246
  %v6248 = vrot.slane %v6240, %v6247
  %v6250 = vunpack.c.l.s4 1983009808
  %v6251 = vunpack.c.0.s8 %v6250
  %v6252 = vlaneseq
  %v6253 = vshrl.u32 %v6252, 7
  %v6254 = vsub.s32 %v6251, %v6253
  %v6255 = vrot.slane %v6241, %v6254
  %v6256 = vcombine.low %v6248, %v6255
  %v6257 = vcombine.low %v4832, %v4833
  %v6258 = vcombine.low %v4834, %v4835
  %v6260 = vunpack.c.l.s4 1983009808
  %v6261 = vunpack.c.0.s8 %v6260
  %v6262 = vlaneseq
  %v6263 = vshrl.u32 %v6262, 7
  %v6264 = vsub.s32 %v6261, %v6263
  %v6265 = vrot.slane %v6257, %v6264
  %v6267 = vunpack.c.l.s4 1983009808
  %v6268 = vunpack.c.0.s8 %v6267
  %v6269 = vlaneseq
  %v6270 = vshrl.u32 %v6269, 7
  %v6271 = vsub.s32 %v6268, %v6270
  %v6272 = vrot.slane %v6258, %v6271
  %v6273 = vcombine.low %v6265, %v6272
  %6274 = vrot.lane.b32.xlu0 %v6256, 40
  %v6275 = vpop.permute.xlu0 %6274
  %6276 = vrot.lane.b32.xlu0 %v6273, 40
  %v6277 = vpop.permute.xlu0 %6276
  %v6278 = vcombine.low %v4929, %v4943
  %v6279 = vcombine.low %v4957, %v4971
  %v6281 = vunpack.c.l.s4 1983009808
  %v6282 = vunpack.c.0.s8 %v6281
  %v6283 = vlaneseq
  %v6284 = vshrl.u32 %v6283, 7
  %v6285 = vsub.s32 %v6282, %v6284
  %v6286 = vrot.slane %v6278, %v6285
  %v6288 = vunpack.c.l.s4 1983009808
  %v6289 = vunpack.c.0.s8 %v6288
  %v6290 = vlaneseq
  %v6291 = vshrl.u32 %v6290, 7
  %v6292 = vsub.s32 %v6289, %v6291
  %v6293 = vrot.slane %v6279, %v6292
  %v6294 = vcombine.low %v6286, %v6293
  %v6295 = vcombine.low %v4985, %v4999
  %v6296 = vcombine.low %v5013, %v5027
  %v6298 = vunpack.c.l.s4 1983009808
  %v6299 = vunpack.c.0.s8 %v6298
  %v6300 = vlaneseq
  %v6301 = vshrl.u32 %v6300, 7
  %v6302 = vsub.s32 %v6299, %v6301
  %v6303 = vrot.slane %v6295, %v6302
  %v6305 = vunpack.c.l.s4 1983009808
  %v6306 = vunpack.c.0.s8 %v6305
  %v6307 = vlaneseq
  %v6308 = vshrl.u32 %v6307, 7
  %v6309 = vsub.s32 %v6306, %v6308
  %v6310 = vrot.slane %v6296, %v6309
  %v6311 = vcombine.low %v6303, %v6310
  %6312 = vrot.lane.b32.xlu0 %v6294, 48
  %v6313 = vpop.permute.xlu0 %6312
  %6314 = vrot.lane.b32.xlu0 %v6311, 48
  %v6315 = vpop.permute.xlu0 %6314
  %v6316 = vcombine.low %v5121, %v5135
  %v6317 = vcombine.low %v5149, %v5163
  %v6319 = vunpack.c.l.s4 1983009808
  %v6320 = vunpack.c.0.s8 %v6319
  %v6321 = vlaneseq
  %v6322 = vshrl.u32 %v6321, 7
  %v6323 = vsub.s32 %v6320, %v6322
  %v6324 = vrot.slane %v6316, %v6323
  %v6326 = vunpack.c.l.s4 1983009808
  %v6327 = vunpack.c.0.s8 %v6326
  %v6328 = vlaneseq
  %v6329 = vshrl.u32 %v6328, 7
  %v6330 = vsub.s32 %v6327, %v6329
  %v6331 = vrot.slane %v6317, %v6330
  %v6332 = vcombine.low %v6324, %v6331
  %v6333 = vcombine.low %v5177, %v5191
  %v6334 = vcombine.low %v5205, %v5219
  %v6336 = vunpack.c.l.s4 1983009808
  %v6337 = vunpack.c.0.s8 %v6336
  %v6338 = vlaneseq
  %v6339 = vshrl.u32 %v6338, 7
  %v6340 = vsub.s32 %v6337, %v6339
  %v6341 = vrot.slane %v6333, %v6340
  %v6343 = vunpack.c.l.s4 1983009808
  %v6344 = vunpack.c.0.s8 %v6343
  %v6345 = vlaneseq
  %v6346 = vshrl.u32 %v6345, 7
  %v6347 = vsub.s32 %v6344, %v6346
  %v6348 = vrot.slane %v6334, %v6347
  %v6349 = vcombine.low %v6341, %v6348
  %6350 = vrot.lane.b32.xlu0 %v6332, 56
  %v6351 = vpop.permute.xlu0 %6350
  %6352 = vrot.lane.b32.xlu0 %v6349, 56
  %v6353 = vpop.permute.xlu0 %6352
  %v6362 = vcombine.low %v5220, %v5221
  %v6363 = vcombine.low %v5222, %v5223
  %v6365 = vunpack.c.l.s4 1983009808
  %v6366 = vunpack.c.0.s8 %v6365
  %v6367 = vlaneseq
  %v6368 = vshrl.u32 %v6367, 7
  %v6369 = vsub.s32 %v6366, %v6368
  %v6370 = vrot.slane %v6362, %v6369
  %v6372 = vunpack.c.l.s4 1983009808
  %v6373 = vunpack.c.0.s8 %v6372
  %v6374 = vlaneseq
  %v6375 = vshrl.u32 %v6374, 7
  %v6376 = vsub.s32 %v6373, %v6375
  %v6377 = vrot.slane %v6363, %v6376
  %v6378 = vcombine.low %v6370, %v6377
  %v6379 = vcombine.low %v5224, %v5225
  %v6380 = vcombine.low %v5226, %v5227
  %v6382 = vunpack.c.l.s4 1983009808
  %v6383 = vunpack.c.0.s8 %v6382
  %v6384 = vlaneseq
  %v6385 = vshrl.u32 %v6384, 7
  %v6386 = vsub.s32 %v6383, %v6385
  %v6387 = vrot.slane %v6379, %v6386
  %v6389 = vunpack.c.l.s4 1983009808
  %v6390 = vunpack.c.0.s8 %v6389
  %v6391 = vlaneseq
  %v6392 = vshrl.u32 %v6391, 7
  %v6393 = vsub.s32 %v6390, %v6392
  %v6394 = vrot.slane %v6380, %v6393
  %v6395 = vcombine.low %v6387, %v6394
  %6396 = vrot.lane.b32.xlu0 %v6378, 64
  %v6397 = vpop.permute.xlu0 %6396
  %6398 = vrot.lane.b32.xlu0 %v6395, 64
  %v6399 = vpop.permute.xlu0 %6398
  %v6408 = vcombine.low %v5228, %v5229
  %v6409 = vcombine.low %v5230, %v5231
  %v6411 = vunpack.c.l.s4 1983009808
  %v6412 = vunpack.c.0.s8 %v6411
  %v6413 = vlaneseq
  %v6414 = vshrl.u32 %v6413, 7
  %v6415 = vsub.s32 %v6412, %v6414
  %v6416 = vrot.slane %v6408, %v6415
  %v6418 = vunpack.c.l.s4 1983009808
  %v6419 = vunpack.c.0.s8 %v6418
  %v6420 = vlaneseq
  %v6421 = vshrl.u32 %v6420, 7
  %v6422 = vsub.s32 %v6419, %v6421
  %v6423 = vrot.slane %v6409, %v6422
  %v6424 = vcombine.low %v6416, %v6423
  %v6425 = vcombine.low %v5232, %v5233
  %v6426 = vcombine.low %v5234, %v5235
  %v6428 = vunpack.c.l.s4 1983009808
  %v6429 = vunpack.c.0.s8 %v6428
  %v6430 = vlaneseq
  %v6431 = vshrl.u32 %v6430, 7
  %v6432 = vsub.s32 %v6429, %v6431
  %v6433 = vrot.slane %v6425, %v6432
  %v6435 = vunpack.c.l.s4 1983009808
  %v6436 = vunpack.c.0.s8 %v6435
  %v6437 = vlaneseq
  %v6438 = vshrl.u32 %v6437, 7
  %v6439 = vsub.s32 %v6436, %v6438
  %v6440 = vrot.slane %v6426, %v6439
  %v6441 = vcombine.low %v6433, %v6440
  %6442 = vrot.lane.b32.xlu0 %v6424, 72
  %v6443 = vpop.permute.xlu0 %6442
  %6444 = vrot.lane.b32.xlu0 %v6441, 72
  %v6445 = vpop.permute.xlu0 %6444
  %v6446 = vcombine.low %v5329, %v5343
  %v6447 = vcombine.low %v5357, %v5371
  %v6449 = vunpack.c.l.s4 1983009808
  %v6450 = vunpack.c.0.s8 %v6449
  %v6451 = vlaneseq
  %v6452 = vshrl.u32 %v6451, 7
  %v6453 = vsub.s32 %v6450, %v6452
  %v6454 = vrot.slane %v6446, %v6453
  %v6456 = vunpack.c.l.s4 1983009808
  %v6457 = vunpack.c.0.s8 %v6456
  %v6458 = vlaneseq
  %v6459 = vshrl.u32 %v6458, 7
  %v6460 = vsub.s32 %v6457, %v6459
  %v6461 = vrot.slane %v6447, %v6460
  %v6462 = vcombine.low %v6454, %v6461
  %v6463 = vcombine.low %v5385, %v5399
  %v6464 = vcombine.low %v5413, %v5427
  %v6466 = vunpack.c.l.s4 1983009808
  %v6467 = vunpack.c.0.s8 %v6466
  %v6468 = vlaneseq
  %v6469 = vshrl.u32 %v6468, 7
  %v6470 = vsub.s32 %v6467, %v6469
  %v6471 = vrot.slane %v6463, %v6470
  %v6473 = vunpack.c.l.s4 1983009808
  %v6474 = vunpack.c.0.s8 %v6473
  %v6475 = vlaneseq
  %v6476 = vshrl.u32 %v6475, 7
  %v6477 = vsub.s32 %v6474, %v6476
  %v6478 = vrot.slane %v6464, %v6477
  %v6479 = vcombine.low %v6471, %v6478
  %6480 = vrot.lane.b32.xlu0 %v6462, 80
  %v6481 = vpop.permute.xlu0 %6480
  %6482 = vrot.lane.b32.xlu0 %v6479, 80
  %v6483 = vpop.permute.xlu0 %6482
  %v6484 = vcombine.low %v5521, %v5535
  %v6485 = vcombine.low %v5549, %v5563
  %v6487 = vunpack.c.l.s4 1983009808
  %v6488 = vunpack.c.0.s8 %v6487
  %v6489 = vlaneseq
  %v6490 = vshrl.u32 %v6489, 7
  %v6491 = vsub.s32 %v6488, %v6490
  %v6492 = vrot.slane %v6484, %v6491
  %v6494 = vunpack.c.l.s4 1983009808
  %v6495 = vunpack.c.0.s8 %v6494
  %v6496 = vlaneseq
  %v6497 = vshrl.u32 %v6496, 7
  %v6498 = vsub.s32 %v6495, %v6497
  %v6499 = vrot.slane %v6485, %v6498
  %v6500 = vcombine.low %v6492, %v6499
  %v6501 = vcombine.low %v5577, %v5591
  %v6502 = vcombine.low %v5605, %v5619
  %v6504 = vunpack.c.l.s4 1983009808
  %v6505 = vunpack.c.0.s8 %v6504
  %v6506 = vlaneseq
  %v6507 = vshrl.u32 %v6506, 7
  %v6508 = vsub.s32 %v6505, %v6507
  %v6509 = vrot.slane %v6501, %v6508
  %v6511 = vunpack.c.l.s4 1983009808
  %v6512 = vunpack.c.0.s8 %v6511
  %v6513 = vlaneseq
  %v6514 = vshrl.u32 %v6513, 7
  %v6515 = vsub.s32 %v6512, %v6514
  %v6516 = vrot.slane %v6502, %v6515
  %v6517 = vcombine.low %v6509, %v6516
  %6518 = vrot.lane.b32.xlu0 %v6500, 88
  %v6519 = vpop.permute.xlu0 %6518
  %6520 = vrot.lane.b32.xlu0 %v6517, 88
  %v6521 = vpop.permute.xlu0 %6520
  %v6530 = vcombine.low %v5621, %v5622
  %v6531 = vcombine.low %v5623, %v5624
  %v6533 = vunpack.c.l.s4 1983009808
  %v6534 = vunpack.c.0.s8 %v6533
  %v6535 = vlaneseq
  %v6536 = vshrl.u32 %v6535, 7
  %v6537 = vsub.s32 %v6534, %v6536
  %v6538 = vrot.slane %v6530, %v6537
  %v6540 = vunpack.c.l.s4 1983009808
  %v6541 = vunpack.c.0.s8 %v6540
  %v6542 = vlaneseq
  %v6543 = vshrl.u32 %v6542, 7
  %v6544 = vsub.s32 %v6541, %v6543
  %v6545 = vrot.slane %v6531, %v6544
  %v6546 = vcombine.low %v6538, %v6545
  %v6547 = vcombine.low %v5625, %v5626
  %v6548 = vcombine.low %v5627, %v5628
  %v6550 = vunpack.c.l.s4 1983009808
  %v6551 = vunpack.c.0.s8 %v6550
  %v6552 = vlaneseq
  %v6553 = vshrl.u32 %v6552, 7
  %v6554 = vsub.s32 %v6551, %v6553
  %v6555 = vrot.slane %v6547, %v6554
  %v6557 = vunpack.c.l.s4 1983009808
  %v6558 = vunpack.c.0.s8 %v6557
  %v6559 = vlaneseq
  %v6560 = vshrl.u32 %v6559, 7
  %v6561 = vsub.s32 %v6558, %v6560
  %v6562 = vrot.slane %v6548, %v6561
  %v6563 = vcombine.low %v6555, %v6562
  %6564 = vrot.lane.b32.xlu0 %v6546, 96
  %v6565 = vpop.permute.xlu0 %6564
  %6566 = vrot.lane.b32.xlu0 %v6563, 96
  %v6567 = vpop.permute.xlu0 %6566
  %v6576 = vcombine.low %v5630, %v5631
  %v6577 = vcombine.low %v5632, %v5633
  %v6579 = vunpack.c.l.s4 1983009808
  %v6580 = vunpack.c.0.s8 %v6579
  %v6581 = vlaneseq
  %v6582 = vshrl.u32 %v6581, 7
  %v6583 = vsub.s32 %v6580, %v6582
  %v6584 = vrot.slane %v6576, %v6583
  %v6586 = vunpack.c.l.s4 1983009808
  %v6587 = vunpack.c.0.s8 %v6586
  %v6588 = vlaneseq
  %v6589 = vshrl.u32 %v6588, 7
  %v6590 = vsub.s32 %v6587, %v6589
  %v6591 = vrot.slane %v6577, %v6590
  %v6592 = vcombine.low %v6584, %v6591
  %v6593 = vcombine.low %v5634, %v5635
  %v6594 = vcombine.low %v5636, %v5637
  %v6596 = vunpack.c.l.s4 1983009808
  %v6597 = vunpack.c.0.s8 %v6596
  %v6598 = vlaneseq
  %v6599 = vshrl.u32 %v6598, 7
  %v6600 = vsub.s32 %v6597, %v6599
  %v6601 = vrot.slane %v6593, %v6600
  %v6603 = vunpack.c.l.s4 1983009808
  %v6604 = vunpack.c.0.s8 %v6603
  %v6605 = vlaneseq
  %v6606 = vshrl.u32 %v6605, 7
  %v6607 = vsub.s32 %v6604, %v6606
  %v6608 = vrot.slane %v6594, %v6607
  %v6609 = vcombine.low %v6601, %v6608
  %6610 = vrot.lane.b32.xlu0 %v6592, 104
  %v6611 = vpop.permute.xlu0 %6610
  %6612 = vrot.lane.b32.xlu0 %v6609, 104
  %v6613 = vpop.permute.xlu0 %6612
  %v6614 = vcombine.low %v5731, %v5745
  %v6615 = vcombine.low %v5759, %v5773
  %v6617 = vunpack.c.l.s4 1983009808
  %v6618 = vunpack.c.0.s8 %v6617
  %v6619 = vlaneseq
  %v6620 = vshrl.u32 %v6619, 7
  %v6621 = vsub.s32 %v6618, %v6620
  %v6622 = vrot.slane %v6614, %v6621
  %v6624 = vunpack.c.l.s4 1983009808
  %v6625 = vunpack.c.0.s8 %v6624
  %v6626 = vlaneseq
  %v6627 = vshrl.u32 %v6626, 7
  %v6628 = vsub.s32 %v6625, %v6627
  %v6629 = vrot.slane %v6615, %v6628
  %v6630 = vcombine.low %v6622, %v6629
  %v6631 = vcombine.low %v5787, %v5801
  %v6632 = vcombine.low %v5815, %v5829
  %v6634 = vunpack.c.l.s4 1983009808
  %v6635 = vunpack.c.0.s8 %v6634
  %v6636 = vlaneseq
  %v6637 = vshrl.u32 %v6636, 7
  %v6638 = vsub.s32 %v6635, %v6637
  %v6639 = vrot.slane %v6631, %v6638
  %v6641 = vunpack.c.l.s4 1983009808
  %v6642 = vunpack.c.0.s8 %v6641
  %v6643 = vlaneseq
  %v6644 = vshrl.u32 %v6643, 7
  %v6645 = vsub.s32 %v6642, %v6644
  %v6646 = vrot.slane %v6632, %v6645
  %v6647 = vcombine.low %v6639, %v6646
  %6648 = vrot.lane.b32.xlu0 %v6630, 112
  %v6649 = vpop.permute.xlu0 %6648
  %6650 = vrot.lane.b32.xlu0 %v6647, 112
  %v6651 = vpop.permute.xlu0 %6650
  %v6652 = vcombine.low %v5923, %v5937
  %v6653 = vcombine.low %v5951, %v5965
  %v6655 = vunpack.c.l.s4 1983009808
  %v6656 = vunpack.c.0.s8 %v6655
  %v6657 = vlaneseq
  %v6658 = vshrl.u32 %v6657, 7
  %v6659 = vsub.s32 %v6656, %v6658
  %v6660 = vrot.slane %v6652, %v6659
  %v6662 = vunpack.c.l.s4 1983009808
  %v6663 = vunpack.c.0.s8 %v6662
  %v6664 = vlaneseq
  %v6665 = vshrl.u32 %v6664, 7
  %v6666 = vsub.s32 %v6663, %v6665
  %v6667 = vrot.slane %v6653, %v6666
  %v6668 = vcombine.low %v6660, %v6667
  %v6669 = vcombine.low %v5979, %v5993
  %v6670 = vcombine.low %v6007, %v6021
  %v6672 = vunpack.c.l.s4 1983009808
  %v6673 = vunpack.c.0.s8 %v6672
  %v6674 = vlaneseq
  %v6675 = vshrl.u32 %v6674, 7
  %v6676 = vsub.s32 %v6673, %v6675
  %v6677 = vrot.slane %v6669, %v6676
  %v6679 = vunpack.c.l.s4 1983009808
  %v6680 = vunpack.c.0.s8 %v6679
  %v6681 = vlaneseq
  %v6682 = vshrl.u32 %v6681, 7
  %v6683 = vsub.s32 %v6680, %v6682
  %v6684 = vrot.slane %v6670, %v6683
  %v6685 = vcombine.low %v6677, %v6684
  %6686 = vrot.lane.b32.xlu0 %v6668, 120
  %v6687 = vpop.permute.xlu0 %6686
  %6688 = vrot.lane.b32.xlu0 %v6685, 120
  %v6689 = vpop.permute.xlu0 %6688
  %v6692 = vsel %vm2864, %v6046, %v6107
  %v6695 = vsel %vm2864, %v6063, %v6109
  %v6697 = vsel %vm2898, %v6692, %v6145
  %v6699 = vsel %vm2898, %v6695, %v6147
  %v6701 = vsel %vm2932, %v6697, %v6183
  %v6703 = vsel %vm2932, %v6699, %v6185
  %v6705 = vsel %vm2966, %v6701, %v6229
  %v6707 = vsel %vm2966, %v6703, %v6231
  %v6709 = vsel %vm3000, %v6705, %v6275
  %v6711 = vsel %vm3000, %v6707, %v6277
  %v6713 = vsel %vm3034, %v6709, %v6313
  %v6715 = vsel %vm3034, %v6711, %v6315
  %v6717 = vsel %vm3068, %v6713, %v6351
  %v6719 = vsel %vm3068, %v6715, %v6353
  %v6721 = vsel %vm3141, %v6717, %v6397
  %v6723 = vsel %vm3141, %v6719, %v6399
  %vm6724 = vcmask 588800
  %v6726 = vsel %vm6724, %v6721, %v6443
  %v6728 = vsel %vm6724, %v6723, %v6445
  %vm6729 = vcmask 654336
  %v6731 = vsel %vm6729, %v6726, %v6481
  %v6733 = vsel %vm6729, %v6728, %v6483
  %vm6734 = vcmask 719872
  %v6736 = vsel %vm6734, %v6731, %v6519
  %v6738 = vsel %vm6734, %v6733, %v6521
  %vm6739 = vcmask 785408
  %v6741 = vsel %vm6739, %v6736, %v6565
  %v6743 = vsel %vm6739, %v6738, %v6567
  %vm6744 = vcmask 850944
  %v6746 = vsel %vm6744, %v6741, %v6611
  %v6748 = vsel %vm6744, %v6743, %v6613
  %vm6749 = vcmask 916480
  %v6751 = vsel %vm6749, %v6746, %v6649
  %v6753 = vsel %vm6749, %v6748, %v6651
  %vm6754 = vcmask 982016
  %v6756 = vsel %vm6754, %v6751, %v6687
  %v6759 = vsel %vm6754, %v6753, %v6689
  %v6761 = vld [vmem:[%s3] sm:$0xf]
  %v6762 = vld [vmem:[%s3 + $0x4] sm:$0xf]
  %v6763 = vld [vmem:[%s3 + $0x8] sm:$0xf]
  %v6764 = vld [vmem:[%s3 + $0xc] sm:$0xf]
  %v6765 = vld [vmem:[%s3 + $0x10] sm:$0xf]
  %v6766 = vld [vmem:[%s3 + $0x14] sm:$0xf]
  %v6767 = vld [vmem:[%s3 + $0x18] sm:$0xf]
  %v6768 = vld [vmem:[%s3 + $0x1c] sm:$0xf]
  %v6769 = vld [vmem:[%s3 + $0x20] sm:$0xf]
  %v6770 = vld [vmem:[%s3 + $0x24] sm:$0xf]
  %v6771 = vld [vmem:[%s3 + $0x28] sm:$0xf]
  %v6772 = vld [vmem:[%s3 + $0x2c] sm:$0xf]
  %v6773 = vld [vmem:[%s3 + $0x30] sm:$0xf]
  %v6774 = vld [vmem:[%s3 + $0x34] sm:$0xf]
  %v6775 = vld [vmem:[%s3 + $0x38] sm:$0xf]
  %v6776 = vld [vmem:[%s3 + $0x3c] sm:$0xf]
  %v6777 = vld [vmem:[%s4] sm:$0x1]
  %v6779 = vlaneseq
  %v6780 = vshrl.u32 %v6779, 7
  %v6781 = vsub.s32 0, %v6780
  %v6782 = vrot.slane %v6777, %v6781
  %v6800 = vunpack.c.l.b16 %v6761
  %v6801 = vunpack.c.l.b16 %v6762
  %v6802 = vunpack.c.l.b16 %v6763
  %v6803 = vunpack.c.l.b16 %v6764
  %v6804 = vunpack.c.l.b16 %v6765
  %v6805 = vunpack.c.l.b16 %v6766
  %v6806 = vunpack.c.l.b16 %v6767
  %v6807 = vunpack.c.l.b16 %v6768
  %v6808 = vunpack.c.l.b16 %v6769
  %v6809 = vunpack.c.l.b16 %v6770
  %v6810 = vunpack.c.l.b16 %v6771
  %v6811 = vunpack.c.l.b16 %v6772
  %v6812 = vunpack.c.l.b16 %v6773
  %v6813 = vunpack.c.l.b16 %v6774
  %v6814 = vunpack.c.l.b16 %v6775
  %v6815 = vunpack.c.l.b16 %v6776
  %v6816 = vpack.c.b16 %v6801, %v6800
  %v6817 = vpack.c.b16 %v6803, %v6802
  %v6818 = vpack.c.b16 %v6805, %v6804
  %v6819 = vpack.c.b16 %v6807, %v6806
  %v6820 = vpack.c.b16 %v6809, %v6808
  %v6821 = vpack.c.b16 %v6811, %v6810
  %v6822 = vpack.c.b16 %v6813, %v6812
  %v6823 = vpack.c.b16 %v6815, %v6814
  %6832 = vmatprep.subr.bf16.mxu0 0
  %6833 = vmatpush1.bf16.msra.mxu0 %v6823
  %6834 = vmatprep.subr.bf16.mxu0 0
  %6835 = vmatpush1.bf16.msra.mxu0 %v6822
  %6836 = vmatprep.subr.bf16.mxu0 0
  %6837 = vmatpush1.bf16.msra.mxu0 %v6821
  %6838 = vmatprep.subr.bf16.mxu0 0
  %6839 = vmatpush1.bf16.msra.mxu0 %v6820
  %6840 = vmatprep.subr.bf16.mxu0 0
  %6841 = vmatpush1.bf16.msra.mxu0 %v6819
  %6842 = vmatprep.subr.bf16.mxu0 0
  %6843 = vmatpush1.bf16.msra.mxu0 %v6818
  %6844 = vmatprep.subr.bf16.mxu0 0
  %6845 = vmatpush1.bf16.msra.mxu0 %v6817
  %6846 = vmatprep.subr.bf16.mxu0 0
  %6847 = vmatpush1.bf16.msra.mxu0 %v6816
  %6848 = vmatprep.subr.bf16.mxu0 0
  %6849 = vmatpush2.bf16.msra.mxu0 0
  %6850 = vmatprep.subr.bf16.mxu0 0
  %6851 = vmatpush2.bf16.msra.mxu0 0
  %6852 = vmatprep.subr.bf16.mxu0 0
  %6853 = vmatpush2.bf16.msra.mxu0 0
  %6854 = vmatprep.subr.bf16.mxu0 0
  %6855 = vmatpush2.bf16.msra.mxu0 0
  %6856 = vmatprep.subr.bf16.mxu0 0
  %6857 = vmatpush2.bf16.msra.mxu0 0
  %6858 = vmatprep.subr.bf16.mxu0 0
  %6859 = vmatpush2.bf16.msra.mxu0 0
  %6860 = vmatprep.subr.bf16.mxu0 0
  %6861 = vmatpush2.bf16.msra.mxu0 0
  %6862 = vmatprep.subr.bf16.mxu0 0
  %6863 = vmatpush2.bf16.msra.mxu0 0
  %6864 = vmatprep.mubr.bf16.mxu0 0
  %6865 = vmatmul.mubr.bf16.gmra.mxu0 %v6756
  %v6866 = vpop.f32.mrf.mxu0
  %v6867 = vadd.f32 %v6782, %v6866
  %v6868 = vpop.f32.mrf.mxu0
  %v6869 = vpop.f32.mrf.mxu0
  %v6870 = vadd.f32 %v6782, %v6869
  %v6871 = vpop.f32.mrf.mxu0
  %6872 = vmatprep.mubr.bf16.mxu0 0
  %6873 = vmatmul.mubr.bf16.gmra.mxu0 %v6759
  %v6874 = vpop.f32.mrf.mxu0
  %v6875 = vadd.f32 %v6782, %v6874
  %v6876 = vpop.f32.mrf.mxu0
  %v6877 = vpop.f32.mrf.mxu0
  %v6878 = vadd.f32 %v6782, %v6877
  %v6879 = vpop.f32.mrf.mxu0
  %6880 = vdwg.mxu0
  %vm6881 = vcmp.gt.f32.partialorder %v6867, 0.0
  %vm6882 = vcmp.gt.f32.partialorder %v6870, 0.0
  %vm6883 = vcmp.gt.f32.partialorder %v6875, 0.0
  %vm6884 = vcmp.gt.f32.partialorder %v6878, 0.0
  %v6885 = vmul.f32 %v6867, 0.2
  %v6886 = vmul.f32 %v6870, 0.2
  %v6887 = vmul.f32 %v6875, 0.2
  %v6888 = vmul.f32 %v6878, 0.2
  %v6889 = vsel %vm6881, %v6867, %v6885
  %v6890 = vsel %vm6882, %v6870, %v6886
  %v6891 = vsel %vm6883, %v6875, %v6887
  %v6892 = vsel %vm6884, %v6878, %v6888
  %v6897 = vcombine.high %v6889, %v6889
  %v6899 = vunpack.c.l.s4 1983009808
  %v6900 = vunpack.c.0.s8 %v6899
  %v6901 = vlaneseq
  %v6902 = vshrl.u32 %v6901, 7
  %v6903 = vsub.s32 %v6900, %v6902
  %v6904 = vrot.slane %v6889, %v6903
  %v6906 = vunpack.c.l.s4 1983009808
  %v6907 = vunpack.c.0.s8 %v6906
  %v6908 = vlaneseq
  %v6909 = vshrl.u32 %v6908, 7
  %v6910 = vsub.s32 %v6907, %v6909
  %v6911 = vrot.slane %v6897, %v6910
  %v6912 = vcombine.high %v6904, %v6904
  %v6913 = vcombine.high %v6911, %v6911
  %v6914 = vcombine.high %v6890, %v6890
  %v6916 = vunpack.c.l.s4 1983009808
  %v6917 = vunpack.c.0.s8 %v6916
  %v6918 = vlaneseq
  %v6919 = vshrl.u32 %v6918, 7
  %v6920 = vsub.s32 %v6917, %v6919
  %v6921 = vrot.slane %v6890, %v6920
  %v6923 = vunpack.c.l.s4 1983009808
  %v6924 = vunpack.c.0.s8 %v6923
  %v6925 = vlaneseq
  %v6926 = vshrl.u32 %v6925, 7
  %v6927 = vsub.s32 %v6924, %v6926
  %v6928 = vrot.slane %v6914, %v6927
  %v6929 = vcombine.high %v6921, %v6921
  %v6930 = vcombine.high %v6928, %v6928
  %v6931 = vcombine.high %v6891, %v6891
  %v6933 = vunpack.c.l.s4 1983009808
  %v6934 = vunpack.c.0.s8 %v6933
  %v6935 = vlaneseq
  %v6936 = vshrl.u32 %v6935, 7
  %v6937 = vsub.s32 %v6934, %v6936
  %v6938 = vrot.slane %v6891, %v6937
  %v6940 = vunpack.c.l.s4 1983009808
  %v6941 = vunpack.c.0.s8 %v6940
  %v6942 = vlaneseq
  %v6943 = vshrl.u32 %v6942, 7
  %v6944 = vsub.s32 %v6941, %v6943
  %v6945 = vrot.slane %v6931, %v6944
  %v6946 = vcombine.high %v6938, %v6938
  %v6947 = vcombine.high %v6945, %v6945
  %v6948 = vcombine.high %v6892, %v6892
  %v6950 = vunpack.c.l.s4 1983009808
  %v6951 = vunpack.c.0.s8 %v6950
  %v6952 = vlaneseq
  %v6953 = vshrl.u32 %v6952, 7
  %v6954 = vsub.s32 %v6951, %v6953
  %v6955 = vrot.slane %v6892, %v6954
  %v6957 = vunpack.c.l.s4 1983009808
  %v6958 = vunpack.c.0.s8 %v6957
  %v6959 = vlaneseq
  %v6960 = vshrl.u32 %v6959, 7
  %v6961 = vsub.s32 %v6958, %v6960
  %v6962 = vrot.slane %v6948, %v6961
  %v6963 = vcombine.high %v6955, %v6955
  %v6964 = vcombine.high %v6962, %v6962
  %v6981 = vpack.c.bf16 %v6904, %v6904
  %v6982 = vpack.c.bf16 %v6912, %v6912
  %v6983 = vpack.c.bf16 %v6911, %v6911
  %v6984 = vpack.c.bf16 %v6913, %v6913
  %v6985 = vpack.c.bf16 %v6921, %v6921
  %v6986 = vpack.c.bf16 %v6929, %v6929
  %v6987 = vpack.c.bf16 %v6928, %v6928
  %v6988 = vpack.c.bf16 %v6930, %v6930
  %v6989 = vpack.c.bf16 %v6938, %v6938
  %v6990 = vpack.c.bf16 %v6946, %v6946
  %v6991 = vpack.c.bf16 %v6945, %v6945
  %v6992 = vpack.c.bf16 %v6947, %v6947
  %v6993 = vpack.c.bf16 %v6955, %v6955
  %v6994 = vpack.c.bf16 %v6963, %v6963
  %v6995 = vpack.c.bf16 %v6962, %v6962
  %v6996 = vpack.c.bf16 %v6964, %v6964
  %v7006 = vunpack.c.l.s4 1983009808
  %v7007 = vunpack.c.0.s8 %v7006
  %v7008 = vlaneseq
  %v7009 = vshrl.u32 %v7008, 7
  %v7010 = vsub.s32 %v7007, %v7009
  %v7011 = vrot.slane %v6981, %v7010
  %v7013 = vunpack.c.l.s4 1983009808
  %v7014 = vunpack.c.0.s8 %v7013
  %v7015 = vlaneseq
  %v7016 = vshrl.u32 %v7015, 7
  %v7017 = vsub.s32 %v7014, %v7016
  %v7018 = vrot.slane %v6982, %v7017
  %v7020 = vunpack.c.l.s4 1983009808
  %v7021 = vunpack.c.0.s8 %v7020
  %v7022 = vlaneseq
  %v7023 = vshrl.u32 %v7022, 7
  %v7024 = vsub.s32 %v7021, %v7023
  %v7025 = vrot.slane %v6985, %v7024
  %v7027 = vunpack.c.l.s4 1983009808
  %v7028 = vunpack.c.0.s8 %v7027
  %v7029 = vlaneseq
  %v7030 = vshrl.u32 %v7029, 7
  %v7031 = vsub.s32 %v7028, %v7030
  %v7032 = vrot.slane %v6986, %v7031
  %v7034 = vunpack.c.l.s4 1983009808
  %v7035 = vunpack.c.0.s8 %v7034
  %v7036 = vlaneseq
  %v7037 = vshrl.u32 %v7036, 7
  %v7038 = vsub.s32 %v7035, %v7037
  %v7039 = vrot.slane %v6989, %v7038
  %v7041 = vunpack.c.l.s4 1983009808
  %v7042 = vunpack.c.0.s8 %v7041
  %v7043 = vlaneseq
  %v7044 = vshrl.u32 %v7043, 7
  %v7045 = vsub.s32 %v7042, %v7044
  %v7046 = vrot.slane %v6990, %v7045
  %v7048 = vunpack.c.l.s4 1983009808
  %v7049 = vunpack.c.0.s8 %v7048
  %v7050 = vlaneseq
  %v7051 = vshrl.u32 %v7050, 7
  %v7052 = vsub.s32 %v7049, %v7051
  %v7053 = vrot.slane %v6993, %v7052
  %v7055 = vunpack.c.l.s4 1983009808
  %v7056 = vunpack.c.0.s8 %v7055
  %v7057 = vlaneseq
  %v7058 = vshrl.u32 %v7057, 7
  %v7059 = vsub.s32 %v7056, %v7058
  %v7060 = vrot.slane %v6994, %v7059
  %v7062 = vunpack.c.l.s4 1983009808
  %v7063 = vunpack.c.0.s8 %v7062
  %v7064 = vlaneseq
  %v7065 = vshrl.u32 %v7064, 7
  %v7066 = vsub.s32 %v7063, %v7065
  %v7067 = vrot.slane %v7011, %v7066
  %v7069 = vunpack.c.l.s4 1983009808
  %v7070 = vunpack.c.0.s8 %v7069
  %v7071 = vlaneseq
  %v7072 = vshrl.u32 %v7071, 7
  %v7073 = vsub.s32 %v7070, %v7072
  %v7074 = vrot.slane %v7018, %v7073
  %v7076 = vunpack.c.l.s4 1983009808
  %v7077 = vunpack.c.0.s8 %v7076
  %v7078 = vlaneseq
  %v7079 = vshrl.u32 %v7078, 7
  %v7080 = vsub.s32 %v7077, %v7079
  %v7081 = vrot.slane %v7025, %v7080
  %v7083 = vunpack.c.l.s4 1983009808
  %v7084 = vunpack.c.0.s8 %v7083
  %v7085 = vlaneseq
  %v7086 = vshrl.u32 %v7085, 7
  %v7087 = vsub.s32 %v7084, %v7086
  %v7088 = vrot.slane %v7032, %v7087
  %v7090 = vunpack.c.l.s4 1983009808
  %v7091 = vunpack.c.0.s8 %v7090
  %v7092 = vlaneseq
  %v7093 = vshrl.u32 %v7092, 7
  %v7094 = vsub.s32 %v7091, %v7093
  %v7095 = vrot.slane %v7039, %v7094
  %v7097 = vunpack.c.l.s4 1983009808
  %v7098 = vunpack.c.0.s8 %v7097
  %v7099 = vlaneseq
  %v7100 = vshrl.u32 %v7099, 7
  %v7101 = vsub.s32 %v7098, %v7100
  %v7102 = vrot.slane %v7046, %v7101
  %v7104 = vunpack.c.l.s4 1983009808
  %v7105 = vunpack.c.0.s8 %v7104
  %v7106 = vlaneseq
  %v7107 = vshrl.u32 %v7106, 7
  %v7108 = vsub.s32 %v7105, %v7107
  %v7109 = vrot.slane %v7053, %v7108
  %v7111 = vunpack.c.l.s4 1983009808
  %v7112 = vunpack.c.0.s8 %v7111
  %v7113 = vlaneseq
  %v7114 = vshrl.u32 %v7113, 7
  %v7115 = vsub.s32 %v7112, %v7114
  %v7116 = vrot.slane %v7060, %v7115
  %v7117 = vunpack.c.l.b16 %v7067
  %v7118 = vunpack.c.l.b16 %v7074
  %v7119 = vunpack.c.l.b16 %v7081
  %v7120 = vunpack.c.l.b16 %v7088
  %v7121 = vunpack.c.l.b16 %v7095
  %v7122 = vunpack.c.l.b16 %v7102
  %v7123 = vunpack.c.l.b16 %v7109
  %v7124 = vunpack.c.l.b16 %v7116
  %v7125 = vrot.slane %v7118, 7
  %v7126 = vsel %vm3848, %v7125, %v7117
  %v7127 = vrot.slane %v7120, 7
  %v7128 = vsel %vm3848, %v7127, %v7119
  %v7129 = vrot.slane %v7122, 7
  %v7130 = vsel %vm3848, %v7129, %v7121
  %v7131 = vrot.slane %v7124, 7
  %v7132 = vsel %vm3848, %v7131, %v7123
  %v7133 = vpack.c.b16 %v7126, %v7126
  %v7134 = vpack.c.b16 %v7128, %v7128
  %v7135 = vpack.c.b16 %v7130, %v7130
  %v7136 = vpack.c.b16 %v7132, %v7132
  %v7138 = vunpack.c.l.s4 1983009808
  %v7139 = vunpack.c.0.s8 %v7138
  %v7140 = vlaneseq
  %v7141 = vshrl.u32 %v7140, 7
  %v7142 = vsub.s32 %v7139, %v7141
  %v7143 = vrot.slane %v7133, %v7142
  %v7145 = vunpack.c.l.s4 1983009808
  %v7146 = vunpack.c.0.s8 %v7145
  %v7147 = vlaneseq
  %v7148 = vshrl.u32 %v7147, 7
  %v7149 = vsub.s32 %v7146, %v7148
  %v7150 = vrot.slane %v7134, %v7149
  %v7152 = vunpack.c.l.s4 1983009808
  %v7153 = vunpack.c.0.s8 %v7152
  %v7154 = vlaneseq
  %v7155 = vshrl.u32 %v7154, 7
  %v7156 = vsub.s32 %v7153, %v7155
  %v7157 = vrot.slane %v7135, %v7156
  %v7159 = vunpack.c.l.s4 1983009808
  %v7160 = vunpack.c.0.s8 %v7159
  %v7161 = vlaneseq
  %v7162 = vshrl.u32 %v7161, 7
  %v7163 = vsub.s32 %v7160, %v7162
  %v7164 = vrot.slane %v7136, %v7163
  %s7169 = scalar_lea.vmem [#allocation3], 18
  %vm7170 = vcmask 122880
  %7171 = vst.msk [vmem:[%s7169] sm:$0x1] %vm7170, %v7143
  %7172 = vst.msk [vmem:[%s7169 + $0x2] sm:$0x1] %vm7170, %v7150
  %7173 = vst.msk [vmem:[%s7169 + $0x18] sm:$0x1] %vm7170, %v7157
  %7174 = vst.msk [vmem:[%s7169 + $0x1a] sm:$0x1] %vm7170, %v7164
  %v7175 = vsel %vm3851, %v7125, %v7117
  %v7176 = vsel %vm3851, %v7127, %v7119
  %v7177 = vsel %vm3851, %v7129, %v7121
  %v7178 = vsel %vm3851, %v7131, %v7123
  %v7179 = vpack.c.b16 %v7175, %v7175
  %v7180 = vpack.c.b16 %v7176, %v7176
  %v7181 = vpack.c.b16 %v7177, %v7177
  %v7182 = vpack.c.b16 %v7178, %v7178
  %v7184 = vunpack.c.l.s4 1983009808
  %v7185 = vunpack.c.0.s8 %v7184
  %v7186 = vlaneseq
  %v7187 = vshrl.u32 %v7186, 7
  %v7188 = vsub.s32 %v7185, %v7187
  %v7189 = vrot.slane %v7179, %v7188
  %v7191 = vunpack.c.l.s4 1983009808
  %v7192 = vunpack.c.0.s8 %v7191
  %v7193 = vlaneseq
  %v7194 = vshrl.u32 %v7193, 7
  %v7195 = vsub.s32 %v7192, %v7194
  %v7196 = vrot.slane %v7180, %v7195
  %v7198 = vunpack.c.l.s4 1983009808
  %v7199 = vunpack.c.0.s8 %v7198
  %v7200 = vlaneseq
  %v7201 = vshrl.u32 %v7200, 7
  %v7202 = vsub.s32 %v7199, %v7201
  %v7203 = vrot.slane %v7181, %v7202
  %v7205 = vunpack.c.l.s4 1983009808
  %v7206 = vunpack.c.0.s8 %v7205
  %v7207 = vlaneseq
  %v7208 = vshrl.u32 %v7207, 7
  %v7209 = vsub.s32 %v7206, %v7208
  %v7210 = vrot.slane %v7182, %v7209
  %s7215 = scalar_lea.vmem [#allocation3], 12
  %vm7216 = vcmask 123904
  %vm7217 = vsmask.f32 1282
  %vm7218 = vmand %vm7216, %vm7217
  %v7219 = vld [vmem:[%s7215] sm:$0x3]
  %v7220 = vsel %vm7218, %v7189, %v7219
  %7221 = vst [vmem:[%s7215] sm:$0x3] %v7220
  %v7222 = vld [vmem:[%s7215 + $0x2] sm:$0x3]
  %v7223 = vsel %vm7218, %v7196, %v7222
  %7224 = vst [vmem:[%s7215 + $0x2] sm:$0x3] %v7223
  %v7225 = vld [vmem:[%s7215 + $0x18] sm:$0x3]
  %v7226 = vsel %vm7218, %v7203, %v7225
  %7227 = vst [vmem:[%s7215 + $0x18] sm:$0x3] %v7226
  %v7228 = vld [vmem:[%s7215 + $0x1a] sm:$0x3]
  %v7229 = vsel %vm7218, %v7210, %v7228
  %7230 = vst [vmem:[%s7215 + $0x1a] sm:$0x3] %v7229
  %v7240 = vunpack.c.l.s4 1983009808
  %v7241 = vunpack.c.0.s8 %v7240
  %v7242 = vlaneseq
  %v7243 = vshrl.u32 %v7242, 7
  %v7244 = vsub.s32 %v7241, %v7243
  %v7245 = vrot.slane %v6983, %v7244
  %v7247 = vunpack.c.l.s4 1983009808
  %v7248 = vunpack.c.0.s8 %v7247
  %v7249 = vlaneseq
  %v7250 = vshrl.u32 %v7249, 7
  %v7251 = vsub.s32 %v7248, %v7250
  %v7252 = vrot.slane %v6984, %v7251
  %v7254 = vunpack.c.l.s4 1983009808
  %v7255 = vunpack.c.0.s8 %v7254
  %v7256 = vlaneseq
  %v7257 = vshrl.u32 %v7256, 7
  %v7258 = vsub.s32 %v7255, %v7257
  %v7259 = vrot.slane %v6987, %v7258
  %v7261 = vunpack.c.l.s4 1983009808
  %v7262 = vunpack.c.0.s8 %v7261
  %v7263 = vlaneseq
  %v7264 = vshrl.u32 %v7263, 7
  %v7265 = vsub.s32 %v7262, %v7264
  %v7266 = vrot.slane %v6988, %v7265
  %v7268 = vunpack.c.l.s4 1983009808
  %v7269 = vunpack.c.0.s8 %v7268
  %v7270 = vlaneseq
  %v7271 = vshrl.u32 %v7270, 7
  %v7272 = vsub.s32 %v7269, %v7271
  %v7273 = vrot.slane %v6991, %v7272
  %v7275 = vunpack.c.l.s4 1983009808
  %v7276 = vunpack.c.0.s8 %v7275
  %v7277 = vlaneseq
  %v7278 = vshrl.u32 %v7277, 7
  %v7279 = vsub.s32 %v7276, %v7278
  %v7280 = vrot.slane %v6992, %v7279
  %v7282 = vunpack.c.l.s4 1983009808
  %v7283 = vunpack.c.0.s8 %v7282
  %v7284 = vlaneseq
  %v7285 = vshrl.u32 %v7284, 7
  %v7286 = vsub.s32 %v7283, %v7285
  %v7287 = vrot.slane %v6995, %v7286
  %v7289 = vunpack.c.l.s4 1983009808
  %v7290 = vunpack.c.0.s8 %v7289
  %v7291 = vlaneseq
  %v7292 = vshrl.u32 %v7291, 7
  %v7293 = vsub.s32 %v7290, %v7292
  %v7294 = vrot.slane %v6996, %v7293
  %v7296 = vunpack.c.l.s4 1983009808
  %v7297 = vunpack.c.0.s8 %v7296
  %v7298 = vlaneseq
  %v7299 = vshrl.u32 %v7298, 7
  %v7300 = vsub.s32 %v7297, %v7299
  %v7301 = vrot.slane %v7245, %v7300
  %v7303 = vunpack.c.l.s4 1983009808
  %v7304 = vunpack.c.0.s8 %v7303
  %v7305 = vlaneseq
  %v7306 = vshrl.u32 %v7305, 7
  %v7307 = vsub.s32 %v7304, %v7306
  %v7308 = vrot.slane %v7252, %v7307
  %v7310 = vunpack.c.l.s4 1983009808
  %v7311 = vunpack.c.0.s8 %v7310
  %v7312 = vlaneseq
  %v7313 = vshrl.u32 %v7312, 7
  %v7314 = vsub.s32 %v7311, %v7313
  %v7315 = vrot.slane %v7259, %v7314
  %v7317 = vunpack.c.l.s4 1983009808
  %v7318 = vunpack.c.0.s8 %v7317
  %v7319 = vlaneseq
  %v7320 = vshrl.u32 %v7319, 7
  %v7321 = vsub.s32 %v7318, %v7320
  %v7322 = vrot.slane %v7266, %v7321
  %v7324 = vunpack.c.l.s4 1983009808
  %v7325 = vunpack.c.0.s8 %v7324
  %v7326 = vlaneseq
  %v7327 = vshrl.u32 %v7326, 7
  %v7328 = vsub.s32 %v7325, %v7327
  %v7329 = vrot.slane %v7273, %v7328
  %v7331 = vunpack.c.l.s4 1983009808
  %v7332 = vunpack.c.0.s8 %v7331
  %v7333 = vlaneseq
  %v7334 = vshrl.u32 %v7333, 7
  %v7335 = vsub.s32 %v7332, %v7334
  %v7336 = vrot.slane %v7280, %v7335
  %v7338 = vunpack.c.l.s4 1983009808
  %v7339 = vunpack.c.0.s8 %v7338
  %v7340 = vlaneseq
  %v7341 = vshrl.u32 %v7340, 7
  %v7342 = vsub.s32 %v7339, %v7341
  %v7343 = vrot.slane %v7287, %v7342
  %v7345 = vunpack.c.l.s4 1983009808
  %v7346 = vunpack.c.0.s8 %v7345
  %v7347 = vlaneseq
  %v7348 = vshrl.u32 %v7347, 7
  %v7349 = vsub.s32 %v7346, %v7348
  %v7350 = vrot.slane %v7294, %v7349
  %v7351 = vunpack.c.l.b16 %v7301
  %v7352 = vunpack.c.l.b16 %v7308
  %v7353 = vunpack.c.l.b16 %v7315
  %v7354 = vunpack.c.l.b16 %v7322
  %v7355 = vunpack.c.l.b16 %v7329
  %v7356 = vunpack.c.l.b16 %v7336
  %v7357 = vunpack.c.l.b16 %v7343
  %v7358 = vunpack.c.l.b16 %v7350
  %v7359 = vrot.slane %v7352, 7
  %v7360 = vsel %vm3848, %v7359, %v7351
  %v7361 = vrot.slane %v7354, 7
  %v7362 = vsel %vm3848, %v7361, %v7353
  %v7363 = vrot.slane %v7356, 7
  %v7364 = vsel %vm3848, %v7363, %v7355
  %v7365 = vrot.slane %v7358, 7
  %v7366 = vsel %vm3848, %v7365, %v7357
  %v7367 = vpack.c.b16 %v7360, %v7360
  %v7368 = vpack.c.b16 %v7362, %v7362
  %v7369 = vpack.c.b16 %v7364, %v7364
  %v7370 = vpack.c.b16 %v7366, %v7366
  %v7372 = vunpack.c.l.s4 1983009808
  %v7373 = vunpack.c.0.s8 %v7372
  %v7374 = vlaneseq
  %v7375 = vshrl.u32 %v7374, 7
  %v7376 = vsub.s32 %v7373, %v7375
  %v7377 = vrot.slane %v7367, %v7376
  %v7379 = vunpack.c.l.s4 1983009808
  %v7380 = vunpack.c.0.s8 %v7379
  %v7381 = vlaneseq
  %v7382 = vshrl.u32 %v7381, 7
  %v7383 = vsub.s32 %v7380, %v7382
  %v7384 = vrot.slane %v7368, %v7383
  %v7386 = vunpack.c.l.s4 1983009808
  %v7387 = vunpack.c.0.s8 %v7386
  %v7388 = vlaneseq
  %v7389 = vshrl.u32 %v7388, 7
  %v7390 = vsub.s32 %v7387, %v7389
  %v7391 = vrot.slane %v7369, %v7390
  %v7393 = vunpack.c.l.s4 1983009808
  %v7394 = vunpack.c.0.s8 %v7393
  %v7395 = vlaneseq
  %v7396 = vshrl.u32 %v7395, 7
  %v7397 = vsub.s32 %v7394, %v7396
  %v7398 = vrot.slane %v7370, %v7397
  %s7403 = scalar_lea.vmem [#allocation3], 8
  %7404 = vst.msk [vmem:[%s7403] sm:$0x1] %vm7170, %v7377
  %7405 = vst.msk [vmem:[%s7403 + $0x2] sm:$0x1] %vm7170, %v7384
  %7406 = vst.msk [vmem:[%s7403 + $0x18] sm:$0x1] %vm7170, %v7391
  %7407 = vst.msk [vmem:[%s7403 + $0x1a] sm:$0x1] %vm7170, %v7398
  %v7408 = vsel %vm3851, %v7359, %v7351
  %v7409 = vsel %vm3851, %v7361, %v7353
  %v7410 = vsel %vm3851, %v7363, %v7355
  %v7411 = vsel %vm3851, %v7365, %v7357
  %v7412 = vpack.c.b16 %v7408, %v7408
  %v7413 = vpack.c.b16 %v7409, %v7409
  %v7414 = vpack.c.b16 %v7410, %v7410
  %v7415 = vpack.c.b16 %v7411, %v7411
  %v7417 = vunpack.c.l.s4 1983009808
  %v7418 = vunpack.c.0.s8 %v7417
  %v7419 = vlaneseq
  %v7420 = vshrl.u32 %v7419, 7
  %v7421 = vsub.s32 %v7418, %v7420
  %v7422 = vrot.slane %v7412, %v7421
  %v7424 = vunpack.c.l.s4 1983009808
  %v7425 = vunpack.c.0.s8 %v7424
  %v7426 = vlaneseq
  %v7427 = vshrl.u32 %v7426, 7
  %v7428 = vsub.s32 %v7425, %v7427
  %v7429 = vrot.slane %v7413, %v7428
  %v7431 = vunpack.c.l.s4 1983009808
  %v7432 = vunpack.c.0.s8 %v7431
  %v7433 = vlaneseq
  %v7434 = vshrl.u32 %v7433, 7
  %v7435 = vsub.s32 %v7432, %v7434
  %v7436 = vrot.slane %v7414, %v7435
  %v7438 = vunpack.c.l.s4 1983009808
  %v7439 = vunpack.c.0.s8 %v7438
  %v7440 = vlaneseq
  %v7441 = vshrl.u32 %v7440, 7
  %v7442 = vsub.s32 %v7439, %v7441
  %v7443 = vrot.slane %v7415, %v7442
  %s7448 = scalar_lea.vmem [#allocation3], 2
  %v7449 = vld [vmem:[%s7448] sm:$0x3]
  %v7450 = vsel %vm7218, %v7422, %v7449
  %7451 = vst [vmem:[%s7448] sm:$0x3] %v7450
  %v7452 = vld [vmem:[%s7448 + $0x2] sm:$0x3]
  %v7453 = vsel %vm7218, %v7429, %v7452
  %7454 = vst [vmem:[%s7448 + $0x2] sm:$0x3] %v7453
  %v7455 = vld [vmem:[%s7448 + $0x18] sm:$0x3]
  %v7456 = vsel %vm7218, %v7436, %v7455
  %7457 = vst [vmem:[%s7448 + $0x18] sm:$0x3] %v7456
  %v7458 = vld [vmem:[%s7448 + $0x1a] sm:$0x3]
  %v7459 = vsel %vm7218, %v7443, %v7458
  %7460 = vst [vmem:[%s7448 + $0x1a] sm:$0x3] %v7459
  %vm7461 = vmand %vm7216, %vm4509
  %v7462 = vld [vmem:[#allocation3] sm:$0x3]
  %v7463 = vsel %vm7461, 0, %v7462
  %7464 = vst [vmem:[#allocation3] sm:$0x3] %v7463
  %v7465 = vld [vmem:[#allocation3 + $0x18] sm:$0x3]
  %v7466 = vsel %vm7461, 0, %v7465
  %7467 = vst [vmem:[#allocation3 + $0x18] sm:$0x3] %v7466
  %vm7468 = vcmask 122880
  %vm7469 = vmand %vm7468, %vm4268
  %v7470 = vld [vmem:[#allocation3] sm:$0x1]
  %v7471 = vsel %vm7469, 0, %v7470
  %7472 = vst [vmem:[#allocation3] sm:$0x1] %v7471
  %v7473 = vld [vmem:[#allocation3 + $0x2] sm:$0x1]
  %v7474 = vsel %vm7469, 0, %v7473
  %7475 = vst [vmem:[#allocation3 + $0x2] sm:$0x1] %v7474
  %v7476 = vld [vmem:[#allocation3 + $0x4] sm:$0x1]
  %v7477 = vsel %vm7469, 0, %v7476
  %7478 = vst [vmem:[#allocation3 + $0x4] sm:$0x1] %v7477
  %v7479 = vld [vmem:[#allocation3 + $0x18] sm:$0x1]
  %v7480 = vsel %vm7469, 0, %v7479
  %7481 = vst [vmem:[#allocation3 + $0x18] sm:$0x1] %v7480
  %v7482 = vld [vmem:[#allocation3 + $0x1a] sm:$0x1]
  %v7483 = vsel %vm7469, 0, %v7482
  %7484 = vst [vmem:[#allocation3 + $0x1a] sm:$0x1] %v7483
  %v7485 = vld [vmem:[#allocation3 + $0x1c] sm:$0x1]
  %v7486 = vsel %vm7469, 0, %v7485
  %7487 = vst [vmem:[#allocation3 + $0x1c] sm:$0x1] %v7486
  %s7488 = scalar_lea.vmem [#allocation3], 6
  %v7489 = vld [vmem:[%s7488] sm:$0x3]
  %v7490 = vsel %vm7461, 0, %v7489
  %7491 = vst [vmem:[%s7488] sm:$0x3] %v7490
  %v7492 = vld [vmem:[%s7488 + $0x18] sm:$0x3]
  %v7493 = vsel %vm7461, 0, %v7492
  %7494 = vst [vmem:[%s7488 + $0x18] sm:$0x3] %v7493
  %vm7495 = vcmask 123905
  %vm7496 = vmand %vm7495, %vm4509
  %v7497 = vld [vmem:[%s7488] sm:$0x2]
  %v7498 = vsel %vm7496, 0, %v7497
  %7499 = vst [vmem:[%s7488] sm:$0x2] %v7498
  %v7500 = vld [vmem:[%s7488 + $0x2] sm:$0x2]
  %v7501 = vsel %vm7496, 0, %v7500
  %7502 = vst [vmem:[%s7488 + $0x2] sm:$0x2] %v7501
  %v7503 = vld [vmem:[%s7488 + $0x4] sm:$0x2]
  %v7504 = vsel %vm7496, 0, %v7503
  %7505 = vst [vmem:[%s7488 + $0x4] sm:$0x2] %v7504
  %v7506 = vld [vmem:[%s7488 + $0x18] sm:$0x2]
  %v7507 = vsel %vm7496, 0, %v7506
  %7508 = vst [vmem:[%s7488 + $0x18] sm:$0x2] %v7507
  %v7509 = vld [vmem:[%s7488 + $0x1a] sm:$0x2]
  %v7510 = vsel %vm7496, 0, %v7509
  %7511 = vst [vmem:[%s7488 + $0x1a] sm:$0x2] %v7510
  %v7512 = vld [vmem:[%s7488 + $0x1c] sm:$0x2]
  %v7513 = vsel %vm7496, 0, %v7512
  %7514 = vst [vmem:[%s7488 + $0x1c] sm:$0x2] %v7513
  %s7515 = scalar_lea.vmem [#allocation3], 16
  %v7516 = vld [vmem:[%s7515] sm:$0x3]
  %v7517 = vsel %vm7461, 0, %v7516
  %7518 = vst [vmem:[%s7515] sm:$0x3] %v7517
  %v7519 = vld [vmem:[%s7515 + $0x18] sm:$0x3]
  %v7520 = vsel %vm7461, 0, %v7519
  %7521 = vst [vmem:[%s7515 + $0x18] sm:$0x3] %v7520
  %v7522 = vld [vmem:[%s7215] sm:$0x1]
  %v7523 = vsel %vm7469, 0, %v7522
  %7524 = vst [vmem:[%s7215] sm:$0x1] %v7523
  %v7525 = vld [vmem:[%s7215 + $0x2] sm:$0x1]
  %v7526 = vsel %vm7469, 0, %v7525
  %7527 = vst [vmem:[%s7215 + $0x2] sm:$0x1] %v7526
  %v7528 = vld [vmem:[%s7215 + $0x4] sm:$0x1]
  %v7529 = vsel %vm7469, 0, %v7528
  %7530 = vst [vmem:[%s7215 + $0x4] sm:$0x1] %v7529
  %v7531 = vld [vmem:[%s7215 + $0x18] sm:$0x1]
  %v7532 = vsel %vm7469, 0, %v7531
  %7533 = vst [vmem:[%s7215 + $0x18] sm:$0x1] %v7532
  %v7534 = vld [vmem:[%s7215 + $0x1a] sm:$0x1]
  %v7535 = vsel %vm7469, 0, %v7534
  %7536 = vst [vmem:[%s7215 + $0x1a] sm:$0x1] %v7535
  %v7537 = vld [vmem:[%s7215 + $0x1c] sm:$0x1]
  %v7538 = vsel %vm7469, 0, %v7537
  %7539 = vst [vmem:[%s7215 + $0x1c] sm:$0x1] %v7538
  %s7540 = scalar_lea.vmem [#allocation3], 22
  %v7541 = vld [vmem:[%s7540] sm:$0x3]
  %v7542 = vsel %vm7461, 0, %v7541
  %7543 = vst [vmem:[%s7540] sm:$0x3] %v7542
  %v7544 = vld [vmem:[%s7540 + $0x18] sm:$0x3]
  %v7545 = vsel %vm7461, 0, %v7544
  %7546 = vst [vmem:[%s7540 + $0x18] sm:$0x3] %v7545
  %v7547 = vld [vmem:[%s7169] sm:$0x2]
  %v7548 = vsel %vm7496, 0, %v7547
  %7549 = vst [vmem:[%s7169] sm:$0x2] %v7548
  %v7550 = vld [vmem:[%s7169 + $0x2] sm:$0x2]
  %v7551 = vsel %vm7496, 0, %v7550
  %7552 = vst [vmem:[%s7169 + $0x2] sm:$0x2] %v7551
  %v7553 = vld [vmem:[%s7169 + $0x4] sm:$0x2]
  %v7554 = vsel %vm7496, 0, %v7553
  %7555 = vst [vmem:[%s7169 + $0x4] sm:$0x2] %v7554
  %v7556 = vld [vmem:[%s7169 + $0x18] sm:$0x2]
  %v7557 = vsel %vm7496, 0, %v7556
  %7558 = vst [vmem:[%s7169 + $0x18] sm:$0x2] %v7557
  %v7559 = vld [vmem:[%s7169 + $0x1a] sm:$0x2]
  %v7560 = vsel %vm7496, 0, %v7559
  %7561 = vst [vmem:[%s7169 + $0x1a] sm:$0x2] %v7560
  %v7562 = vld [vmem:[%s7169 + $0x1c] sm:$0x2]
  %v7563 = vsel %vm7496, 0, %v7562
  %7564 = vst [vmem:[%s7169 + $0x1c] sm:$0x2] %v7563
  %v7565 = vld [vmem:[#allocation3] sm:$0x1]
  %v7566 = vld [vmem:[#allocation3 + $0x2] sm:$0x1]
  %v7567 = vld [vmem:[#allocation3 + $0x18] sm:$0x1]
  %v7568 = vld [vmem:[#allocation3 + $0x1a] sm:$0x1]
  %v7569 = vld [vmem:[%s7488] sm:$0x1]
  %v7570 = vld [vmem:[%s7488 + $0x2] sm:$0x1]
  %v7571 = vld [vmem:[%s7488 + $0x18] sm:$0x1]
  %v7572 = vld [vmem:[%s7488 + $0x1a] sm:$0x1]
  %v7573 = vld [vmem:[#allocation3] sm:$0x3]
  %v7574 = vld [vmem:[#allocation3 + $0x2] sm:$0x3]
  %v7575 = vld [vmem:[#allocation3 + $0x18] sm:$0x3]
  %v7576 = vld [vmem:[#allocation3 + $0x1a] sm:$0x3]
  %v7582 = vunpack.c.l.s4 1966171168
  %v7583 = vunpack.c.0.s8 %v7582
  %v7584 = vlaneseq
  %v7585 = vshrl.u32 %v7584, 7
  %v7586 = vsub.s32 %v7583, %v7585
  %v7587 = vrot.slane %v7573, %v7586
  %v7588 = vcombine.high %v7587, %v7587
  %v7590 = vunpack.c.l.s4 1966171168
  %v7591 = vunpack.c.0.s8 %v7590
  %v7592 = vlaneseq
  %v7593 = vshrl.u32 %v7592, 7
  %v7594 = vsub.s32 %v7591, %v7593
  %v7595 = vrot.slane %v7574, %v7594
  %v7596 = vcombine.high %v7595, %v7595
  %v7598 = vunpack.c.l.s4 1966171168
  %v7599 = vunpack.c.0.s8 %v7598
  %v7600 = vlaneseq
  %v7601 = vshrl.u32 %v7600, 7
  %v7602 = vsub.s32 %v7599, %v7601
  %v7603 = vrot.slane %v7575, %v7602
  %v7604 = vcombine.high %v7603, %v7603
  %v7606 = vunpack.c.l.s4 1966171168
  %v7607 = vunpack.c.0.s8 %v7606
  %v7608 = vlaneseq
  %v7609 = vshrl.u32 %v7608, 7
  %v7610 = vsub.s32 %v7607, %v7609
  %v7611 = vrot.slane %v7576, %v7610
  %v7612 = vcombine.high %v7611, %v7611
  %vm7613 = vsmask.f32 1284
  %vm7614 = vmor %vm4268, %vm7613
  %vm7615 = vsmask.f32 2312
  %vm7616 = vmor %vm7614, %vm7615
  %vm7617 = vsmask.f32 3340
  %vm7618 = vmor %vm7616, %vm7617
  %vm7619 = vsmask.f32 4368
  %vm7620 = vmor %vm7618, %vm7619
  %vm7621 = vsmask.f32 5396
  %vm7622 = vmor %vm7620, %vm7621
  %vm7623 = vsmask.f32 6424
  %vm7624 = vmor %vm7622, %vm7623
  %vm7625 = vsmask.f32 7452
  %vm7626 = vmor %vm7624, %vm7625
  %v7628 = vshrl.u32 %v7587, 16
  %v7630 = vrot.slane %v7628, 7
  %v7631 = vrot.slane %v7630, 1
  %v7633 = vshll.u32 %v7588, 16
  %v7635 = vsel %vm7626, %v7631, %v7633
  %v7637 = vshrl.u32 %v7595, 16
  %v7639 = vrot.slane %v7637, 7
  %v7640 = vrot.slane %v7639, 1
  %v7642 = vshll.u32 %v7596, 16
  %v7644 = vsel %vm7626, %v7640, %v7642
  %v7646 = vshrl.u32 %v7603, 16
  %v7648 = vrot.slane %v7646, 7
  %v7649 = vrot.slane %v7648, 1
  %v7651 = vshll.u32 %v7604, 16
  %v7653 = vsel %vm7626, %v7649, %v7651
  %v7655 = vshrl.u32 %v7611, 16
  %v7657 = vrot.slane %v7655, 7
  %v7658 = vrot.slane %v7657, 1
  %v7660 = vshll.u32 %v7612, 16
  %v7662 = vsel %vm7626, %v7658, %v7660
  %v7663 = vld [vmem:[%s7488] sm:$0x3]
  %v7664 = vld [vmem:[%s7488 + $0x2] sm:$0x3]
  %v7665 = vld [vmem:[%s7488 + $0x18] sm:$0x3]
  %v7666 = vld [vmem:[%s7488 + $0x1a] sm:$0x3]
  %v7672 = vunpack.c.l.s4 1966171168
  %v7673 = vunpack.c.0.s8 %v7672
  %v7674 = vlaneseq
  %v7675 = vshrl.u32 %v7674, 7
  %v7676 = vsub.s32 %v7673, %v7675
  %v7677 = vrot.slane %v7663, %v7676
  %v7678 = vcombine.high %v7677, %v7677
  %v7680 = vunpack.c.l.s4 1966171168
  %v7681 = vunpack.c.0.s8 %v7680
  %v7682 = vlaneseq
  %v7683 = vshrl.u32 %v7682, 7
  %v7684 = vsub.s32 %v7681, %v7683
  %v7685 = vrot.slane %v7664, %v7684
  %v7686 = vcombine.high %v7685, %v7685
  %v7688 = vunpack.c.l.s4 1966171168
  %v7689 = vunpack.c.0.s8 %v7688
  %v7690 = vlaneseq
  %v7691 = vshrl.u32 %v7690, 7
  %v7692 = vsub.s32 %v7689, %v7691
  %v7693 = vrot.slane %v7665, %v7692
  %v7694 = vcombine.high %v7693, %v7693
  %v7696 = vunpack.c.l.s4 1966171168
  %v7697 = vunpack.c.0.s8 %v7696
  %v7698 = vlaneseq
  %v7699 = vshrl.u32 %v7698, 7
  %v7700 = vsub.s32 %v7697, %v7699
  %v7701 = vrot.slane %v7666, %v7700
  %v7702 = vcombine.high %v7701, %v7701
  %v7704 = vshrl.u32 %v7677, 16
  %v7706 = vrot.slane %v7704, 7
  %v7707 = vrot.slane %v7706, 1
  %v7709 = vshll.u32 %v7678, 16
  %v7711 = vsel %vm7626, %v7707, %v7709
  %v7713 = vshrl.u32 %v7685, 16
  %v7715 = vrot.slane %v7713, 7
  %v7716 = vrot.slane %v7715, 1
  %v7718 = vshll.u32 %v7686, 16
  %v7720 = vsel %vm7626, %v7716, %v7718
  %v7722 = vshrl.u32 %v7693, 16
  %v7724 = vrot.slane %v7722, 7
  %v7725 = vrot.slane %v7724, 1
  %v7727 = vshll.u32 %v7694, 16
  %v7729 = vsel %vm7626, %v7725, %v7727
  %v7731 = vshrl.u32 %v7701, 16
  %v7733 = vrot.slane %v7731, 7
  %v7734 = vrot.slane %v7733, 1
  %v7736 = vshll.u32 %v7702, 16
  %v7738 = vsel %vm7626, %v7734, %v7736
  %v7739 = vld [vmem:[%s7215] sm:$0x1]
  %v7740 = vld [vmem:[%s7215 + $0x2] sm:$0x1]
  %v7741 = vld [vmem:[%s7215 + $0x18] sm:$0x1]
  %v7742 = vld [vmem:[%s7215 + $0x1a] sm:$0x1]
  %v7743 = vld [vmem:[%s7169] sm:$0x1]
  %v7744 = vld [vmem:[%s7169 + $0x2] sm:$0x1]
  %v7745 = vld [vmem:[%s7169 + $0x18] sm:$0x1]
  %v7746 = vld [vmem:[%s7169 + $0x1a] sm:$0x1]
  %v7747 = vld [vmem:[%s7215] sm:$0x3]
  %v7748 = vld [vmem:[%s7215 + $0x2] sm:$0x3]
  %v7749 = vld [vmem:[%s7215 + $0x18] sm:$0x3]
  %v7750 = vld [vmem:[%s7215 + $0x1a] sm:$0x3]
  %v7756 = vunpack.c.l.s4 1966171168
  %v7757 = vunpack.c.0.s8 %v7756
  %v7758 = vlaneseq
  %v7759 = vshrl.u32 %v7758, 7
  %v7760 = vsub.s32 %v7757, %v7759
  %v7761 = vrot.slane %v7747, %v7760
  %v7762 = vcombine.high %v7761, %v7761
  %v7764 = vunpack.c.l.s4 1966171168
  %v7765 = vunpack.c.0.s8 %v7764
  %v7766 = vlaneseq
  %v7767 = vshrl.u32 %v7766, 7
  %v7768 = vsub.s32 %v7765, %v7767
  %v7769 = vrot.slane %v7748, %v7768
  %v7770 = vcombine.high %v7769, %v7769
  %v7772 = vunpack.c.l.s4 1966171168
  %v7773 = vunpack.c.0.s8 %v7772
  %v7774 = vlaneseq
  %v7775 = vshrl.u32 %v7774, 7
  %v7776 = vsub.s32 %v7773, %v7775
  %v7777 = vrot.slane %v7749, %v7776
  %v7778 = vcombine.high %v7777, %v7777
  %v7780 = vunpack.c.l.s4 1966171168
  %v7781 = vunpack.c.0.s8 %v7780
  %v7782 = vlaneseq
  %v7783 = vshrl.u32 %v7782, 7
  %v7784 = vsub.s32 %v7781, %v7783
  %v7785 = vrot.slane %v7750, %v7784
  %v7786 = vcombine.high %v7785, %v7785
  %v7788 = vshrl.u32 %v7761, 16
  %v7790 = vrot.slane %v7788, 7
  %v7791 = vrot.slane %v7790, 1
  %v7793 = vshll.u32 %v7762, 16
  %v7795 = vsel %vm7626, %v7791, %v7793
  %v7797 = vshrl.u32 %v7769, 16
  %v7799 = vrot.slane %v7797, 7
  %v7800 = vrot.slane %v7799, 1
  %v7802 = vshll.u32 %v7770, 16
  %v7804 = vsel %vm7626, %v7800, %v7802
  %v7806 = vshrl.u32 %v7777, 16
  %v7808 = vrot.slane %v7806, 7
  %v7809 = vrot.slane %v7808, 1
  %v7811 = vshll.u32 %v7778, 16
  %v7813 = vsel %vm7626, %v7809, %v7811
  %v7815 = vshrl.u32 %v7785, 16
  %v7817 = vrot.slane %v7815, 7
  %v7818 = vrot.slane %v7817, 1
  %v7820 = vshll.u32 %v7786, 16
  %v7822 = vsel %vm7626, %v7818, %v7820
  %v7823 = vld [vmem:[%s7169] sm:$0x3]
  %v7824 = vld [vmem:[%s7169 + $0x2] sm:$0x3]
  %v7825 = vld [vmem:[%s7169 + $0x18] sm:$0x3]
  %v7826 = vld [vmem:[%s7169 + $0x1a] sm:$0x3]
  %v7832 = vunpack.c.l.s4 1966171168
  %v7833 = vunpack.c.0.s8 %v7832
  %v7834 = vlaneseq
  %v7835 = vshrl.u32 %v7834, 7
  %v7836 = vsub.s32 %v7833, %v7835
  %v7837 = vrot.slane %v7823, %v7836
  %v7838 = vcombine.high %v7837, %v7837
  %v7840 = vunpack.c.l.s4 1966171168
  %v7841 = vunpack.c.0.s8 %v7840
  %v7842 = vlaneseq
  %v7843 = vshrl.u32 %v7842, 7
  %v7844 = vsub.s32 %v7841, %v7843
  %v7845 = vrot.slane %v7824, %v7844
  %v7846 = vcombine.high %v7845, %v7845
  %v7848 = vunpack.c.l.s4 1966171168
  %v7849 = vunpack.c.0.s8 %v7848
  %v7850 = vlaneseq
  %v7851 = vshrl.u32 %v7850, 7
  %v7852 = vsub.s32 %v7849, %v7851
  %v7853 = vrot.slane %v7825, %v7852
  %v7854 = vcombine.high %v7853, %v7853
  %v7856 = vunpack.c.l.s4 1966171168
  %v7857 = vunpack.c.0.s8 %v7856
  %v7858 = vlaneseq
  %v7859 = vshrl.u32 %v7858, 7
  %v7860 = vsub.s32 %v7857, %v7859
  %v7861 = vrot.slane %v7826, %v7860
  %v7862 = vcombine.high %v7861, %v7861
  %v7864 = vshrl.u32 %v7837, 16
  %v7866 = vrot.slane %v7864, 7
  %v7867 = vrot.slane %v7866, 1
  %v7869 = vshll.u32 %v7838, 16
  %v7871 = vsel %vm7626, %v7867, %v7869
  %v7873 = vshrl.u32 %v7845, 16
  %v7875 = vrot.slane %v7873, 7
  %v7876 = vrot.slane %v7875, 1
  %v7878 = vshll.u32 %v7846, 16
  %v7880 = vsel %vm7626, %v7876, %v7878
  %v7882 = vshrl.u32 %v7853, 16
  %v7884 = vrot.slane %v7882, 7
  %v7885 = vrot.slane %v7884, 1
  %v7887 = vshll.u32 %v7854, 16
  %v7889 = vsel %vm7626, %v7885, %v7887
  %v7891 = vshrl.u32 %v7861, 16
  %v7893 = vrot.slane %v7891, 7
  %v7894 = vrot.slane %v7893, 1
  %v7896 = vshll.u32 %v7862, 16
  %v7898 = vsel %vm7626, %v7894, %v7896
  %v7899 = vld [vmem:[%s7448] sm:$0x1]
  %v7900 = vld [vmem:[%s7448 + $0x2] sm:$0x1]
  %v7901 = vld [vmem:[%s7448 + $0x18] sm:$0x1]
  %v7902 = vld [vmem:[%s7448 + $0x1a] sm:$0x1]
  %v7903 = vld [vmem:[%s7403] sm:$0x1]
  %v7904 = vld [vmem:[%s7403 + $0x2] sm:$0x1]
  %v7905 = vld [vmem:[%s7403 + $0x18] sm:$0x1]
  %v7906 = vld [vmem:[%s7403 + $0x1a] sm:$0x1]
  %v7907 = vld [vmem:[%s7448] sm:$0x3]
  %v7908 = vld [vmem:[%s7448 + $0x2] sm:$0x3]
  %v7909 = vld [vmem:[%s7448 + $0x18] sm:$0x3]
  %v7910 = vld [vmem:[%s7448 + $0x1a] sm:$0x3]
  %v7916 = vunpack.c.l.s4 1966171168
  %v7917 = vunpack.c.0.s8 %v7916
  %v7918 = vlaneseq
  %v7919 = vshrl.u32 %v7918, 7
  %v7920 = vsub.s32 %v7917, %v7919
  %v7921 = vrot.slane %v7907, %v7920
  %v7922 = vcombine.high %v7921, %v7921
  %v7924 = vunpack.c.l.s4 1966171168
  %v7925 = vunpack.c.0.s8 %v7924
  %v7926 = vlaneseq
  %v7927 = vshrl.u32 %v7926, 7
  %v7928 = vsub.s32 %v7925, %v7927
  %v7929 = vrot.slane %v7908, %v7928
  %v7930 = vcombine.high %v7929, %v7929
  %v7932 = vunpack.c.l.s4 1966171168
  %v7933 = vunpack.c.0.s8 %v7932
  %v7934 = vlaneseq
  %v7935 = vshrl.u32 %v7934, 7
  %v7936 = vsub.s32 %v7933, %v7935
  %v7937 = vrot.slane %v7909, %v7936
  %v7938 = vcombine.high %v7937, %v7937
  %v7940 = vunpack.c.l.s4 1966171168
  %v7941 = vunpack.c.0.s8 %v7940
  %v7942 = vlaneseq
  %v7943 = vshrl.u32 %v7942, 7
  %v7944 = vsub.s32 %v7941, %v7943
  %v7945 = vrot.slane %v7910, %v7944
  %v7946 = vcombine.high %v7945, %v7945
  %v7948 = vshrl.u32 %v7921, 16
  %v7950 = vrot.slane %v7948, 7
  %v7951 = vrot.slane %v7950, 1
  %v7953 = vshll.u32 %v7922, 16
  %v7955 = vsel %vm7626, %v7951, %v7953
  %v7957 = vshrl.u32 %v7929, 16
  %v7959 = vrot.slane %v7957, 7
  %v7960 = vrot.slane %v7959, 1
  %v7962 = vshll.u32 %v7930, 16
  %v7964 = vsel %vm7626, %v7960, %v7962
  %v7966 = vshrl.u32 %v7937, 16
  %v7968 = vrot.slane %v7966, 7
  %v7969 = vrot.slane %v7968, 1
  %v7971 = vshll.u32 %v7938, 16
  %v7973 = vsel %vm7626, %v7969, %v7971
  %v7975 = vshrl.u32 %v7945, 16
  %v7977 = vrot.slane %v7975, 7
  %v7978 = vrot.slane %v7977, 1
  %v7980 = vshll.u32 %v7946, 16
  %v7982 = vsel %vm7626, %v7978, %v7980
  %v7983 = vld [vmem:[%s7403] sm:$0x3]
  %v7984 = vld [vmem:[%s7403 + $0x2] sm:$0x3]
  %v7985 = vld [vmem:[%s7403 + $0x18] sm:$0x3]
  %v7986 = vld [vmem:[%s7403 + $0x1a] sm:$0x3]
  %v7992 = vunpack.c.l.s4 1966171168
  %v7993 = vunpack.c.0.s8 %v7992
  %v7994 = vlaneseq
  %v7995 = vshrl.u32 %v7994, 7
  %v7996 = vsub.s32 %v7993, %v7995
  %v7997 = vrot.slane %v7983, %v7996
  %v7998 = vcombine.high %v7997, %v7997
  %v8000 = vunpack.c.l.s4 1966171168
  %v8001 = vunpack.c.0.s8 %v8000
  %v8002 = vlaneseq
  %v8003 = vshrl.u32 %v8002, 7
  %v8004 = vsub.s32 %v8001, %v8003
  %v8005 = vrot.slane %v7984, %v8004
  %v8006 = vcombine.high %v8005, %v8005
  %v8008 = vunpack.c.l.s4 1966171168
  %v8009 = vunpack.c.0.s8 %v8008
  %v8010 = vlaneseq
  %v8011 = vshrl.u32 %v8010, 7
  %v8012 = vsub.s32 %v8009, %v8011
  %v8013 = vrot.slane %v7985, %v8012
  %v8014 = vcombine.high %v8013, %v8013
  %v8016 = vunpack.c.l.s4 1966171168
  %v8017 = vunpack.c.0.s8 %v8016
  %v8018 = vlaneseq
  %v8019 = vshrl.u32 %v8018, 7
  %v8020 = vsub.s32 %v8017, %v8019
  %v8021 = vrot.slane %v7986, %v8020
  %v8022 = vcombine.high %v8021, %v8021
  %v8024 = vshrl.u32 %v7997, 16
  %v8026 = vrot.slane %v8024, 7
  %v8027 = vrot.slane %v8026, 1
  %v8029 = vshll.u32 %v7998, 16
  %v8031 = vsel %vm7626, %v8027, %v8029
  %v8033 = vshrl.u32 %v8005, 16
  %v8035 = vrot.slane %v8033, 7
  %v8036 = vrot.slane %v8035, 1
  %v8038 = vshll.u32 %v8006, 16
  %v8040 = vsel %vm7626, %v8036, %v8038
  %v8042 = vshrl.u32 %v8013, 16
  %v8044 = vrot.slane %v8042, 7
  %v8045 = vrot.slane %v8044, 1
  %v8047 = vshll.u32 %v8014, 16
  %v8049 = vsel %vm7626, %v8045, %v8047
  %v8051 = vshrl.u32 %v8021, 16
  %v8053 = vrot.slane %v8051, 7
  %v8054 = vrot.slane %v8053, 1
  %v8056 = vshll.u32 %v8022, 16
  %v8058 = vsel %vm7626, %v8054, %v8056
  %s8059 = scalar_lea.vmem [#allocation3], 14
  %v8060 = vld [vmem:[%s8059] sm:$0x1]
  %v8061 = vld [vmem:[%s8059 + $0x2] sm:$0x1]
  %v8062 = vld [vmem:[%s8059 + $0x18] sm:$0x1]
  %v8063 = vld [vmem:[%s8059 + $0x1a] sm:$0x1]
  %s8064 = scalar_lea.vmem [#allocation3], 20
  %v8065 = vld [vmem:[%s8064] sm:$0x1]
  %v8066 = vld [vmem:[%s8064 + $0x2] sm:$0x1]
  %v8067 = vld [vmem:[%s8064 + $0x18] sm:$0x1]
  %v8068 = vld [vmem:[%s8064 + $0x1a] sm:$0x1]
  %v8069 = vld [vmem:[%s8059] sm:$0x3]
  %v8070 = vld [vmem:[%s8059 + $0x2] sm:$0x3]
  %v8071 = vld [vmem:[%s8059 + $0x18] sm:$0x3]
  %v8072 = vld [vmem:[%s8059 + $0x1a] sm:$0x3]
  %v8078 = vunpack.c.l.s4 1966171168
  %v8079 = vunpack.c.0.s8 %v8078
  %v8080 = vlaneseq
  %v8081 = vshrl.u32 %v8080, 7
  %v8082 = vsub.s32 %v8079, %v8081
  %v8083 = vrot.slane %v8069, %v8082
  %v8084 = vcombine.high %v8083, %v8083
  %v8086 = vunpack.c.l.s4 1966171168
  %v8087 = vunpack.c.0.s8 %v8086
  %v8088 = vlaneseq
  %v8089 = vshrl.u32 %v8088, 7
  %v8090 = vsub.s32 %v8087, %v8089
  %v8091 = vrot.slane %v8070, %v8090
  %v8092 = vcombine.high %v8091, %v8091
  %v8094 = vunpack.c.l.s4 1966171168
  %v8095 = vunpack.c.0.s8 %v8094
  %v8096 = vlaneseq
  %v8097 = vshrl.u32 %v8096, 7
  %v8098 = vsub.s32 %v8095, %v8097
  %v8099 = vrot.slane %v8071, %v8098
  %v8100 = vcombine.high %v8099, %v8099
  %v8102 = vunpack.c.l.s4 1966171168
  %v8103 = vunpack.c.0.s8 %v8102
  %v8104 = vlaneseq
  %v8105 = vshrl.u32 %v8104, 7
  %v8106 = vsub.s32 %v8103, %v8105
  %v8107 = vrot.slane %v8072, %v8106
  %v8108 = vcombine.high %v8107, %v8107
  %v8110 = vshrl.u32 %v8083, 16
  %v8112 = vrot.slane %v8110, 7
  %v8113 = vrot.slane %v8112, 1
  %v8115 = vshll.u32 %v8084, 16
  %v8117 = vsel %vm7626, %v8113, %v8115
  %v8119 = vshrl.u32 %v8091, 16
  %v8121 = vrot.slane %v8119, 7
  %v8122 = vrot.slane %v8121, 1
  %v8124 = vshll.u32 %v8092, 16
  %v8126 = vsel %vm7626, %v8122, %v8124
  %v8128 = vshrl.u32 %v8099, 16
  %v8130 = vrot.slane %v8128, 7
  %v8131 = vrot.slane %v8130, 1
  %v8133 = vshll.u32 %v8100, 16
  %v8135 = vsel %vm7626, %v8131, %v8133
  %v8137 = vshrl.u32 %v8107, 16
  %v8139 = vrot.slane %v8137, 7
  %v8140 = vrot.slane %v8139, 1
  %v8142 = vshll.u32 %v8108, 16
  %v8144 = vsel %vm7626, %v8140, %v8142
  %v8145 = vld [vmem:[%s8064] sm:$0x3]
  %v8146 = vld [vmem:[%s8064 + $0x2] sm:$0x3]
  %v8147 = vld [vmem:[%s8064 + $0x18] sm:$0x3]
  %v8148 = vld [vmem:[%s8064 + $0x1a] sm:$0x3]
  %v8154 = vunpack.c.l.s4 1966171168
  %v8155 = vunpack.c.0.s8 %v8154
  %v8156 = vlaneseq
  %v8157 = vshrl.u32 %v8156, 7
  %v8158 = vsub.s32 %v8155, %v8157
  %v8159 = vrot.slane %v8145, %v8158
  %v8160 = vcombine.high %v8159, %v8159
  %v8162 = vunpack.c.l.s4 1966171168
  %v8163 = vunpack.c.0.s8 %v8162
  %v8164 = vlaneseq
  %v8165 = vshrl.u32 %v8164, 7
  %v8166 = vsub.s32 %v8163, %v8165
  %v8167 = vrot.slane %v8146, %v8166
  %v8168 = vcombine.high %v8167, %v8167
  %v8170 = vunpack.c.l.s4 1966171168
  %v8171 = vunpack.c.0.s8 %v8170
  %v8172 = vlaneseq
  %v8173 = vshrl.u32 %v8172, 7
  %v8174 = vsub.s32 %v8171, %v8173
  %v8175 = vrot.slane %v8147, %v8174
  %v8176 = vcombine.high %v8175, %v8175
  %v8178 = vunpack.c.l.s4 1966171168
  %v8179 = vunpack.c.0.s8 %v8178
  %v8180 = vlaneseq
  %v8181 = vshrl.u32 %v8180, 7
  %v8182 = vsub.s32 %v8179, %v8181
  %v8183 = vrot.slane %v8148, %v8182
  %v8184 = vcombine.high %v8183, %v8183
  %v8186 = vshrl.u32 %v8159, 16
  %v8188 = vrot.slane %v8186, 7
  %v8189 = vrot.slane %v8188, 1
  %v8191 = vshll.u32 %v8160, 16
  %v8193 = vsel %vm7626, %v8189, %v8191
  %v8195 = vshrl.u32 %v8167, 16
  %v8197 = vrot.slane %v8195, 7
  %v8198 = vrot.slane %v8197, 1
  %v8200 = vshll.u32 %v8168, 16
  %v8202 = vsel %vm7626, %v8198, %v8200
  %v8204 = vshrl.u32 %v8175, 16
  %v8206 = vrot.slane %v8204, 7
  %v8207 = vrot.slane %v8206, 1
  %v8209 = vshll.u32 %v8176, 16
  %v8211 = vsel %vm7626, %v8207, %v8209
  %v8213 = vshrl.u32 %v8183, 16
  %v8215 = vrot.slane %v8213, 7
  %v8216 = vrot.slane %v8215, 1
  %v8218 = vshll.u32 %v8184, 16
  %v8220 = vsel %vm7626, %v8216, %v8218
  %v8225 = vcombine.low %v7565, %v7566
  %v8226 = vcombine.low %v7567, %v7568
  %v8228 = vunpack.c.l.s4 1966171168
  %v8229 = vunpack.c.0.s8 %v8228
  %v8230 = vlaneseq
  %v8231 = vshrl.u32 %v8230, 7
  %v8232 = vsub.s32 %v8229, %v8231
  %v8233 = vrot.slane %v8225, %v8232
  %v8235 = vunpack.c.l.s4 1966171168
  %v8236 = vunpack.c.0.s8 %v8235
  %v8237 = vlaneseq
  %v8238 = vshrl.u32 %v8237, 7
  %v8239 = vsub.s32 %v8236, %v8238
  %v8240 = vrot.slane %v8226, %v8239
  %v8241 = vcombine.low %v8233, %v8240
  %v8243 = vunpack.c.l.s4 1966171168
  %v8244 = vunpack.c.0.s8 %v8243
  %v8245 = vlaneseq
  %v8246 = vshrl.u32 %v8245, 7
  %v8247 = vsub.s32 %v8244, %v8246
  %v8248 = vrot.slane %v8241, %v8247
  %v8253 = vcombine.low %v7569, %v7570
  %v8254 = vcombine.low %v7571, %v7572
  %v8256 = vunpack.c.l.s4 1966171168
  %v8257 = vunpack.c.0.s8 %v8256
  %v8258 = vlaneseq
  %v8259 = vshrl.u32 %v8258, 7
  %v8260 = vsub.s32 %v8257, %v8259
  %v8261 = vrot.slane %v8253, %v8260
  %v8263 = vunpack.c.l.s4 1966171168
  %v8264 = vunpack.c.0.s8 %v8263
  %v8265 = vlaneseq
  %v8266 = vshrl.u32 %v8265, 7
  %v8267 = vsub.s32 %v8264, %v8266
  %v8268 = vrot.slane %v8254, %v8267
  %v8269 = vcombine.low %v8261, %v8268
  %v8271 = vunpack.c.l.s4 1966171168
  %v8272 = vunpack.c.0.s8 %v8271
  %v8273 = vlaneseq
  %v8274 = vshrl.u32 %v8273, 7
  %v8275 = vsub.s32 %v8272, %v8274
  %v8276 = vrot.slane %v8269, %v8275
  %8277 = vrot.lane.b32.xlu0 %v8276, 16
  %v8278 = vpop.permute.xlu0 %8277
  %v8279 = vcombine.low %v7635, %v7644
  %v8280 = vcombine.low %v7653, %v7662
  %v8282 = vunpack.c.l.s4 1966171168
  %v8283 = vunpack.c.0.s8 %v8282
  %v8284 = vlaneseq
  %v8285 = vshrl.u32 %v8284, 7
  %v8286 = vsub.s32 %v8283, %v8285
  %v8287 = vrot.slane %v8279, %v8286
  %v8289 = vunpack.c.l.s4 1966171168
  %v8290 = vunpack.c.0.s8 %v8289
  %v8291 = vlaneseq
  %v8292 = vshrl.u32 %v8291, 7
  %v8293 = vsub.s32 %v8290, %v8292
  %v8294 = vrot.slane %v8280, %v8293
  %v8295 = vcombine.low %v8287, %v8294
  %v8297 = vunpack.c.l.s4 1966171168
  %v8298 = vunpack.c.0.s8 %v8297
  %v8299 = vlaneseq
  %v8300 = vshrl.u32 %v8299, 7
  %v8301 = vsub.s32 %v8298, %v8300
  %v8302 = vrot.slane %v8295, %v8301
  %8303 = vrot.lane.b32.xlu0 %v8302, 32
  %v8304 = vpop.permute.xlu0 %8303
  %v8305 = vcombine.low %v7711, %v7720
  %v8306 = vcombine.low %v7729, %v7738
  %v8308 = vunpack.c.l.s4 1966171168
  %v8309 = vunpack.c.0.s8 %v8308
  %v8310 = vlaneseq
  %v8311 = vshrl.u32 %v8310, 7
  %v8312 = vsub.s32 %v8309, %v8311
  %v8313 = vrot.slane %v8305, %v8312
  %v8315 = vunpack.c.l.s4 1966171168
  %v8316 = vunpack.c.0.s8 %v8315
  %v8317 = vlaneseq
  %v8318 = vshrl.u32 %v8317, 7
  %v8319 = vsub.s32 %v8316, %v8318
  %v8320 = vrot.slane %v8306, %v8319
  %v8321 = vcombine.low %v8313, %v8320
  %v8323 = vunpack.c.l.s4 1966171168
  %v8324 = vunpack.c.0.s8 %v8323
  %v8325 = vlaneseq
  %v8326 = vshrl.u32 %v8325, 7
  %v8327 = vsub.s32 %v8324, %v8326
  %v8328 = vrot.slane %v8321, %v8327
  %8329 = vrot.lane.b32.xlu0 %v8328, 48
  %v8330 = vpop.permute.xlu0 %8329
  %v8335 = vcombine.low %v7739, %v7740
  %v8336 = vcombine.low %v7741, %v7742
  %v8338 = vunpack.c.l.s4 1966171168
  %v8339 = vunpack.c.0.s8 %v8338
  %v8340 = vlaneseq
  %v8341 = vshrl.u32 %v8340, 7
  %v8342 = vsub.s32 %v8339, %v8341
  %v8343 = vrot.slane %v8335, %v8342
  %v8345 = vunpack.c.l.s4 1966171168
  %v8346 = vunpack.c.0.s8 %v8345
  %v8347 = vlaneseq
  %v8348 = vshrl.u32 %v8347, 7
  %v8349 = vsub.s32 %v8346, %v8348
  %v8350 = vrot.slane %v8336, %v8349
  %v8351 = vcombine.low %v8343, %v8350
  %v8353 = vunpack.c.l.s4 1966171168
  %v8354 = vunpack.c.0.s8 %v8353
  %v8355 = vlaneseq
  %v8356 = vshrl.u32 %v8355, 7
  %v8357 = vsub.s32 %v8354, %v8356
  %v8358 = vrot.slane %v8351, %v8357
  %8359 = vrot.lane.b32.xlu0 %v8358, 64
  %v8360 = vpop.permute.xlu0 %8359
  %v8365 = vcombine.low %v7743, %v7744
  %v8366 = vcombine.low %v7745, %v7746
  %v8368 = vunpack.c.l.s4 1966171168
  %v8369 = vunpack.c.0.s8 %v8368
  %v8370 = vlaneseq
  %v8371 = vshrl.u32 %v8370, 7
  %v8372 = vsub.s32 %v8369, %v8371
  %v8373 = vrot.slane %v8365, %v8372
  %v8375 = vunpack.c.l.s4 1966171168
  %v8376 = vunpack.c.0.s8 %v8375
  %v8377 = vlaneseq
  %v8378 = vshrl.u32 %v8377, 7
  %v8379 = vsub.s32 %v8376, %v8378
  %v8380 = vrot.slane %v8366, %v8379
  %v8381 = vcombine.low %v8373, %v8380
  %v8383 = vunpack.c.l.s4 1966171168
  %v8384 = vunpack.c.0.s8 %v8383
  %v8385 = vlaneseq
  %v8386 = vshrl.u32 %v8385, 7
  %v8387 = vsub.s32 %v8384, %v8386
  %v8388 = vrot.slane %v8381, %v8387
  %8389 = vrot.lane.b32.xlu0 %v8388, 80
  %v8390 = vpop.permute.xlu0 %8389
  %v8391 = vcombine.low %v7795, %v7804
  %v8392 = vcombine.low %v7813, %v7822
  %v8394 = vunpack.c.l.s4 1966171168
  %v8395 = vunpack.c.0.s8 %v8394
  %v8396 = vlaneseq
  %v8397 = vshrl.u32 %v8396, 7
  %v8398 = vsub.s32 %v8395, %v8397
  %v8399 = vrot.slane %v8391, %v8398
  %v8401 = vunpack.c.l.s4 1966171168
  %v8402 = vunpack.c.0.s8 %v8401
  %v8403 = vlaneseq
  %v8404 = vshrl.u32 %v8403, 7
  %v8405 = vsub.s32 %v8402, %v8404
  %v8406 = vrot.slane %v8392, %v8405
  %v8407 = vcombine.low %v8399, %v8406
  %v8409 = vunpack.c.l.s4 1966171168
  %v8410 = vunpack.c.0.s8 %v8409
  %v8411 = vlaneseq
  %v8412 = vshrl.u32 %v8411, 7
  %v8413 = vsub.s32 %v8410, %v8412
  %v8414 = vrot.slane %v8407, %v8413
  %8415 = vrot.lane.b32.xlu0 %v8414, 96
  %v8416 = vpop.permute.xlu0 %8415
  %v8417 = vcombine.low %v7871, %v7880
  %v8418 = vcombine.low %v7889, %v7898
  %v8420 = vunpack.c.l.s4 1966171168
  %v8421 = vunpack.c.0.s8 %v8420
  %v8422 = vlaneseq
  %v8423 = vshrl.u32 %v8422, 7
  %v8424 = vsub.s32 %v8421, %v8423
  %v8425 = vrot.slane %v8417, %v8424
  %v8427 = vunpack.c.l.s4 1966171168
  %v8428 = vunpack.c.0.s8 %v8427
  %v8429 = vlaneseq
  %v8430 = vshrl.u32 %v8429, 7
  %v8431 = vsub.s32 %v8428, %v8430
  %v8432 = vrot.slane %v8418, %v8431
  %v8433 = vcombine.low %v8425, %v8432
  %v8435 = vunpack.c.l.s4 1966171168
  %v8436 = vunpack.c.0.s8 %v8435
  %v8437 = vlaneseq
  %v8438 = vshrl.u32 %v8437, 7
  %v8439 = vsub.s32 %v8436, %v8438
  %v8440 = vrot.slane %v8433, %v8439
  %8441 = vrot.lane.b32.xlu0 %v8440, 112
  %v8442 = vpop.permute.xlu0 %8441
  %v8447 = vcombine.low %v7899, %v7900
  %v8448 = vcombine.low %v7901, %v7902
  %v8450 = vunpack.c.l.s4 1966171168
  %v8451 = vunpack.c.0.s8 %v8450
  %v8452 = vlaneseq
  %v8453 = vshrl.u32 %v8452, 7
  %v8454 = vsub.s32 %v8451, %v8453
  %v8455 = vrot.slane %v8447, %v8454
  %v8457 = vunpack.c.l.s4 1966171168
  %v8458 = vunpack.c.0.s8 %v8457
  %v8459 = vlaneseq
  %v8460 = vshrl.u32 %v8459, 7
  %v8461 = vsub.s32 %v8458, %v8460
  %v8462 = vrot.slane %v8448, %v8461
  %v8463 = vcombine.low %v8455, %v8462
  %v8465 = vunpack.c.l.s4 1966171168
  %v8466 = vunpack.c.0.s8 %v8465
  %v8467 = vlaneseq
  %v8468 = vshrl.u32 %v8467, 7
  %v8469 = vsub.s32 %v8466, %v8468
  %v8470 = vrot.slane %v8463, %v8469
  %v8475 = vcombine.low %v7903, %v7904
  %v8476 = vcombine.low %v7905, %v7906
  %v8478 = vunpack.c.l.s4 1966171168
  %v8479 = vunpack.c.0.s8 %v8478
  %v8480 = vlaneseq
  %v8481 = vshrl.u32 %v8480, 7
  %v8482 = vsub.s32 %v8479, %v8481
  %v8483 = vrot.slane %v8475, %v8482
  %v8485 = vunpack.c.l.s4 1966171168
  %v8486 = vunpack.c.0.s8 %v8485
  %v8487 = vlaneseq
  %v8488 = vshrl.u32 %v8487, 7
  %v8489 = vsub.s32 %v8486, %v8488
  %v8490 = vrot.slane %v8476, %v8489
  %v8491 = vcombine.low %v8483, %v8490
  %v8493 = vunpack.c.l.s4 1966171168
  %v8494 = vunpack.c.0.s8 %v8493
  %v8495 = vlaneseq
  %v8496 = vshrl.u32 %v8495, 7
  %v8497 = vsub.s32 %v8494, %v8496
  %v8498 = vrot.slane %v8491, %v8497
  %8499 = vrot.lane.b32.xlu0 %v8498, 16
  %v8500 = vpop.permute.xlu0 %8499
  %v8501 = vcombine.low %v7955, %v7964
  %v8502 = vcombine.low %v7973, %v7982
  %v8504 = vunpack.c.l.s4 1966171168
  %v8505 = vunpack.c.0.s8 %v8504
  %v8506 = vlaneseq
  %v8507 = vshrl.u32 %v8506, 7
  %v8508 = vsub.s32 %v8505, %v8507
  %v8509 = vrot.slane %v8501, %v8508
  %v8511 = vunpack.c.l.s4 1966171168
  %v8512 = vunpack.c.0.s8 %v8511
  %v8513 = vlaneseq
  %v8514 = vshrl.u32 %v8513, 7
  %v8515 = vsub.s32 %v8512, %v8514
  %v8516 = vrot.slane %v8502, %v8515
  %v8517 = vcombine.low %v8509, %v8516
  %v8519 = vunpack.c.l.s4 1966171168
  %v8520 = vunpack.c.0.s8 %v8519
  %v8521 = vlaneseq
  %v8522 = vshrl.u32 %v8521, 7
  %v8523 = vsub.s32 %v8520, %v8522
  %v8524 = vrot.slane %v8517, %v8523
  %8525 = vrot.lane.b32.xlu0 %v8524, 32
  %v8526 = vpop.permute.xlu0 %8525
  %v8527 = vcombine.low %v8031, %v8040
  %v8528 = vcombine.low %v8049, %v8058
  %v8530 = vunpack.c.l.s4 1966171168
  %v8531 = vunpack.c.0.s8 %v8530
  %v8532 = vlaneseq
  %v8533 = vshrl.u32 %v8532, 7
  %v8534 = vsub.s32 %v8531, %v8533
  %v8535 = vrot.slane %v8527, %v8534
  %v8537 = vunpack.c.l.s4 1966171168
  %v8538 = vunpack.c.0.s8 %v8537
  %v8539 = vlaneseq
  %v8540 = vshrl.u32 %v8539, 7
  %v8541 = vsub.s32 %v8538, %v8540
  %v8542 = vrot.slane %v8528, %v8541
  %v8543 = vcombine.low %v8535, %v8542
  %v8545 = vunpack.c.l.s4 1966171168
  %v8546 = vunpack.c.0.s8 %v8545
  %v8547 = vlaneseq
  %v8548 = vshrl.u32 %v8547, 7
  %v8549 = vsub.s32 %v8546, %v8548
  %v8550 = vrot.slane %v8543, %v8549
  %8551 = vrot.lane.b32.xlu0 %v8550, 48
  %v8552 = vpop.permute.xlu0 %8551
  %v8557 = vcombine.low %v8060, %v8061
  %v8558 = vcombine.low %v8062, %v8063
  %v8560 = vunpack.c.l.s4 1966171168
  %v8561 = vunpack.c.0.s8 %v8560
  %v8562 = vlaneseq
  %v8563 = vshrl.u32 %v8562, 7
  %v8564 = vsub.s32 %v8561, %v8563
  %v8565 = vrot.slane %v8557, %v8564
  %v8567 = vunpack.c.l.s4 1966171168
  %v8568 = vunpack.c.0.s8 %v8567
  %v8569 = vlaneseq
  %v8570 = vshrl.u32 %v8569, 7
  %v8571 = vsub.s32 %v8568, %v8570
  %v8572 = vrot.slane %v8558, %v8571
  %v8573 = vcombine.low %v8565, %v8572
  %v8575 = vunpack.c.l.s4 1966171168
  %v8576 = vunpack.c.0.s8 %v8575
  %v8577 = vlaneseq
  %v8578 = vshrl.u32 %v8577, 7
  %v8579 = vsub.s32 %v8576, %v8578
  %v8580 = vrot.slane %v8573, %v8579
  %8581 = vrot.lane.b32.xlu0 %v8580, 64
  %v8582 = vpop.permute.xlu0 %8581
  %v8587 = vcombine.low %v8065, %v8066
  %v8588 = vcombine.low %v8067, %v8068
  %v8590 = vunpack.c.l.s4 1966171168
  %v8591 = vunpack.c.0.s8 %v8590
  %v8592 = vlaneseq
  %v8593 = vshrl.u32 %v8592, 7
  %v8594 = vsub.s32 %v8591, %v8593
  %v8595 = vrot.slane %v8587, %v8594
  %v8597 = vunpack.c.l.s4 1966171168
  %v8598 = vunpack.c.0.s8 %v8597
  %v8599 = vlaneseq
  %v8600 = vshrl.u32 %v8599, 7
  %v8601 = vsub.s32 %v8598, %v8600
  %v8602 = vrot.slane %v8588, %v8601
  %v8603 = vcombine.low %v8595, %v8602
  %v8605 = vunpack.c.l.s4 1966171168
  %v8606 = vunpack.c.0.s8 %v8605
  %v8607 = vlaneseq
  %v8608 = vshrl.u32 %v8607, 7
  %v8609 = vsub.s32 %v8606, %v8608
  %v8610 = vrot.slane %v8603, %v8609
  %8611 = vrot.lane.b32.xlu0 %v8610, 80
  %v8612 = vpop.permute.xlu0 %8611
  %v8613 = vcombine.low %v8117, %v8126
  %v8614 = vcombine.low %v8135, %v8144
  %v8616 = vunpack.c.l.s4 1966171168
  %v8617 = vunpack.c.0.s8 %v8616
  %v8618 = vlaneseq
  %v8619 = vshrl.u32 %v8618, 7
  %v8620 = vsub.s32 %v8617, %v8619
  %v8621 = vrot.slane %v8613, %v8620
  %v8623 = vunpack.c.l.s4 1966171168
  %v8624 = vunpack.c.0.s8 %v8623
  %v8625 = vlaneseq
  %v8626 = vshrl.u32 %v8625, 7
  %v8627 = vsub.s32 %v8624, %v8626
  %v8628 = vrot.slane %v8614, %v8627
  %v8629 = vcombine.low %v8621, %v8628
  %v8631 = vunpack.c.l.s4 1966171168
  %v8632 = vunpack.c.0.s8 %v8631
  %v8633 = vlaneseq
  %v8634 = vshrl.u32 %v8633, 7
  %v8635 = vsub.s32 %v8632, %v8634
  %v8636 = vrot.slane %v8629, %v8635
  %8637 = vrot.lane.b32.xlu0 %v8636, 96
  %v8638 = vpop.permute.xlu0 %8637
  %v8639 = vcombine.low %v8193, %v8202
  %v8640 = vcombine.low %v8211, %v8220
  %v8642 = vunpack.c.l.s4 1966171168
  %v8643 = vunpack.c.0.s8 %v8642
  %v8644 = vlaneseq
  %v8645 = vshrl.u32 %v8644, 7
  %v8646 = vsub.s32 %v8643, %v8645
  %v8647 = vrot.slane %v8639, %v8646
  %v8649 = vunpack.c.l.s4 1966171168
  %v8650 = vunpack.c.0.s8 %v8649
  %v8651 = vlaneseq
  %v8652 = vshrl.u32 %v8651, 7
  %v8653 = vsub.s32 %v8650, %v8652
  %v8654 = vrot.slane %v8640, %v8653
  %v8655 = vcombine.low %v8647, %v8654
  %v8657 = vunpack.c.l.s4 1966171168
  %v8658 = vunpack.c.0.s8 %v8657
  %v8659 = vlaneseq
  %v8660 = vshrl.u32 %v8659, 7
  %v8661 = vsub.s32 %v8658, %v8660
  %v8662 = vrot.slane %v8655, %v8661
  %8663 = vrot.lane.b32.xlu0 %v8662, 112
  %v8664 = vpop.permute.xlu0 %8663
  %v8667 = vsel %vm2898, %v8248, %v8278
  %v8669 = vsel %vm2966, %v8667, %v8304
  %v8671 = vsel %vm3034, %v8669, %v8330
  %v8673 = vsel %vm3141, %v8671, %v8360
  %v8675 = vsel %vm6729, %v8673, %v8390
  %v8677 = vsel %vm6739, %v8675, %v8416
  %v8679 = vsel %vm6749, %v8677, %v8442
  %v8683 = vsel %vm2898, %v8470, %v8500
  %v8685 = vsel %vm2966, %v8683, %v8526
  %v8687 = vsel %vm3034, %v8685, %v8552
  %v8689 = vsel %vm3141, %v8687, %v8582
  %v8691 = vsel %vm6729, %v8689, %v8612
  %v8693 = vsel %vm6739, %v8691, %v8638
  %v8695 = vsel %vm6749, %v8693, %v8664
  %v8697 = vld [vmem:[%s5] sm:$0xf]
  %v8698 = vld [vmem:[%s5 + $0x4] sm:$0xf]
  %v8699 = vld [vmem:[%s5 + $0x8] sm:$0xf]
  %v8700 = vld [vmem:[%s5 + $0xc] sm:$0xf]
  %v8701 = vld [vmem:[%s5 + $0x10] sm:$0xf]
  %v8702 = vld [vmem:[%s5 + $0x14] sm:$0xf]
  %v8703 = vld [vmem:[%s5 + $0x18] sm:$0xf]
  %v8704 = vld [vmem:[%s5 + $0x1c] sm:$0xf]
  %v8705 = vld [vmem:[%s5 + $0x20] sm:$0xf]
  %v8706 = vld [vmem:[%s5 + $0x24] sm:$0xf]
  %v8707 = vld [vmem:[%s5 + $0x28] sm:$0xf]
  %v8708 = vld [vmem:[%s5 + $0x2c] sm:$0xf]
  %v8709 = vld [vmem:[%s5 + $0x30] sm:$0xf]
  %v8710 = vld [vmem:[%s5 + $0x34] sm:$0xf]
  %v8711 = vld [vmem:[%s5 + $0x38] sm:$0xf]
  %v8712 = vld [vmem:[%s5 + $0x3c] sm:$0xf]
  %v8713 = vld [vmem:[%s5 + $0x40] sm:$0xf]
  %v8714 = vld [vmem:[%s5 + $0x44] sm:$0xf]
  %v8715 = vld [vmem:[%s5 + $0x48] sm:$0xf]
  %v8716 = vld [vmem:[%s5 + $0x4c] sm:$0xf]
  %v8717 = vld [vmem:[%s5 + $0x50] sm:$0xf]
  %v8718 = vld [vmem:[%s5 + $0x54] sm:$0xf]
  %v8719 = vld [vmem:[%s5 + $0x58] sm:$0xf]
  %v8720 = vld [vmem:[%s5 + $0x5c] sm:$0xf]
  %v8721 = vld [vmem:[%s5 + $0x60] sm:$0xf]
  %v8722 = vld [vmem:[%s5 + $0x64] sm:$0xf]
  %v8723 = vld [vmem:[%s5 + $0x68] sm:$0xf]
  %v8724 = vld [vmem:[%s5 + $0x6c] sm:$0xf]
  %v8725 = vld [vmem:[%s5 + $0x70] sm:$0xf]
  %v8726 = vld [vmem:[%s5 + $0x74] sm:$0xf]
  %v8727 = vld [vmem:[%s5 + $0x78] sm:$0xf]
  %v8728 = vld [vmem:[%s5 + $0x7c] sm:$0xf]
  %v8729 = vld [vmem:[#allocation4] sm:$0x1]
  %v8731 = vlaneseq
  %v8732 = vshrl.u32 %v8731, 7
  %v8733 = vsub.s32 0, %v8732
  %v8734 = vrot.slane %v8729, %v8733
  %v8768 = vunpack.c.l.b16 %v8697
  %v8769 = vunpack.c.l.b16 %v8698
  %v8770 = vunpack.c.l.b16 %v8699
  %v8771 = vunpack.c.l.b16 %v8700
  %v8772 = vunpack.c.l.b16 %v8701
  %v8773 = vunpack.c.l.b16 %v8702
  %v8774 = vunpack.c.l.b16 %v8703
  %v8775 = vunpack.c.l.b16 %v8704
  %v8776 = vunpack.c.l.b16 %v8705
  %v8777 = vunpack.c.l.b16 %v8706
  %v8778 = vunpack.c.l.b16 %v8707
  %v8779 = vunpack.c.l.b16 %v8708
  %v8780 = vunpack.c.l.b16 %v8709
  %v8781 = vunpack.c.l.b16 %v8710
  %v8782 = vunpack.c.l.b16 %v8711
  %v8783 = vunpack.c.l.b16 %v8712
  %v8784 = vunpack.c.l.b16 %v8713
  %v8785 = vunpack.c.l.b16 %v8714
  %v8786 = vunpack.c.l.b16 %v8715
  %v8787 = vunpack.c.l.b16 %v8716
  %v8788 = vunpack.c.l.b16 %v8717
  %v8789 = vunpack.c.l.b16 %v8718
  %v8790 = vunpack.c.l.b16 %v8719
  %v8791 = vunpack.c.l.b16 %v8720
  %v8792 = vunpack.c.l.b16 %v8721
  %v8793 = vunpack.c.l.b16 %v8722
  %v8794 = vunpack.c.l.b16 %v8723
  %v8795 = vunpack.c.l.b16 %v8724
  %v8796 = vunpack.c.l.b16 %v8725
  %v8797 = vunpack.c.l.b16 %v8726
  %v8798 = vunpack.c.l.b16 %v8727
  %v8799 = vunpack.c.l.b16 %v8728
  %v8800 = vpack.c.b16 %v8769, %v8768
  %v8801 = vpack.c.b16 %v8771, %v8770
  %v8802 = vpack.c.b16 %v8773, %v8772
  %v8803 = vpack.c.b16 %v8775, %v8774
  %v8804 = vpack.c.b16 %v8777, %v8776
  %v8805 = vpack.c.b16 %v8779, %v8778
  %v8806 = vpack.c.b16 %v8781, %v8780
  %v8807 = vpack.c.b16 %v8783, %v8782
  %v8808 = vpack.c.b16 %v8785, %v8784
  %v8809 = vpack.c.b16 %v8787, %v8786
  %v8810 = vpack.c.b16 %v8789, %v8788
  %v8811 = vpack.c.b16 %v8791, %v8790
  %v8812 = vpack.c.b16 %v8793, %v8792
  %v8813 = vpack.c.b16 %v8795, %v8794
  %v8814 = vpack.c.b16 %v8797, %v8796
  %v8815 = vpack.c.b16 %v8799, %v8798
  %8832 = vmatprep.subr.bf16.mxu0 0
  %8833 = vmatpush1.bf16.msra.mxu0 %v8807
  %8834 = vmatprep.subr.bf16.mxu0 0
  %8835 = vmatpush1.bf16.msra.mxu0 %v8806
  %8836 = vmatprep.subr.bf16.mxu0 0
  %8837 = vmatpush1.bf16.msra.mxu0 %v8805
  %8838 = vmatprep.subr.bf16.mxu0 0
  %8839 = vmatpush1.bf16.msra.mxu0 %v8804
  %8840 = vmatprep.subr.bf16.mxu0 0
  %8841 = vmatpush1.bf16.msra.mxu0 %v8803
  %8842 = vmatprep.subr.bf16.mxu0 0
  %8843 = vmatpush1.bf16.msra.mxu0 %v8802
  %8844 = vmatprep.subr.bf16.mxu0 0
  %8845 = vmatpush1.bf16.msra.mxu0 %v8801
  %8846 = vmatprep.subr.bf16.mxu0 0
  %8847 = vmatpush1.bf16.msra.mxu0 %v8800
  %8848 = vmatprep.subr.bf16.mxu0 0
  %8849 = vmatpush2.bf16.msra.mxu0 %v8815
  %8850 = vmatprep.subr.bf16.mxu0 0
  %8851 = vmatpush2.bf16.msra.mxu0 %v8814
  %8852 = vmatprep.subr.bf16.mxu0 0
  %8853 = vmatpush2.bf16.msra.mxu0 %v8813
  %8854 = vmatprep.subr.bf16.mxu0 0
  %8855 = vmatpush2.bf16.msra.mxu0 %v8812
  %8856 = vmatprep.subr.bf16.mxu0 0
  %8857 = vmatpush2.bf16.msra.mxu0 %v8811
  %8858 = vmatprep.subr.bf16.mxu0 0
  %8859 = vmatpush2.bf16.msra.mxu0 %v8810
  %8860 = vmatprep.subr.bf16.mxu0 0
  %8861 = vmatpush2.bf16.msra.mxu0 %v8809
  %8862 = vmatprep.subr.bf16.mxu0 0
  %8863 = vmatpush2.bf16.msra.mxu0 %v8808
  %8864 = vmatprep.mubr.bf16.mxu0 %v8695
  %8865 = vmatmul.mubr.bf16.gmra.mxu0 %v8679
  %v8866 = vpop.f32.mrf.mxu0
  %v8867 = vadd.f32 %v8734, %v8866
  %v8868 = vpop.f32.mrf.mxu0
  %v8869 = vpop.f32.mrf.mxu0
  %v8870 = vpop.f32.mrf.mxu0
  %8871 = vdwg.mxu0
  %8873 = vset.pattern.permute.xlu0 0
  %8874 = vperm.xlu0 %8873, %v8867
  %v8875 = vpop.permute.xlu0 %8874
  %v8876 = vlaneseq
  %v8877 = vand.u32 %v8876, 127
  %v8878 = vlaneseq
  %v8879 = vshrl.u32 %v8878, 7
  %v8880 = vsub.s32 %v8877, %v8879
  %v8881 = vrot.slane %v8875, %v8880
  %vm8883 = vcmask 57344
  %8884 = vst.msk [vmem:[%s7] sm:$0x1] %vm8883, %v8881
  // Predicated region
  $region30: #{light_light_fc_discriminator.1} parent=0 // pred_check
    _
  $region31: #{light_light_fc_discriminator.1} parent=0 // pred_check_branch
    %8886 = sbr.rel (0) target = $region33
  $region32: #{light_light_fc_discriminator.1} parent=0 // pred_region
    _
  $region33: #{light_light_fc_discriminator.1} parent=0 // pred_fallthru
    _
  // Predicated region
  $region34: #{light_light_fc_discriminator.1} parent=0 // pred_check
    _
  $region35: #{light_light_fc_discriminator.1} parent=0 // pred_check_branch
    %8888 = sbr.rel (0) target = $region37
  $region36: #{light_light_fc_discriminator.1} parent=0 // pred_region
    _
  $region37: #{light_light_fc_discriminator.1} parent=0 // pred_fallthru
    _

</llo_original>
